<compile_context>
chip_gen: v7x
topology: tpu7x:2x2x1
jax: 0.10.0
libtpu: 0.0.40
codegen_flags: <defaults>
</compile_context>

<pallas_src>
import functools

import jax
import jax.numpy as jnp
from jax.experimental import pallas as pl
from jax.experimental.pallas import tpu as pltpu


_PAD = 8           # sublane-aligned junk rows at each end of the y1 scratch
_NEG_SLOPE = 0.01  # PyTorch LeakyReLU default


def _conv_block_kernel(x_ref, w1_ref, w2_ref, sb_ref, out_ref, y1_ref, *, TH, W):
    """Fused [conv3x3(reflect) + BN + LeakyReLU] x 2 for one (batch, row-tile).

    x_ref  : ((TH+4)*(W+2) + 2, Cin) bf16  raw rows [r0-1, r0+TH+2] of the
             reflect-padded input, flattened over (row, padded-col), with one
             junk element at each end so every 3x3 tap is an in-bounds static
             contiguous slice (in-kernel im2col).
    w1_ref : (9, Cin, C) bf16  dense per-tap conv1 weights (tap = dy*3+dx).
    w2_ref : (9, C,   C) bf16  dense per-tap conv2 weights.
    sb_ref : (4, C) f32        rows = [scale1, bias1, scale2, bias2] (folded BN).
    out_ref: (TH*(W+2), C) bf16  block output, flattened over (row, padded-col);
             the two padded columns per row are garbage and dropped by the wrapper.
    y1_ref : ((TH+2)*(W+2) + 2*_PAD, C) bf16 scratch holding the intermediate
             activation (incl. its reflect halo rows/cols) -> never hits HBM.
    """
    WP = W + 2
    Q1 = (TH + 2) * WP          # conv1 output rows (TH rows + 1 halo row each side)
    Q2 = TH * WP                # conv2 / block output rows
    C = y1_ref.shape[1]
    t = pl.program_id(1)
    n_t = pl.num_programs(1)

    def conv9(src_ref, w_ref, base, rows):
        # 3x3 conv as 9 accumulated dense (rows, Cin) x (Cin, Cout) MXU matmuls
        # (f32 accumulation).  Each tap is a static offset slice of the
        # flattened spatial-major slab -> no 9x-wide im2col temporary.
        acc = None
        for dy in range(3):
            for dx in range(3):
                start = base + dy * WP + dx
                lhs = src_ref[start:start + rows, :]
                p = jnp.dot(lhs, w_ref[dy * 3 + dx],
                            preferred_element_type=jnp.float32)
                acc = p if acc is None else acc + p
        return acc

    # ---------------- conv1 + BN1 + LeakyReLU (f32 epilogue) -----------------
    y1 = conv9(x_ref, w1_ref, 0, Q1)                       # (Q1, C) f32
    y1 = y1 * sb_ref[0:1, :] + sb_ref[1:2, :]
    y1 = jnp.where(y1 > 0, y1, _NEG_SLOPE * y1)
    # Dropout2d(0.3): identity in eval mode.

    # Reflect-fix the two padded columns of the intermediate activation:
    # col 0 <- col 2, col W+1 <- col W-1  (flat positions q+2 / q-2).
    col = jax.lax.broadcasted_iota(jnp.int32, (Q1, 1), 0) % WP
    y_fwd = jnp.concatenate([y1[2:], y1[:2]], axis=0)            # value at q+2
    y_bwd = jnp.concatenate([y1[Q1 - 2:], y1[:Q1 - 2]], axis=0)  # value at q-2
    y1 = jnp.where(col == 0, y_fwd, y1)
    y1 = jnp.where(col == W + 1, y_bwd, y1)

    # Stash as bf16 (second matmul operand dtype); zero the junk pad rows.
    y1_ref[0:_PAD, :] = jnp.zeros((_PAD, C), y1_ref.dtype)
    y1_ref[_PAD + Q1:_PAD + Q1 + _PAD, :] = jnp.zeros((_PAD, C), y1_ref.dtype)
    y1_ref[_PAD:_PAD + Q1, :] = y1.astype(y1_ref.dtype)

    # Reflect-fix the intermediate's row halo at the image top/bottom:
    # y1[-1] := y1[1]  (first tile),   y1[H] := y1[H-2]  (last tile).
    @pl.when(t == 0)
    def _():
        y1_ref[_PAD:_PAD + WP, :] = y1_ref[_PAD + 2 * WP:_PAD + 3 * WP, :]

    @pl.when(t == n_t - 1)
    def _():
        y1_ref[_PAD + (TH + 1) * WP:_PAD + (TH + 2) * WP, :] = (
            y1_ref[_PAD + (TH - 1) * WP:_PAD + TH * WP, :])

    # ---------------- conv2 + BN2 + LeakyReLU + bf16 store --------------------
    y2 = conv9(y1_ref, w2_ref, _PAD - 1, Q2)               # (Q2, C) f32
    y2 = y2 * sb_ref[2:3, :] + sb_ref[3:4, :]
    y2 = jnp.where(y2 > 0, y2, _NEG_SLOPE * y2)
    out_ref[...] = y2.astype(out_ref.dtype)


def _fold_bn(gamma, beta, mean, var, eps=1e-5):
    scale = gamma / jnp.sqrt(var + eps)
    bias = beta - mean * scale
    return scale, bias


def pack_params(params):
    """One-time packing of module parameters into kernel operands.

    Hoisted out of the per-call forward so weights / folded BN are not
    re-packed (and re-written to HBM) on every step.
    """
    w1 = params["w1"]                       # (3, 3, Cin, C) HWIO
    w2 = params["w2"]                       # (3, 3, C,   C)
    cin, c = w1.shape[2], w1.shape[3]
    w1p = w1.reshape(9, cin, c).astype(jnp.bfloat16)   # tap = dy*3+dx
    w2p = w2.reshape(9, c, c).astype(jnp.bfloat16)
    s1, b1 = _fold_bn(**params["bn1"])
    s2, b2 = _fold_bn(**params["bn2"])
    sb = jnp.stack([s1, b1, s2, b2]).astype(jnp.float32)   # (4, C)
    return dict(w1=w1p, w2=w2p, sb=sb)


def _pick_tile(H):
    # Largest row tile <= 128 that divides H (multiple of 8 for sublane packing);
    # bounded so per-step VMEM stays well under v7x's 64 MiB at real UNet sizes.
    for th in (128, 64, 32, 16, 8):
        if H % th == 0:
            return th
    return H


def init_params(key, in_channel, out_channel):
    """Deterministic parameter init (shapes match the PyTorch module, HWIO conv)."""
    ks = jax.random.split(key, 6)
    w1 = 0.1 * jax.random.normal(ks[0], (3, 3, in_channel, out_channel), jnp.float32)
    w2 = 0.1 * jax.random.normal(ks[1], (3, 3, out_channel, out_channel), jnp.float32)
    bn1 = dict(
        gamma=1.0 + 0.1 * jax.random.normal(ks[2], (out_channel,), jnp.float32),
        beta=0.1 * jax.random.normal(ks[3], (out_channel,), jnp.float32),
        mean=0.05 * jax.random.normal(ks[4], (out_channel,), jnp.float32),
        var=0.5 + jnp.abs(0.2 * jax.random.normal(ks[5], (out_channel,), jnp.float32)),
    )
    bn2 = dict(
        gamma=jnp.linspace(0.9, 1.1, out_channel, dtype=jnp.float32),
        beta=jnp.linspace(-0.05, 0.05, out_channel, dtype=jnp.float32),
        mean=jnp.linspace(-0.02, 0.02, out_channel, dtype=jnp.float32),
        var=jnp.linspace(0.8, 1.2, out_channel, dtype=jnp.float32),
    )
    return dict(w1=w1, bn1=bn1, w2=w2, bn2=bn2)


@jax.jit
def conv_block_forward(x_nchw, packed):
    """Full Conv_Block forward (inference).  Interface matches PyTorch: NCHW f32."""
    w1p, w2p, sb = packed["w1"], packed["w2"], packed["sb"]
    Cin, C = w1p.shape[1], w1p.shape[2]

    x = jnp.transpose(x_nchw, (0, 2, 3, 1))            # NCHW -> NHWC
    N, H, W, _ = x.shape
    WP = W + 2
    TH = _pick_tile(H)                                 # assumes H, W >= 2
    nT = H // TH
    Q1 = (TH + 2) * WP
    Q2 = TH * WP
    F = (TH + 4) * WP + 2

    # Raw activation rows only (im2col happens in-kernel): reflect-pad H/W once,
    # add a clamp row top+bottom (placeholder for the intermediate halo that the
    # kernel fixes itself), and cut per-tile slabs of TH+4 rows.  This is
    # ~(TH+4)/TH * (W+2)/W of the raw bytes, vs. the previous 9x im2col blow-up.
    # TODO(synk): express the overlapping row window via pl.Element to drop even
    # this small halo duplication.
    xp = jnp.pad(x, ((0, 0), (1, 1), (1, 1), (0, 0)), mode="reflect")  # (N,H+2,W+2,Cin)
    xp = jnp.pad(xp, ((0, 0), (1, 1), (0, 0), (0, 0)), mode="edge")    # (N,H+4,W+2,Cin)
    slabs = jnp.stack([xp[:, t * TH:t * TH + TH + 4] for t in range(nT)], axis=1)
    slabs = slabs.reshape(N, nT, (TH + 4) * WP, Cin)
    slabs = jnp.pad(slabs, ((0, 0), (0, 0), (1, 1), (0, 0)))           # 1 junk elem each end
    slabs = slabs.astype(jnp.bfloat16)                                 # (N, nT, F, Cin)

    kernel = functools.partial(_conv_block_kernel, TH=TH, W=W)
    out = pl.pallas_call(
        kernel,
        out_shape=jax.ShapeDtypeStruct((N, nT * Q2, C), jnp.bfloat16),
        grid_spec=pltpu.PrefetchScalarGridSpec(
            num_scalar_prefetch=0,
            grid=(N, nT),
            in_specs=[
                pl.BlockSpec((None, None, F, Cin), lambda n, t: (n, t, 0, 0)),
                pl.BlockSpec((9, Cin, C), lambda n, t: (0, 0, 0)),
                pl.BlockSpec((9, C, C), lambda n, t: (0, 0, 0)),
                pl.BlockSpec((4, C), lambda n, t: (0, 0)),
            ],
            out_specs=pl.BlockSpec((None, Q2, C), lambda n, t: (n, t, 0)),
            scratch_shapes=[pltpu.VMEM((Q1 + 2 * _PAD, C), jnp.bfloat16)],
        ),
        compiler_params=pltpu.CompilerParams(
            dimension_semantics=("parallel", "parallel"),
            vmem_limit_bytes=48 * 1024 * 1024),
    )(slabs, w1p, w2p, sb)

    out = out.reshape(N, H, WP, C)[:, :, 1:W + 1, :]   # drop the two garbage cols
    # Kernel output stays bf16 NHWC; convert back to the PyTorch interface here.
    return jnp.transpose(out, (0, 3, 1, 2)).astype(jnp.float32)   # NHWC -> NCHW


def _reference_forward(x_nchw, params):
    """Pure-JAX f32 reference (lax.conv) for correctness checking."""
    def block(x, w_hwio, bn):
        xpad = jnp.pad(x, ((0, 0), (0, 0), (1, 1), (1, 1)), mode="reflect")
        y = jax.lax.conv_general_dilated(
            xpad, w_hwio, window_strides=(1, 1), padding="VALID",
            dimension_numbers=("NCHW", "HWIO", "NCHW"))
        scale, bias = _fold_bn(**bn)
        y = y * scale.reshape(1, -1, 1, 1) + bias.reshape(1, -1, 1, 1)
        return jnp.where(y > 0, y, _NEG_SLOPE * y)
    y = block(x_nchw, params["w1"], params["bn1"])
    return block(y, params["w2"], params["bn2"])


if __name__ == "__main__":
    key = jax.random.PRNGKey(0)
    k_x, k_p = jax.random.split(key)

    in_channel, out_channel = 4, 8
    x = jax.random.normal(k_x, (2, in_channel, 16, 16), jnp.float32)
    params = init_params(k_p, in_channel, out_channel)
    packed = pack_params(params)     # one-time weight/BN packing (hoisted)

    out = jax.block_until_ready(conv_block_forward(x, packed))
    ref = _reference_forward(x, params)

    assert out.shape == (2, out_channel, 16, 16), out.shape
    # bf16 matmul operands / bf16 writeback with f32 accumulation: ~1e-2 tolerance.
    max_err = float(jnp.max(jnp.abs(out - ref)))
    assert jnp.allclose(out, ref, atol=3e-2, rtol=3e-2), (
        f"mismatch vs reference (max abs err {max_err})")

    print("KERNEL_OK")
</pallas_src>

<mosaic_0001>
module attributes {stable_mosaic.version = 11 : i64} {
  func.func @_conv_block_kernel(%arg0: i32, %arg1: i32, %arg2: memref<1x1x362x4xbf16, #tpu.memory_space<vmem>>, %arg3: memref<9x4x8xbf16, #tpu.memory_space<vmem>>, %arg4: memref<9x8x8xbf16, #tpu.memory_space<vmem>>, %arg5: memref<4x8xf32, #tpu.memory_space<vmem>>, %arg6: memref<1x288x8xbf16, #tpu.memory_space<vmem>>, %arg7: memref<340x8xbf16, #tpu.memory_space<vmem>>) attributes {dimension_semantics = [#tpu.dimension_semantics<parallel>, #tpu.dimension_semantics<parallel>], iteration_bounds = array<i64: 2, 1>, scalar_prefetch = 0 : i64, scratch_operands = 1 : i64, tpu.core_type = #tpu.core_type<tc>, window_params = [{transform_indices = @transform_0, window_bounds = array<i64: 1, 1, 362, 4>}, {pipeline_mode = #tpu.pipeline_mode<synchronous>, transform_indices = @transform_1, window_bounds = array<i64: 9, 4, 8>}, {pipeline_mode = #tpu.pipeline_mode<synchronous>, transform_indices = @transform_2, window_bounds = array<i64: 9, 8, 8>}, {pipeline_mode = #tpu.pipeline_mode<synchronous>, transform_indices = @transform_3, window_bounds = array<i64: 4, 8>}, {transform_indices = @transform_4, window_bounds = array<i64: 1, 288, 8>}]} {
    %c0 = arith.constant 0 : index
    %c0_0 = arith.constant 0 : index
    %c0_1 = arith.constant 0 : index
    %c0_2 = arith.constant 0 : index
    %0 = vector.load %arg2[%c0, %c0_0, %c0_1, %c0_2] : memref<1x1x362x4xbf16, #tpu.memory_space<vmem>>, vector<1x1x324x4xbf16>
    %1 = vector.shape_cast %0 : vector<1x1x324x4xbf16> to vector<324x4xbf16>
    %c0_3 = arith.constant 0 : index
    %c0_4 = arith.constant 0 : index
    %c0_5 = arith.constant 0 : index
    %2 = vector.load %arg3[%c0_3, %c0_4, %c0_5] : memref<9x4x8xbf16, #tpu.memory_space<vmem>>, vector<1x4x8xbf16>
    %3 = vector.shape_cast %2 : vector<1x4x8xbf16> to vector<4x8xbf16>
    %cst = arith.constant dense<0.000000e+00> : vector<324x8xf32>
    %4 = tpu.matmul %1, %3, %cst {dimension_numbers = #tpu.dot_dimension_numbers<[1], [0], [0], [1], [0, 0, 1, 1], [], []>} : vector<324x4xbf16>, vector<4x8xbf16>, vector<324x8xf32> -> vector<324x8xf32>
    %c0_6 = arith.constant 0 : index
    %c0_7 = arith.constant 0 : index
    %c1 = arith.constant 1 : index
    %c0_8 = arith.constant 0 : index
    %5 = vector.load %arg2[%c0_6, %c0_7, %c1, %c0_8] : memref<1x1x362x4xbf16, #tpu.memory_space<vmem>>, vector<1x1x324x4xbf16>
    %6 = vector.shape_cast %5 : vector<1x1x324x4xbf16> to vector<324x4xbf16>
    %c1_9 = arith.constant 1 : index
    %c0_10 = arith.constant 0 : index
    %c0_11 = arith.constant 0 : index
    %7 = vector.load %arg3[%c1_9, %c0_10, %c0_11] : memref<9x4x8xbf16, #tpu.memory_space<vmem>>, vector<1x4x8xbf16>
    %8 = vector.shape_cast %7 : vector<1x4x8xbf16> to vector<4x8xbf16>
    %cst_12 = arith.constant dense<0.000000e+00> : vector<324x8xf32>
    %9 = tpu.matmul %6, %8, %cst_12 {dimension_numbers = #tpu.dot_dimension_numbers<[1], [0], [0], [1], [0, 0, 1, 1], [], []>} : vector<324x4xbf16>, vector<4x8xbf16>, vector<324x8xf32> -> vector<324x8xf32>
    %10 = arith.addf %4, %9 : vector<324x8xf32>
    %c0_13 = arith.constant 0 : index
    %c0_14 = arith.constant 0 : index
    %c2 = arith.constant 2 : index
    %c0_15 = arith.constant 0 : index
    %11 = vector.load %arg2[%c0_13, %c0_14, %c2, %c0_15] : memref<1x1x362x4xbf16, #tpu.memory_space<vmem>>, vector<1x1x324x4xbf16>
    %12 = vector.shape_cast %11 : vector<1x1x324x4xbf16> to vector<324x4xbf16>
    %c2_16 = arith.constant 2 : index
    %c0_17 = arith.constant 0 : index
    %c0_18 = arith.constant 0 : index
    %13 = vector.load %arg3[%c2_16, %c0_17, %c0_18] : memref<9x4x8xbf16, #tpu.memory_space<vmem>>, vector<1x4x8xbf16>
    %14 = vector.shape_cast %13 : vector<1x4x8xbf16> to vector<4x8xbf16>
    %cst_19 = arith.constant dense<0.000000e+00> : vector<324x8xf32>
    %15 = tpu.matmul %12, %14, %cst_19 {dimension_numbers = #tpu.dot_dimension_numbers<[1], [0], [0], [1], [0, 0, 1, 1], [], []>} : vector<324x4xbf16>, vector<4x8xbf16>, vector<324x8xf32> -> vector<324x8xf32>
    %16 = arith.addf %10, %15 : vector<324x8xf32>
    %c0_20 = arith.constant 0 : index
    %c0_21 = arith.constant 0 : index
    %c18 = arith.constant 18 : index
    %c0_22 = arith.constant 0 : index
    %17 = vector.load %arg2[%c0_20, %c0_21, %c18, %c0_22] : memref<1x1x362x4xbf16, #tpu.memory_space<vmem>>, vector<1x1x324x4xbf16>
    %18 = vector.shape_cast %17 : vector<1x1x324x4xbf16> to vector<324x4xbf16>
    %c3 = arith.constant 3 : index
    %c0_23 = arith.constant 0 : index
    %c0_24 = arith.constant 0 : index
    %19 = vector.load %arg3[%c3, %c0_23, %c0_24] : memref<9x4x8xbf16, #tpu.memory_space<vmem>>, vector<1x4x8xbf16>
    %20 = vector.shape_cast %19 : vector<1x4x8xbf16> to vector<4x8xbf16>
    %cst_25 = arith.constant dense<0.000000e+00> : vector<324x8xf32>
    %21 = tpu.matmul %18, %20, %cst_25 {dimension_numbers = #tpu.dot_dimension_numbers<[1], [0], [0], [1], [0, 0, 1, 1], [], []>} : vector<324x4xbf16>, vector<4x8xbf16>, vector<324x8xf32> -> vector<324x8xf32>
    %22 = arith.addf %16, %21 : vector<324x8xf32>
    %c0_26 = arith.constant 0 : index
    %c0_27 = arith.constant 0 : index
    %c19 = arith.constant 19 : index
    %c0_28 = arith.constant 0 : index
    %23 = vector.load %arg2[%c0_26, %c0_27, %c19, %c0_28] : memref<1x1x362x4xbf16, #tpu.memory_space<vmem>>, vector<1x1x324x4xbf16>
    %24 = vector.shape_cast %23 : vector<1x1x324x4xbf16> to vector<324x4xbf16>
    %c4 = arith.constant 4 : index
    %c0_29 = arith.constant 0 : index
    %c0_30 = arith.constant 0 : index
    %25 = vector.load %arg3[%c4, %c0_29, %c0_30] : memref<9x4x8xbf16, #tpu.memory_space<vmem>>, vector<1x4x8xbf16>
    %26 = vector.shape_cast %25 : vector<1x4x8xbf16> to vector<4x8xbf16>
    %cst_31 = arith.constant dense<0.000000e+00> : vector<324x8xf32>
    %27 = tpu.matmul %24, %26, %cst_31 {dimension_numbers = #tpu.dot_dimension_numbers<[1], [0], [0], [1], [0, 0, 1, 1], [], []>} : vector<324x4xbf16>, vector<4x8xbf16>, vector<324x8xf32> -> vector<324x8xf32>
    %28 = arith.addf %22, %27 : vector<324x8xf32>
    %c0_32 = arith.constant 0 : index
    %c0_33 = arith.constant 0 : index
    %c20 = arith.constant 20 : index
    %c0_34 = arith.constant 0 : index
    %29 = vector.load %arg2[%c0_32, %c0_33, %c20, %c0_34] : memref<1x1x362x4xbf16, #tpu.memory_space<vmem>>, vector<1x1x324x4xbf16>
    %30 = vector.shape_cast %29 : vector<1x1x324x4xbf16> to vector<324x4xbf16>
    %c5 = arith.constant 5 : index
    %c0_35 = arith.constant 0 : index
    %c0_36 = arith.constant 0 : index
    %31 = vector.load %arg3[%c5, %c0_35, %c0_36] : memref<9x4x8xbf16, #tpu.memory_space<vmem>>, vector<1x4x8xbf16>
    %32 = vector.shape_cast %31 : vector<1x4x8xbf16> to vector<4x8xbf16>
    %cst_37 = arith.constant dense<0.000000e+00> : vector<324x8xf32>
    %33 = tpu.matmul %30, %32, %cst_37 {dimension_numbers = #tpu.dot_dimension_numbers<[1], [0], [0], [1], [0, 0, 1, 1], [], []>} : vector<324x4xbf16>, vector<4x8xbf16>, vector<324x8xf32> -> vector<324x8xf32>
    %34 = arith.addf %28, %33 : vector<324x8xf32>
    %c0_38 = arith.constant 0 : index
    %c0_39 = arith.constant 0 : index
    %c36 = arith.constant 36 : index
    %c0_40 = arith.constant 0 : index
    %35 = vector.load %arg2[%c0_38, %c0_39, %c36, %c0_40] : memref<1x1x362x4xbf16, #tpu.memory_space<vmem>>, vector<1x1x324x4xbf16>
    %36 = vector.shape_cast %35 : vector<1x1x324x4xbf16> to vector<324x4xbf16>
    %c6 = arith.constant 6 : index
    %c0_41 = arith.constant 0 : index
    %c0_42 = arith.constant 0 : index
    %37 = vector.load %arg3[%c6, %c0_41, %c0_42] : memref<9x4x8xbf16, #tpu.memory_space<vmem>>, vector<1x4x8xbf16>
    %38 = vector.shape_cast %37 : vector<1x4x8xbf16> to vector<4x8xbf16>
    %cst_43 = arith.constant dense<0.000000e+00> : vector<324x8xf32>
    %39 = tpu.matmul %36, %38, %cst_43 {dimension_numbers = #tpu.dot_dimension_numbers<[1], [0], [0], [1], [0, 0, 1, 1], [], []>} : vector<324x4xbf16>, vector<4x8xbf16>, vector<324x8xf32> -> vector<324x8xf32>
    %40 = arith.addf %34, %39 : vector<324x8xf32>
    %c0_44 = arith.constant 0 : index
    %c0_45 = arith.constant 0 : index
    %c37 = arith.constant 37 : index
    %c0_46 = arith.constant 0 : index
    %41 = vector.load %arg2[%c0_44, %c0_45, %c37, %c0_46] : memref<1x1x362x4xbf16, #tpu.memory_space<vmem>>, vector<1x1x324x4xbf16>
    %42 = vector.shape_cast %41 : vector<1x1x324x4xbf16> to vector<324x4xbf16>
    %c7 = arith.constant 7 : index
    %c0_47 = arith.constant 0 : index
    %c0_48 = arith.constant 0 : index
    %43 = vector.load %arg3[%c7, %c0_47, %c0_48] : memref<9x4x8xbf16, #tpu.memory_space<vmem>>, vector<1x4x8xbf16>
    %44 = vector.shape_cast %43 : vector<1x4x8xbf16> to vector<4x8xbf16>
    %cst_49 = arith.constant dense<0.000000e+00> : vector<324x8xf32>
    %45 = tpu.matmul %42, %44, %cst_49 {dimension_numbers = #tpu.dot_dimension_numbers<[1], [0], [0], [1], [0, 0, 1, 1], [], []>} : vector<324x4xbf16>, vector<4x8xbf16>, vector<324x8xf32> -> vector<324x8xf32>
    %46 = arith.addf %40, %45 : vector<324x8xf32>
    %c0_50 = arith.constant 0 : index
    %c0_51 = arith.constant 0 : index
    %c38 = arith.constant 38 : index
    %c0_52 = arith.constant 0 : index
    %47 = vector.load %arg2[%c0_50, %c0_51, %c38, %c0_52] : memref<1x1x362x4xbf16, #tpu.memory_space<vmem>>, vector<1x1x324x4xbf16>
    %48 = vector.shape_cast %47 : vector<1x1x324x4xbf16> to vector<324x4xbf16>
    %c8 = arith.constant 8 : index
    %c0_53 = arith.constant 0 : index
    %c0_54 = arith.constant 0 : index
    %49 = vector.load %arg3[%c8, %c0_53, %c0_54] : memref<9x4x8xbf16, #tpu.memory_space<vmem>>, vector<1x4x8xbf16>
    %50 = vector.shape_cast %49 : vector<1x4x8xbf16> to vector<4x8xbf16>
    %cst_55 = arith.constant dense<0.000000e+00> : vector<324x8xf32>
    %51 = tpu.matmul %48, %50, %cst_55 {dimension_numbers = #tpu.dot_dimension_numbers<[1], [0], [0], [1], [0, 0, 1, 1], [], []>} : vector<324x4xbf16>, vector<4x8xbf16>, vector<324x8xf32> -> vector<324x8xf32>
    %52 = arith.addf %46, %51 : vector<324x8xf32>
    %c0_56 = arith.constant 0 : index
    %c0_57 = arith.constant 0 : index
    %53 = vector.load %arg5[%c0_56, %c0_57] : memref<4x8xf32, #tpu.memory_space<vmem>>, vector<1x8xf32>
    %54 = vector.broadcast %53 : vector<1x8xf32> to vector<324x8xf32>
    %55 = arith.mulf %52, %54 : vector<324x8xf32>
    %c1_58 = arith.constant 1 : index
    %c0_59 = arith.constant 0 : index
    %56 = vector.load %arg5[%c1_58, %c0_59] : memref<4x8xf32, #tpu.memory_space<vmem>>, vector<1x8xf32>
    %57 = vector.broadcast %56 : vector<1x8xf32> to vector<324x8xf32>
    %58 = arith.addf %55, %57 : vector<324x8xf32>
    %cst_60 = arith.constant 0.000000e+00 : f32
    %59 = vector.broadcast %cst_60 : f32 to vector<324x8xf32>
    %60 = arith.cmpf ogt, %58, %59 : vector<324x8xf32>
    %cst_61 = arith.constant 0.00999999977 : f32
    %61 = vector.broadcast %cst_61 : f32 to vector<324x8xf32>
    %62 = arith.mulf %61, %58 : vector<324x8xf32>
    %63 = arith.select %60, %58, %62 : vector<324x8xi1>, vector<324x8xf32>
    %64 = tpu.iota {dimensions = array<i32: 0>} : vector<324x1xi32>
    %c18_i32 = arith.constant 18 : i32
    %c0_i32 = arith.constant 0 : i32
    %65 = arith.cmpi eq, %c18_i32, %c0_i32 : i32
    %c1_i32 = arith.constant 1 : i32
    %66 = arith.select %65, %c1_i32, %c18_i32 : i32
    %67 = vector.broadcast %66 : i32 to vector<324x1xi32>
    %68 = arith.remsi %64, %67 : vector<324x1xi32>
    %c0_i32_62 = arith.constant 0 : i32
    %69 = vector.broadcast %c0_i32_62 : i32 to vector<324x1xi32>
    %70 = arith.cmpi ne, %68, %69 : vector<324x1xi32>
    %c0_i32_63 = arith.constant 0 : i32
    %71 = vector.broadcast %c0_i32_63 : i32 to vector<324x1xi32>
    %72 = arith.cmpi slt, %68, %71 : vector<324x1xi32>
    %c0_i32_64 = arith.constant 0 : i32
    %73 = arith.cmpi slt, %66, %c0_i32_64 : i32
    %74 = vector.broadcast %73 : i1 to vector<324x1xi1>
    %75 = vector.broadcast %74 : vector<324x1xi1> to vector<324x1xi1>
    %76 = arith.xori %72, %75 : vector<324x1xi1>
    %77 = arith.andi %76, %70 : vector<324x1xi1>
    %78 = vector.broadcast %66 : i32 to vector<324x1xi32>
    %79 = arith.addi %68, %78 : vector<324x1xi32>
    %80 = arith.select %77, %79, %68 : vector<324x1xi1>, vector<324x1xi32>
    %81 = vector.extract_strided_slice %63 {offsets = [2, 0], sizes = [322, 8], strides = [1, 1]} : vector<324x8xf32> to vector<322x8xf32>
    %82 = vector.extract_strided_slice %63 {offsets = [0, 0], sizes = [2, 8], strides = [1, 1]} : vector<324x8xf32> to vector<2x8xf32>
    %83 = tpu.concatenate %81, %82 in 0 : vector<322x8xf32>, vector<2x8xf32> -> vector<324x8xf32>
    %84 = vector.extract_strided_slice %63 {offsets = [322, 0], sizes = [2, 8], strides = [1, 1]} : vector<324x8xf32> to vector<2x8xf32>
    %85 = vector.extract_strided_slice %63 {offsets = [0, 0], sizes = [322, 8], strides = [1, 1]} : vector<324x8xf32> to vector<322x8xf32>
    %86 = tpu.concatenate %84, %85 in 0 : vector<2x8xf32>, vector<322x8xf32> -> vector<324x8xf32>
    %c0_i32_65 = arith.constant 0 : i32
    %87 = vector.broadcast %c0_i32_65 : i32 to vector<324x1xi32>
    %88 = arith.cmpi eq, %80, %87 : vector<324x1xi32>
    %89 = vector.shape_cast %88 : vector<324x1xi1> to vector<324x1xi1>
    %90 = vector.broadcast %89 : vector<324x1xi1> to vector<324x8xi1>
    %91 = arith.select %90, %83, %63 : vector<324x8xi1>, vector<324x8xf32>
    %c17_i32 = arith.constant 17 : i32
    %92 = vector.broadcast %c17_i32 : i32 to vector<324x1xi32>
    %93 = arith.cmpi eq, %80, %92 : vector<324x1xi32>
    %94 = vector.shape_cast %93 : vector<324x1xi1> to vector<324x1xi1>
    %95 = vector.broadcast %94 : vector<324x1xi1> to vector<324x8xi1>
    %96 = arith.select %95, %86, %91 : vector<324x8xi1>, vector<324x8xf32>
    %cst_66 = arith.constant 0.000000e+00 : bf16
    %97 = vector.broadcast %cst_66 : bf16 to vector<8x8xbf16>
    %c0_67 = arith.constant 0 : index
    %c0_68 = arith.constant 0 : index
    %98 = vector.load %arg7[%c0_67, %c0_68] : memref<340x8xbf16, #tpu.memory_space<vmem>>, vector<8x8xbf16>
    tpu.vector_store %arg7[%c0_67, %c0_68], %97 {strides = array<i32>} : memref<340x8xbf16, #tpu.memory_space<vmem>>, vector<8x8xbf16>,
    %cst_69 = arith.constant 0.000000e+00 : bf16
    %99 = vector.broadcast %cst_69 : bf16 to vector<8x8xbf16>
    %c332 = arith.constant 332 : index
    %c0_70 = arith.constant 0 : index
    %100 = vector.load %arg7[%c332, %c0_70] : memref<340x8xbf16, #tpu.memory_space<vmem>>, vector<8x8xbf16>
    tpu.vector_store %arg7[%c332, %c0_70], %99 {strides = array<i32>} : memref<340x8xbf16, #tpu.memory_space<vmem>>, vector<8x8xbf16>,
    %101 = arith.truncf %96 : vector<324x8xf32> to vector<324x8xbf16>
    %c8_71 = arith.constant 8 : index
    %c0_72 = arith.constant 0 : index
    %102 = vector.load %arg7[%c8_71, %c0_72] : memref<340x8xbf16, #tpu.memory_space<vmem>>, vector<324x8xbf16>
    tpu.vector_store %arg7[%c8_71, %c0_72], %101 {strides = array<i32>} : memref<340x8xbf16, #tpu.memory_space<vmem>>, vector<324x8xbf16>,
    %c0_i32_73 = arith.constant 0 : i32
    %103 = arith.cmpi eq, %arg1, %c0_i32_73 : i32
    %104 = arith.extui %103 : i1 to i32
    %c0_i32_74 = arith.constant 0 : i32
    %105 = arith.cmpi ne, %104, %c0_i32_74 : i32
    scf.if %105 {
      %c44_133 = arith.constant 44 : index
      %c0_134 = arith.constant 0 : index
      %168 = vector.load %arg7[%c44_133, %c0_134] : memref<340x8xbf16, #tpu.memory_space<vmem>>, vector<18x8xbf16>
      %c8_135 = arith.constant 8 : index
      %c0_136 = arith.constant 0 : index
      %169 = vector.load %arg7[%c8_135, %c0_136] : memref<340x8xbf16, #tpu.memory_space<vmem>>, vector<18x8xbf16>
      tpu.vector_store %arg7[%c8_135, %c0_136], %168 {strides = array<i32>} : memref<340x8xbf16, #tpu.memory_space<vmem>>, vector<18x8xbf16>,
    } else {
    }
    %c0_i32_75 = arith.constant 0 : i32
    %106 = arith.cmpi eq, %arg1, %c0_i32_75 : i32
    %107 = arith.extui %106 : i1 to i32
    %c0_i32_76 = arith.constant 0 : i32
    %108 = arith.cmpi ne, %107, %c0_i32_76 : i32
    scf.if %108 {
      %c278 = arith.constant 278 : index
      %c0_133 = arith.constant 0 : index
      %168 = vector.load %arg7[%c278, %c0_133] : memref<340x8xbf16, #tpu.memory_space<vmem>>, vector<18x8xbf16>
      %c314 = arith.constant 314 : index
      %c0_134 = arith.constant 0 : index
      %169 = vector.load %arg7[%c314, %c0_134] : memref<340x8xbf16, #tpu.memory_space<vmem>>, vector<18x8xbf16>
      tpu.vector_store %arg7[%c314, %c0_134], %168 {strides = array<i32>} : memref<340x8xbf16, #tpu.memory_space<vmem>>, vector<18x8xbf16>,
    } else {
    }
    %c7_77 = arith.constant 7 : index
    %c0_78 = arith.constant 0 : index
    %109 = vector.load %arg7[%c7_77, %c0_78] : memref<340x8xbf16, #tpu.memory_space<vmem>>, vector<288x8xbf16>
    %c0_79 = arith.constant 0 : index
    %c0_80 = arith.constant 0 : index
    %c0_81 = arith.constant 0 : index
    %110 = vector.load %arg4[%c0_79, %c0_80, %c0_81] : memref<9x8x8xbf16, #tpu.memory_space<vmem>>, vector<1x8x8xbf16>
    %111 = vector.shape_cast %110 : vector<1x8x8xbf16> to vector<8x8xbf16>
    %cst_82 = arith.constant dense<0.000000e+00> : vector<288x8xf32>
    %112 = tpu.matmul %109, %111, %cst_82 {dimension_numbers = #tpu.dot_dimension_numbers<[1], [0], [0], [1], [0, 0, 1, 1], [], []>} : vector<288x8xbf16>, vector<8x8xbf16>, vector<288x8xf32> -> vector<288x8xf32>
    %c8_83 = arith.constant 8 : index
    %c0_84 = arith.constant 0 : index
    %113 = vector.load %arg7[%c8_83, %c0_84] : memref<340x8xbf16, #tpu.memory_space<vmem>>, vector<288x8xbf16>
    %c1_85 = arith.constant 1 : index
    %c0_86 = arith.constant 0 : index
    %c0_87 = arith.constant 0 : index
    %114 = vector.load %arg4[%c1_85, %c0_86, %c0_87] : memref<9x8x8xbf16, #tpu.memory_space<vmem>>, vector<1x8x8xbf16>
    %115 = vector.shape_cast %114 : vector<1x8x8xbf16> to vector<8x8xbf16>
    %cst_88 = arith.constant dense<0.000000e+00> : vector<288x8xf32>
    %116 = tpu.matmul %113, %115, %cst_88 {dimension_numbers = #tpu.dot_dimension_numbers<[1], [0], [0], [1], [0, 0, 1, 1], [], []>} : vector<288x8xbf16>, vector<8x8xbf16>, vector<288x8xf32> -> vector<288x8xf32>
    %117 = arith.addf %112, %116 : vector<288x8xf32>
    %c9 = arith.constant 9 : index
    %c0_89 = arith.constant 0 : index
    %118 = vector.load %arg7[%c9, %c0_89] : memref<340x8xbf16, #tpu.memory_space<vmem>>, vector<288x8xbf16>
    %c2_90 = arith.constant 2 : index
    %c0_91 = arith.constant 0 : index
    %c0_92 = arith.constant 0 : index
    %119 = vector.load %arg4[%c2_90, %c0_91, %c0_92] : memref<9x8x8xbf16, #tpu.memory_space<vmem>>, vector<1x8x8xbf16>
    %120 = vector.shape_cast %119 : vector<1x8x8xbf16> to vector<8x8xbf16>
    %cst_93 = arith.constant dense<0.000000e+00> : vector<288x8xf32>
    %121 = tpu.matmul %118, %120, %cst_93 {dimension_numbers = #tpu.dot_dimension_numbers<[1], [0], [0], [1], [0, 0, 1, 1], [], []>} : vector<288x8xbf16>, vector<8x8xbf16>, vector<288x8xf32> -> vector<288x8xf32>
    %122 = arith.addf %117, %121 : vector<288x8xf32>
    %c25 = arith.constant 25 : index
    %c0_94 = arith.constant 0 : index
    %123 = vector.load %arg7[%c25, %c0_94] : memref<340x8xbf16, #tpu.memory_space<vmem>>, vector<288x8xbf16>
    %c3_95 = arith.constant 3 : index
    %c0_96 = arith.constant 0 : index
    %c0_97 = arith.constant 0 : index
    %124 = vector.load %arg4[%c3_95, %c0_96, %c0_97] : memref<9x8x8xbf16, #tpu.memory_space<vmem>>, vector<1x8x8xbf16>
    %125 = vector.shape_cast %124 : vector<1x8x8xbf16> to vector<8x8xbf16>
    %cst_98 = arith.constant dense<0.000000e+00> : vector<288x8xf32>
    %126 = tpu.matmul %123, %125, %cst_98 {dimension_numbers = #tpu.dot_dimension_numbers<[1], [0], [0], [1], [0, 0, 1, 1], [], []>} : vector<288x8xbf16>, vector<8x8xbf16>, vector<288x8xf32> -> vector<288x8xf32>
    %127 = arith.addf %122, %126 : vector<288x8xf32>
    %c26 = arith.constant 26 : index
    %c0_99 = arith.constant 0 : index
    %128 = vector.load %arg7[%c26, %c0_99] : memref<340x8xbf16, #tpu.memory_space<vmem>>, vector<288x8xbf16>
    %c4_100 = arith.constant 4 : index
    %c0_101 = arith.constant 0 : index
    %c0_102 = arith.constant 0 : index
    %129 = vector.load %arg4[%c4_100, %c0_101, %c0_102] : memref<9x8x8xbf16, #tpu.memory_space<vmem>>, vector<1x8x8xbf16>
    %130 = vector.shape_cast %129 : vector<1x8x8xbf16> to vector<8x8xbf16>
    %cst_103 = arith.constant dense<0.000000e+00> : vector<288x8xf32>
    %131 = tpu.matmul %128, %130, %cst_103 {dimension_numbers = #tpu.dot_dimension_numbers<[1], [0], [0], [1], [0, 0, 1, 1], [], []>} : vector<288x8xbf16>, vector<8x8xbf16>, vector<288x8xf32> -> vector<288x8xf32>
    %132 = arith.addf %127, %131 : vector<288x8xf32>
    %c27 = arith.constant 27 : index
    %c0_104 = arith.constant 0 : index
    %133 = vector.load %arg7[%c27, %c0_104] : memref<340x8xbf16, #tpu.memory_space<vmem>>, vector<288x8xbf16>
    %c5_105 = arith.constant 5 : index
    %c0_106 = arith.constant 0 : index
    %c0_107 = arith.constant 0 : index
    %134 = vector.load %arg4[%c5_105, %c0_106, %c0_107] : memref<9x8x8xbf16, #tpu.memory_space<vmem>>, vector<1x8x8xbf16>
    %135 = vector.shape_cast %134 : vector<1x8x8xbf16> to vector<8x8xbf16>
    %cst_108 = arith.constant dense<0.000000e+00> : vector<288x8xf32>
    %136 = tpu.matmul %133, %135, %cst_108 {dimension_numbers = #tpu.dot_dimension_numbers<[1], [0], [0], [1], [0, 0, 1, 1], [], []>} : vector<288x8xbf16>, vector<8x8xbf16>, vector<288x8xf32> -> vector<288x8xf32>
    %137 = arith.addf %132, %136 : vector<288x8xf32>
    %c43 = arith.constant 43 : index
    %c0_109 = arith.constant 0 : index
    %138 = vector.load %arg7[%c43, %c0_109] : memref<340x8xbf16, #tpu.memory_space<vmem>>, vector<288x8xbf16>
    %c6_110 = arith.constant 6 : index
    %c0_111 = arith.constant 0 : index
    %c0_112 = arith.constant 0 : index
    %139 = vector.load %arg4[%c6_110, %c0_111, %c0_112] : memref<9x8x8xbf16, #tpu.memory_space<vmem>>, vector<1x8x8xbf16>
    %140 = vector.shape_cast %139 : vector<1x8x8xbf16> to vector<8x8xbf16>
    %cst_113 = arith.constant dense<0.000000e+00> : vector<288x8xf32>
    %141 = tpu.matmul %138, %140, %cst_113 {dimension_numbers = #tpu.dot_dimension_numbers<[1], [0], [0], [1], [0, 0, 1, 1], [], []>} : vector<288x8xbf16>, vector<8x8xbf16>, vector<288x8xf32> -> vector<288x8xf32>
    %142 = arith.addf %137, %141 : vector<288x8xf32>
    %c44 = arith.constant 44 : index
    %c0_114 = arith.constant 0 : index
    %143 = vector.load %arg7[%c44, %c0_114] : memref<340x8xbf16, #tpu.memory_space<vmem>>, vector<288x8xbf16>
    %c7_115 = arith.constant 7 : index
    %c0_116 = arith.constant 0 : index
    %c0_117 = arith.constant 0 : index
    %144 = vector.load %arg4[%c7_115, %c0_116, %c0_117] : memref<9x8x8xbf16, #tpu.memory_space<vmem>>, vector<1x8x8xbf16>
    %145 = vector.shape_cast %144 : vector<1x8x8xbf16> to vector<8x8xbf16>
    %cst_118 = arith.constant dense<0.000000e+00> : vector<288x8xf32>
    %146 = tpu.matmul %143, %145, %cst_118 {dimension_numbers = #tpu.dot_dimension_numbers<[1], [0], [0], [1], [0, 0, 1, 1], [], []>} : vector<288x8xbf16>, vector<8x8xbf16>, vector<288x8xf32> -> vector<288x8xf32>
    %147 = arith.addf %142, %146 : vector<288x8xf32>
    %c45 = arith.constant 45 : index
    %c0_119 = arith.constant 0 : index
    %148 = vector.load %arg7[%c45, %c0_119] : memref<340x8xbf16, #tpu.memory_space<vmem>>, vector<288x8xbf16>
    %c8_120 = arith.constant 8 : index
    %c0_121 = arith.constant 0 : index
    %c0_122 = arith.constant 0 : index
    %149 = vector.load %arg4[%c8_120, %c0_121, %c0_122] : memref<9x8x8xbf16, #tpu.memory_space<vmem>>, vector<1x8x8xbf16>
    %150 = vector.shape_cast %149 : vector<1x8x8xbf16> to vector<8x8xbf16>
    %cst_123 = arith.constant dense<0.000000e+00> : vector<288x8xf32>
    %151 = tpu.matmul %148, %150, %cst_123 {dimension_numbers = #tpu.dot_dimension_numbers<[1], [0], [0], [1], [0, 0, 1, 1], [], []>} : vector<288x8xbf16>, vector<8x8xbf16>, vector<288x8xf32> -> vector<288x8xf32>
    %152 = arith.addf %147, %151 : vector<288x8xf32>
    %c2_124 = arith.constant 2 : index
    %c0_125 = arith.constant 0 : index
    %153 = vector.load %arg5[%c2_124, %c0_125] : memref<4x8xf32, #tpu.memory_space<vmem>>, vector<1x8xf32>
    %154 = vector.broadcast %153 : vector<1x8xf32> to vector<288x8xf32>
    %155 = arith.mulf %152, %154 : vector<288x8xf32>
    %c3_126 = arith.constant 3 : index
    %c0_127 = arith.constant 0 : index
    %156 = vector.load %arg5[%c3_126, %c0_127] : memref<4x8xf32, #tpu.memory_space<vmem>>, vector<1x8xf32>
    %157 = vector.broadcast %156 : vector<1x8xf32> to vector<288x8xf32>
    %158 = arith.addf %155, %157 : vector<288x8xf32>
    %cst_128 = arith.constant 0.000000e+00 : f32
    %159 = vector.broadcast %cst_128 : f32 to vector<288x8xf32>
    %160 = arith.cmpf ogt, %158, %159 : vector<288x8xf32>
    %cst_129 = arith.constant 0.00999999977 : f32
    %161 = vector.broadcast %cst_129 : f32 to vector<288x8xf32>
    %162 = arith.mulf %161, %158 : vector<288x8xf32>
    %163 = arith.select %160, %158, %162 : vector<288x8xi1>, vector<288x8xf32>
    %164 = arith.truncf %163 : vector<288x8xf32> to vector<288x8xbf16>
    %c0_130 = arith.constant 0 : index
    %c0_131 = arith.constant 0 : index
    %c0_132 = arith.constant 0 : index
    %165 = vector.load %arg6[%c0_130, %c0_131, %c0_132] : memref<1x288x8xbf16, #tpu.memory_space<vmem>>, vector<1x288x8xbf16>
    %166 = vector.shape_cast %165 : vector<1x288x8xbf16> to vector<288x8xbf16>
    %167 = vector.shape_cast %164 : vector<288x8xbf16> to vector<1x288x8xbf16>
    tpu.vector_store %arg6[%c0_130, %c0_131, %c0_132], %167 {strides = array<i32>} : memref<1x288x8xbf16, #tpu.memory_space<vmem>>, vector<1x288x8xbf16>,
    return
  }
  func.func @transform_0(%arg0: i32, %arg1: i32) -> (i32, i32, i32, i32) {
    %c0_i32 = arith.constant 0 : i32
    %c0_i32_0 = arith.constant 0 : i32
    %c0_i32_1 = arith.constant 0 : i32
    return %arg0, %arg1, %c0_i32, %c0_i32_0 : i32, i32, i32, i32
  }
  func.func @transform_1(%arg0: i32, %arg1: i32) -> (i32, i32, i32) {
    %c0_i32 = arith.constant 0 : i32
    %c0_i32_0 = arith.constant 0 : i32
    %c0_i32_1 = arith.constant 0 : i32
    %c0_i32_2 = arith.constant 0 : i32
    return %c0_i32, %c0_i32_0, %c0_i32_1 : i32, i32, i32
  }
  func.func @transform_2(%arg0: i32, %arg1: i32) -> (i32, i32, i32) {
    %c0_i32 = arith.constant 0 : i32
    %c0_i32_0 = arith.constant 0 : i32
    %c0_i32_1 = arith.constant 0 : i32
    %c0_i32_2 = arith.constant 0 : i32
    return %c0_i32, %c0_i32_0, %c0_i32_1 : i32, i32, i32
  }
  func.func @transform_3(%arg0: i32, %arg1: i32) -> (i32, i32) {
    %c0_i32 = arith.constant 0 : i32
    %c0_i32_0 = arith.constant 0 : i32
    %c0_i32_1 = arith.constant 0 : i32
    return %c0_i32, %c0_i32_0 : i32, i32
  }
  func.func @transform_4(%arg0: i32, %arg1: i32) -> (i32, i32, i32) {
    %c0_i32 = arith.constant 0 : i32
    %c0_i32_0 = arith.constant 0 : i32
    return %arg0, %arg1, %c0_i32 : i32, i32, i32
  }
}

</mosaic_0001>

<llo_original>
// kernel: conv_block_forward.1
$region0: #{conv_block_forward.1}
  #allocation0 [shape = 'u32[]', space=smem, size = 0x4, offset = 0x4, fixed_abs, tag = 'smem constant byte address 0x4 - core index']
  #allocation1 [shape = 'u32[144,128]{1,0:T(1,128)}', space=vmem, size = 0x12000, scoped, tag = 'internal scratch']
  #allocation2 [shape = 'bf16[340,8]{1,0:T(8,128)(2,1)}', space=vmem, size = 0x15800, scoped, tag = 'scratch operand']
  %s0 = inlined_call_operand.vmem [shape: bf16[2,1,362,4], index: 0, kind: input, shape index: {}]
  %s1 = inlined_call_operand.vmem [shape: bf16[9,4,8], index: 1, kind: input, shape index: {}]
  %s2 = inlined_call_operand.vmem [shape: bf16[9,8,8], index: 2, kind: input, shape index: {}]
  %s3 = inlined_call_operand.vmem [shape: f32[4,8], index: 3, kind: input, shape index: {}]
  %s4 = inlined_call_operand.vmem [shape: bf16[2,288,8], index: 4, kind: output, shape index: {}]
  %s5 = sld [smem:[#allocation0]]
  $region53: #{conv_block_forward.1} parent=0
    _
  %s7 = ssub.s32 1, %s5
  %s8 = scalar_select 0, %s7, %s5
  loop: start=0, step=1, limit=4
  $region2: #{conv_block_forward.1} parent=0 // loop_pre_header
    _
  $region3: #{conv_block_forward.1} parent=0 // loop_header
    %s10 = sphi 0, %s14
    %p11 = scmp.ge.s32.totalorder %s10, 4
    %s17 = sphi 0, %s29
    %s18 = sphi 0, %s25
    %s19 = sphi 0, %s17
    %s20 = sphi 0, %s18
    %s21 = sphi 0, %s19
    %s22 = sphi 0, %s20
    %s34 = sphi 0, %s36
    %s37 = sphi 0, %s34
    %s38 = sphi 0, %s37
    %s54 = sphi 0, %s38
    %s58 = sphi 0, %s58
    %s60 = sphi 0, %s58
    %s61 = sphi 0, %s60
    %s75 = sphi 0, %s61
    %s79 = sphi 0, %s79
    %s81 = sphi 0, %s79
    %s82 = sphi 0, %s81
    %s96 = sphi 0, %s82
    %s100 = sphi 0, %s100
    %s102 = sphi 0, %s100
    %s103 = sphi 0, %s102
    %s117 = sphi 0, %s103
    %s125 = sphi 0, %s127
    %s128 = sphi 0, %s125
    %s129 = sphi 0, %s128
    %s145 = sphi 0, %s129
  $region4: #{conv_block_forward.1} parent=0 // loop_header_branch
    %13 = sbr.rel (%p11) target = $region8
  $region5: #{conv_block_forward.1} parent=0 // loop_body
    %s15 = ssub.s32 %s10, 1
    %s16 = ssub.s32 %s10, 2
    %s23 = sadd.s32 1, %s18
    %p24 = scmp.ge.s32.totalorder %s23, 1
    %s25 = scalar_select %p24, 0, %s23
    %s26 = sadd.s32 1, %s17
    %s27 = scalar_select %p24, %s26, %s17
    %p28 = scmp.ge.s32.totalorder %s27, 2
    %s29 = scalar_select %p28, 0, %s27
    %s30 = ssub.s32 %s17, %s29
    %s31 = ssub.s32 %s18, %s25
    %s32 = sor.u32 %s30, %s31
    %p33 = scmp.eq.s32.totalorder %s32, 0
    %s35 = sadd.s32 %s34, 1
    %s36 = scalar_select %p33, %s34, %s35
    %p39 = pneg %p33
    %p40 = scmp.eq.s32.totalorder %s10, 1
    %p41 = por %p39, %p40
    %p42 = scmp.ne.s32.totalorder %s34, %s37
    %p43 = scmp.eq.s32.totalorder %s10, 0
    %p44 = por %p42, %p43
    %p45 = scmp.ne.s32.totalorder %s34, %s37
    %p46 = scmp.eq.s32.totalorder %s15, 1
    %p47 = por %p45, %p46
    %p48 = scmp.ne.s32.totalorder %s37, %s38
    %p49 = scmp.eq.s32.totalorder %s15, 0
    %p50 = por %p48, %p49
    %p51 = scmp.ne.s32.totalorder %s37, %s38
    %p52 = scmp.eq.s32.totalorder %s16, 1
    %p53 = por %p51, %p52
    %p55 = scmp.ne.s32.totalorder %s38, %s54
    %p56 = scmp.eq.s32.totalorder %s16, 0
    %p57 = por %p55, %p56
    %s59 = sadd.s32 %s58, 1
    %p62 = scmp.eq.s32.totalorder %s10, 1
    %p63 = scmp.ne.s32.totalorder %s58, %s60
    %p64 = scmp.eq.s32.totalorder %s10, 0
    %p65 = por %p63, %p64
    %p66 = scmp.ne.s32.totalorder %s58, %s60
    %p67 = scmp.eq.s32.totalorder %s15, 1
    %p68 = por %p66, %p67
    %p69 = scmp.ne.s32.totalorder %s60, %s61
    %p70 = scmp.eq.s32.totalorder %s15, 0
    %p71 = por %p69, %p70
    %p72 = scmp.ne.s32.totalorder %s60, %s61
    %p73 = scmp.eq.s32.totalorder %s16, 1
    %p74 = por %p72, %p73
    %p76 = scmp.ne.s32.totalorder %s61, %s75
    %p77 = scmp.eq.s32.totalorder %s16, 0
    %p78 = por %p76, %p77
    %s80 = sadd.s32 %s79, 1
    %p83 = scmp.eq.s32.totalorder %s10, 1
    %p84 = scmp.ne.s32.totalorder %s79, %s81
    %p85 = scmp.eq.s32.totalorder %s10, 0
    %p86 = por %p84, %p85
    %p87 = scmp.ne.s32.totalorder %s79, %s81
    %p88 = scmp.eq.s32.totalorder %s15, 1
    %p89 = por %p87, %p88
    %p90 = scmp.ne.s32.totalorder %s81, %s82
    %p91 = scmp.eq.s32.totalorder %s15, 0
    %p92 = por %p90, %p91
    %p93 = scmp.ne.s32.totalorder %s81, %s82
    %p94 = scmp.eq.s32.totalorder %s16, 1
    %p95 = por %p93, %p94
    %p97 = scmp.ne.s32.totalorder %s82, %s96
    %p98 = scmp.eq.s32.totalorder %s16, 0
    %p99 = por %p97, %p98
    %s101 = sadd.s32 %s100, 1
    %p104 = scmp.eq.s32.totalorder %s10, 1
    %p105 = scmp.ne.s32.totalorder %s100, %s102
    %p106 = scmp.eq.s32.totalorder %s10, 0
    %p107 = por %p105, %p106
    %p108 = scmp.ne.s32.totalorder %s100, %s102
    %p109 = scmp.eq.s32.totalorder %s15, 1
    %p110 = por %p108, %p109
    %p111 = scmp.ne.s32.totalorder %s102, %s103
    %p112 = scmp.eq.s32.totalorder %s15, 0
    %p113 = por %p111, %p112
    %p114 = scmp.ne.s32.totalorder %s102, %s103
    %p115 = scmp.eq.s32.totalorder %s16, 1
    %p116 = por %p114, %p115
    %p118 = scmp.ne.s32.totalorder %s103, %s117
    %p119 = scmp.eq.s32.totalorder %s16, 0
    %p120 = por %p118, %p119
    %s121 = ssub.s32 %s17, %s29
    %s122 = ssub.s32 %s18, %s25
    %s123 = sor.u32 %s121, %s122
    %p124 = scmp.eq.s32.totalorder %s123, 0
    %s126 = sadd.s32 %s125, 1
    %s127 = scalar_select %p124, %s125, %s126
    %p130 = pneg %p124
    %p131 = scmp.eq.s32.totalorder %s10, 1
    %p132 = por %p130, %p131
    %p133 = scmp.ne.s32.totalorder %s125, %s128
    %p134 = scmp.eq.s32.totalorder %s10, 0
    %p135 = por %p133, %p134
    %p136 = scmp.ne.s32.totalorder %s125, %s128
    %p137 = scmp.eq.s32.totalorder %s15, 1
    %p138 = por %p136, %p137
    %p139 = scmp.ne.s32.totalorder %s128, %s129
    %p140 = scmp.eq.s32.totalorder %s15, 0
    %p141 = por %p139, %p140
    %p142 = scmp.ne.s32.totalorder %s128, %s129
    %p143 = scmp.eq.s32.totalorder %s16, 1
    %p144 = por %p142, %p143
    %p146 = scmp.ne.s32.totalorder %s129, %s145
    %p147 = scmp.eq.s32.totalorder %s16, 0
    %p148 = por %p146, %p147
    %p149 = scmp.le.s32.totalorder 1, %s10
    %p150 = scmp.lt.s32.totalorder %s10, 3
    %p151 = pnand %p149, %p150
    %p152 = pneg %p151
    // Predicated region
    $region9: #{conv_block_forward.1} parent=5 // pred_check
      _
    $region10: #{conv_block_forward.1} parent=5 // pred_check_branch
      %154 = sbr.rel (%p151) target = $region12
    $region11: #{conv_block_forward.1} parent=5 // pred_region
      %s155 = ssub.s32 %s10, 1
      // Predicated region
      $region13: #{conv_block_forward.1} parent=11 // pred_check
        %p156 = pneg %p71
      $region14: #{conv_block_forward.1} parent=11 // pred_check_branch
        %158 = sbr.rel (%p156) target = $region16
      $region15: #{conv_block_forward.1} parent=11 // pred_region
        _
      $region16: #{conv_block_forward.1} parent=11 // pred_fallthru
        _
      // Predicated region
      $region17: #{conv_block_forward.1} parent=11 // pred_check
        %p159 = pneg %p92
      $region18: #{conv_block_forward.1} parent=11 // pred_check_branch
        %161 = sbr.rel (%p159) target = $region20
      $region19: #{conv_block_forward.1} parent=11 // pred_region
        _
      $region20: #{conv_block_forward.1} parent=11 // pred_fallthru
        _
      // Predicated region
      $region21: #{conv_block_forward.1} parent=11 // pred_check
        %p162 = pneg %p113
      $region22: #{conv_block_forward.1} parent=11 // pred_check_branch
        %164 = sbr.rel (%p162) target = $region24
      $region23: #{conv_block_forward.1} parent=11 // pred_region
        _
      $region24: #{conv_block_forward.1} parent=11 // pred_fallthru
        _
    $region12: #{conv_block_forward.1} parent=5 // pred_fallthru
      _
    %p165 = scmp.lt.s32.totalorder %s10, 2
    // Predicated region
    $region25: #{conv_block_forward.1} parent=5 // pred_check
      %p166 = pneg %p165
    $region26: #{conv_block_forward.1} parent=5 // pred_check_branch
      %168 = sbr.rel (%p166) target = $region28
    $region27: #{conv_block_forward.1} parent=5 // pred_region
      // Predicated region
      $region29: #{conv_block_forward.1} parent=27 // pred_check
        %p169 = pneg %p44
      $region30: #{conv_block_forward.1} parent=27 // pred_check_branch
        %171 = sbr.rel (%p169) target = $region32
      $region31: #{conv_block_forward.1} parent=27 // pred_region
        %p172 = scmp.lt.s32.totalorder %s17, 1
        %s173 = scalar_select %p172, %s17, 1
        %p174 = scmp.lt.s32.totalorder %s18, 0
        %s175 = scalar_select %p174, %s18, 0
        %s176 = smul.addr %s175, 46
        %s177 = smul.addr %s173, 46
        %s178 = sadd.s32 %s176, %s177
        %s179 = smul.addr %s178, 4
        %s180 = scalar_lea.vmem %s0, %s179
      $region32: #{conv_block_forward.1} parent=27 // pred_fallthru
        _
    $region28: #{conv_block_forward.1} parent=5 // pred_fallthru
      _
    %p181 = scmp.le.s32.totalorder 1, %s10
    %p182 = scmp.lt.s32.totalorder %s10, 3
    %p183 = pnand %p181, %p182
    %p184 = pneg %p183
    // Predicated region
    $region33: #{conv_block_forward.1} parent=5 // pred_check
      _
    $region34: #{conv_block_forward.1} parent=5 // pred_check_branch
      %186 = sbr.rel (%p183) target = $region36
    $region35: #{conv_block_forward.1} parent=5 // pred_region
      %s187 = ssub.s32 %s10, 1
      %p188 = scmp.lt.s32.totalorder %s19, 1
      %s189 = scalar_select %p188, %s19, 1
      %p190 = scmp.lt.s32.totalorder %s20, 0
      %s191 = scalar_select %p190, %s20, 0
      %s192 = smul.addr %s191, 46
      %s193 = smul.addr %s189, 46
      %s194 = sadd.s32 %s192, %s193
      %s195 = smul.addr %s194, 4
      %s196 = scalar_lea.vmem %s0, %s195
      %p197 = pneg %p50
      %p198 = pneg %p47
      %p199 = pneg %p71
      %p200 = pneg %p68
      %p201 = pneg %p92
      %p202 = pneg %p89
      %p203 = pneg %p113
      %p204 = pneg %p110
      %p205 = pneg %p141
      %p206 = pneg %p138
      %s207 = smul.u32 36, %s20
      %p208 = scmp.lt.s32.totalorder %s19, 1
      %s209 = scalar_select %p208, %s19, 1
      %p210 = scmp.lt.s32.totalorder %s207, 35
      %s211 = scalar_select %p210, %s207, 35
      %s212 = smul.addr %s209, 36
      %s213 = sadd.s32 %s211, %s212
      %s214 = smul.addr %s213, 4
      %s215 = scalar_lea.vmem %s4, %s214
      %p216 = scmp.lt.s32.totalorder %s19, 1
      %s217 = scalar_select %p216, %s19, 1
      %p218 = scmp.lt.s32.totalorder %s20, 0
      %s219 = scalar_select %p218, %s20, 0
      %s220 = smul.addr %s219, 46
      %s221 = smul.addr %s217, 46
      %s222 = sadd.s32 %s220, %s221
      %s223 = smul.addr %s222, 4
      %s224 = scalar_lea.vmem %s0, %s223
      %s225 = smul.u32 36, %s20
      %p226 = scmp.lt.s32.totalorder %s19, 1
      %s227 = scalar_select %p226, %s19, 1
      %p228 = scmp.lt.s32.totalorder %s225, 35
      %s229 = scalar_select %p228, %s225, 35
      %s230 = smul.addr %s227, 36
      %s231 = sadd.s32 %s229, %s230
      %s232 = smul.addr %s231, 4
      %s233 = scalar_lea.vmem %s4, %s232
      %s234 = smul.u32 36, %s20
      %v236 = vld [vmem:[%s224] sm:$0xf]
      %v237 = vld [vmem:[%s224 + $0x4] sm:$0xf]
      %v238 = vld [vmem:[%s224 + $0x8] sm:$0xf]
      %v239 = vld [vmem:[%s224 + $0xc] sm:$0xf]
      %v240 = vld [vmem:[%s224 + $0x10] sm:$0xf]
      %v241 = vld [vmem:[%s224 + $0x14] sm:$0xf]
      %v242 = vld [vmem:[%s224 + $0x18] sm:$0xf]
      %v243 = vld [vmem:[%s224 + $0x1c] sm:$0xf]
      %v244 = vld [vmem:[%s224 + $0x20] sm:$0xf]
      %v245 = vld [vmem:[%s224 + $0x24] sm:$0xf]
      %v246 = vld [vmem:[%s224 + $0x28] sm:$0xf]
      %v247 = vld [vmem:[%s224 + $0x2c] sm:$0xf]
      %v248 = vld [vmem:[%s224 + $0x30] sm:$0xf]
      %v249 = vld [vmem:[%s224 + $0x34] sm:$0xf]
      %v250 = vld [vmem:[%s224 + $0x38] sm:$0xf]
      %v251 = vld [vmem:[%s224 + $0x3c] sm:$0xf]
      %v252 = vld [vmem:[%s224 + $0x40] sm:$0xf]
      %v253 = vld [vmem:[%s224 + $0x44] sm:$0xf]
      %v254 = vld [vmem:[%s224 + $0x48] sm:$0xf]
      %v255 = vld [vmem:[%s224 + $0x4c] sm:$0xf]
      %v256 = vld [vmem:[%s224 + $0x50] sm:$0xf]
      %v257 = vld [vmem:[%s224 + $0x54] sm:$0xf]
      %v258 = vld [vmem:[%s224 + $0x58] sm:$0xf]
      %v259 = vld [vmem:[%s224 + $0x5c] sm:$0xf]
      %v260 = vld [vmem:[%s224 + $0x60] sm:$0xf]
      %v261 = vld [vmem:[%s224 + $0x64] sm:$0xf]
      %v262 = vld [vmem:[%s224 + $0x68] sm:$0xf]
      %v263 = vld [vmem:[%s224 + $0x6c] sm:$0xf]
      %v264 = vld [vmem:[%s224 + $0x70] sm:$0xf]
      %v265 = vld [vmem:[%s224 + $0x74] sm:$0xf]
      %v266 = vld [vmem:[%s224 + $0x78] sm:$0xf]
      %v267 = vld [vmem:[%s224 + $0x7c] sm:$0xf]
      %v268 = vld [vmem:[%s224 + $0x80] sm:$0xf]
      %v269 = vld [vmem:[%s224 + $0x84] sm:$0xf]
      %v270 = vld [vmem:[%s224 + $0x88] sm:$0xf]
      %v271 = vld [vmem:[%s224 + $0x8c] sm:$0xf]
      %v272 = vld [vmem:[%s224 + $0x90] sm:$0xf]
      %v273 = vld [vmem:[%s224 + $0x94] sm:$0xf]
      %v274 = vld [vmem:[%s224 + $0x98] sm:$0xf]
      %v275 = vld [vmem:[%s224 + $0x9c] sm:$0xf]
      %v276 = vld [vmem:[%s224 + $0xa0] sm:$0x3]
      %v277 = vld [vmem:[%s1] sm:$0x3]
      %v278 = vld [vmem:[%s224 + $0xa0] sm:$0x7]
      %s279 = scalar_lea.vmem %s1, 2
      %v280 = vld [vmem:[%s279] sm:$0x3]
      %v322 = vunpack.c.l.b16 %v236
      %v323 = vunpack.c.l.b16 %v237
      %v324 = vunpack.c.l.b16 %v238
      %v325 = vunpack.c.l.b16 %v239
      %v326 = vunpack.c.l.b16 %v240
      %v327 = vunpack.c.l.b16 %v241
      %v328 = vunpack.c.l.b16 %v242
      %v329 = vunpack.c.l.b16 %v243
      %v330 = vunpack.c.l.b16 %v244
      %v331 = vunpack.c.l.b16 %v245
      %v332 = vunpack.c.l.b16 %v246
      %v333 = vunpack.c.l.b16 %v247
      %v334 = vunpack.c.l.b16 %v248
      %v335 = vunpack.c.l.b16 %v249
      %v336 = vunpack.c.l.b16 %v250
      %v337 = vunpack.c.l.b16 %v251
      %v338 = vunpack.c.l.b16 %v252
      %v339 = vunpack.c.l.b16 %v253
      %v340 = vunpack.c.l.b16 %v254
      %v341 = vunpack.c.l.b16 %v255
      %v342 = vunpack.c.l.b16 %v256
      %v343 = vunpack.c.l.b16 %v257
      %v344 = vunpack.c.l.b16 %v258
      %v345 = vunpack.c.l.b16 %v259
      %v346 = vunpack.c.l.b16 %v260
      %v347 = vunpack.c.l.b16 %v261
      %v348 = vunpack.c.l.b16 %v262
      %v349 = vunpack.c.l.b16 %v263
      %v350 = vunpack.c.l.b16 %v264
      %v351 = vunpack.c.l.b16 %v265
      %v352 = vunpack.c.l.b16 %v266
      %v353 = vunpack.c.l.b16 %v267
      %v354 = vunpack.c.l.b16 %v268
      %v355 = vunpack.c.l.b16 %v269
      %v356 = vunpack.c.l.b16 %v270
      %v357 = vunpack.c.l.b16 %v271
      %v358 = vunpack.c.l.b16 %v272
      %v359 = vunpack.c.l.b16 %v273
      %v360 = vunpack.c.l.b16 %v274
      %v361 = vunpack.c.l.b16 %v275
      %v362 = vunpack.c.l.b16 %v278
      %v363 = vpack.c.b16 %v323, %v322
      %v364 = vpack.c.b16 %v325, %v324
      %v365 = vpack.c.b16 %v327, %v326
      %v366 = vpack.c.b16 %v329, %v328
      %v367 = vpack.c.b16 %v331, %v330
      %v368 = vpack.c.b16 %v333, %v332
      %v369 = vpack.c.b16 %v335, %v334
      %v370 = vpack.c.b16 %v337, %v336
      %v371 = vpack.c.b16 %v339, %v338
      %v372 = vpack.c.b16 %v341, %v340
      %v373 = vpack.c.b16 %v343, %v342
      %v374 = vpack.c.b16 %v345, %v344
      %v375 = vpack.c.b16 %v347, %v346
      %v376 = vpack.c.b16 %v349, %v348
      %v377 = vpack.c.b16 %v351, %v350
      %v378 = vpack.c.b16 %v353, %v352
      %v379 = vpack.c.b16 %v355, %v354
      %v380 = vpack.c.b16 %v357, %v356
      %v381 = vpack.c.b16 %v359, %v358
      %v382 = vpack.c.b16 %v361, %v360
      %v383 = vpack.c.b16 %v362, %v362
      %vm384 = vsmask.f32 7424
      %v386 = vshrl.u32 %v363, 16
      %v388 = vshll.u32 %v363, 16
      %v390 = vrot.slane %v388, 1
      %v391 = vor.u32 %v386, %v390
      %v393 = vshll.u32 %v364, 16
      %v395 = vrot.slane %v393, 1
      %v396 = vsel %vm384, %v391, %v395
      %v397 = vshrl.u32 %v364, 16
      %v399 = vor.u32 %v397, %v395
      %v401 = vshll.u32 %v365, 16
      %v403 = vrot.slane %v401, 1
      %v404 = vsel %vm384, %v399, %v403
      %v405 = vshrl.u32 %v365, 16
      %v407 = vor.u32 %v405, %v403
      %v409 = vshll.u32 %v366, 16
      %v411 = vrot.slane %v409, 1
      %v412 = vsel %vm384, %v407, %v411
      %v413 = vshrl.u32 %v366, 16
      %v415 = vor.u32 %v413, %v411
      %v417 = vshll.u32 %v367, 16
      %v419 = vrot.slane %v417, 1
      %v420 = vsel %vm384, %v415, %v419
      %v421 = vshrl.u32 %v367, 16
      %v423 = vor.u32 %v421, %v419
      %v425 = vshll.u32 %v368, 16
      %v427 = vrot.slane %v425, 1
      %v428 = vsel %vm384, %v423, %v427
      %v429 = vshrl.u32 %v368, 16
      %v431 = vor.u32 %v429, %v427
      %v433 = vshll.u32 %v369, 16
      %v435 = vrot.slane %v433, 1
      %v436 = vsel %vm384, %v431, %v435
      %v437 = vshrl.u32 %v369, 16
      %v439 = vor.u32 %v437, %v435
      %v441 = vshll.u32 %v370, 16
      %v443 = vrot.slane %v441, 1
      %v444 = vsel %vm384, %v439, %v443
      %v445 = vshrl.u32 %v370, 16
      %v447 = vor.u32 %v445, %v443
      %v449 = vshll.u32 %v371, 16
      %v451 = vrot.slane %v449, 1
      %v452 = vsel %vm384, %v447, %v451
      %v453 = vshrl.u32 %v371, 16
      %v455 = vor.u32 %v453, %v451
      %v457 = vshll.u32 %v372, 16
      %v459 = vrot.slane %v457, 1
      %v460 = vsel %vm384, %v455, %v459
      %v461 = vshrl.u32 %v372, 16
      %v463 = vor.u32 %v461, %v459
      %v465 = vshll.u32 %v373, 16
      %v467 = vrot.slane %v465, 1
      %v468 = vsel %vm384, %v463, %v467
      %v469 = vshrl.u32 %v373, 16
      %v471 = vor.u32 %v469, %v467
      %v473 = vshll.u32 %v374, 16
      %v475 = vrot.slane %v473, 1
      %v476 = vsel %vm384, %v471, %v475
      %v477 = vshrl.u32 %v374, 16
      %v479 = vor.u32 %v477, %v475
      %v481 = vshll.u32 %v375, 16
      %v483 = vrot.slane %v481, 1
      %v484 = vsel %vm384, %v479, %v483
      %v485 = vshrl.u32 %v375, 16
      %v487 = vor.u32 %v485, %v483
      %v489 = vshll.u32 %v376, 16
      %v491 = vrot.slane %v489, 1
      %v492 = vsel %vm384, %v487, %v491
      %v493 = vshrl.u32 %v376, 16
      %v495 = vor.u32 %v493, %v491
      %v497 = vshll.u32 %v377, 16
      %v499 = vrot.slane %v497, 1
      %v500 = vsel %vm384, %v495, %v499
      %v501 = vshrl.u32 %v377, 16
      %v503 = vor.u32 %v501, %v499
      %v505 = vshll.u32 %v378, 16
      %v507 = vrot.slane %v505, 1
      %v508 = vsel %vm384, %v503, %v507
      %v509 = vshrl.u32 %v378, 16
      %v511 = vor.u32 %v509, %v507
      %v513 = vshll.u32 %v379, 16
      %v515 = vrot.slane %v513, 1
      %v516 = vsel %vm384, %v511, %v515
      %v517 = vshrl.u32 %v379, 16
      %v519 = vor.u32 %v517, %v515
      %v521 = vshll.u32 %v380, 16
      %v523 = vrot.slane %v521, 1
      %v524 = vsel %vm384, %v519, %v523
      %v525 = vshrl.u32 %v380, 16
      %v527 = vor.u32 %v525, %v523
      %v529 = vshll.u32 %v381, 16
      %v531 = vrot.slane %v529, 1
      %v532 = vsel %vm384, %v527, %v531
      %v533 = vshrl.u32 %v381, 16
      %v535 = vor.u32 %v533, %v531
      %v537 = vshll.u32 %v382, 16
      %v539 = vrot.slane %v537, 1
      %v540 = vsel %vm384, %v535, %v539
      %v541 = vshrl.u32 %v382, 16
      %v543 = vor.u32 %v541, %v539
      %v545 = vshll.u32 %v383, 16
      %v547 = vrot.slane %v545, 1
      %v548 = vsel %vm384, %v543, %v547
      %v549 = vshrl.u32 %v383, 16
      %v551 = vor.u32 %v549, %v547
      %vm552 = vcmask 31744
      %v554 = vsel %vm552, %v396, 0
      %v557 = vsel %vm552, %v404, 0
      %v560 = vsel %vm552, %v412, 0
      %v563 = vsel %vm552, %v420, 0
      %v566 = vsel %vm552, %v428, 0
      %v569 = vsel %vm552, %v436, 0
      %v572 = vsel %vm552, %v444, 0
      %v575 = vsel %vm552, %v452, 0
      %v578 = vsel %vm552, %v460, 0
      %v581 = vsel %vm552, %v468, 0
      %v584 = vsel %vm552, %v476, 0
      %v587 = vsel %vm552, %v484, 0
      %v590 = vsel %vm552, %v492, 0
      %v593 = vsel %vm552, %v500, 0
      %v596 = vsel %vm552, %v508, 0
      %v599 = vsel %vm552, %v516, 0
      %v602 = vsel %vm552, %v524, 0
      %v605 = vsel %vm552, %v532, 0
      %v608 = vsel %vm552, %v540, 0
      %v611 = vsel %vm552, %v548, 0
      %v614 = vsel %vm552, %v551, 0
      %vm616 = vcmask 1041408
      %v618 = vsel %vm616, %v280, 0
      %620 = vmatprep.subr.bf16.mxu0 0
      %621 = vmatpush1.bf16.msra.mxu0 %v618
      %622 = vmatprep.subr.bf16.mxu0 0
      %623 = vmatpush1.bf16.msra.mxu0 0
      %624 = vmatprep.subr.bf16.mxu0 0
      %625 = vmatpush1.bf16.msra.mxu0 0
      %626 = vmatprep.subr.bf16.mxu0 0
      %627 = vmatpush1.bf16.msra.mxu0 0
      %628 = vmatprep.subr.bf16.mxu0 0
      %629 = vmatpush1.bf16.msra.mxu0 0
      %630 = vmatprep.subr.bf16.mxu0 0
      %631 = vmatpush1.bf16.msra.mxu0 0
      %632 = vmatprep.subr.bf16.mxu0 0
      %633 = vmatpush1.bf16.msra.mxu0 0
      %634 = vmatprep.subr.bf16.mxu0 0
      %635 = vmatpush1.bf16.msra.mxu0 0
      %636 = vmatprep.subr.bf16.mxu0 0
      %637 = vmatpush1.bf16.msra.mxu0 0
      %638 = vmatprep.subr.bf16.mxu0 0
      %639 = vmatpush1.bf16.msra.mxu0 0
      %640 = vmatprep.subr.bf16.mxu0 0
      %641 = vmatpush1.bf16.msra.mxu0 0
      %642 = vmatprep.subr.bf16.mxu0 0
      %643 = vmatpush1.bf16.msra.mxu0 0
      %644 = vmatprep.subr.bf16.mxu0 0
      %645 = vmatpush1.bf16.msra.mxu0 0
      %646 = vmatprep.subr.bf16.mxu0 0
      %647 = vmatpush1.bf16.msra.mxu0 0
      %648 = vmatprep.subr.bf16.mxu0 0
      %649 = vmatpush1.bf16.msra.mxu0 0
      %650 = vmatprep.subr.bf16.mxu0 0
      %651 = vmatpush1.bf16.msra.mxu0 0
      %652 = vmatprep.mubr.bf16.mxu0 0
      %653 = vmatmul.mubr.bf16.gmra.mrb[0].mxu0 %v554
      %v654 = vpop.f32.mrb[0].mxu0
      %v655 = vadd.f32 0.0, %v654
      %v656 = vpop.f32.mrb[0].mxu0
      %v657 = vpop.f32.mrb[0].mxu0
      %v658 = vadd.f32 0.0, %v657
      %v659 = vpop.f32.mrb[0].mxu0
      %660 = vmatprep.mubr.bf16.mxu0 0
      %661 = vmatmul.mubr.bf16.gmra.mrb[0].mxu0 %v557
      %v662 = vpop.f32.mrb[0].mxu0
      %v663 = vadd.f32 0.0, %v662
      %v664 = vpop.f32.mrb[0].mxu0
      %v665 = vpop.f32.mrb[0].mxu0
      %v666 = vadd.f32 0.0, %v665
      %v667 = vpop.f32.mrb[0].mxu0
      %668 = vmatprep.mubr.bf16.mxu0 0
      %669 = vmatmul.mubr.bf16.gmra.mrb[0].mxu0 %v560
      %v670 = vpop.f32.mrb[0].mxu0
      %v671 = vadd.f32 0.0, %v670
      %v672 = vpop.f32.mrb[0].mxu0
      %v673 = vpop.f32.mrb[0].mxu0
      %v674 = vadd.f32 0.0, %v673
      %v675 = vpop.f32.mrb[0].mxu0
      %676 = vmatprep.mubr.bf16.mxu0 0
      %677 = vmatmul.mubr.bf16.gmra.mrb[0].mxu0 %v563
      %v678 = vpop.f32.mrb[0].mxu0
      %v679 = vadd.f32 0.0, %v678
      %v680 = vpop.f32.mrb[0].mxu0
      %v681 = vpop.f32.mrb[0].mxu0
      %v682 = vadd.f32 0.0, %v681
      %v683 = vpop.f32.mrb[0].mxu0
      %684 = vmatprep.mubr.bf16.mxu0 0
      %685 = vmatmul.mubr.bf16.gmra.mrb[0].mxu0 %v566
      %v686 = vpop.f32.mrb[0].mxu0
      %v687 = vadd.f32 0.0, %v686
      %v688 = vpop.f32.mrb[0].mxu0
      %v689 = vpop.f32.mrb[0].mxu0
      %v690 = vadd.f32 0.0, %v689
      %v691 = vpop.f32.mrb[0].mxu0
      %692 = vmatprep.mubr.bf16.mxu0 0
      %693 = vmatmul.mubr.bf16.gmra.mrb[0].mxu0 %v569
      %v694 = vpop.f32.mrb[0].mxu0
      %v695 = vadd.f32 0.0, %v694
      %v696 = vpop.f32.mrb[0].mxu0
      %v697 = vpop.f32.mrb[0].mxu0
      %v698 = vadd.f32 0.0, %v697
      %v699 = vpop.f32.mrb[0].mxu0
      %700 = vmatprep.mubr.bf16.mxu0 0
      %701 = vmatmul.mubr.bf16.gmra.mrb[0].mxu0 %v572
      %v702 = vpop.f32.mrb[0].mxu0
      %v703 = vadd.f32 0.0, %v702
      %v704 = vpop.f32.mrb[0].mxu0
      %v705 = vpop.f32.mrb[0].mxu0
      %v706 = vadd.f32 0.0, %v705
      %v707 = vpop.f32.mrb[0].mxu0
      %708 = vmatprep.mubr.bf16.mxu0 0
      %709 = vmatmul.mubr.bf16.gmra.mrb[0].mxu0 %v575
      %v710 = vpop.f32.mrb[0].mxu0
      %v711 = vadd.f32 0.0, %v710
      %v712 = vpop.f32.mrb[0].mxu0
      %v713 = vpop.f32.mrb[0].mxu0
      %v714 = vadd.f32 0.0, %v713
      %v715 = vpop.f32.mrb[0].mxu0
      %716 = vmatprep.mubr.bf16.mxu0 0
      %717 = vmatmul.mubr.bf16.gmra.mrb[0].mxu0 %v578
      %v718 = vpop.f32.mrb[0].mxu0
      %v719 = vadd.f32 0.0, %v718
      %v720 = vpop.f32.mrb[0].mxu0
      %v721 = vpop.f32.mrb[0].mxu0
      %v722 = vadd.f32 0.0, %v721
      %v723 = vpop.f32.mrb[0].mxu0
      %724 = vmatprep.mubr.bf16.mxu0 0
      %725 = vmatmul.mubr.bf16.gmra.mrb[0].mxu0 %v581
      %v726 = vpop.f32.mrb[0].mxu0
      %v727 = vadd.f32 0.0, %v726
      %v728 = vpop.f32.mrb[0].mxu0
      %v729 = vpop.f32.mrb[0].mxu0
      %v730 = vadd.f32 0.0, %v729
      %v731 = vpop.f32.mrb[0].mxu0
      %732 = vmatprep.mubr.bf16.mxu0 0
      %733 = vmatmul.mubr.bf16.gmra.mrb[0].mxu0 %v584
      %v734 = vpop.f32.mrb[0].mxu0
      %v735 = vadd.f32 0.0, %v734
      %v736 = vpop.f32.mrb[0].mxu0
      %v737 = vpop.f32.mrb[0].mxu0
      %v738 = vadd.f32 0.0, %v737
      %v739 = vpop.f32.mrb[0].mxu0
      %740 = vmatprep.mubr.bf16.mxu0 0
      %741 = vmatmul.mubr.bf16.gmra.mrb[0].mxu0 %v587
      %v742 = vpop.f32.mrb[0].mxu0
      %v743 = vadd.f32 0.0, %v742
      %v744 = vpop.f32.mrb[0].mxu0
      %v745 = vpop.f32.mrb[0].mxu0
      %v746 = vadd.f32 0.0, %v745
      %v747 = vpop.f32.mrb[0].mxu0
      %748 = vmatprep.mubr.bf16.mxu0 0
      %749 = vmatmul.mubr.bf16.gmra.mrb[0].mxu0 %v590
      %v750 = vpop.f32.mrb[0].mxu0
      %v751 = vadd.f32 0.0, %v750
      %v752 = vpop.f32.mrb[0].mxu0
      %v753 = vpop.f32.mrb[0].mxu0
      %v754 = vadd.f32 0.0, %v753
      %v755 = vpop.f32.mrb[0].mxu0
      %756 = vmatprep.mubr.bf16.mxu0 0
      %757 = vmatmul.mubr.bf16.gmra.mrb[0].mxu0 %v593
      %v758 = vpop.f32.mrb[0].mxu0
      %v759 = vadd.f32 0.0, %v758
      %v760 = vpop.f32.mrb[0].mxu0
      %v761 = vpop.f32.mrb[0].mxu0
      %v762 = vadd.f32 0.0, %v761
      %v763 = vpop.f32.mrb[0].mxu0
      %764 = vmatprep.mubr.bf16.mxu0 0
      %765 = vmatmul.mubr.bf16.gmra.mrb[0].mxu0 %v596
      %v766 = vpop.f32.mrb[0].mxu0
      %v767 = vadd.f32 0.0, %v766
      %v768 = vpop.f32.mrb[0].mxu0
      %v769 = vpop.f32.mrb[0].mxu0
      %v770 = vadd.f32 0.0, %v769
      %v771 = vpop.f32.mrb[0].mxu0
      %772 = vmatprep.mubr.bf16.mxu0 0
      %773 = vmatmul.mubr.bf16.gmra.mrb[0].mxu0 %v599
      %v774 = vpop.f32.mrb[0].mxu0
      %v775 = vadd.f32 0.0, %v774
      %v776 = vpop.f32.mrb[0].mxu0
      %v777 = vpop.f32.mrb[0].mxu0
      %v778 = vadd.f32 0.0, %v777
      %v779 = vpop.f32.mrb[0].mxu0
      %780 = vmatprep.mubr.bf16.mxu0 0
      %781 = vmatmul.mubr.bf16.gmra.mrb[0].mxu0 %v602
      %v782 = vpop.f32.mrb[0].mxu0
      %v783 = vadd.f32 0.0, %v782
      %v784 = vpop.f32.mrb[0].mxu0
      %v785 = vpop.f32.mrb[0].mxu0
      %v786 = vadd.f32 0.0, %v785
      %v787 = vpop.f32.mrb[0].mxu0
      %788 = vmatprep.mubr.bf16.mxu0 0
      %789 = vmatmul.mubr.bf16.gmra.mrb[0].mxu0 %v605
      %v790 = vpop.f32.mrb[0].mxu0
      %v791 = vadd.f32 0.0, %v790
      %v792 = vpop.f32.mrb[0].mxu0
      %v793 = vpop.f32.mrb[0].mxu0
      %v794 = vadd.f32 0.0, %v793
      %v795 = vpop.f32.mrb[0].mxu0
      %796 = vmatprep.mubr.bf16.mxu0 0
      %797 = vmatmul.mubr.bf16.gmra.mrb[0].mxu0 %v608
      %v798 = vpop.f32.mrb[0].mxu0
      %v799 = vadd.f32 0.0, %v798
      %v800 = vpop.f32.mrb[0].mxu0
      %v801 = vpop.f32.mrb[0].mxu0
      %v802 = vadd.f32 0.0, %v801
      %v803 = vpop.f32.mrb[0].mxu0
      %804 = vmatprep.mubr.bf16.mxu0 0
      %805 = vmatmul.mubr.bf16.gmra.mrb[0].mxu0 %v611
      %v806 = vpop.f32.mrb[0].mxu0
      %v807 = vadd.f32 0.0, %v806
      %v808 = vpop.f32.mrb[0].mxu0
      %v809 = vpop.f32.mrb[0].mxu0
      %v810 = vadd.f32 0.0, %v809
      %v811 = vpop.f32.mrb[0].mxu0
      %812 = vmatprep.mubr.bf16.mxu0 0
      %813 = vmatmul.mubr.bf16.gmra.mrb[0].mxu0 %v614
      %v814 = vpop.f32.mrb[0].mxu0
      %v815 = vadd.f32 0.0, %v814
      %v816 = vpop.f32.mrb[0].mxu0
      %v817 = vpop.f32.mrb[0].mxu0
      %v818 = vpop.f32.mrb[0].mxu0
      %819 = vdwg.mxu0
      %v821 = vunpack.c.l.b16 %v276
      %v822 = vpack.c.b16 %v821, %v821
      %v823 = vsel %vm552, %v363, 0
      %v825 = vsel %vm552, %v364, 0
      %v827 = vsel %vm552, %v365, 0
      %v829 = vsel %vm552, %v366, 0
      %v831 = vsel %vm552, %v367, 0
      %v833 = vsel %vm552, %v368, 0
      %v835 = vsel %vm552, %v369, 0
      %v837 = vsel %vm552, %v370, 0
      %v839 = vsel %vm552, %v371, 0
      %v841 = vsel %vm552, %v372, 0
      %v843 = vsel %vm552, %v373, 0
      %v845 = vsel %vm552, %v374, 0
      %v847 = vsel %vm552, %v375, 0
      %v849 = vsel %vm552, %v376, 0
      %v851 = vsel %vm552, %v377, 0
      %v853 = vsel %vm552, %v378, 0
      %v855 = vsel %vm552, %v379, 0
      %v857 = vsel %vm552, %v380, 0
      %v859 = vsel %vm552, %v381, 0
      %v861 = vsel %vm552, %v382, 0
      %v864 = vsel %vm552, %v822, 0
      %v867 = vsel %vm616, %v277, 0
      %869 = vmatprep.subr.bf16.mxu0 0
      %870 = vmatpush1.bf16.msra.mxu0 %v867
      %871 = vmatprep.subr.bf16.mxu0 0
      %872 = vmatpush1.bf16.msra.mxu0 0
      %873 = vmatprep.subr.bf16.mxu0 0
      %874 = vmatpush1.bf16.msra.mxu0 0
      %875 = vmatprep.subr.bf16.mxu0 0
      %876 = vmatpush1.bf16.msra.mxu0 0
      %877 = vmatprep.subr.bf16.mxu0 0
      %878 = vmatpush1.bf16.msra.mxu0 0
      %879 = vmatprep.subr.bf16.mxu0 0
      %880 = vmatpush1.bf16.msra.mxu0 0
      %881 = vmatprep.subr.bf16.mxu0 0
      %882 = vmatpush1.bf16.msra.mxu0 0
      %883 = vmatprep.subr.bf16.mxu0 0
      %884 = vmatpush1.bf16.msra.mxu0 0
      %885 = vmatprep.subr.bf16.mxu0 0
      %886 = vmatpush1.bf16.msra.mxu0 0
      %887 = vmatprep.subr.bf16.mxu0 0
      %888 = vmatpush1.bf16.msra.mxu0 0
      %889 = vmatprep.subr.bf16.mxu0 0
      %890 = vmatpush1.bf16.msra.mxu0 0
      %891 = vmatprep.subr.bf16.mxu0 0
      %892 = vmatpush1.bf16.msra.mxu0 0
      %893 = vmatprep.subr.bf16.mxu0 0
      %894 = vmatpush1.bf16.msra.mxu0 0
      %895 = vmatprep.subr.bf16.mxu0 0
      %896 = vmatpush1.bf16.msra.mxu0 0
      %897 = vmatprep.subr.bf16.mxu0 0
      %898 = vmatpush1.bf16.msra.mxu0 0
      %899 = vmatprep.subr.bf16.mxu0 0
      %900 = vmatpush1.bf16.msra.mxu0 0
      %901 = vmatprep.mubr.bf16.mxu0 0
      %902 = vmatmul.mubr.bf16.gmra.mrb[0].mxu0 %v823
      %v903 = vpop.f32.mrb[0].mxu0
      %v904 = vadd.f32 %v655, %v903
      %v905 = vpop.f32.mrb[0].mxu0
      %v906 = vpop.f32.mrb[0].mxu0
      %v907 = vadd.f32 %v658, %v906
      %v908 = vpop.f32.mrb[0].mxu0
      %909 = vmatprep.mubr.bf16.mxu0 0
      %910 = vmatmul.mubr.bf16.gmra.mrb[0].mxu0 %v825
      %v911 = vpop.f32.mrb[0].mxu0
      %v912 = vadd.f32 %v663, %v911
      %v913 = vpop.f32.mrb[0].mxu0
      %v914 = vpop.f32.mrb[0].mxu0
      %v915 = vadd.f32 %v666, %v914
      %v916 = vpop.f32.mrb[0].mxu0
      %917 = vmatprep.mubr.bf16.mxu0 0
      %918 = vmatmul.mubr.bf16.gmra.mrb[0].mxu0 %v827
      %v919 = vpop.f32.mrb[0].mxu0
      %v920 = vadd.f32 %v671, %v919
      %v921 = vpop.f32.mrb[0].mxu0
      %v922 = vpop.f32.mrb[0].mxu0
      %v923 = vadd.f32 %v674, %v922
      %v924 = vpop.f32.mrb[0].mxu0
      %925 = vmatprep.mubr.bf16.mxu0 0
      %926 = vmatmul.mubr.bf16.gmra.mrb[0].mxu0 %v829
      %v927 = vpop.f32.mrb[0].mxu0
      %v928 = vadd.f32 %v679, %v927
      %v929 = vpop.f32.mrb[0].mxu0
      %v930 = vpop.f32.mrb[0].mxu0
      %v931 = vadd.f32 %v682, %v930
      %v932 = vpop.f32.mrb[0].mxu0
      %933 = vmatprep.mubr.bf16.mxu0 0
      %934 = vmatmul.mubr.bf16.gmra.mrb[0].mxu0 %v831
      %v935 = vpop.f32.mrb[0].mxu0
      %v936 = vadd.f32 %v687, %v935
      %v937 = vpop.f32.mrb[0].mxu0
      %v938 = vpop.f32.mrb[0].mxu0
      %v939 = vadd.f32 %v690, %v938
      %v940 = vpop.f32.mrb[0].mxu0
      %941 = vmatprep.mubr.bf16.mxu0 0
      %942 = vmatmul.mubr.bf16.gmra.mrb[0].mxu0 %v833
      %v943 = vpop.f32.mrb[0].mxu0
      %v944 = vadd.f32 %v695, %v943
      %v945 = vpop.f32.mrb[0].mxu0
      %v946 = vpop.f32.mrb[0].mxu0
      %v947 = vadd.f32 %v698, %v946
      %v948 = vpop.f32.mrb[0].mxu0
      %949 = vmatprep.mubr.bf16.mxu0 0
      %950 = vmatmul.mubr.bf16.gmra.mrb[0].mxu0 %v835
      %v951 = vpop.f32.mrb[0].mxu0
      %v952 = vadd.f32 %v703, %v951
      %v953 = vpop.f32.mrb[0].mxu0
      %v954 = vpop.f32.mrb[0].mxu0
      %v955 = vadd.f32 %v706, %v954
      %v956 = vpop.f32.mrb[0].mxu0
      %957 = vmatprep.mubr.bf16.mxu0 0
      %958 = vmatmul.mubr.bf16.gmra.mrb[0].mxu0 %v837
      %v959 = vpop.f32.mrb[0].mxu0
      %v960 = vadd.f32 %v711, %v959
      %v961 = vpop.f32.mrb[0].mxu0
      %v962 = vpop.f32.mrb[0].mxu0
      %v963 = vadd.f32 %v714, %v962
      %v964 = vpop.f32.mrb[0].mxu0
      %965 = vmatprep.mubr.bf16.mxu0 0
      %966 = vmatmul.mubr.bf16.gmra.mrb[0].mxu0 %v839
      %v967 = vpop.f32.mrb[0].mxu0
      %v968 = vadd.f32 %v719, %v967
      %v969 = vpop.f32.mrb[0].mxu0
      %v970 = vpop.f32.mrb[0].mxu0
      %v971 = vadd.f32 %v722, %v970
      %v972 = vpop.f32.mrb[0].mxu0
      %973 = vmatprep.mubr.bf16.mxu0 0
      %974 = vmatmul.mubr.bf16.gmra.mrb[0].mxu0 %v841
      %v975 = vpop.f32.mrb[0].mxu0
      %v976 = vadd.f32 %v727, %v975
      %v977 = vpop.f32.mrb[0].mxu0
      %v978 = vpop.f32.mrb[0].mxu0
      %v979 = vadd.f32 %v730, %v978
      %v980 = vpop.f32.mrb[0].mxu0
      %981 = vmatprep.mubr.bf16.mxu0 0
      %982 = vmatmul.mubr.bf16.gmra.mrb[0].mxu0 %v843
      %v983 = vpop.f32.mrb[0].mxu0
      %v984 = vadd.f32 %v735, %v983
      %v985 = vpop.f32.mrb[0].mxu0
      %v986 = vpop.f32.mrb[0].mxu0
      %v987 = vadd.f32 %v738, %v986
      %v988 = vpop.f32.mrb[0].mxu0
      %989 = vmatprep.mubr.bf16.mxu0 0
      %990 = vmatmul.mubr.bf16.gmra.mrb[0].mxu0 %v845
      %v991 = vpop.f32.mrb[0].mxu0
      %v992 = vadd.f32 %v743, %v991
      %v993 = vpop.f32.mrb[0].mxu0
      %v994 = vpop.f32.mrb[0].mxu0
      %v995 = vadd.f32 %v746, %v994
      %v996 = vpop.f32.mrb[0].mxu0
      %997 = vmatprep.mubr.bf16.mxu0 0
      %998 = vmatmul.mubr.bf16.gmra.mrb[0].mxu0 %v847
      %v999 = vpop.f32.mrb[0].mxu0
      %v1000 = vadd.f32 %v751, %v999
      %v1001 = vpop.f32.mrb[0].mxu0
      %v1002 = vpop.f32.mrb[0].mxu0
      %v1003 = vadd.f32 %v754, %v1002
      %v1004 = vpop.f32.mrb[0].mxu0
      %1005 = vmatprep.mubr.bf16.mxu0 0
      %1006 = vmatmul.mubr.bf16.gmra.mrb[0].mxu0 %v849
      %v1007 = vpop.f32.mrb[0].mxu0
      %v1008 = vadd.f32 %v759, %v1007
      %v1009 = vpop.f32.mrb[0].mxu0
      %v1010 = vpop.f32.mrb[0].mxu0
      %v1011 = vadd.f32 %v762, %v1010
      %v1012 = vpop.f32.mrb[0].mxu0
      %1013 = vmatprep.mubr.bf16.mxu0 0
      %1014 = vmatmul.mubr.bf16.gmra.mrb[0].mxu0 %v851
      %v1015 = vpop.f32.mrb[0].mxu0
      %v1016 = vadd.f32 %v767, %v1015
      %v1017 = vpop.f32.mrb[0].mxu0
      %v1018 = vpop.f32.mrb[0].mxu0
      %v1019 = vadd.f32 %v770, %v1018
      %v1020 = vpop.f32.mrb[0].mxu0
      %1021 = vmatprep.mubr.bf16.mxu0 0
      %1022 = vmatmul.mubr.bf16.gmra.mrb[0].mxu0 %v853
      %v1023 = vpop.f32.mrb[0].mxu0
      %v1024 = vadd.f32 %v775, %v1023
      %v1025 = vpop.f32.mrb[0].mxu0
      %v1026 = vpop.f32.mrb[0].mxu0
      %v1027 = vadd.f32 %v778, %v1026
      %v1028 = vpop.f32.mrb[0].mxu0
      %1029 = vmatprep.mubr.bf16.mxu0 0
      %1030 = vmatmul.mubr.bf16.gmra.mrb[0].mxu0 %v855
      %v1031 = vpop.f32.mrb[0].mxu0
      %v1032 = vadd.f32 %v783, %v1031
      %v1033 = vpop.f32.mrb[0].mxu0
      %v1034 = vpop.f32.mrb[0].mxu0
      %v1035 = vadd.f32 %v786, %v1034
      %v1036 = vpop.f32.mrb[0].mxu0
      %1037 = vmatprep.mubr.bf16.mxu0 0
      %1038 = vmatmul.mubr.bf16.gmra.mrb[0].mxu0 %v857
      %v1039 = vpop.f32.mrb[0].mxu0
      %v1040 = vadd.f32 %v791, %v1039
      %v1041 = vpop.f32.mrb[0].mxu0
      %v1042 = vpop.f32.mrb[0].mxu0
      %v1043 = vadd.f32 %v794, %v1042
      %v1044 = vpop.f32.mrb[0].mxu0
      %1045 = vmatprep.mubr.bf16.mxu0 0
      %1046 = vmatmul.mubr.bf16.gmra.mrb[0].mxu0 %v859
      %v1047 = vpop.f32.mrb[0].mxu0
      %v1048 = vadd.f32 %v799, %v1047
      %v1049 = vpop.f32.mrb[0].mxu0
      %v1050 = vpop.f32.mrb[0].mxu0
      %v1051 = vadd.f32 %v802, %v1050
      %v1052 = vpop.f32.mrb[0].mxu0
      %1053 = vmatprep.mubr.bf16.mxu0 0
      %1054 = vmatmul.mubr.bf16.gmra.mrb[0].mxu0 %v861
      %v1055 = vpop.f32.mrb[0].mxu0
      %v1056 = vadd.f32 %v807, %v1055
      %v1057 = vpop.f32.mrb[0].mxu0
      %v1058 = vpop.f32.mrb[0].mxu0
      %v1059 = vadd.f32 %v810, %v1058
      %v1060 = vpop.f32.mrb[0].mxu0
      %1061 = vmatprep.mubr.bf16.mxu0 0
      %1062 = vmatmul.mubr.bf16.gmra.mrb[0].mxu0 %v864
      %v1063 = vpop.f32.mrb[0].mxu0
      %v1064 = vadd.f32 %v815, %v1063
      %v1065 = vpop.f32.mrb[0].mxu0
      %v1066 = vpop.f32.mrb[0].mxu0
      %v1067 = vpop.f32.mrb[0].mxu0
      %1068 = vdwg.mxu0
      %v1069 = vld [vmem:[%s224] sm:$0xe]
      %s1070 = scalar_lea.vmem %s1, 4
      %v1071 = vld [vmem:[%s1070] sm:$0x3]
      %v1073 = vunpack.c.l.b16 %v1069
      %v1074 = vpack.c.b16 %v323, %v1073
      %vm1075 = vcmask 1046528
      %v1076 = vrot.slane %v1074, 1
      %v1077 = vrot.slane %v364, 1
      %v1078 = vsel %vm1075, %v1076, %v1077
      %v1079 = vrot.slane %v365, 1
      %v1080 = vsel %vm1075, %v1077, %v1079
      %v1081 = vrot.slane %v366, 1
      %v1082 = vsel %vm1075, %v1079, %v1081
      %v1083 = vrot.slane %v367, 1
      %v1084 = vsel %vm1075, %v1081, %v1083
      %v1085 = vrot.slane %v368, 1
      %v1086 = vsel %vm1075, %v1083, %v1085
      %v1087 = vrot.slane %v369, 1
      %v1088 = vsel %vm1075, %v1085, %v1087
      %v1089 = vrot.slane %v370, 1
      %v1090 = vsel %vm1075, %v1087, %v1089
      %v1091 = vrot.slane %v371, 1
      %v1092 = vsel %vm1075, %v1089, %v1091
      %v1093 = vrot.slane %v372, 1
      %v1094 = vsel %vm1075, %v1091, %v1093
      %v1095 = vrot.slane %v373, 1
      %v1096 = vsel %vm1075, %v1093, %v1095
      %v1097 = vrot.slane %v374, 1
      %v1098 = vsel %vm1075, %v1095, %v1097
      %v1099 = vrot.slane %v375, 1
      %v1100 = vsel %vm1075, %v1097, %v1099
      %v1101 = vrot.slane %v376, 1
      %v1102 = vsel %vm1075, %v1099, %v1101
      %v1103 = vrot.slane %v377, 1
      %v1104 = vsel %vm1075, %v1101, %v1103
      %v1105 = vrot.slane %v378, 1
      %v1106 = vsel %vm1075, %v1103, %v1105
      %v1107 = vrot.slane %v379, 1
      %v1108 = vsel %vm1075, %v1105, %v1107
      %v1109 = vrot.slane %v380, 1
      %v1110 = vsel %vm1075, %v1107, %v1109
      %v1111 = vrot.slane %v381, 1
      %v1112 = vsel %vm1075, %v1109, %v1111
      %v1113 = vrot.slane %v382, 1
      %v1114 = vsel %vm1075, %v1111, %v1113
      %v1115 = vrot.slane %v383, 1
      %v1116 = vsel %vm1075, %v1113, %v1115
      %v1118 = vsel %vm552, %v1078, 0
      %v1121 = vsel %vm552, %v1080, 0
      %v1124 = vsel %vm552, %v1082, 0
      %v1127 = vsel %vm552, %v1084, 0
      %v1130 = vsel %vm552, %v1086, 0
      %v1133 = vsel %vm552, %v1088, 0
      %v1136 = vsel %vm552, %v1090, 0
      %v1139 = vsel %vm552, %v1092, 0
      %v1142 = vsel %vm552, %v1094, 0
      %v1145 = vsel %vm552, %v1096, 0
      %v1148 = vsel %vm552, %v1098, 0
      %v1151 = vsel %vm552, %v1100, 0
      %v1154 = vsel %vm552, %v1102, 0
      %v1157 = vsel %vm552, %v1104, 0
      %v1160 = vsel %vm552, %v1106, 0
      %v1163 = vsel %vm552, %v1108, 0
      %v1166 = vsel %vm552, %v1110, 0
      %v1169 = vsel %vm552, %v1112, 0
      %v1172 = vsel %vm552, %v1114, 0
      %v1175 = vsel %vm552, %v1116, 0
      %v1178 = vsel %vm552, %v1115, 0
      %v1181 = vsel %vm616, %v1071, 0
      %1183 = vmatprep.subr.bf16.mxu0 0
      %1184 = vmatpush1.bf16.msra.mxu0 %v1181
      %1185 = vmatprep.subr.bf16.mxu0 0
      %1186 = vmatpush1.bf16.msra.mxu0 0
      %1187 = vmatprep.subr.bf16.mxu0 0
      %1188 = vmatpush1.bf16.msra.mxu0 0
      %1189 = vmatprep.subr.bf16.mxu0 0
      %1190 = vmatpush1.bf16.msra.mxu0 0
      %1191 = vmatprep.subr.bf16.mxu0 0
      %1192 = vmatpush1.bf16.msra.mxu0 0
      %1193 = vmatprep.subr.bf16.mxu0 0
      %1194 = vmatpush1.bf16.msra.mxu0 0
      %1195 = vmatprep.subr.bf16.mxu0 0
      %1196 = vmatpush1.bf16.msra.mxu0 0
      %1197 = vmatprep.subr.bf16.mxu0 0
      %1198 = vmatpush1.bf16.msra.mxu0 0
      %1199 = vmatprep.subr.bf16.mxu0 0
      %1200 = vmatpush1.bf16.msra.mxu0 0
      %1201 = vmatprep.subr.bf16.mxu0 0
      %1202 = vmatpush1.bf16.msra.mxu0 0
      %1203 = vmatprep.subr.bf16.mxu0 0
      %1204 = vmatpush1.bf16.msra.mxu0 0
      %1205 = vmatprep.subr.bf16.mxu0 0
      %1206 = vmatpush1.bf16.msra.mxu0 0
      %1207 = vmatprep.subr.bf16.mxu0 0
      %1208 = vmatpush1.bf16.msra.mxu0 0
      %1209 = vmatprep.subr.bf16.mxu0 0
      %1210 = vmatpush1.bf16.msra.mxu0 0
      %1211 = vmatprep.subr.bf16.mxu0 0
      %1212 = vmatpush1.bf16.msra.mxu0 0
      %1213 = vmatprep.subr.bf16.mxu0 0
      %1214 = vmatpush1.bf16.msra.mxu0 0
      %1215 = vmatprep.mubr.bf16.mxu0 0
      %1216 = vmatmul.mubr.bf16.gmra.mrb[0].mxu0 %v1118
      %v1217 = vpop.f32.mrb[0].mxu0
      %v1218 = vadd.f32 0.0, %v1217
      %v1219 = vpop.f32.mrb[0].mxu0
      %v1220 = vpop.f32.mrb[0].mxu0
      %v1221 = vadd.f32 0.0, %v1220
      %v1222 = vpop.f32.mrb[0].mxu0
      %1223 = vmatprep.mubr.bf16.mxu0 0
      %1224 = vmatmul.mubr.bf16.gmra.mrb[0].mxu0 %v1121
      %v1225 = vpop.f32.mrb[0].mxu0
      %v1226 = vadd.f32 0.0, %v1225
      %v1227 = vpop.f32.mrb[0].mxu0
      %v1228 = vpop.f32.mrb[0].mxu0
      %v1229 = vadd.f32 0.0, %v1228
      %v1230 = vpop.f32.mrb[0].mxu0
      %1231 = vmatprep.mubr.bf16.mxu0 0
      %1232 = vmatmul.mubr.bf16.gmra.mrb[0].mxu0 %v1124
      %v1233 = vpop.f32.mrb[0].mxu0
      %v1234 = vadd.f32 0.0, %v1233
      %v1235 = vpop.f32.mrb[0].mxu0
      %v1236 = vpop.f32.mrb[0].mxu0
      %v1237 = vadd.f32 0.0, %v1236
      %v1238 = vpop.f32.mrb[0].mxu0
      %1239 = vmatprep.mubr.bf16.mxu0 0
      %1240 = vmatmul.mubr.bf16.gmra.mrb[0].mxu0 %v1127
      %v1241 = vpop.f32.mrb[0].mxu0
      %v1242 = vadd.f32 0.0, %v1241
      %v1243 = vpop.f32.mrb[0].mxu0
      %v1244 = vpop.f32.mrb[0].mxu0
      %v1245 = vadd.f32 0.0, %v1244
      %v1246 = vpop.f32.mrb[0].mxu0
      %1247 = vmatprep.mubr.bf16.mxu0 0
      %1248 = vmatmul.mubr.bf16.gmra.mrb[0].mxu0 %v1130
      %v1249 = vpop.f32.mrb[0].mxu0
      %v1250 = vadd.f32 0.0, %v1249
      %v1251 = vpop.f32.mrb[0].mxu0
      %v1252 = vpop.f32.mrb[0].mxu0
      %v1253 = vadd.f32 0.0, %v1252
      %v1254 = vpop.f32.mrb[0].mxu0
      %1255 = vmatprep.mubr.bf16.mxu0 0
      %1256 = vmatmul.mubr.bf16.gmra.mrb[0].mxu0 %v1133
      %v1257 = vpop.f32.mrb[0].mxu0
      %v1258 = vadd.f32 0.0, %v1257
      %v1259 = vpop.f32.mrb[0].mxu0
      %v1260 = vpop.f32.mrb[0].mxu0
      %v1261 = vadd.f32 0.0, %v1260
      %v1262 = vpop.f32.mrb[0].mxu0
      %1263 = vmatprep.mubr.bf16.mxu0 0
      %1264 = vmatmul.mubr.bf16.gmra.mrb[0].mxu0 %v1136
      %v1265 = vpop.f32.mrb[0].mxu0
      %v1266 = vadd.f32 0.0, %v1265
      %v1267 = vpop.f32.mrb[0].mxu0
      %v1268 = vpop.f32.mrb[0].mxu0
      %v1269 = vadd.f32 0.0, %v1268
      %v1270 = vpop.f32.mrb[0].mxu0
      %1271 = vmatprep.mubr.bf16.mxu0 0
      %1272 = vmatmul.mubr.bf16.gmra.mrb[0].mxu0 %v1139
      %v1273 = vpop.f32.mrb[0].mxu0
      %v1274 = vadd.f32 0.0, %v1273
      %v1275 = vpop.f32.mrb[0].mxu0
      %v1276 = vpop.f32.mrb[0].mxu0
      %v1277 = vadd.f32 0.0, %v1276
      %v1278 = vpop.f32.mrb[0].mxu0
      %1279 = vmatprep.mubr.bf16.mxu0 0
      %1280 = vmatmul.mubr.bf16.gmra.mrb[0].mxu0 %v1142
      %v1281 = vpop.f32.mrb[0].mxu0
      %v1282 = vadd.f32 0.0, %v1281
      %v1283 = vpop.f32.mrb[0].mxu0
      %v1284 = vpop.f32.mrb[0].mxu0
      %v1285 = vadd.f32 0.0, %v1284
      %v1286 = vpop.f32.mrb[0].mxu0
      %1287 = vmatprep.mubr.bf16.mxu0 0
      %1288 = vmatmul.mubr.bf16.gmra.mrb[0].mxu0 %v1145
      %v1289 = vpop.f32.mrb[0].mxu0
      %v1290 = vadd.f32 0.0, %v1289
      %v1291 = vpop.f32.mrb[0].mxu0
      %v1292 = vpop.f32.mrb[0].mxu0
      %v1293 = vadd.f32 0.0, %v1292
      %v1294 = vpop.f32.mrb[0].mxu0
      %1295 = vmatprep.mubr.bf16.mxu0 0
      %1296 = vmatmul.mubr.bf16.gmra.mrb[0].mxu0 %v1148
      %v1297 = vpop.f32.mrb[0].mxu0
      %v1298 = vadd.f32 0.0, %v1297
      %v1299 = vpop.f32.mrb[0].mxu0
      %v1300 = vpop.f32.mrb[0].mxu0
      %v1301 = vadd.f32 0.0, %v1300
      %v1302 = vpop.f32.mrb[0].mxu0
      %1303 = vmatprep.mubr.bf16.mxu0 0
      %1304 = vmatmul.mubr.bf16.gmra.mrb[0].mxu0 %v1151
      %v1305 = vpop.f32.mrb[0].mxu0
      %v1306 = vadd.f32 0.0, %v1305
      %v1307 = vpop.f32.mrb[0].mxu0
      %v1308 = vpop.f32.mrb[0].mxu0
      %v1309 = vadd.f32 0.0, %v1308
      %v1310 = vpop.f32.mrb[0].mxu0
      %1311 = vmatprep.mubr.bf16.mxu0 0
      %1312 = vmatmul.mubr.bf16.gmra.mrb[0].mxu0 %v1154
      %v1313 = vpop.f32.mrb[0].mxu0
      %v1314 = vadd.f32 0.0, %v1313
      %v1315 = vpop.f32.mrb[0].mxu0
      %v1316 = vpop.f32.mrb[0].mxu0
      %v1317 = vadd.f32 0.0, %v1316
      %v1318 = vpop.f32.mrb[0].mxu0
      %1319 = vmatprep.mubr.bf16.mxu0 0
      %1320 = vmatmul.mubr.bf16.gmra.mrb[0].mxu0 %v1157
      %v1321 = vpop.f32.mrb[0].mxu0
      %v1322 = vadd.f32 0.0, %v1321
      %v1323 = vpop.f32.mrb[0].mxu0
      %v1324 = vpop.f32.mrb[0].mxu0
      %v1325 = vadd.f32 0.0, %v1324
      %v1326 = vpop.f32.mrb[0].mxu0
      %1327 = vmatprep.mubr.bf16.mxu0 0
      %1328 = vmatmul.mubr.bf16.gmra.mrb[0].mxu0 %v1160
      %v1329 = vpop.f32.mrb[0].mxu0
      %v1330 = vadd.f32 0.0, %v1329
      %v1331 = vpop.f32.mrb[0].mxu0
      %v1332 = vpop.f32.mrb[0].mxu0
      %v1333 = vadd.f32 0.0, %v1332
      %v1334 = vpop.f32.mrb[0].mxu0
      %1335 = vmatprep.mubr.bf16.mxu0 0
      %1336 = vmatmul.mubr.bf16.gmra.mrb[0].mxu0 %v1163
      %v1337 = vpop.f32.mrb[0].mxu0
      %v1338 = vadd.f32 0.0, %v1337
      %v1339 = vpop.f32.mrb[0].mxu0
      %v1340 = vpop.f32.mrb[0].mxu0
      %v1341 = vadd.f32 0.0, %v1340
      %v1342 = vpop.f32.mrb[0].mxu0
      %1343 = vmatprep.mubr.bf16.mxu0 0
      %1344 = vmatmul.mubr.bf16.gmra.mrb[0].mxu0 %v1166
      %v1345 = vpop.f32.mrb[0].mxu0
      %v1346 = vadd.f32 0.0, %v1345
      %v1347 = vpop.f32.mrb[0].mxu0
      %v1348 = vpop.f32.mrb[0].mxu0
      %v1349 = vadd.f32 0.0, %v1348
      %v1350 = vpop.f32.mrb[0].mxu0
      %1351 = vmatprep.mubr.bf16.mxu0 0
      %1352 = vmatmul.mubr.bf16.gmra.mrb[0].mxu0 %v1169
      %v1353 = vpop.f32.mrb[0].mxu0
      %v1354 = vadd.f32 0.0, %v1353
      %v1355 = vpop.f32.mrb[0].mxu0
      %v1356 = vpop.f32.mrb[0].mxu0
      %v1357 = vadd.f32 0.0, %v1356
      %v1358 = vpop.f32.mrb[0].mxu0
      %1359 = vmatprep.mubr.bf16.mxu0 0
      %1360 = vmatmul.mubr.bf16.gmra.mrb[0].mxu0 %v1172
      %v1361 = vpop.f32.mrb[0].mxu0
      %v1362 = vadd.f32 0.0, %v1361
      %v1363 = vpop.f32.mrb[0].mxu0
      %v1364 = vpop.f32.mrb[0].mxu0
      %v1365 = vadd.f32 0.0, %v1364
      %v1366 = vpop.f32.mrb[0].mxu0
      %1367 = vmatprep.mubr.bf16.mxu0 0
      %1368 = vmatmul.mubr.bf16.gmra.mrb[0].mxu0 %v1175
      %v1369 = vpop.f32.mrb[0].mxu0
      %v1370 = vadd.f32 0.0, %v1369
      %v1371 = vpop.f32.mrb[0].mxu0
      %v1372 = vpop.f32.mrb[0].mxu0
      %v1373 = vadd.f32 0.0, %v1372
      %v1374 = vpop.f32.mrb[0].mxu0
      %1375 = vmatprep.mubr.bf16.mxu0 0
      %1376 = vmatmul.mubr.bf16.gmra.mrb[0].mxu0 %v1178
      %v1377 = vpop.f32.mrb[0].mxu0
      %v1378 = vadd.f32 0.0, %v1377
      %v1379 = vpop.f32.mrb[0].mxu0
      %v1380 = vpop.f32.mrb[0].mxu0
      %v1381 = vpop.f32.mrb[0].mxu0
      %1382 = vdwg.mxu0
      %v1383 = vadd.f32 %v904, %v1218
      %v1384 = vadd.f32 %v907, %v1221
      %v1385 = vadd.f32 %v912, %v1226
      %v1386 = vadd.f32 %v915, %v1229
      %v1387 = vadd.f32 %v920, %v1234
      %v1388 = vadd.f32 %v923, %v1237
      %v1389 = vadd.f32 %v928, %v1242
      %v1390 = vadd.f32 %v931, %v1245
      %v1391 = vadd.f32 %v936, %v1250
      %v1392 = vadd.f32 %v939, %v1253
      %v1393 = vadd.f32 %v944, %v1258
      %v1394 = vadd.f32 %v947, %v1261
      %v1395 = vadd.f32 %v952, %v1266
      %v1396 = vadd.f32 %v955, %v1269
      %v1397 = vadd.f32 %v960, %v1274
      %v1398 = vadd.f32 %v963, %v1277
      %v1399 = vadd.f32 %v968, %v1282
      %v1400 = vadd.f32 %v971, %v1285
      %v1401 = vadd.f32 %v976, %v1290
      %v1402 = vadd.f32 %v979, %v1293
      %v1403 = vadd.f32 %v984, %v1298
      %v1404 = vadd.f32 %v987, %v1301
      %v1405 = vadd.f32 %v992, %v1306
      %v1406 = vadd.f32 %v995, %v1309
      %v1407 = vadd.f32 %v1000, %v1314
      %v1408 = vadd.f32 %v1003, %v1317
      %v1409 = vadd.f32 %v1008, %v1322
      %v1410 = vadd.f32 %v1011, %v1325
      %v1411 = vadd.f32 %v1016, %v1330
      %v1412 = vadd.f32 %v1019, %v1333
      %v1413 = vadd.f32 %v1024, %v1338
      %v1414 = vadd.f32 %v1027, %v1341
      %v1415 = vadd.f32 %v1032, %v1346
      %v1416 = vadd.f32 %v1035, %v1349
      %v1417 = vadd.f32 %v1040, %v1354
      %v1418 = vadd.f32 %v1043, %v1357
      %v1419 = vadd.f32 %v1048, %v1362
      %v1420 = vadd.f32 %v1051, %v1365
      %v1421 = vadd.f32 %v1056, %v1370
      %v1422 = vadd.f32 %v1059, %v1373
      %v1423 = vadd.f32 %v1064, %v1378
      %v1424 = vld [vmem:[%s224 + $0x8] sm:$0xe]
      %v1425 = vld [vmem:[%s224 + $0xc] sm:$0xf]
      %v1426 = vld [vmem:[%s224 + $0x10] sm:$0xf]
      %v1427 = vld [vmem:[%s224 + $0x14] sm:$0xf]
      %v1428 = vld [vmem:[%s224 + $0x18] sm:$0xf]
      %v1429 = vld [vmem:[%s224 + $0x1c] sm:$0xf]
      %v1430 = vld [vmem:[%s224 + $0x20] sm:$0xf]
      %v1431 = vld [vmem:[%s224 + $0x24] sm:$0xf]
      %v1432 = vld [vmem:[%s224 + $0x28] sm:$0xf]
      %v1433 = vld [vmem:[%s224 + $0x2c] sm:$0xf]
      %v1434 = vld [vmem:[%s224 + $0x30] sm:$0xf]
      %v1435 = vld [vmem:[%s224 + $0x34] sm:$0xf]
      %v1436 = vld [vmem:[%s224 + $0x38] sm:$0xf]
      %v1437 = vld [vmem:[%s224 + $0x3c] sm:$0xf]
      %v1438 = vld [vmem:[%s224 + $0x40] sm:$0xf]
      %v1439 = vld [vmem:[%s224 + $0x44] sm:$0xf]
      %v1440 = vld [vmem:[%s224 + $0x48] sm:$0xf]
      %v1441 = vld [vmem:[%s224 + $0x4c] sm:$0xf]
      %v1442 = vld [vmem:[%s224 + $0x50] sm:$0xf]
      %v1443 = vld [vmem:[%s224 + $0x54] sm:$0xf]
      %v1444 = vld [vmem:[%s224 + $0x58] sm:$0xf]
      %v1445 = vld [vmem:[%s224 + $0x5c] sm:$0xf]
      %v1446 = vld [vmem:[%s224 + $0x60] sm:$0xf]
      %v1447 = vld [vmem:[%s224 + $0x64] sm:$0xf]
      %v1448 = vld [vmem:[%s224 + $0x68] sm:$0xf]
      %v1449 = vld [vmem:[%s224 + $0x6c] sm:$0xf]
      %v1450 = vld [vmem:[%s224 + $0x70] sm:$0xf]
      %v1451 = vld [vmem:[%s224 + $0x74] sm:$0xf]
      %v1452 = vld [vmem:[%s224 + $0x78] sm:$0xf]
      %v1453 = vld [vmem:[%s224 + $0x7c] sm:$0xf]
      %v1454 = vld [vmem:[%s224 + $0x80] sm:$0xf]
      %v1455 = vld [vmem:[%s224 + $0x84] sm:$0xf]
      %v1456 = vld [vmem:[%s224 + $0x88] sm:$0xf]
      %v1457 = vld [vmem:[%s224 + $0x8c] sm:$0xf]
      %v1458 = vld [vmem:[%s224 + $0x90] sm:$0xf]
      %v1459 = vld [vmem:[%s224 + $0x94] sm:$0xf]
      %v1460 = vld [vmem:[%s224 + $0x98] sm:$0xf]
      %v1461 = vld [vmem:[%s224 + $0x9c] sm:$0xf]
      %v1462 = vld [vmem:[%s224 + $0xa0] sm:$0xf]
      %v1463 = vld [vmem:[%s224 + $0xa4] sm:$0xf]
      %v1464 = vld [vmem:[%s224 + $0xa8] sm:$0x7]
      %s1465 = scalar_lea.vmem %s1, 6
      %v1466 = vld [vmem:[%s1465] sm:$0x3]
      %v1508 = vunpack.c.l.b16 %v1424
      %v1509 = vunpack.c.l.b16 %v1425
      %v1510 = vunpack.c.l.b16 %v1426
      %v1511 = vunpack.c.l.b16 %v1427
      %v1512 = vunpack.c.l.b16 %v1428
      %v1513 = vunpack.c.l.b16 %v1429
      %v1514 = vunpack.c.l.b16 %v1430
      %v1515 = vunpack.c.l.b16 %v1431
      %v1516 = vunpack.c.l.b16 %v1432
      %v1517 = vunpack.c.l.b16 %v1433
      %v1518 = vunpack.c.l.b16 %v1434
      %v1519 = vunpack.c.l.b16 %v1435
      %v1520 = vunpack.c.l.b16 %v1436
      %v1521 = vunpack.c.l.b16 %v1437
      %v1522 = vunpack.c.l.b16 %v1438
      %v1523 = vunpack.c.l.b16 %v1439
      %v1524 = vunpack.c.l.b16 %v1440
      %v1525 = vunpack.c.l.b16 %v1441
      %v1526 = vunpack.c.l.b16 %v1442
      %v1527 = vunpack.c.l.b16 %v1443
      %v1528 = vunpack.c.l.b16 %v1444
      %v1529 = vunpack.c.l.b16 %v1445
      %v1530 = vunpack.c.l.b16 %v1446
      %v1531 = vunpack.c.l.b16 %v1447
      %v1532 = vunpack.c.l.b16 %v1448
      %v1533 = vunpack.c.l.b16 %v1449
      %v1534 = vunpack.c.l.b16 %v1450
      %v1535 = vunpack.c.l.b16 %v1451
      %v1536 = vunpack.c.l.b16 %v1452
      %v1537 = vunpack.c.l.b16 %v1453
      %v1538 = vunpack.c.l.b16 %v1454
      %v1539 = vunpack.c.l.b16 %v1455
      %v1540 = vunpack.c.l.b16 %v1456
      %v1541 = vunpack.c.l.b16 %v1457
      %v1542 = vunpack.c.l.b16 %v1458
      %v1543 = vunpack.c.l.b16 %v1459
      %v1544 = vunpack.c.l.b16 %v1460
      %v1545 = vunpack.c.l.b16 %v1461
      %v1546 = vunpack.c.l.b16 %v1462
      %v1547 = vunpack.c.l.b16 %v1463
      %v1548 = vunpack.c.l.b16 %v1464
      %v1549 = vpack.c.b16 %v1509, %v1508
      %v1550 = vpack.c.b16 %v1511, %v1510
      %v1551 = vpack.c.b16 %v1513, %v1512
      %v1552 = vpack.c.b16 %v1515, %v1514
      %v1553 = vpack.c.b16 %v1517, %v1516
      %v1554 = vpack.c.b16 %v1519, %v1518
      %v1555 = vpack.c.b16 %v1521, %v1520
      %v1556 = vpack.c.b16 %v1523, %v1522
      %v1557 = vpack.c.b16 %v1525, %v1524
      %v1558 = vpack.c.b16 %v1527, %v1526
      %v1559 = vpack.c.b16 %v1529, %v1528
      %v1560 = vpack.c.b16 %v1531, %v1530
      %v1561 = vpack.c.b16 %v1533, %v1532
      %v1562 = vpack.c.b16 %v1535, %v1534
      %v1563 = vpack.c.b16 %v1537, %v1536
      %v1564 = vpack.c.b16 %v1539, %v1538
      %v1565 = vpack.c.b16 %v1541, %v1540
      %v1566 = vpack.c.b16 %v1543, %v1542
      %v1567 = vpack.c.b16 %v1545, %v1544
      %v1568 = vpack.c.b16 %v1547, %v1546
      %v1569 = vpack.c.b16 %v1548, %v1548
      %v1570 = vrot.slane %v1549, 1
      %v1571 = vrot.slane %v1550, 1
      %v1572 = vsel %vm1075, %v1570, %v1571
      %v1573 = vrot.slane %v1551, 1
      %v1574 = vsel %vm1075, %v1571, %v1573
      %v1575 = vrot.slane %v1552, 1
      %v1576 = vsel %vm1075, %v1573, %v1575
      %v1577 = vrot.slane %v1553, 1
      %v1578 = vsel %vm1075, %v1575, %v1577
      %v1579 = vrot.slane %v1554, 1
      %v1580 = vsel %vm1075, %v1577, %v1579
      %v1581 = vrot.slane %v1555, 1
      %v1582 = vsel %vm1075, %v1579, %v1581
      %v1583 = vrot.slane %v1556, 1
      %v1584 = vsel %vm1075, %v1581, %v1583
      %v1585 = vrot.slane %v1557, 1
      %v1586 = vsel %vm1075, %v1583, %v1585
      %v1587 = vrot.slane %v1558, 1
      %v1588 = vsel %vm1075, %v1585, %v1587
      %v1589 = vrot.slane %v1559, 1
      %v1590 = vsel %vm1075, %v1587, %v1589
      %v1591 = vrot.slane %v1560, 1
      %v1592 = vsel %vm1075, %v1589, %v1591
      %v1593 = vrot.slane %v1561, 1
      %v1594 = vsel %vm1075, %v1591, %v1593
      %v1595 = vrot.slane %v1562, 1
      %v1596 = vsel %vm1075, %v1593, %v1595
      %v1597 = vrot.slane %v1563, 1
      %v1598 = vsel %vm1075, %v1595, %v1597
      %v1599 = vrot.slane %v1564, 1
      %v1600 = vsel %vm1075, %v1597, %v1599
      %v1601 = vrot.slane %v1565, 1
      %v1602 = vsel %vm1075, %v1599, %v1601
      %v1603 = vrot.slane %v1566, 1
      %v1604 = vsel %vm1075, %v1601, %v1603
      %v1605 = vrot.slane %v1567, 1
      %v1606 = vsel %vm1075, %v1603, %v1605
      %v1607 = vrot.slane %v1568, 1
      %v1608 = vsel %vm1075, %v1605, %v1607
      %v1609 = vrot.slane %v1569, 1
      %v1610 = vsel %vm1075, %v1607, %v1609
      %v1612 = vsel %vm552, %v1572, 0
      %v1615 = vsel %vm552, %v1574, 0
      %v1618 = vsel %vm552, %v1576, 0
      %v1621 = vsel %vm552, %v1578, 0
      %v1624 = vsel %vm552, %v1580, 0
      %v1627 = vsel %vm552, %v1582, 0
      %v1630 = vsel %vm552, %v1584, 0
      %v1633 = vsel %vm552, %v1586, 0
      %v1636 = vsel %vm552, %v1588, 0
      %v1639 = vsel %vm552, %v1590, 0
      %v1642 = vsel %vm552, %v1592, 0
      %v1645 = vsel %vm552, %v1594, 0
      %v1648 = vsel %vm552, %v1596, 0
      %v1651 = vsel %vm552, %v1598, 0
      %v1654 = vsel %vm552, %v1600, 0
      %v1657 = vsel %vm552, %v1602, 0
      %v1660 = vsel %vm552, %v1604, 0
      %v1663 = vsel %vm552, %v1606, 0
      %v1666 = vsel %vm552, %v1608, 0
      %v1669 = vsel %vm552, %v1610, 0
      %v1672 = vsel %vm552, %v1609, 0
      %v1675 = vsel %vm616, %v1466, 0
      %1677 = vmatprep.subr.bf16.mxu0 0
      %1678 = vmatpush1.bf16.msra.mxu0 %v1675
      %1679 = vmatprep.subr.bf16.mxu0 0
      %1680 = vmatpush1.bf16.msra.mxu0 0
      %1681 = vmatprep.subr.bf16.mxu0 0
      %1682 = vmatpush1.bf16.msra.mxu0 0
      %1683 = vmatprep.subr.bf16.mxu0 0
      %1684 = vmatpush1.bf16.msra.mxu0 0
      %1685 = vmatprep.subr.bf16.mxu0 0
      %1686 = vmatpush1.bf16.msra.mxu0 0
      %1687 = vmatprep.subr.bf16.mxu0 0
      %1688 = vmatpush1.bf16.msra.mxu0 0
      %1689 = vmatprep.subr.bf16.mxu0 0
      %1690 = vmatpush1.bf16.msra.mxu0 0
      %1691 = vmatprep.subr.bf16.mxu0 0
      %1692 = vmatpush1.bf16.msra.mxu0 0
      %1693 = vmatprep.subr.bf16.mxu0 0
      %1694 = vmatpush1.bf16.msra.mxu0 0
      %1695 = vmatprep.subr.bf16.mxu0 0
      %1696 = vmatpush1.bf16.msra.mxu0 0
      %1697 = vmatprep.subr.bf16.mxu0 0
      %1698 = vmatpush1.bf16.msra.mxu0 0
      %1699 = vmatprep.subr.bf16.mxu0 0
      %1700 = vmatpush1.bf16.msra.mxu0 0
      %1701 = vmatprep.subr.bf16.mxu0 0
      %1702 = vmatpush1.bf16.msra.mxu0 0
      %1703 = vmatprep.subr.bf16.mxu0 0
      %1704 = vmatpush1.bf16.msra.mxu0 0
      %1705 = vmatprep.subr.bf16.mxu0 0
      %1706 = vmatpush1.bf16.msra.mxu0 0
      %1707 = vmatprep.subr.bf16.mxu0 0
      %1708 = vmatpush1.bf16.msra.mxu0 0
      %1709 = vmatprep.mubr.bf16.mxu0 0
      %1710 = vmatmul.mubr.bf16.gmra.mrb[0].mxu0 %v1612
      %v1711 = vpop.f32.mrb[0].mxu0
      %v1712 = vadd.f32 0.0, %v1711
      %v1713 = vpop.f32.mrb[0].mxu0
      %v1714 = vpop.f32.mrb[0].mxu0
      %v1715 = vadd.f32 0.0, %v1714
      %v1716 = vpop.f32.mrb[0].mxu0
      %1717 = vmatprep.mubr.bf16.mxu0 0
      %1718 = vmatmul.mubr.bf16.gmra.mrb[0].mxu0 %v1615
      %v1719 = vpop.f32.mrb[0].mxu0
      %v1720 = vadd.f32 0.0, %v1719
      %v1721 = vpop.f32.mrb[0].mxu0
      %v1722 = vpop.f32.mrb[0].mxu0
      %v1723 = vadd.f32 0.0, %v1722
      %v1724 = vpop.f32.mrb[0].mxu0
      %1725 = vmatprep.mubr.bf16.mxu0 0
      %1726 = vmatmul.mubr.bf16.gmra.mrb[0].mxu0 %v1618
      %v1727 = vpop.f32.mrb[0].mxu0
      %v1728 = vadd.f32 0.0, %v1727
      %v1729 = vpop.f32.mrb[0].mxu0
      %v1730 = vpop.f32.mrb[0].mxu0
      %v1731 = vadd.f32 0.0, %v1730
      %v1732 = vpop.f32.mrb[0].mxu0
      %1733 = vmatprep.mubr.bf16.mxu0 0
      %1734 = vmatmul.mubr.bf16.gmra.mrb[0].mxu0 %v1621
      %v1735 = vpop.f32.mrb[0].mxu0
      %v1736 = vadd.f32 0.0, %v1735
      %v1737 = vpop.f32.mrb[0].mxu0
      %v1738 = vpop.f32.mrb[0].mxu0
      %v1739 = vadd.f32 0.0, %v1738
      %v1740 = vpop.f32.mrb[0].mxu0
      %1741 = vmatprep.mubr.bf16.mxu0 0
      %1742 = vmatmul.mubr.bf16.gmra.mrb[0].mxu0 %v1624
      %v1743 = vpop.f32.mrb[0].mxu0
      %v1744 = vadd.f32 0.0, %v1743
      %v1745 = vpop.f32.mrb[0].mxu0
      %v1746 = vpop.f32.mrb[0].mxu0
      %v1747 = vadd.f32 0.0, %v1746
      %v1748 = vpop.f32.mrb[0].mxu0
      %1749 = vmatprep.mubr.bf16.mxu0 0
      %1750 = vmatmul.mubr.bf16.gmra.mrb[0].mxu0 %v1627
      %v1751 = vpop.f32.mrb[0].mxu0
      %v1752 = vadd.f32 0.0, %v1751
      %v1753 = vpop.f32.mrb[0].mxu0
      %v1754 = vpop.f32.mrb[0].mxu0
      %v1755 = vadd.f32 0.0, %v1754
      %v1756 = vpop.f32.mrb[0].mxu0
      %1757 = vmatprep.mubr.bf16.mxu0 0
      %1758 = vmatmul.mubr.bf16.gmra.mrb[0].mxu0 %v1630
      %v1759 = vpop.f32.mrb[0].mxu0
      %v1760 = vadd.f32 0.0, %v1759
      %v1761 = vpop.f32.mrb[0].mxu0
      %v1762 = vpop.f32.mrb[0].mxu0
      %v1763 = vadd.f32 0.0, %v1762
      %v1764 = vpop.f32.mrb[0].mxu0
      %1765 = vmatprep.mubr.bf16.mxu0 0
      %1766 = vmatmul.mubr.bf16.gmra.mrb[0].mxu0 %v1633
      %v1767 = vpop.f32.mrb[0].mxu0
      %v1768 = vadd.f32 0.0, %v1767
      %v1769 = vpop.f32.mrb[0].mxu0
      %v1770 = vpop.f32.mrb[0].mxu0
      %v1771 = vadd.f32 0.0, %v1770
      %v1772 = vpop.f32.mrb[0].mxu0
      %1773 = vmatprep.mubr.bf16.mxu0 0
      %1774 = vmatmul.mubr.bf16.gmra.mrb[0].mxu0 %v1636
      %v1775 = vpop.f32.mrb[0].mxu0
      %v1776 = vadd.f32 0.0, %v1775
      %v1777 = vpop.f32.mrb[0].mxu0
      %v1778 = vpop.f32.mrb[0].mxu0
      %v1779 = vadd.f32 0.0, %v1778
      %v1780 = vpop.f32.mrb[0].mxu0
      %1781 = vmatprep.mubr.bf16.mxu0 0
      %1782 = vmatmul.mubr.bf16.gmra.mrb[0].mxu0 %v1639
      %v1783 = vpop.f32.mrb[0].mxu0
      %v1784 = vadd.f32 0.0, %v1783
      %v1785 = vpop.f32.mrb[0].mxu0
      %v1786 = vpop.f32.mrb[0].mxu0
      %v1787 = vadd.f32 0.0, %v1786
      %v1788 = vpop.f32.mrb[0].mxu0
      %1789 = vmatprep.mubr.bf16.mxu0 0
      %1790 = vmatmul.mubr.bf16.gmra.mrb[0].mxu0 %v1642
      %v1791 = vpop.f32.mrb[0].mxu0
      %v1792 = vadd.f32 0.0, %v1791
      %v1793 = vpop.f32.mrb[0].mxu0
      %v1794 = vpop.f32.mrb[0].mxu0
      %v1795 = vadd.f32 0.0, %v1794
      %v1796 = vpop.f32.mrb[0].mxu0
      %1797 = vmatprep.mubr.bf16.mxu0 0
      %1798 = vmatmul.mubr.bf16.gmra.mrb[0].mxu0 %v1645
      %v1799 = vpop.f32.mrb[0].mxu0
      %v1800 = vadd.f32 0.0, %v1799
      %v1801 = vpop.f32.mrb[0].mxu0
      %v1802 = vpop.f32.mrb[0].mxu0
      %v1803 = vadd.f32 0.0, %v1802
      %v1804 = vpop.f32.mrb[0].mxu0
      %1805 = vmatprep.mubr.bf16.mxu0 0
      %1806 = vmatmul.mubr.bf16.gmra.mrb[0].mxu0 %v1648
      %v1807 = vpop.f32.mrb[0].mxu0
      %v1808 = vadd.f32 0.0, %v1807
      %v1809 = vpop.f32.mrb[0].mxu0
      %v1810 = vpop.f32.mrb[0].mxu0
      %v1811 = vadd.f32 0.0, %v1810
      %v1812 = vpop.f32.mrb[0].mxu0
      %1813 = vmatprep.mubr.bf16.mxu0 0
      %1814 = vmatmul.mubr.bf16.gmra.mrb[0].mxu0 %v1651
      %v1815 = vpop.f32.mrb[0].mxu0
      %v1816 = vadd.f32 0.0, %v1815
      %v1817 = vpop.f32.mrb[0].mxu0
      %v1818 = vpop.f32.mrb[0].mxu0
      %v1819 = vadd.f32 0.0, %v1818
      %v1820 = vpop.f32.mrb[0].mxu0
      %1821 = vmatprep.mubr.bf16.mxu0 0
      %1822 = vmatmul.mubr.bf16.gmra.mrb[0].mxu0 %v1654
      %v1823 = vpop.f32.mrb[0].mxu0
      %v1824 = vadd.f32 0.0, %v1823
      %v1825 = vpop.f32.mrb[0].mxu0
      %v1826 = vpop.f32.mrb[0].mxu0
      %v1827 = vadd.f32 0.0, %v1826
      %v1828 = vpop.f32.mrb[0].mxu0
      %1829 = vmatprep.mubr.bf16.mxu0 0
      %1830 = vmatmul.mubr.bf16.gmra.mrb[0].mxu0 %v1657
      %v1831 = vpop.f32.mrb[0].mxu0
      %v1832 = vadd.f32 0.0, %v1831
      %v1833 = vpop.f32.mrb[0].mxu0
      %v1834 = vpop.f32.mrb[0].mxu0
      %v1835 = vadd.f32 0.0, %v1834
      %v1836 = vpop.f32.mrb[0].mxu0
      %1837 = vmatprep.mubr.bf16.mxu0 0
      %1838 = vmatmul.mubr.bf16.gmra.mrb[0].mxu0 %v1660
      %v1839 = vpop.f32.mrb[0].mxu0
      %v1840 = vadd.f32 0.0, %v1839
      %v1841 = vpop.f32.mrb[0].mxu0
      %v1842 = vpop.f32.mrb[0].mxu0
      %v1843 = vadd.f32 0.0, %v1842
      %v1844 = vpop.f32.mrb[0].mxu0
      %1845 = vmatprep.mubr.bf16.mxu0 0
      %1846 = vmatmul.mubr.bf16.gmra.mrb[0].mxu0 %v1663
      %v1847 = vpop.f32.mrb[0].mxu0
      %v1848 = vadd.f32 0.0, %v1847
      %v1849 = vpop.f32.mrb[0].mxu0
      %v1850 = vpop.f32.mrb[0].mxu0
      %v1851 = vadd.f32 0.0, %v1850
      %v1852 = vpop.f32.mrb[0].mxu0
      %1853 = vmatprep.mubr.bf16.mxu0 0
      %1854 = vmatmul.mubr.bf16.gmra.mrb[0].mxu0 %v1666
      %v1855 = vpop.f32.mrb[0].mxu0
      %v1856 = vadd.f32 0.0, %v1855
      %v1857 = vpop.f32.mrb[0].mxu0
      %v1858 = vpop.f32.mrb[0].mxu0
      %v1859 = vadd.f32 0.0, %v1858
      %v1860 = vpop.f32.mrb[0].mxu0
      %1861 = vmatprep.mubr.bf16.mxu0 0
      %1862 = vmatmul.mubr.bf16.gmra.mrb[0].mxu0 %v1669
      %v1863 = vpop.f32.mrb[0].mxu0
      %v1864 = vadd.f32 0.0, %v1863
      %v1865 = vpop.f32.mrb[0].mxu0
      %v1866 = vpop.f32.mrb[0].mxu0
      %v1867 = vadd.f32 0.0, %v1866
      %v1868 = vpop.f32.mrb[0].mxu0
      %1869 = vmatprep.mubr.bf16.mxu0 0
      %1870 = vmatmul.mubr.bf16.gmra.mrb[0].mxu0 %v1672
      %v1871 = vpop.f32.mrb[0].mxu0
      %v1872 = vadd.f32 0.0, %v1871
      %v1873 = vpop.f32.mrb[0].mxu0
      %v1874 = vpop.f32.mrb[0].mxu0
      %v1875 = vpop.f32.mrb[0].mxu0
      %1876 = vdwg.mxu0
      %v1877 = vadd.f32 %v1383, %v1712
      %v1878 = vadd.f32 %v1384, %v1715
      %v1879 = vadd.f32 %v1385, %v1720
      %v1880 = vadd.f32 %v1386, %v1723
      %v1881 = vadd.f32 %v1387, %v1728
      %v1882 = vadd.f32 %v1388, %v1731
      %v1883 = vadd.f32 %v1389, %v1736
      %v1884 = vadd.f32 %v1390, %v1739
      %v1885 = vadd.f32 %v1391, %v1744
      %v1886 = vadd.f32 %v1392, %v1747
      %v1887 = vadd.f32 %v1393, %v1752
      %v1888 = vadd.f32 %v1394, %v1755
      %v1889 = vadd.f32 %v1395, %v1760
      %v1890 = vadd.f32 %v1396, %v1763
      %v1891 = vadd.f32 %v1397, %v1768
      %v1892 = vadd.f32 %v1398, %v1771
      %v1893 = vadd.f32 %v1399, %v1776
      %v1894 = vadd.f32 %v1400, %v1779
      %v1895 = vadd.f32 %v1401, %v1784
      %v1896 = vadd.f32 %v1402, %v1787
      %v1897 = vadd.f32 %v1403, %v1792
      %v1898 = vadd.f32 %v1404, %v1795
      %v1899 = vadd.f32 %v1405, %v1800
      %v1900 = vadd.f32 %v1406, %v1803
      %v1901 = vadd.f32 %v1407, %v1808
      %v1902 = vadd.f32 %v1408, %v1811
      %v1903 = vadd.f32 %v1409, %v1816
      %v1904 = vadd.f32 %v1410, %v1819
      %v1905 = vadd.f32 %v1411, %v1824
      %v1906 = vadd.f32 %v1412, %v1827
      %v1907 = vadd.f32 %v1413, %v1832
      %v1908 = vadd.f32 %v1414, %v1835
      %v1909 = vadd.f32 %v1415, %v1840
      %v1910 = vadd.f32 %v1416, %v1843
      %v1911 = vadd.f32 %v1417, %v1848
      %v1912 = vadd.f32 %v1418, %v1851
      %v1913 = vadd.f32 %v1419, %v1856
      %v1914 = vadd.f32 %v1420, %v1859
      %v1915 = vadd.f32 %v1421, %v1864
      %v1916 = vadd.f32 %v1422, %v1867
      %v1917 = vadd.f32 %v1423, %v1872
      %v1918 = vld [vmem:[%s224 + $0xa8] sm:$0xf]
      %s1919 = scalar_lea.vmem %s1, 8
      %v1920 = vld [vmem:[%s1919] sm:$0x3]
      %v1922 = vunpack.c.l.b16 %v1918
      %v1923 = vpack.c.b16 %v1922, %v1922
      %vm1924 = vsmask.f32 6400
      %v1926 = vshrl.u32 %v1549, 16
      %v1928 = vrot.slane %v1926, 1
      %v1929 = vshll.u32 %v1549, 16
      %v1931 = vrot.slane %v1929, 2
      %v1932 = vor.u32 %v1928, %v1931
      %v1934 = vshrl.u32 %v1550, 16
      %v1936 = vrot.slane %v1934, 1
      %v1937 = vshll.u32 %v1550, 16
      %v1939 = vrot.slane %v1937, 2
      %v1940 = vor.u32 %v1936, %v1939
      %v1941 = vsel %vm1924, %v1932, %v1940
      %v1943 = vshrl.u32 %v1551, 16
      %v1945 = vrot.slane %v1943, 1
      %v1946 = vshll.u32 %v1551, 16
      %v1948 = vrot.slane %v1946, 2
      %v1949 = vor.u32 %v1945, %v1948
      %v1950 = vsel %vm1924, %v1940, %v1949
      %v1952 = vshrl.u32 %v1552, 16
      %v1954 = vrot.slane %v1952, 1
      %v1955 = vshll.u32 %v1552, 16
      %v1957 = vrot.slane %v1955, 2
      %v1958 = vor.u32 %v1954, %v1957
      %v1959 = vsel %vm1924, %v1949, %v1958
      %v1961 = vshrl.u32 %v1553, 16
      %v1963 = vrot.slane %v1961, 1
      %v1964 = vshll.u32 %v1553, 16
      %v1966 = vrot.slane %v1964, 2
      %v1967 = vor.u32 %v1963, %v1966
      %v1968 = vsel %vm1924, %v1958, %v1967
      %v1970 = vshrl.u32 %v1554, 16
      %v1972 = vrot.slane %v1970, 1
      %v1973 = vshll.u32 %v1554, 16
      %v1975 = vrot.slane %v1973, 2
      %v1976 = vor.u32 %v1972, %v1975
      %v1977 = vsel %vm1924, %v1967, %v1976
      %v1979 = vshrl.u32 %v1555, 16
      %v1981 = vrot.slane %v1979, 1
      %v1982 = vshll.u32 %v1555, 16
      %v1984 = vrot.slane %v1982, 2
      %v1985 = vor.u32 %v1981, %v1984
      %v1986 = vsel %vm1924, %v1976, %v1985
      %v1988 = vshrl.u32 %v1556, 16
      %v1990 = vrot.slane %v1988, 1
      %v1991 = vshll.u32 %v1556, 16
      %v1993 = vrot.slane %v1991, 2
      %v1994 = vor.u32 %v1990, %v1993
      %v1995 = vsel %vm1924, %v1985, %v1994
      %v1997 = vshrl.u32 %v1557, 16
      %v1999 = vrot.slane %v1997, 1
      %v2000 = vshll.u32 %v1557, 16
      %v2002 = vrot.slane %v2000, 2
      %v2003 = vor.u32 %v1999, %v2002
      %v2004 = vsel %vm1924, %v1994, %v2003
      %v2006 = vshrl.u32 %v1558, 16
      %v2008 = vrot.slane %v2006, 1
      %v2009 = vshll.u32 %v1558, 16
      %v2011 = vrot.slane %v2009, 2
      %v2012 = vor.u32 %v2008, %v2011
      %v2013 = vsel %vm1924, %v2003, %v2012
      %v2015 = vshrl.u32 %v1559, 16
      %v2017 = vrot.slane %v2015, 1
      %v2018 = vshll.u32 %v1559, 16
      %v2020 = vrot.slane %v2018, 2
      %v2021 = vor.u32 %v2017, %v2020
      %v2022 = vsel %vm1924, %v2012, %v2021
      %v2024 = vshrl.u32 %v1560, 16
      %v2026 = vrot.slane %v2024, 1
      %v2027 = vshll.u32 %v1560, 16
      %v2029 = vrot.slane %v2027, 2
      %v2030 = vor.u32 %v2026, %v2029
      %v2031 = vsel %vm1924, %v2021, %v2030
      %v2033 = vshrl.u32 %v1561, 16
      %v2035 = vrot.slane %v2033, 1
      %v2036 = vshll.u32 %v1561, 16
      %v2038 = vrot.slane %v2036, 2
      %v2039 = vor.u32 %v2035, %v2038
      %v2040 = vsel %vm1924, %v2030, %v2039
      %v2042 = vshrl.u32 %v1562, 16
      %v2044 = vrot.slane %v2042, 1
      %v2045 = vshll.u32 %v1562, 16
      %v2047 = vrot.slane %v2045, 2
      %v2048 = vor.u32 %v2044, %v2047
      %v2049 = vsel %vm1924, %v2039, %v2048
      %v2051 = vshrl.u32 %v1563, 16
      %v2053 = vrot.slane %v2051, 1
      %v2054 = vshll.u32 %v1563, 16
      %v2056 = vrot.slane %v2054, 2
      %v2057 = vor.u32 %v2053, %v2056
      %v2058 = vsel %vm1924, %v2048, %v2057
      %v2060 = vshrl.u32 %v1564, 16
      %v2062 = vrot.slane %v2060, 1
      %v2063 = vshll.u32 %v1564, 16
      %v2065 = vrot.slane %v2063, 2
      %v2066 = vor.u32 %v2062, %v2065
      %v2067 = vsel %vm1924, %v2057, %v2066
      %v2069 = vshrl.u32 %v1565, 16
      %v2071 = vrot.slane %v2069, 1
      %v2072 = vshll.u32 %v1565, 16
      %v2074 = vrot.slane %v2072, 2
      %v2075 = vor.u32 %v2071, %v2074
      %v2076 = vsel %vm1924, %v2066, %v2075
      %v2078 = vshrl.u32 %v1566, 16
      %v2080 = vrot.slane %v2078, 1
      %v2081 = vshll.u32 %v1566, 16
      %v2083 = vrot.slane %v2081, 2
      %v2084 = vor.u32 %v2080, %v2083
      %v2085 = vsel %vm1924, %v2075, %v2084
      %v2087 = vshrl.u32 %v1567, 16
      %v2089 = vrot.slane %v2087, 1
      %v2090 = vshll.u32 %v1567, 16
      %v2092 = vrot.slane %v2090, 2
      %v2093 = vor.u32 %v2089, %v2092
      %v2094 = vsel %vm1924, %v2084, %v2093
      %v2096 = vshrl.u32 %v1568, 16
      %v2098 = vrot.slane %v2096, 1
      %v2099 = vshll.u32 %v1568, 16
      %v2101 = vrot.slane %v2099, 2
      %v2102 = vor.u32 %v2098, %v2101
      %v2103 = vsel %vm1924, %v2093, %v2102
      %v2105 = vshrl.u32 %v1923, 16
      %v2107 = vrot.slane %v2105, 1
      %v2108 = vshll.u32 %v1923, 16
      %v2110 = vrot.slane %v2108, 2
      %v2111 = vor.u32 %v2107, %v2110
      %v2112 = vsel %vm1924, %v2102, %v2111
      %v2114 = vsel %vm552, %v1941, 0
      %v2117 = vsel %vm552, %v1950, 0
      %v2120 = vsel %vm552, %v1959, 0
      %v2123 = vsel %vm552, %v1968, 0
      %v2126 = vsel %vm552, %v1977, 0
      %v2129 = vsel %vm552, %v1986, 0
      %v2132 = vsel %vm552, %v1995, 0
      %v2135 = vsel %vm552, %v2004, 0
      %v2138 = vsel %vm552, %v2013, 0
      %v2141 = vsel %vm552, %v2022, 0
      %v2144 = vsel %vm552, %v2031, 0
      %v2147 = vsel %vm552, %v2040, 0
      %v2150 = vsel %vm552, %v2049, 0
      %v2153 = vsel %vm552, %v2058, 0
      %v2156 = vsel %vm552, %v2067, 0
      %v2159 = vsel %vm552, %v2076, 0
      %v2162 = vsel %vm552, %v2085, 0
      %v2165 = vsel %vm552, %v2094, 0
      %v2168 = vsel %vm552, %v2103, 0
      %v2171 = vsel %vm552, %v2112, 0
      %v2174 = vsel %vm552, %v2111, 0
      %v2177 = vsel %vm616, %v1920, 0
      %2179 = vmatprep.subr.bf16.mxu0 0
      %2180 = vmatpush1.bf16.msra.mxu0 %v2177
      %2181 = vmatprep.subr.bf16.mxu0 0
      %2182 = vmatpush1.bf16.msra.mxu0 0
      %2183 = vmatprep.subr.bf16.mxu0 0
      %2184 = vmatpush1.bf16.msra.mxu0 0
      %2185 = vmatprep.subr.bf16.mxu0 0
      %2186 = vmatpush1.bf16.msra.mxu0 0
      %2187 = vmatprep.subr.bf16.mxu0 0
      %2188 = vmatpush1.bf16.msra.mxu0 0
      %2189 = vmatprep.subr.bf16.mxu0 0
      %2190 = vmatpush1.bf16.msra.mxu0 0
      %2191 = vmatprep.subr.bf16.mxu0 0
      %2192 = vmatpush1.bf16.msra.mxu0 0
      %2193 = vmatprep.subr.bf16.mxu0 0
      %2194 = vmatpush1.bf16.msra.mxu0 0
      %2195 = vmatprep.subr.bf16.mxu0 0
      %2196 = vmatpush1.bf16.msra.mxu0 0
      %2197 = vmatprep.subr.bf16.mxu0 0
      %2198 = vmatpush1.bf16.msra.mxu0 0
      %2199 = vmatprep.subr.bf16.mxu0 0
      %2200 = vmatpush1.bf16.msra.mxu0 0
      %2201 = vmatprep.subr.bf16.mxu0 0
      %2202 = vmatpush1.bf16.msra.mxu0 0
      %2203 = vmatprep.subr.bf16.mxu0 0
      %2204 = vmatpush1.bf16.msra.mxu0 0
      %2205 = vmatprep.subr.bf16.mxu0 0
      %2206 = vmatpush1.bf16.msra.mxu0 0
      %2207 = vmatprep.subr.bf16.mxu0 0
      %2208 = vmatpush1.bf16.msra.mxu0 0
      %2209 = vmatprep.subr.bf16.mxu0 0
      %2210 = vmatpush1.bf16.msra.mxu0 0
      %2211 = vmatprep.mubr.bf16.mxu0 0
      %2212 = vmatmul.mubr.bf16.gmra.mrb[0].mxu0 %v2114
      %v2213 = vpop.f32.mrb[0].mxu0
      %v2214 = vadd.f32 0.0, %v2213
      %v2215 = vpop.f32.mrb[0].mxu0
      %v2216 = vpop.f32.mrb[0].mxu0
      %v2217 = vadd.f32 0.0, %v2216
      %v2218 = vpop.f32.mrb[0].mxu0
      %2219 = vmatprep.mubr.bf16.mxu0 0
      %2220 = vmatmul.mubr.bf16.gmra.mrb[0].mxu0 %v2117
      %v2221 = vpop.f32.mrb[0].mxu0
      %v2222 = vadd.f32 0.0, %v2221
      %v2223 = vpop.f32.mrb[0].mxu0
      %v2224 = vpop.f32.mrb[0].mxu0
      %v2225 = vadd.f32 0.0, %v2224
      %v2226 = vpop.f32.mrb[0].mxu0
      %2227 = vmatprep.mubr.bf16.mxu0 0
      %2228 = vmatmul.mubr.bf16.gmra.mrb[0].mxu0 %v2120
      %v2229 = vpop.f32.mrb[0].mxu0
      %v2230 = vadd.f32 0.0, %v2229
      %v2231 = vpop.f32.mrb[0].mxu0
      %v2232 = vpop.f32.mrb[0].mxu0
      %v2233 = vadd.f32 0.0, %v2232
      %v2234 = vpop.f32.mrb[0].mxu0
      %2235 = vmatprep.mubr.bf16.mxu0 0
      %2236 = vmatmul.mubr.bf16.gmra.mrb[0].mxu0 %v2123
      %v2237 = vpop.f32.mrb[0].mxu0
      %v2238 = vadd.f32 0.0, %v2237
      %v2239 = vpop.f32.mrb[0].mxu0
      %v2240 = vpop.f32.mrb[0].mxu0
      %v2241 = vadd.f32 0.0, %v2240
      %v2242 = vpop.f32.mrb[0].mxu0
      %2243 = vmatprep.mubr.bf16.mxu0 0
      %2244 = vmatmul.mubr.bf16.gmra.mrb[0].mxu0 %v2126
      %v2245 = vpop.f32.mrb[0].mxu0
      %v2246 = vadd.f32 0.0, %v2245
      %v2247 = vpop.f32.mrb[0].mxu0
      %v2248 = vpop.f32.mrb[0].mxu0
      %v2249 = vadd.f32 0.0, %v2248
      %v2250 = vpop.f32.mrb[0].mxu0
      %2251 = vmatprep.mubr.bf16.mxu0 0
      %2252 = vmatmul.mubr.bf16.gmra.mrb[0].mxu0 %v2129
      %v2253 = vpop.f32.mrb[0].mxu0
      %v2254 = vadd.f32 0.0, %v2253
      %v2255 = vpop.f32.mrb[0].mxu0
      %v2256 = vpop.f32.mrb[0].mxu0
      %v2257 = vadd.f32 0.0, %v2256
      %v2258 = vpop.f32.mrb[0].mxu0
      %2259 = vmatprep.mubr.bf16.mxu0 0
      %2260 = vmatmul.mubr.bf16.gmra.mrb[0].mxu0 %v2132
      %v2261 = vpop.f32.mrb[0].mxu0
      %v2262 = vadd.f32 0.0, %v2261
      %v2263 = vpop.f32.mrb[0].mxu0
      %v2264 = vpop.f32.mrb[0].mxu0
      %v2265 = vadd.f32 0.0, %v2264
      %v2266 = vpop.f32.mrb[0].mxu0
      %2267 = vmatprep.mubr.bf16.mxu0 0
      %2268 = vmatmul.mubr.bf16.gmra.mrb[0].mxu0 %v2135
      %v2269 = vpop.f32.mrb[0].mxu0
      %v2270 = vadd.f32 0.0, %v2269
      %v2271 = vpop.f32.mrb[0].mxu0
      %v2272 = vpop.f32.mrb[0].mxu0
      %v2273 = vadd.f32 0.0, %v2272
      %v2274 = vpop.f32.mrb[0].mxu0
      %2275 = vmatprep.mubr.bf16.mxu0 0
      %2276 = vmatmul.mubr.bf16.gmra.mrb[0].mxu0 %v2138
      %v2277 = vpop.f32.mrb[0].mxu0
      %v2278 = vadd.f32 0.0, %v2277
      %v2279 = vpop.f32.mrb[0].mxu0
      %v2280 = vpop.f32.mrb[0].mxu0
      %v2281 = vadd.f32 0.0, %v2280
      %v2282 = vpop.f32.mrb[0].mxu0
      %2283 = vmatprep.mubr.bf16.mxu0 0
      %2284 = vmatmul.mubr.bf16.gmra.mrb[0].mxu0 %v2141
      %v2285 = vpop.f32.mrb[0].mxu0
      %v2286 = vadd.f32 0.0, %v2285
      %v2287 = vpop.f32.mrb[0].mxu0
      %v2288 = vpop.f32.mrb[0].mxu0
      %v2289 = vadd.f32 0.0, %v2288
      %v2290 = vpop.f32.mrb[0].mxu0
      %2291 = vmatprep.mubr.bf16.mxu0 0
      %2292 = vmatmul.mubr.bf16.gmra.mrb[0].mxu0 %v2144
      %v2293 = vpop.f32.mrb[0].mxu0
      %v2294 = vadd.f32 0.0, %v2293
      %v2295 = vpop.f32.mrb[0].mxu0
      %v2296 = vpop.f32.mrb[0].mxu0
      %v2297 = vadd.f32 0.0, %v2296
      %v2298 = vpop.f32.mrb[0].mxu0
      %2299 = vmatprep.mubr.bf16.mxu0 0
      %2300 = vmatmul.mubr.bf16.gmra.mrb[0].mxu0 %v2147
      %v2301 = vpop.f32.mrb[0].mxu0
      %v2302 = vadd.f32 0.0, %v2301
      %v2303 = vpop.f32.mrb[0].mxu0
      %v2304 = vpop.f32.mrb[0].mxu0
      %v2305 = vadd.f32 0.0, %v2304
      %v2306 = vpop.f32.mrb[0].mxu0
      %2307 = vmatprep.mubr.bf16.mxu0 0
      %2308 = vmatmul.mubr.bf16.gmra.mrb[0].mxu0 %v2150
      %v2309 = vpop.f32.mrb[0].mxu0
      %v2310 = vadd.f32 0.0, %v2309
      %v2311 = vpop.f32.mrb[0].mxu0
      %v2312 = vpop.f32.mrb[0].mxu0
      %v2313 = vadd.f32 0.0, %v2312
      %v2314 = vpop.f32.mrb[0].mxu0
      %2315 = vmatprep.mubr.bf16.mxu0 0
      %2316 = vmatmul.mubr.bf16.gmra.mrb[0].mxu0 %v2153
      %v2317 = vpop.f32.mrb[0].mxu0
      %v2318 = vadd.f32 0.0, %v2317
      %v2319 = vpop.f32.mrb[0].mxu0
      %v2320 = vpop.f32.mrb[0].mxu0
      %v2321 = vadd.f32 0.0, %v2320
      %v2322 = vpop.f32.mrb[0].mxu0
      %2323 = vmatprep.mubr.bf16.mxu0 0
      %2324 = vmatmul.mubr.bf16.gmra.mrb[0].mxu0 %v2156
      %v2325 = vpop.f32.mrb[0].mxu0
      %v2326 = vadd.f32 0.0, %v2325
      %v2327 = vpop.f32.mrb[0].mxu0
      %v2328 = vpop.f32.mrb[0].mxu0
      %v2329 = vadd.f32 0.0, %v2328
      %v2330 = vpop.f32.mrb[0].mxu0
      %2331 = vmatprep.mubr.bf16.mxu0 0
      %2332 = vmatmul.mubr.bf16.gmra.mrb[0].mxu0 %v2159
      %v2333 = vpop.f32.mrb[0].mxu0
      %v2334 = vadd.f32 0.0, %v2333
      %v2335 = vpop.f32.mrb[0].mxu0
      %v2336 = vpop.f32.mrb[0].mxu0
      %v2337 = vadd.f32 0.0, %v2336
      %v2338 = vpop.f32.mrb[0].mxu0
      %2339 = vmatprep.mubr.bf16.mxu0 0
      %2340 = vmatmul.mubr.bf16.gmra.mrb[0].mxu0 %v2162
      %v2341 = vpop.f32.mrb[0].mxu0
      %v2342 = vadd.f32 0.0, %v2341
      %v2343 = vpop.f32.mrb[0].mxu0
      %v2344 = vpop.f32.mrb[0].mxu0
      %v2345 = vadd.f32 0.0, %v2344
      %v2346 = vpop.f32.mrb[0].mxu0
      %2347 = vmatprep.mubr.bf16.mxu0 0
      %2348 = vmatmul.mubr.bf16.gmra.mrb[0].mxu0 %v2165
      %v2349 = vpop.f32.mrb[0].mxu0
      %v2350 = vadd.f32 0.0, %v2349
      %v2351 = vpop.f32.mrb[0].mxu0
      %v2352 = vpop.f32.mrb[0].mxu0
      %v2353 = vadd.f32 0.0, %v2352
      %v2354 = vpop.f32.mrb[0].mxu0
      %2355 = vmatprep.mubr.bf16.mxu0 0
      %2356 = vmatmul.mubr.bf16.gmra.mrb[0].mxu0 %v2168
      %v2357 = vpop.f32.mrb[0].mxu0
      %v2358 = vadd.f32 0.0, %v2357
      %v2359 = vpop.f32.mrb[0].mxu0
      %v2360 = vpop.f32.mrb[0].mxu0
      %v2361 = vadd.f32 0.0, %v2360
      %v2362 = vpop.f32.mrb[0].mxu0
      %2363 = vmatprep.mubr.bf16.mxu0 0
      %2364 = vmatmul.mubr.bf16.gmra.mrb[0].mxu0 %v2171
      %v2365 = vpop.f32.mrb[0].mxu0
      %v2366 = vadd.f32 0.0, %v2365
      %v2367 = vpop.f32.mrb[0].mxu0
      %v2368 = vpop.f32.mrb[0].mxu0
      %v2369 = vadd.f32 0.0, %v2368
      %v2370 = vpop.f32.mrb[0].mxu0
      %2371 = vmatprep.mubr.bf16.mxu0 0
      %2372 = vmatmul.mubr.bf16.gmra.mrb[0].mxu0 %v2174
      %v2373 = vpop.f32.mrb[0].mxu0
      %v2374 = vadd.f32 0.0, %v2373
      %v2375 = vpop.f32.mrb[0].mxu0
      %v2376 = vpop.f32.mrb[0].mxu0
      %v2377 = vpop.f32.mrb[0].mxu0
      %2378 = vdwg.mxu0
      %v2379 = vadd.f32 %v1877, %v2214
      %v2380 = vadd.f32 %v1878, %v2217
      %v2381 = vadd.f32 %v1879, %v2222
      %v2382 = vadd.f32 %v1880, %v2225
      %v2383 = vadd.f32 %v1881, %v2230
      %v2384 = vadd.f32 %v1882, %v2233
      %v2385 = vadd.f32 %v1883, %v2238
      %v2386 = vadd.f32 %v1884, %v2241
      %v2387 = vadd.f32 %v1885, %v2246
      %v2388 = vadd.f32 %v1886, %v2249
      %v2389 = vadd.f32 %v1887, %v2254
      %v2390 = vadd.f32 %v1888, %v2257
      %v2391 = vadd.f32 %v1889, %v2262
      %v2392 = vadd.f32 %v1890, %v2265
      %v2393 = vadd.f32 %v1891, %v2270
      %v2394 = vadd.f32 %v1892, %v2273
      %v2395 = vadd.f32 %v1893, %v2278
      %v2396 = vadd.f32 %v1894, %v2281
      %v2397 = vadd.f32 %v1895, %v2286
      %v2398 = vadd.f32 %v1896, %v2289
      %v2399 = vadd.f32 %v1897, %v2294
      %v2400 = vadd.f32 %v1898, %v2297
      %v2401 = vadd.f32 %v1899, %v2302
      %v2402 = vadd.f32 %v1900, %v2305
      %v2403 = vadd.f32 %v1901, %v2310
      %v2404 = vadd.f32 %v1902, %v2313
      %v2405 = vadd.f32 %v1903, %v2318
      %v2406 = vadd.f32 %v1904, %v2321
      %v2407 = vadd.f32 %v1905, %v2326
      %v2408 = vadd.f32 %v1906, %v2329
      %v2409 = vadd.f32 %v1907, %v2334
      %v2410 = vadd.f32 %v1908, %v2337
      %v2411 = vadd.f32 %v1909, %v2342
      %v2412 = vadd.f32 %v1910, %v2345
      %v2413 = vadd.f32 %v1911, %v2350
      %v2414 = vadd.f32 %v1912, %v2353
      %v2415 = vadd.f32 %v1913, %v2358
      %v2416 = vadd.f32 %v1914, %v2361
      %v2417 = vadd.f32 %v1915, %v2366
      %v2418 = vadd.f32 %v1916, %v2369
      %v2419 = vadd.f32 %v1917, %v2374
      %v2420 = vld [vmem:[%s224 + $0x8] sm:$0xc]
      %s2421 = scalar_lea.vmem %s1, 10
      %v2422 = vld [vmem:[%s2421] sm:$0x3]
      %v2424 = vunpack.c.l.b16 %v2420
      %v2425 = vpack.c.b16 %v1509, %v2424
      %vm2426 = vcmask 1045504
      %v2427 = vrot.slane %v2425, 2
      %v2428 = vrot.slane %v1550, 2
      %v2429 = vsel %vm2426, %v2427, %v2428
      %v2430 = vrot.slane %v1551, 2
      %v2431 = vsel %vm2426, %v2428, %v2430
      %v2432 = vrot.slane %v1552, 2
      %v2433 = vsel %vm2426, %v2430, %v2432
      %v2434 = vrot.slane %v1553, 2
      %v2435 = vsel %vm2426, %v2432, %v2434
      %v2436 = vrot.slane %v1554, 2
      %v2437 = vsel %vm2426, %v2434, %v2436
      %v2438 = vrot.slane %v1555, 2
      %v2439 = vsel %vm2426, %v2436, %v2438
      %v2440 = vrot.slane %v1556, 2
      %v2441 = vsel %vm2426, %v2438, %v2440
      %v2442 = vrot.slane %v1557, 2
      %v2443 = vsel %vm2426, %v2440, %v2442
      %v2444 = vrot.slane %v1558, 2
      %v2445 = vsel %vm2426, %v2442, %v2444
      %v2446 = vrot.slane %v1559, 2
      %v2447 = vsel %vm2426, %v2444, %v2446
      %v2448 = vrot.slane %v1560, 2
      %v2449 = vsel %vm2426, %v2446, %v2448
      %v2450 = vrot.slane %v1561, 2
      %v2451 = vsel %vm2426, %v2448, %v2450
      %v2452 = vrot.slane %v1562, 2
      %v2453 = vsel %vm2426, %v2450, %v2452
      %v2454 = vrot.slane %v1563, 2
      %v2455 = vsel %vm2426, %v2452, %v2454
      %v2456 = vrot.slane %v1564, 2
      %v2457 = vsel %vm2426, %v2454, %v2456
      %v2458 = vrot.slane %v1565, 2
      %v2459 = vsel %vm2426, %v2456, %v2458
      %v2460 = vrot.slane %v1566, 2
      %v2461 = vsel %vm2426, %v2458, %v2460
      %v2462 = vrot.slane %v1567, 2
      %v2463 = vsel %vm2426, %v2460, %v2462
      %v2464 = vrot.slane %v1568, 2
      %v2465 = vsel %vm2426, %v2462, %v2464
      %v2466 = vrot.slane %v1923, 2
      %v2467 = vsel %vm2426, %v2464, %v2466
      %v2469 = vsel %vm552, %v2429, 0
      %v2472 = vsel %vm552, %v2431, 0
      %v2475 = vsel %vm552, %v2433, 0
      %v2478 = vsel %vm552, %v2435, 0
      %v2481 = vsel %vm552, %v2437, 0
      %v2484 = vsel %vm552, %v2439, 0
      %v2487 = vsel %vm552, %v2441, 0
      %v2490 = vsel %vm552, %v2443, 0
      %v2493 = vsel %vm552, %v2445, 0
      %v2496 = vsel %vm552, %v2447, 0
      %v2499 = vsel %vm552, %v2449, 0
      %v2502 = vsel %vm552, %v2451, 0
      %v2505 = vsel %vm552, %v2453, 0
      %v2508 = vsel %vm552, %v2455, 0
      %v2511 = vsel %vm552, %v2457, 0
      %v2514 = vsel %vm552, %v2459, 0
      %v2517 = vsel %vm552, %v2461, 0
      %v2520 = vsel %vm552, %v2463, 0
      %v2523 = vsel %vm552, %v2465, 0
      %v2526 = vsel %vm552, %v2467, 0
      %v2529 = vsel %vm552, %v2466, 0
      %v2532 = vsel %vm616, %v2422, 0
      %2534 = vmatprep.subr.bf16.mxu0 0
      %2535 = vmatpush1.bf16.msra.mxu0 %v2532
      %2536 = vmatprep.subr.bf16.mxu0 0
      %2537 = vmatpush1.bf16.msra.mxu0 0
      %2538 = vmatprep.subr.bf16.mxu0 0
      %2539 = vmatpush1.bf16.msra.mxu0 0
      %2540 = vmatprep.subr.bf16.mxu0 0
      %2541 = vmatpush1.bf16.msra.mxu0 0
      %2542 = vmatprep.subr.bf16.mxu0 0
      %2543 = vmatpush1.bf16.msra.mxu0 0
      %2544 = vmatprep.subr.bf16.mxu0 0
      %2545 = vmatpush1.bf16.msra.mxu0 0
      %2546 = vmatprep.subr.bf16.mxu0 0
      %2547 = vmatpush1.bf16.msra.mxu0 0
      %2548 = vmatprep.subr.bf16.mxu0 0
      %2549 = vmatpush1.bf16.msra.mxu0 0
      %2550 = vmatprep.subr.bf16.mxu0 0
      %2551 = vmatpush1.bf16.msra.mxu0 0
      %2552 = vmatprep.subr.bf16.mxu0 0
      %2553 = vmatpush1.bf16.msra.mxu0 0
      %2554 = vmatprep.subr.bf16.mxu0 0
      %2555 = vmatpush1.bf16.msra.mxu0 0
      %2556 = vmatprep.subr.bf16.mxu0 0
      %2557 = vmatpush1.bf16.msra.mxu0 0
      %2558 = vmatprep.subr.bf16.mxu0 0
      %2559 = vmatpush1.bf16.msra.mxu0 0
      %2560 = vmatprep.subr.bf16.mxu0 0
      %2561 = vmatpush1.bf16.msra.mxu0 0
      %2562 = vmatprep.subr.bf16.mxu0 0
      %2563 = vmatpush1.bf16.msra.mxu0 0
      %2564 = vmatprep.subr.bf16.mxu0 0
      %2565 = vmatpush1.bf16.msra.mxu0 0
      %2566 = vmatprep.mubr.bf16.mxu0 0
      %2567 = vmatmul.mubr.bf16.gmra.mrb[0].mxu0 %v2469
      %v2568 = vpop.f32.mrb[0].mxu0
      %v2569 = vadd.f32 0.0, %v2568
      %v2570 = vpop.f32.mrb[0].mxu0
      %v2571 = vpop.f32.mrb[0].mxu0
      %v2572 = vadd.f32 0.0, %v2571
      %v2573 = vpop.f32.mrb[0].mxu0
      %2574 = vmatprep.mubr.bf16.mxu0 0
      %2575 = vmatmul.mubr.bf16.gmra.mrb[0].mxu0 %v2472
      %v2576 = vpop.f32.mrb[0].mxu0
      %v2577 = vadd.f32 0.0, %v2576
      %v2578 = vpop.f32.mrb[0].mxu0
      %v2579 = vpop.f32.mrb[0].mxu0
      %v2580 = vadd.f32 0.0, %v2579
      %v2581 = vpop.f32.mrb[0].mxu0
      %2582 = vmatprep.mubr.bf16.mxu0 0
      %2583 = vmatmul.mubr.bf16.gmra.mrb[0].mxu0 %v2475
      %v2584 = vpop.f32.mrb[0].mxu0
      %v2585 = vadd.f32 0.0, %v2584
      %v2586 = vpop.f32.mrb[0].mxu0
      %v2587 = vpop.f32.mrb[0].mxu0
      %v2588 = vadd.f32 0.0, %v2587
      %v2589 = vpop.f32.mrb[0].mxu0
      %2590 = vmatprep.mubr.bf16.mxu0 0
      %2591 = vmatmul.mubr.bf16.gmra.mrb[0].mxu0 %v2478
      %v2592 = vpop.f32.mrb[0].mxu0
      %v2593 = vadd.f32 0.0, %v2592
      %v2594 = vpop.f32.mrb[0].mxu0
      %v2595 = vpop.f32.mrb[0].mxu0
      %v2596 = vadd.f32 0.0, %v2595
      %v2597 = vpop.f32.mrb[0].mxu0
      %2598 = vmatprep.mubr.bf16.mxu0 0
      %2599 = vmatmul.mubr.bf16.gmra.mrb[0].mxu0 %v2481
      %v2600 = vpop.f32.mrb[0].mxu0
      %v2601 = vadd.f32 0.0, %v2600
      %v2602 = vpop.f32.mrb[0].mxu0
      %v2603 = vpop.f32.mrb[0].mxu0
      %v2604 = vadd.f32 0.0, %v2603
      %v2605 = vpop.f32.mrb[0].mxu0
      %2606 = vmatprep.mubr.bf16.mxu0 0
      %2607 = vmatmul.mubr.bf16.gmra.mrb[0].mxu0 %v2484
      %v2608 = vpop.f32.mrb[0].mxu0
      %v2609 = vadd.f32 0.0, %v2608
      %v2610 = vpop.f32.mrb[0].mxu0
      %v2611 = vpop.f32.mrb[0].mxu0
      %v2612 = vadd.f32 0.0, %v2611
      %v2613 = vpop.f32.mrb[0].mxu0
      %2614 = vmatprep.mubr.bf16.mxu0 0
      %2615 = vmatmul.mubr.bf16.gmra.mrb[0].mxu0 %v2487
      %v2616 = vpop.f32.mrb[0].mxu0
      %v2617 = vadd.f32 0.0, %v2616
      %v2618 = vpop.f32.mrb[0].mxu0
      %v2619 = vpop.f32.mrb[0].mxu0
      %v2620 = vadd.f32 0.0, %v2619
      %v2621 = vpop.f32.mrb[0].mxu0
      %2622 = vmatprep.mubr.bf16.mxu0 0
      %2623 = vmatmul.mubr.bf16.gmra.mrb[0].mxu0 %v2490
      %v2624 = vpop.f32.mrb[0].mxu0
      %v2625 = vadd.f32 0.0, %v2624
      %v2626 = vpop.f32.mrb[0].mxu0
      %v2627 = vpop.f32.mrb[0].mxu0
      %v2628 = vadd.f32 0.0, %v2627
      %v2629 = vpop.f32.mrb[0].mxu0
      %2630 = vmatprep.mubr.bf16.mxu0 0
      %2631 = vmatmul.mubr.bf16.gmra.mrb[0].mxu0 %v2493
      %v2632 = vpop.f32.mrb[0].mxu0
      %v2633 = vadd.f32 0.0, %v2632
      %v2634 = vpop.f32.mrb[0].mxu0
      %v2635 = vpop.f32.mrb[0].mxu0
      %v2636 = vadd.f32 0.0, %v2635
      %v2637 = vpop.f32.mrb[0].mxu0
      %2638 = vmatprep.mubr.bf16.mxu0 0
      %2639 = vmatmul.mubr.bf16.gmra.mrb[0].mxu0 %v2496
      %v2640 = vpop.f32.mrb[0].mxu0
      %v2641 = vadd.f32 0.0, %v2640
      %v2642 = vpop.f32.mrb[0].mxu0
      %v2643 = vpop.f32.mrb[0].mxu0
      %v2644 = vadd.f32 0.0, %v2643
      %v2645 = vpop.f32.mrb[0].mxu0
      %2646 = vmatprep.mubr.bf16.mxu0 0
      %2647 = vmatmul.mubr.bf16.gmra.mrb[0].mxu0 %v2499
      %v2648 = vpop.f32.mrb[0].mxu0
      %v2649 = vadd.f32 0.0, %v2648
      %v2650 = vpop.f32.mrb[0].mxu0
      %v2651 = vpop.f32.mrb[0].mxu0
      %v2652 = vadd.f32 0.0, %v2651
      %v2653 = vpop.f32.mrb[0].mxu0
      %2654 = vmatprep.mubr.bf16.mxu0 0
      %2655 = vmatmul.mubr.bf16.gmra.mrb[0].mxu0 %v2502
      %v2656 = vpop.f32.mrb[0].mxu0
      %v2657 = vadd.f32 0.0, %v2656
      %v2658 = vpop.f32.mrb[0].mxu0
      %v2659 = vpop.f32.mrb[0].mxu0
      %v2660 = vadd.f32 0.0, %v2659
      %v2661 = vpop.f32.mrb[0].mxu0
      %2662 = vmatprep.mubr.bf16.mxu0 0
      %2663 = vmatmul.mubr.bf16.gmra.mrb[0].mxu0 %v2505
      %v2664 = vpop.f32.mrb[0].mxu0
      %v2665 = vadd.f32 0.0, %v2664
      %v2666 = vpop.f32.mrb[0].mxu0
      %v2667 = vpop.f32.mrb[0].mxu0
      %v2668 = vadd.f32 0.0, %v2667
      %v2669 = vpop.f32.mrb[0].mxu0
      %2670 = vmatprep.mubr.bf16.mxu0 0
      %2671 = vmatmul.mubr.bf16.gmra.mrb[0].mxu0 %v2508
      %v2672 = vpop.f32.mrb[0].mxu0
      %v2673 = vadd.f32 0.0, %v2672
      %v2674 = vpop.f32.mrb[0].mxu0
      %v2675 = vpop.f32.mrb[0].mxu0
      %v2676 = vadd.f32 0.0, %v2675
      %v2677 = vpop.f32.mrb[0].mxu0
      %2678 = vmatprep.mubr.bf16.mxu0 0
      %2679 = vmatmul.mubr.bf16.gmra.mrb[0].mxu0 %v2511
      %v2680 = vpop.f32.mrb[0].mxu0
      %v2681 = vadd.f32 0.0, %v2680
      %v2682 = vpop.f32.mrb[0].mxu0
      %v2683 = vpop.f32.mrb[0].mxu0
      %v2684 = vadd.f32 0.0, %v2683
      %v2685 = vpop.f32.mrb[0].mxu0
      %2686 = vmatprep.mubr.bf16.mxu0 0
      %2687 = vmatmul.mubr.bf16.gmra.mrb[0].mxu0 %v2514
      %v2688 = vpop.f32.mrb[0].mxu0
      %v2689 = vadd.f32 0.0, %v2688
      %v2690 = vpop.f32.mrb[0].mxu0
      %v2691 = vpop.f32.mrb[0].mxu0
      %v2692 = vadd.f32 0.0, %v2691
      %v2693 = vpop.f32.mrb[0].mxu0
      %2694 = vmatprep.mubr.bf16.mxu0 0
      %2695 = vmatmul.mubr.bf16.gmra.mrb[0].mxu0 %v2517
      %v2696 = vpop.f32.mrb[0].mxu0
      %v2697 = vadd.f32 0.0, %v2696
      %v2698 = vpop.f32.mrb[0].mxu0
      %v2699 = vpop.f32.mrb[0].mxu0
      %v2700 = vadd.f32 0.0, %v2699
      %v2701 = vpop.f32.mrb[0].mxu0
      %2702 = vmatprep.mubr.bf16.mxu0 0
      %2703 = vmatmul.mubr.bf16.gmra.mrb[0].mxu0 %v2520
      %v2704 = vpop.f32.mrb[0].mxu0
      %v2705 = vadd.f32 0.0, %v2704
      %v2706 = vpop.f32.mrb[0].mxu0
      %v2707 = vpop.f32.mrb[0].mxu0
      %v2708 = vadd.f32 0.0, %v2707
      %v2709 = vpop.f32.mrb[0].mxu0
      %2710 = vmatprep.mubr.bf16.mxu0 0
      %2711 = vmatmul.mubr.bf16.gmra.mrb[0].mxu0 %v2523
      %v2712 = vpop.f32.mrb[0].mxu0
      %v2713 = vadd.f32 0.0, %v2712
      %v2714 = vpop.f32.mrb[0].mxu0
      %v2715 = vpop.f32.mrb[0].mxu0
      %v2716 = vadd.f32 0.0, %v2715
      %v2717 = vpop.f32.mrb[0].mxu0
      %2718 = vmatprep.mubr.bf16.mxu0 0
      %2719 = vmatmul.mubr.bf16.gmra.mrb[0].mxu0 %v2526
      %v2720 = vpop.f32.mrb[0].mxu0
      %v2721 = vadd.f32 0.0, %v2720
      %v2722 = vpop.f32.mrb[0].mxu0
      %v2723 = vpop.f32.mrb[0].mxu0
      %v2724 = vadd.f32 0.0, %v2723
      %v2725 = vpop.f32.mrb[0].mxu0
      %2726 = vmatprep.mubr.bf16.mxu0 0
      %2727 = vmatmul.mubr.bf16.gmra.mrb[0].mxu0 %v2529
      %v2728 = vpop.f32.mrb[0].mxu0
      %v2729 = vadd.f32 0.0, %v2728
      %v2730 = vpop.f32.mrb[0].mxu0
      %v2731 = vpop.f32.mrb[0].mxu0
      %v2732 = vpop.f32.mrb[0].mxu0
      %2733 = vdwg.mxu0
      %v2734 = vadd.f32 %v2379, %v2569
      %v2735 = vadd.f32 %v2380, %v2572
      %v2736 = vadd.f32 %v2381, %v2577
      %v2737 = vadd.f32 %v2382, %v2580
      %v2738 = vadd.f32 %v2383, %v2585
      %v2739 = vadd.f32 %v2384, %v2588
      %v2740 = vadd.f32 %v2385, %v2593
      %v2741 = vadd.f32 %v2386, %v2596
      %v2742 = vadd.f32 %v2387, %v2601
      %v2743 = vadd.f32 %v2388, %v2604
      %v2744 = vadd.f32 %v2389, %v2609
      %v2745 = vadd.f32 %v2390, %v2612
      %v2746 = vadd.f32 %v2391, %v2617
      %v2747 = vadd.f32 %v2392, %v2620
      %v2748 = vadd.f32 %v2393, %v2625
      %v2749 = vadd.f32 %v2394, %v2628
      %v2750 = vadd.f32 %v2395, %v2633
      %v2751 = vadd.f32 %v2396, %v2636
      %v2752 = vadd.f32 %v2397, %v2641
      %v2753 = vadd.f32 %v2398, %v2644
      %v2754 = vadd.f32 %v2399, %v2649
      %v2755 = vadd.f32 %v2400, %v2652
      %v2756 = vadd.f32 %v2401, %v2657
      %v2757 = vadd.f32 %v2402, %v2660
      %v2758 = vadd.f32 %v2403, %v2665
      %v2759 = vadd.f32 %v2404, %v2668
      %v2760 = vadd.f32 %v2405, %v2673
      %v2761 = vadd.f32 %v2406, %v2676
      %v2762 = vadd.f32 %v2407, %v2681
      %v2763 = vadd.f32 %v2408, %v2684
      %v2764 = vadd.f32 %v2409, %v2689
      %v2765 = vadd.f32 %v2410, %v2692
      %v2766 = vadd.f32 %v2411, %v2697
      %v2767 = vadd.f32 %v2412, %v2700
      %v2768 = vadd.f32 %v2413, %v2705
      %v2769 = vadd.f32 %v2414, %v2708
      %v2770 = vadd.f32 %v2415, %v2713
      %v2771 = vadd.f32 %v2416, %v2716
      %v2772 = vadd.f32 %v2417, %v2721
      %v2773 = vadd.f32 %v2418, %v2724
      %v2774 = vadd.f32 %v2419, %v2729
      %v2775 = vld [vmem:[%s224 + $0x10] sm:$0xc]
      %v2776 = vld [vmem:[%s224 + $0x14] sm:$0xf]
      %v2777 = vld [vmem:[%s224 + $0x18] sm:$0xf]
      %v2778 = vld [vmem:[%s224 + $0x1c] sm:$0xf]
      %v2779 = vld [vmem:[%s224 + $0x20] sm:$0xf]
      %v2780 = vld [vmem:[%s224 + $0x24] sm:$0xf]
      %v2781 = vld [vmem:[%s224 + $0x28] sm:$0xf]
      %v2782 = vld [vmem:[%s224 + $0x2c] sm:$0xf]
      %v2783 = vld [vmem:[%s224 + $0x30] sm:$0xf]
      %v2784 = vld [vmem:[%s224 + $0x34] sm:$0xf]
      %v2785 = vld [vmem:[%s224 + $0x38] sm:$0xf]
      %v2786 = vld [vmem:[%s224 + $0x3c] sm:$0xf]
      %v2787 = vld [vmem:[%s224 + $0x40] sm:$0xf]
      %v2788 = vld [vmem:[%s224 + $0x44] sm:$0xf]
      %v2789 = vld [vmem:[%s224 + $0x48] sm:$0xf]
      %v2790 = vld [vmem:[%s224 + $0x4c] sm:$0xf]
      %v2791 = vld [vmem:[%s224 + $0x50] sm:$0xf]
      %v2792 = vld [vmem:[%s224 + $0x54] sm:$0xf]
      %v2793 = vld [vmem:[%s224 + $0x58] sm:$0xf]
      %v2794 = vld [vmem:[%s224 + $0x5c] sm:$0xf]
      %v2795 = vld [vmem:[%s224 + $0x60] sm:$0xf]
      %v2796 = vld [vmem:[%s224 + $0x64] sm:$0xf]
      %v2797 = vld [vmem:[%s224 + $0x68] sm:$0xf]
      %v2798 = vld [vmem:[%s224 + $0x6c] sm:$0xf]
      %v2799 = vld [vmem:[%s224 + $0x70] sm:$0xf]
      %v2800 = vld [vmem:[%s224 + $0x74] sm:$0xf]
      %v2801 = vld [vmem:[%s224 + $0x78] sm:$0xf]
      %v2802 = vld [vmem:[%s224 + $0x7c] sm:$0xf]
      %v2803 = vld [vmem:[%s224 + $0x80] sm:$0xf]
      %v2804 = vld [vmem:[%s224 + $0x84] sm:$0xf]
      %v2805 = vld [vmem:[%s224 + $0x88] sm:$0xf]
      %v2806 = vld [vmem:[%s224 + $0x8c] sm:$0xf]
      %v2807 = vld [vmem:[%s224 + $0x90] sm:$0xf]
      %v2808 = vld [vmem:[%s224 + $0x94] sm:$0xf]
      %v2809 = vld [vmem:[%s224 + $0x98] sm:$0xf]
      %v2810 = vld [vmem:[%s224 + $0x9c] sm:$0xf]
      %v2811 = vld [vmem:[%s224 + $0xa0] sm:$0xf]
      %v2812 = vld [vmem:[%s224 + $0xa4] sm:$0xf]
      %v2813 = vld [vmem:[%s224 + $0xa8] sm:$0xf]
      %v2814 = vld [vmem:[%s224 + $0xac] sm:$0xf]
      %v2815 = vld [vmem:[%s224 + $0xb0] sm:$0xf]
      %s2816 = scalar_lea.vmem %s1, 12
      %v2817 = vld [vmem:[%s2816] sm:$0x3]
      %v2859 = vunpack.c.l.b16 %v2775
      %v2860 = vunpack.c.l.b16 %v2776
      %v2861 = vunpack.c.l.b16 %v2777
      %v2862 = vunpack.c.l.b16 %v2778
      %v2863 = vunpack.c.l.b16 %v2779
      %v2864 = vunpack.c.l.b16 %v2780
      %v2865 = vunpack.c.l.b16 %v2781
      %v2866 = vunpack.c.l.b16 %v2782
      %v2867 = vunpack.c.l.b16 %v2783
      %v2868 = vunpack.c.l.b16 %v2784
      %v2869 = vunpack.c.l.b16 %v2785
      %v2870 = vunpack.c.l.b16 %v2786
      %v2871 = vunpack.c.l.b16 %v2787
      %v2872 = vunpack.c.l.b16 %v2788
      %v2873 = vunpack.c.l.b16 %v2789
      %v2874 = vunpack.c.l.b16 %v2790
      %v2875 = vunpack.c.l.b16 %v2791
      %v2876 = vunpack.c.l.b16 %v2792
      %v2877 = vunpack.c.l.b16 %v2793
      %v2878 = vunpack.c.l.b16 %v2794
      %v2879 = vunpack.c.l.b16 %v2795
      %v2880 = vunpack.c.l.b16 %v2796
      %v2881 = vunpack.c.l.b16 %v2797
      %v2882 = vunpack.c.l.b16 %v2798
      %v2883 = vunpack.c.l.b16 %v2799
      %v2884 = vunpack.c.l.b16 %v2800
      %v2885 = vunpack.c.l.b16 %v2801
      %v2886 = vunpack.c.l.b16 %v2802
      %v2887 = vunpack.c.l.b16 %v2803
      %v2888 = vunpack.c.l.b16 %v2804
      %v2889 = vunpack.c.l.b16 %v2805
      %v2890 = vunpack.c.l.b16 %v2806
      %v2891 = vunpack.c.l.b16 %v2807
      %v2892 = vunpack.c.l.b16 %v2808
      %v2893 = vunpack.c.l.b16 %v2809
      %v2894 = vunpack.c.l.b16 %v2810
      %v2895 = vunpack.c.l.b16 %v2811
      %v2896 = vunpack.c.l.b16 %v2812
      %v2897 = vunpack.c.l.b16 %v2813
      %v2898 = vunpack.c.l.b16 %v2814
      %v2899 = vunpack.c.l.b16 %v2815
      %v2900 = vpack.c.b16 %v2860, %v2859
      %v2901 = vpack.c.b16 %v2862, %v2861
      %v2902 = vpack.c.b16 %v2864, %v2863
      %v2903 = vpack.c.b16 %v2866, %v2865
      %v2904 = vpack.c.b16 %v2868, %v2867
      %v2905 = vpack.c.b16 %v2870, %v2869
      %v2906 = vpack.c.b16 %v2872, %v2871
      %v2907 = vpack.c.b16 %v2874, %v2873
      %v2908 = vpack.c.b16 %v2876, %v2875
      %v2909 = vpack.c.b16 %v2878, %v2877
      %v2910 = vpack.c.b16 %v2880, %v2879
      %v2911 = vpack.c.b16 %v2882, %v2881
      %v2912 = vpack.c.b16 %v2884, %v2883
      %v2913 = vpack.c.b16 %v2886, %v2885
      %v2914 = vpack.c.b16 %v2888, %v2887
      %v2915 = vpack.c.b16 %v2890, %v2889
      %v2916 = vpack.c.b16 %v2892, %v2891
      %v2917 = vpack.c.b16 %v2894, %v2893
      %v2918 = vpack.c.b16 %v2896, %v2895
      %v2919 = vpack.c.b16 %v2898, %v2897
      %v2920 = vpack.c.b16 %v2899, %v2899
      %v2921 = vrot.slane %v2900, 2
      %v2922 = vrot.slane %v2901, 2
      %v2923 = vsel %vm2426, %v2921, %v2922
      %v2924 = vrot.slane %v2902, 2
      %v2925 = vsel %vm2426, %v2922, %v2924
      %v2926 = vrot.slane %v2903, 2
      %v2927 = vsel %vm2426, %v2924, %v2926
      %v2928 = vrot.slane %v2904, 2
      %v2929 = vsel %vm2426, %v2926, %v2928
      %v2930 = vrot.slane %v2905, 2
      %v2931 = vsel %vm2426, %v2928, %v2930
      %v2932 = vrot.slane %v2906, 2
      %v2933 = vsel %vm2426, %v2930, %v2932
      %v2934 = vrot.slane %v2907, 2
      %v2935 = vsel %vm2426, %v2932, %v2934
      %v2936 = vrot.slane %v2908, 2
      %v2937 = vsel %vm2426, %v2934, %v2936
      %v2938 = vrot.slane %v2909, 2
      %v2939 = vsel %vm2426, %v2936, %v2938
      %v2940 = vrot.slane %v2910, 2
      %v2941 = vsel %vm2426, %v2938, %v2940
      %v2942 = vrot.slane %v2911, 2
      %v2943 = vsel %vm2426, %v2940, %v2942
      %v2944 = vrot.slane %v2912, 2
      %v2945 = vsel %vm2426, %v2942, %v2944
      %v2946 = vrot.slane %v2913, 2
      %v2947 = vsel %vm2426, %v2944, %v2946
      %v2948 = vrot.slane %v2914, 2
      %v2949 = vsel %vm2426, %v2946, %v2948
      %v2950 = vrot.slane %v2915, 2
      %v2951 = vsel %vm2426, %v2948, %v2950
      %v2952 = vrot.slane %v2916, 2
      %v2953 = vsel %vm2426, %v2950, %v2952
      %v2954 = vrot.slane %v2917, 2
      %v2955 = vsel %vm2426, %v2952, %v2954
      %v2956 = vrot.slane %v2918, 2
      %v2957 = vsel %vm2426, %v2954, %v2956
      %v2958 = vrot.slane %v2919, 2
      %v2959 = vsel %vm2426, %v2956, %v2958
      %v2960 = vrot.slane %v2920, 2
      %v2961 = vsel %vm2426, %v2958, %v2960
      %v2963 = vsel %vm552, %v2923, 0
      %v2966 = vsel %vm552, %v2925, 0
      %v2969 = vsel %vm552, %v2927, 0
      %v2972 = vsel %vm552, %v2929, 0
      %v2975 = vsel %vm552, %v2931, 0
      %v2978 = vsel %vm552, %v2933, 0
      %v2981 = vsel %vm552, %v2935, 0
      %v2984 = vsel %vm552, %v2937, 0
      %v2987 = vsel %vm552, %v2939, 0
      %v2990 = vsel %vm552, %v2941, 0
      %v2993 = vsel %vm552, %v2943, 0
      %v2996 = vsel %vm552, %v2945, 0
      %v2999 = vsel %vm552, %v2947, 0
      %v3002 = vsel %vm552, %v2949, 0
      %v3005 = vsel %vm552, %v2951, 0
      %v3008 = vsel %vm552, %v2953, 0
      %v3011 = vsel %vm552, %v2955, 0
      %v3014 = vsel %vm552, %v2957, 0
      %v3017 = vsel %vm552, %v2959, 0
      %v3020 = vsel %vm552, %v2961, 0
      %v3023 = vsel %vm552, %v2960, 0
      %v3026 = vsel %vm616, %v2817, 0
      %3028 = vmatprep.subr.bf16.mxu0 0
      %3029 = vmatpush1.bf16.msra.mxu0 %v3026
      %3030 = vmatprep.subr.bf16.mxu0 0
      %3031 = vmatpush1.bf16.msra.mxu0 0
      %3032 = vmatprep.subr.bf16.mxu0 0
      %3033 = vmatpush1.bf16.msra.mxu0 0
      %3034 = vmatprep.subr.bf16.mxu0 0
      %3035 = vmatpush1.bf16.msra.mxu0 0
      %3036 = vmatprep.subr.bf16.mxu0 0
      %3037 = vmatpush1.bf16.msra.mxu0 0
      %3038 = vmatprep.subr.bf16.mxu0 0
      %3039 = vmatpush1.bf16.msra.mxu0 0
      %3040 = vmatprep.subr.bf16.mxu0 0
      %3041 = vmatpush1.bf16.msra.mxu0 0
      %3042 = vmatprep.subr.bf16.mxu0 0
      %3043 = vmatpush1.bf16.msra.mxu0 0
      %3044 = vmatprep.subr.bf16.mxu0 0
      %3045 = vmatpush1.bf16.msra.mxu0 0
      %3046 = vmatprep.subr.bf16.mxu0 0
      %3047 = vmatpush1.bf16.msra.mxu0 0
      %3048 = vmatprep.subr.bf16.mxu0 0
      %3049 = vmatpush1.bf16.msra.mxu0 0
      %3050 = vmatprep.subr.bf16.mxu0 0
      %3051 = vmatpush1.bf16.msra.mxu0 0
      %3052 = vmatprep.subr.bf16.mxu0 0
      %3053 = vmatpush1.bf16.msra.mxu0 0
      %3054 = vmatprep.subr.bf16.mxu0 0
      %3055 = vmatpush1.bf16.msra.mxu0 0
      %3056 = vmatprep.subr.bf16.mxu0 0
      %3057 = vmatpush1.bf16.msra.mxu0 0
      %3058 = vmatprep.subr.bf16.mxu0 0
      %3059 = vmatpush1.bf16.msra.mxu0 0
      %3060 = vmatprep.mubr.bf16.mxu0 0
      %3061 = vmatmul.mubr.bf16.gmra.mrb[0].mxu0 %v2963
      %v3062 = vpop.f32.mrb[0].mxu0
      %v3063 = vadd.f32 0.0, %v3062
      %v3064 = vpop.f32.mrb[0].mxu0
      %v3065 = vpop.f32.mrb[0].mxu0
      %v3066 = vadd.f32 0.0, %v3065
      %v3067 = vpop.f32.mrb[0].mxu0
      %3068 = vmatprep.mubr.bf16.mxu0 0
      %3069 = vmatmul.mubr.bf16.gmra.mrb[0].mxu0 %v2966
      %v3070 = vpop.f32.mrb[0].mxu0
      %v3071 = vadd.f32 0.0, %v3070
      %v3072 = vpop.f32.mrb[0].mxu0
      %v3073 = vpop.f32.mrb[0].mxu0
      %v3074 = vadd.f32 0.0, %v3073
      %v3075 = vpop.f32.mrb[0].mxu0
      %3076 = vmatprep.mubr.bf16.mxu0 0
      %3077 = vmatmul.mubr.bf16.gmra.mrb[0].mxu0 %v2969
      %v3078 = vpop.f32.mrb[0].mxu0
      %v3079 = vadd.f32 0.0, %v3078
      %v3080 = vpop.f32.mrb[0].mxu0
      %v3081 = vpop.f32.mrb[0].mxu0
      %v3082 = vadd.f32 0.0, %v3081
      %v3083 = vpop.f32.mrb[0].mxu0
      %3084 = vmatprep.mubr.bf16.mxu0 0
      %3085 = vmatmul.mubr.bf16.gmra.mrb[0].mxu0 %v2972
      %v3086 = vpop.f32.mrb[0].mxu0
      %v3087 = vadd.f32 0.0, %v3086
      %v3088 = vpop.f32.mrb[0].mxu0
      %v3089 = vpop.f32.mrb[0].mxu0
      %v3090 = vadd.f32 0.0, %v3089
      %v3091 = vpop.f32.mrb[0].mxu0
      %3092 = vmatprep.mubr.bf16.mxu0 0
      %3093 = vmatmul.mubr.bf16.gmra.mrb[0].mxu0 %v2975
      %v3094 = vpop.f32.mrb[0].mxu0
      %v3095 = vadd.f32 0.0, %v3094
      %v3096 = vpop.f32.mrb[0].mxu0
      %v3097 = vpop.f32.mrb[0].mxu0
      %v3098 = vadd.f32 0.0, %v3097
      %v3099 = vpop.f32.mrb[0].mxu0
      %3100 = vmatprep.mubr.bf16.mxu0 0
      %3101 = vmatmul.mubr.bf16.gmra.mrb[0].mxu0 %v2978
      %v3102 = vpop.f32.mrb[0].mxu0
      %v3103 = vadd.f32 0.0, %v3102
      %v3104 = vpop.f32.mrb[0].mxu0
      %v3105 = vpop.f32.mrb[0].mxu0
      %v3106 = vadd.f32 0.0, %v3105
      %v3107 = vpop.f32.mrb[0].mxu0
      %3108 = vmatprep.mubr.bf16.mxu0 0
      %3109 = vmatmul.mubr.bf16.gmra.mrb[0].mxu0 %v2981
      %v3110 = vpop.f32.mrb[0].mxu0
      %v3111 = vadd.f32 0.0, %v3110
      %v3112 = vpop.f32.mrb[0].mxu0
      %v3113 = vpop.f32.mrb[0].mxu0
      %v3114 = vadd.f32 0.0, %v3113
      %v3115 = vpop.f32.mrb[0].mxu0
      %3116 = vmatprep.mubr.bf16.mxu0 0
      %3117 = vmatmul.mubr.bf16.gmra.mrb[0].mxu0 %v2984
      %v3118 = vpop.f32.mrb[0].mxu0
      %v3119 = vadd.f32 0.0, %v3118
      %v3120 = vpop.f32.mrb[0].mxu0
      %v3121 = vpop.f32.mrb[0].mxu0
      %v3122 = vadd.f32 0.0, %v3121
      %v3123 = vpop.f32.mrb[0].mxu0
      %3124 = vmatprep.mubr.bf16.mxu0 0
      %3125 = vmatmul.mubr.bf16.gmra.mrb[0].mxu0 %v2987
      %v3126 = vpop.f32.mrb[0].mxu0
      %v3127 = vadd.f32 0.0, %v3126
      %v3128 = vpop.f32.mrb[0].mxu0
      %v3129 = vpop.f32.mrb[0].mxu0
      %v3130 = vadd.f32 0.0, %v3129
      %v3131 = vpop.f32.mrb[0].mxu0
      %3132 = vmatprep.mubr.bf16.mxu0 0
      %3133 = vmatmul.mubr.bf16.gmra.mrb[0].mxu0 %v2990
      %v3134 = vpop.f32.mrb[0].mxu0
      %v3135 = vadd.f32 0.0, %v3134
      %v3136 = vpop.f32.mrb[0].mxu0
      %v3137 = vpop.f32.mrb[0].mxu0
      %v3138 = vadd.f32 0.0, %v3137
      %v3139 = vpop.f32.mrb[0].mxu0
      %3140 = vmatprep.mubr.bf16.mxu0 0
      %3141 = vmatmul.mubr.bf16.gmra.mrb[0].mxu0 %v2993
      %v3142 = vpop.f32.mrb[0].mxu0
      %v3143 = vadd.f32 0.0, %v3142
      %v3144 = vpop.f32.mrb[0].mxu0
      %v3145 = vpop.f32.mrb[0].mxu0
      %v3146 = vadd.f32 0.0, %v3145
      %v3147 = vpop.f32.mrb[0].mxu0
      %3148 = vmatprep.mubr.bf16.mxu0 0
      %3149 = vmatmul.mubr.bf16.gmra.mrb[0].mxu0 %v2996
      %v3150 = vpop.f32.mrb[0].mxu0
      %v3151 = vadd.f32 0.0, %v3150
      %v3152 = vpop.f32.mrb[0].mxu0
      %v3153 = vpop.f32.mrb[0].mxu0
      %v3154 = vadd.f32 0.0, %v3153
      %v3155 = vpop.f32.mrb[0].mxu0
      %3156 = vmatprep.mubr.bf16.mxu0 0
      %3157 = vmatmul.mubr.bf16.gmra.mrb[0].mxu0 %v2999
      %v3158 = vpop.f32.mrb[0].mxu0
      %v3159 = vadd.f32 0.0, %v3158
      %v3160 = vpop.f32.mrb[0].mxu0
      %v3161 = vpop.f32.mrb[0].mxu0
      %v3162 = vadd.f32 0.0, %v3161
      %v3163 = vpop.f32.mrb[0].mxu0
      %3164 = vmatprep.mubr.bf16.mxu0 0
      %3165 = vmatmul.mubr.bf16.gmra.mrb[0].mxu0 %v3002
      %v3166 = vpop.f32.mrb[0].mxu0
      %v3167 = vadd.f32 0.0, %v3166
      %v3168 = vpop.f32.mrb[0].mxu0
      %v3169 = vpop.f32.mrb[0].mxu0
      %v3170 = vadd.f32 0.0, %v3169
      %v3171 = vpop.f32.mrb[0].mxu0
      %3172 = vmatprep.mubr.bf16.mxu0 0
      %3173 = vmatmul.mubr.bf16.gmra.mrb[0].mxu0 %v3005
      %v3174 = vpop.f32.mrb[0].mxu0
      %v3175 = vadd.f32 0.0, %v3174
      %v3176 = vpop.f32.mrb[0].mxu0
      %v3177 = vpop.f32.mrb[0].mxu0
      %v3178 = vadd.f32 0.0, %v3177
      %v3179 = vpop.f32.mrb[0].mxu0
      %3180 = vmatprep.mubr.bf16.mxu0 0
      %3181 = vmatmul.mubr.bf16.gmra.mrb[0].mxu0 %v3008
      %v3182 = vpop.f32.mrb[0].mxu0
      %v3183 = vadd.f32 0.0, %v3182
      %v3184 = vpop.f32.mrb[0].mxu0
      %v3185 = vpop.f32.mrb[0].mxu0
      %v3186 = vadd.f32 0.0, %v3185
      %v3187 = vpop.f32.mrb[0].mxu0
      %3188 = vmatprep.mubr.bf16.mxu0 0
      %3189 = vmatmul.mubr.bf16.gmra.mrb[0].mxu0 %v3011
      %v3190 = vpop.f32.mrb[0].mxu0
      %v3191 = vadd.f32 0.0, %v3190
      %v3192 = vpop.f32.mrb[0].mxu0
      %v3193 = vpop.f32.mrb[0].mxu0
      %v3194 = vadd.f32 0.0, %v3193
      %v3195 = vpop.f32.mrb[0].mxu0
      %3196 = vmatprep.mubr.bf16.mxu0 0
      %3197 = vmatmul.mubr.bf16.gmra.mrb[0].mxu0 %v3014
      %v3198 = vpop.f32.mrb[0].mxu0
      %v3199 = vadd.f32 0.0, %v3198
      %v3200 = vpop.f32.mrb[0].mxu0
      %v3201 = vpop.f32.mrb[0].mxu0
      %v3202 = vadd.f32 0.0, %v3201
      %v3203 = vpop.f32.mrb[0].mxu0
      %3204 = vmatprep.mubr.bf16.mxu0 0
      %3205 = vmatmul.mubr.bf16.gmra.mrb[0].mxu0 %v3017
      %v3206 = vpop.f32.mrb[0].mxu0
      %v3207 = vadd.f32 0.0, %v3206
      %v3208 = vpop.f32.mrb[0].mxu0
      %v3209 = vpop.f32.mrb[0].mxu0
      %v3210 = vadd.f32 0.0, %v3209
      %v3211 = vpop.f32.mrb[0].mxu0
      %3212 = vmatprep.mubr.bf16.mxu0 0
      %3213 = vmatmul.mubr.bf16.gmra.mrb[0].mxu0 %v3020
      %v3214 = vpop.f32.mrb[0].mxu0
      %v3215 = vadd.f32 0.0, %v3214
      %v3216 = vpop.f32.mrb[0].mxu0
      %v3217 = vpop.f32.mrb[0].mxu0
      %v3218 = vadd.f32 0.0, %v3217
      %v3219 = vpop.f32.mrb[0].mxu0
      %3220 = vmatprep.mubr.bf16.mxu0 0
      %3221 = vmatmul.mubr.bf16.gmra.mrb[0].mxu0 %v3023
      %v3222 = vpop.f32.mrb[0].mxu0
      %v3223 = vadd.f32 0.0, %v3222
      %v3224 = vpop.f32.mrb[0].mxu0
      %v3225 = vpop.f32.mrb[0].mxu0
      %v3226 = vpop.f32.mrb[0].mxu0
      %3227 = vdwg.mxu0
      %v3228 = vadd.f32 %v2734, %v3063
      %v3229 = vadd.f32 %v2735, %v3066
      %v3230 = vadd.f32 %v2736, %v3071
      %v3231 = vadd.f32 %v2737, %v3074
      %v3232 = vadd.f32 %v2738, %v3079
      %v3233 = vadd.f32 %v2739, %v3082
      %v3234 = vadd.f32 %v2740, %v3087
      %v3235 = vadd.f32 %v2741, %v3090
      %v3236 = vadd.f32 %v2742, %v3095
      %v3237 = vadd.f32 %v2743, %v3098
      %v3238 = vadd.f32 %v2744, %v3103
      %v3239 = vadd.f32 %v2745, %v3106
      %v3240 = vadd.f32 %v2746, %v3111
      %v3241 = vadd.f32 %v2747, %v3114
      %v3242 = vadd.f32 %v2748, %v3119
      %v3243 = vadd.f32 %v2749, %v3122
      %v3244 = vadd.f32 %v2750, %v3127
      %v3245 = vadd.f32 %v2751, %v3130
      %v3246 = vadd.f32 %v2752, %v3135
      %v3247 = vadd.f32 %v2753, %v3138
      %v3248 = vadd.f32 %v2754, %v3143
      %v3249 = vadd.f32 %v2755, %v3146
      %v3250 = vadd.f32 %v2756, %v3151
      %v3251 = vadd.f32 %v2757, %v3154
      %v3252 = vadd.f32 %v2758, %v3159
      %v3253 = vadd.f32 %v2759, %v3162
      %v3254 = vadd.f32 %v2760, %v3167
      %v3255 = vadd.f32 %v2761, %v3170
      %v3256 = vadd.f32 %v2762, %v3175
      %v3257 = vadd.f32 %v2763, %v3178
      %v3258 = vadd.f32 %v2764, %v3183
      %v3259 = vadd.f32 %v2765, %v3186
      %v3260 = vadd.f32 %v2766, %v3191
      %v3261 = vadd.f32 %v2767, %v3194
      %v3262 = vadd.f32 %v2768, %v3199
      %v3263 = vadd.f32 %v2769, %v3202
      %v3264 = vadd.f32 %v2770, %v3207
      %v3265 = vadd.f32 %v2771, %v3210
      %v3266 = vadd.f32 %v2772, %v3215
      %v3267 = vadd.f32 %v2773, %v3218
      %v3268 = vadd.f32 %v2774, %v3223
      %v3269 = vld [vmem:[%s224 + $0x10] sm:$0xc]
      %v3270 = vld [vmem:[%s224 + $0x14] sm:$0xf]
      %v3271 = vld [vmem:[%s224 + $0x18] sm:$0xf]
      %v3272 = vld [vmem:[%s224 + $0x1c] sm:$0xf]
      %v3273 = vld [vmem:[%s224 + $0x20] sm:$0xf]
      %v3274 = vld [vmem:[%s224 + $0x24] sm:$0xf]
      %v3275 = vld [vmem:[%s224 + $0x28] sm:$0xf]
      %v3276 = vld [vmem:[%s224 + $0x2c] sm:$0xf]
      %v3277 = vld [vmem:[%s224 + $0x30] sm:$0xf]
      %v3278 = vld [vmem:[%s224 + $0x34] sm:$0xf]
      %v3279 = vld [vmem:[%s224 + $0x38] sm:$0xf]
      %v3280 = vld [vmem:[%s224 + $0x3c] sm:$0xf]
      %v3281 = vld [vmem:[%s224 + $0x40] sm:$0xf]
      %v3282 = vld [vmem:[%s224 + $0x44] sm:$0xf]
      %v3283 = vld [vmem:[%s224 + $0x48] sm:$0xf]
      %v3284 = vld [vmem:[%s224 + $0x4c] sm:$0xf]
      %v3285 = vld [vmem:[%s224 + $0x50] sm:$0xf]
      %v3286 = vld [vmem:[%s224 + $0x54] sm:$0xf]
      %v3287 = vld [vmem:[%s224 + $0x58] sm:$0xf]
      %v3288 = vld [vmem:[%s224 + $0x5c] sm:$0xf]
      %v3289 = vld [vmem:[%s224 + $0x60] sm:$0xf]
      %v3290 = vld [vmem:[%s224 + $0x64] sm:$0xf]
      %v3291 = vld [vmem:[%s224 + $0x68] sm:$0xf]
      %v3292 = vld [vmem:[%s224 + $0x6c] sm:$0xf]
      %v3293 = vld [vmem:[%s224 + $0x70] sm:$0xf]
      %v3294 = vld [vmem:[%s224 + $0x74] sm:$0xf]
      %v3295 = vld [vmem:[%s224 + $0x78] sm:$0xf]
      %v3296 = vld [vmem:[%s224 + $0x7c] sm:$0xf]
      %v3297 = vld [vmem:[%s224 + $0x80] sm:$0xf]
      %v3298 = vld [vmem:[%s224 + $0x84] sm:$0xf]
      %v3299 = vld [vmem:[%s224 + $0x88] sm:$0xf]
      %v3300 = vld [vmem:[%s224 + $0x8c] sm:$0xf]
      %v3301 = vld [vmem:[%s224 + $0x90] sm:$0xf]
      %v3302 = vld [vmem:[%s224 + $0x94] sm:$0xf]
      %v3303 = vld [vmem:[%s224 + $0x98] sm:$0xf]
      %v3304 = vld [vmem:[%s224 + $0x9c] sm:$0xf]
      %v3305 = vld [vmem:[%s224 + $0xa0] sm:$0xf]
      %v3306 = vld [vmem:[%s224 + $0xa4] sm:$0xf]
      %v3307 = vld [vmem:[%s224 + $0xa8] sm:$0xf]
      %v3308 = vld [vmem:[%s224 + $0xac] sm:$0xf]
      %v3309 = vld [vmem:[%s224 + $0xb0] sm:$0xf]
      %v3310 = vld [vmem:[%s224 + $0xb4] sm:$0x1]
      %s3311 = scalar_lea.vmem %s1, 14
      %v3312 = vld [vmem:[%s3311] sm:$0x3]
      %v3355 = vunpack.c.l.b16 %v3269
      %v3356 = vunpack.c.l.b16 %v3270
      %v3357 = vunpack.c.l.b16 %v3271
      %v3358 = vunpack.c.l.b16 %v3272
      %v3359 = vunpack.c.l.b16 %v3273
      %v3360 = vunpack.c.l.b16 %v3274
      %v3361 = vunpack.c.l.b16 %v3275
      %v3362 = vunpack.c.l.b16 %v3276
      %v3363 = vunpack.c.l.b16 %v3277
      %v3364 = vunpack.c.l.b16 %v3278
      %v3365 = vunpack.c.l.b16 %v3279
      %v3366 = vunpack.c.l.b16 %v3280
      %v3367 = vunpack.c.l.b16 %v3281
      %v3368 = vunpack.c.l.b16 %v3282
      %v3369 = vunpack.c.l.b16 %v3283
      %v3370 = vunpack.c.l.b16 %v3284
      %v3371 = vunpack.c.l.b16 %v3285
      %v3372 = vunpack.c.l.b16 %v3286
      %v3373 = vunpack.c.l.b16 %v3287
      %v3374 = vunpack.c.l.b16 %v3288
      %v3375 = vunpack.c.l.b16 %v3289
      %v3376 = vunpack.c.l.b16 %v3290
      %v3377 = vunpack.c.l.b16 %v3291
      %v3378 = vunpack.c.l.b16 %v3292
      %v3379 = vunpack.c.l.b16 %v3293
      %v3380 = vunpack.c.l.b16 %v3294
      %v3381 = vunpack.c.l.b16 %v3295
      %v3382 = vunpack.c.l.b16 %v3296
      %v3383 = vunpack.c.l.b16 %v3297
      %v3384 = vunpack.c.l.b16 %v3298
      %v3385 = vunpack.c.l.b16 %v3299
      %v3386 = vunpack.c.l.b16 %v3300
      %v3387 = vunpack.c.l.b16 %v3301
      %v3388 = vunpack.c.l.b16 %v3302
      %v3389 = vunpack.c.l.b16 %v3303
      %v3390 = vunpack.c.l.b16 %v3304
      %v3391 = vunpack.c.l.b16 %v3305
      %v3392 = vunpack.c.l.b16 %v3306
      %v3393 = vunpack.c.l.b16 %v3307
      %v3394 = vunpack.c.l.b16 %v3308
      %v3395 = vunpack.c.l.b16 %v3309
      %v3396 = vunpack.c.l.b16 %v3310
      %v3397 = vpack.c.b16 %v3356, %v3355
      %v3398 = vpack.c.b16 %v3358, %v3357
      %v3399 = vpack.c.b16 %v3360, %v3359
      %v3400 = vpack.c.b16 %v3362, %v3361
      %v3401 = vpack.c.b16 %v3364, %v3363
      %v3402 = vpack.c.b16 %v3366, %v3365
      %v3403 = vpack.c.b16 %v3368, %v3367
      %v3404 = vpack.c.b16 %v3370, %v3369
      %v3405 = vpack.c.b16 %v3372, %v3371
      %v3406 = vpack.c.b16 %v3374, %v3373
      %v3407 = vpack.c.b16 %v3376, %v3375
      %v3408 = vpack.c.b16 %v3378, %v3377
      %v3409 = vpack.c.b16 %v3380, %v3379
      %v3410 = vpack.c.b16 %v3382, %v3381
      %v3411 = vpack.c.b16 %v3384, %v3383
      %v3412 = vpack.c.b16 %v3386, %v3385
      %v3413 = vpack.c.b16 %v3388, %v3387
      %v3414 = vpack.c.b16 %v3390, %v3389
      %v3415 = vpack.c.b16 %v3392, %v3391
      %v3416 = vpack.c.b16 %v3394, %v3393
      %v3417 = vpack.c.b16 %v3396, %v3395
      %vm3418 = vsmask.f32 5376
      %v3420 = vshrl.u32 %v3397, 16
      %v3422 = vrot.slane %v3420, 2
      %v3423 = vshll.u32 %v3397, 16
      %v3425 = vrot.slane %v3423, 3
      %v3426 = vor.u32 %v3422, %v3425
      %v3428 = vshrl.u32 %v3398, 16
      %v3430 = vrot.slane %v3428, 2
      %v3431 = vshll.u32 %v3398, 16
      %v3433 = vrot.slane %v3431, 3
      %v3434 = vor.u32 %v3430, %v3433
      %v3435 = vsel %vm3418, %v3426, %v3434
      %v3437 = vshrl.u32 %v3399, 16
      %v3439 = vrot.slane %v3437, 2
      %v3440 = vshll.u32 %v3399, 16
      %v3442 = vrot.slane %v3440, 3
      %v3443 = vor.u32 %v3439, %v3442
      %v3444 = vsel %vm3418, %v3434, %v3443
      %v3446 = vshrl.u32 %v3400, 16
      %v3448 = vrot.slane %v3446, 2
      %v3449 = vshll.u32 %v3400, 16
      %v3451 = vrot.slane %v3449, 3
      %v3452 = vor.u32 %v3448, %v3451
      %v3453 = vsel %vm3418, %v3443, %v3452
      %v3455 = vshrl.u32 %v3401, 16
      %v3457 = vrot.slane %v3455, 2
      %v3458 = vshll.u32 %v3401, 16
      %v3460 = vrot.slane %v3458, 3
      %v3461 = vor.u32 %v3457, %v3460
      %v3462 = vsel %vm3418, %v3452, %v3461
      %v3464 = vshrl.u32 %v3402, 16
      %v3466 = vrot.slane %v3464, 2
      %v3467 = vshll.u32 %v3402, 16
      %v3469 = vrot.slane %v3467, 3
      %v3470 = vor.u32 %v3466, %v3469
      %v3471 = vsel %vm3418, %v3461, %v3470
      %v3473 = vshrl.u32 %v3403, 16
      %v3475 = vrot.slane %v3473, 2
      %v3476 = vshll.u32 %v3403, 16
      %v3478 = vrot.slane %v3476, 3
      %v3479 = vor.u32 %v3475, %v3478
      %v3480 = vsel %vm3418, %v3470, %v3479
      %v3482 = vshrl.u32 %v3404, 16
      %v3484 = vrot.slane %v3482, 2
      %v3485 = vshll.u32 %v3404, 16
      %v3487 = vrot.slane %v3485, 3
      %v3488 = vor.u32 %v3484, %v3487
      %v3489 = vsel %vm3418, %v3479, %v3488
      %v3491 = vshrl.u32 %v3405, 16
      %v3493 = vrot.slane %v3491, 2
      %v3494 = vshll.u32 %v3405, 16
      %v3496 = vrot.slane %v3494, 3
      %v3497 = vor.u32 %v3493, %v3496
      %v3498 = vsel %vm3418, %v3488, %v3497
      %v3500 = vshrl.u32 %v3406, 16
      %v3502 = vrot.slane %v3500, 2
      %v3503 = vshll.u32 %v3406, 16
      %v3505 = vrot.slane %v3503, 3
      %v3506 = vor.u32 %v3502, %v3505
      %v3507 = vsel %vm3418, %v3497, %v3506
      %v3509 = vshrl.u32 %v3407, 16
      %v3511 = vrot.slane %v3509, 2
      %v3512 = vshll.u32 %v3407, 16
      %v3514 = vrot.slane %v3512, 3
      %v3515 = vor.u32 %v3511, %v3514
      %v3516 = vsel %vm3418, %v3506, %v3515
      %v3518 = vshrl.u32 %v3408, 16
      %v3520 = vrot.slane %v3518, 2
      %v3521 = vshll.u32 %v3408, 16
      %v3523 = vrot.slane %v3521, 3
      %v3524 = vor.u32 %v3520, %v3523
      %v3525 = vsel %vm3418, %v3515, %v3524
      %v3527 = vshrl.u32 %v3409, 16
      %v3529 = vrot.slane %v3527, 2
      %v3530 = vshll.u32 %v3409, 16
      %v3532 = vrot.slane %v3530, 3
      %v3533 = vor.u32 %v3529, %v3532
      %v3534 = vsel %vm3418, %v3524, %v3533
      %v3536 = vshrl.u32 %v3410, 16
      %v3538 = vrot.slane %v3536, 2
      %v3539 = vshll.u32 %v3410, 16
      %v3541 = vrot.slane %v3539, 3
      %v3542 = vor.u32 %v3538, %v3541
      %v3543 = vsel %vm3418, %v3533, %v3542
      %v3545 = vshrl.u32 %v3411, 16
      %v3547 = vrot.slane %v3545, 2
      %v3548 = vshll.u32 %v3411, 16
      %v3550 = vrot.slane %v3548, 3
      %v3551 = vor.u32 %v3547, %v3550
      %v3552 = vsel %vm3418, %v3542, %v3551
      %v3554 = vshrl.u32 %v3412, 16
      %v3556 = vrot.slane %v3554, 2
      %v3557 = vshll.u32 %v3412, 16
      %v3559 = vrot.slane %v3557, 3
      %v3560 = vor.u32 %v3556, %v3559
      %v3561 = vsel %vm3418, %v3551, %v3560
      %v3563 = vshrl.u32 %v3413, 16
      %v3565 = vrot.slane %v3563, 2
      %v3566 = vshll.u32 %v3413, 16
      %v3568 = vrot.slane %v3566, 3
      %v3569 = vor.u32 %v3565, %v3568
      %v3570 = vsel %vm3418, %v3560, %v3569
      %v3572 = vshrl.u32 %v3414, 16
      %v3574 = vrot.slane %v3572, 2
      %v3575 = vshll.u32 %v3414, 16
      %v3577 = vrot.slane %v3575, 3
      %v3578 = vor.u32 %v3574, %v3577
      %v3579 = vsel %vm3418, %v3569, %v3578
      %v3581 = vshrl.u32 %v3415, 16
      %v3583 = vrot.slane %v3581, 2
      %v3584 = vshll.u32 %v3415, 16
      %v3586 = vrot.slane %v3584, 3
      %v3587 = vor.u32 %v3583, %v3586
      %v3588 = vsel %vm3418, %v3578, %v3587
      %v3590 = vshrl.u32 %v3416, 16
      %v3592 = vrot.slane %v3590, 2
      %v3593 = vshll.u32 %v3416, 16
      %v3595 = vrot.slane %v3593, 3
      %v3596 = vor.u32 %v3592, %v3595
      %v3597 = vsel %vm3418, %v3587, %v3596
      %v3599 = vshrl.u32 %v3417, 16
      %v3601 = vrot.slane %v3599, 2
      %v3602 = vshll.u32 %v3417, 16
      %v3604 = vrot.slane %v3602, 3
      %v3605 = vor.u32 %v3601, %v3604
      %v3606 = vsel %vm3418, %v3596, %v3605
      %v3608 = vsel %vm552, %v3435, 0
      %v3611 = vsel %vm552, %v3444, 0
      %v3614 = vsel %vm552, %v3453, 0
      %v3617 = vsel %vm552, %v3462, 0
      %v3620 = vsel %vm552, %v3471, 0
      %v3623 = vsel %vm552, %v3480, 0
      %v3626 = vsel %vm552, %v3489, 0
      %v3629 = vsel %vm552, %v3498, 0
      %v3632 = vsel %vm552, %v3507, 0
      %v3635 = vsel %vm552, %v3516, 0
      %v3638 = vsel %vm552, %v3525, 0
      %v3641 = vsel %vm552, %v3534, 0
      %v3644 = vsel %vm552, %v3543, 0
      %v3647 = vsel %vm552, %v3552, 0
      %v3650 = vsel %vm552, %v3561, 0
      %v3653 = vsel %vm552, %v3570, 0
      %v3656 = vsel %vm552, %v3579, 0
      %v3659 = vsel %vm552, %v3588, 0
      %v3662 = vsel %vm552, %v3597, 0
      %v3665 = vsel %vm552, %v3606, 0
      %v3668 = vsel %vm552, %v3605, 0
      %v3671 = vsel %vm616, %v3312, 0
      %3673 = vmatprep.subr.bf16.mxu0 0
      %3674 = vmatpush1.bf16.msra.mxu0 %v3671
      %3675 = vmatprep.subr.bf16.mxu0 0
      %3676 = vmatpush1.bf16.msra.mxu0 0
      %3677 = vmatprep.subr.bf16.mxu0 0
      %3678 = vmatpush1.bf16.msra.mxu0 0
      %3679 = vmatprep.subr.bf16.mxu0 0
      %3680 = vmatpush1.bf16.msra.mxu0 0
      %3681 = vmatprep.subr.bf16.mxu0 0
      %3682 = vmatpush1.bf16.msra.mxu0 0
      %3683 = vmatprep.subr.bf16.mxu0 0
      %3684 = vmatpush1.bf16.msra.mxu0 0
      %3685 = vmatprep.subr.bf16.mxu0 0
      %3686 = vmatpush1.bf16.msra.mxu0 0
      %3687 = vmatprep.subr.bf16.mxu0 0
      %3688 = vmatpush1.bf16.msra.mxu0 0
      %3689 = vmatprep.subr.bf16.mxu0 0
      %3690 = vmatpush1.bf16.msra.mxu0 0
      %3691 = vmatprep.subr.bf16.mxu0 0
      %3692 = vmatpush1.bf16.msra.mxu0 0
      %3693 = vmatprep.subr.bf16.mxu0 0
      %3694 = vmatpush1.bf16.msra.mxu0 0
      %3695 = vmatprep.subr.bf16.mxu0 0
      %3696 = vmatpush1.bf16.msra.mxu0 0
      %3697 = vmatprep.subr.bf16.mxu0 0
      %3698 = vmatpush1.bf16.msra.mxu0 0
      %3699 = vmatprep.subr.bf16.mxu0 0
      %3700 = vmatpush1.bf16.msra.mxu0 0
      %3701 = vmatprep.subr.bf16.mxu0 0
      %3702 = vmatpush1.bf16.msra.mxu0 0
      %3703 = vmatprep.subr.bf16.mxu0 0
      %3704 = vmatpush1.bf16.msra.mxu0 0
      %3705 = vmatprep.mubr.bf16.mxu0 0
      %3706 = vmatmul.mubr.bf16.gmra.mrb[0].mxu0 %v3608
      %v3707 = vpop.f32.mrb[0].mxu0
      %v3708 = vadd.f32 0.0, %v3707
      %v3709 = vpop.f32.mrb[0].mxu0
      %v3710 = vpop.f32.mrb[0].mxu0
      %v3711 = vadd.f32 0.0, %v3710
      %v3712 = vpop.f32.mrb[0].mxu0
      %3713 = vmatprep.mubr.bf16.mxu0 0
      %3714 = vmatmul.mubr.bf16.gmra.mrb[0].mxu0 %v3611
      %v3715 = vpop.f32.mrb[0].mxu0
      %v3716 = vadd.f32 0.0, %v3715
      %v3717 = vpop.f32.mrb[0].mxu0
      %v3718 = vpop.f32.mrb[0].mxu0
      %v3719 = vadd.f32 0.0, %v3718
      %v3720 = vpop.f32.mrb[0].mxu0
      %3721 = vmatprep.mubr.bf16.mxu0 0
      %3722 = vmatmul.mubr.bf16.gmra.mrb[0].mxu0 %v3614
      %v3723 = vpop.f32.mrb[0].mxu0
      %v3724 = vadd.f32 0.0, %v3723
      %v3725 = vpop.f32.mrb[0].mxu0
      %v3726 = vpop.f32.mrb[0].mxu0
      %v3727 = vadd.f32 0.0, %v3726
      %v3728 = vpop.f32.mrb[0].mxu0
      %3729 = vmatprep.mubr.bf16.mxu0 0
      %3730 = vmatmul.mubr.bf16.gmra.mrb[0].mxu0 %v3617
      %v3731 = vpop.f32.mrb[0].mxu0
      %v3732 = vadd.f32 0.0, %v3731
      %v3733 = vpop.f32.mrb[0].mxu0
      %v3734 = vpop.f32.mrb[0].mxu0
      %v3735 = vadd.f32 0.0, %v3734
      %v3736 = vpop.f32.mrb[0].mxu0
      %3737 = vmatprep.mubr.bf16.mxu0 0
      %3738 = vmatmul.mubr.bf16.gmra.mrb[0].mxu0 %v3620
      %v3739 = vpop.f32.mrb[0].mxu0
      %v3740 = vadd.f32 0.0, %v3739
      %v3741 = vpop.f32.mrb[0].mxu0
      %v3742 = vpop.f32.mrb[0].mxu0
      %v3743 = vadd.f32 0.0, %v3742
      %v3744 = vpop.f32.mrb[0].mxu0
      %3745 = vmatprep.mubr.bf16.mxu0 0
      %3746 = vmatmul.mubr.bf16.gmra.mrb[0].mxu0 %v3623
      %v3747 = vpop.f32.mrb[0].mxu0
      %v3748 = vadd.f32 0.0, %v3747
      %v3749 = vpop.f32.mrb[0].mxu0
      %v3750 = vpop.f32.mrb[0].mxu0
      %v3751 = vadd.f32 0.0, %v3750
      %v3752 = vpop.f32.mrb[0].mxu0
      %3753 = vmatprep.mubr.bf16.mxu0 0
      %3754 = vmatmul.mubr.bf16.gmra.mrb[0].mxu0 %v3626
      %v3755 = vpop.f32.mrb[0].mxu0
      %v3756 = vadd.f32 0.0, %v3755
      %v3757 = vpop.f32.mrb[0].mxu0
      %v3758 = vpop.f32.mrb[0].mxu0
      %v3759 = vadd.f32 0.0, %v3758
      %v3760 = vpop.f32.mrb[0].mxu0
      %3761 = vmatprep.mubr.bf16.mxu0 0
      %3762 = vmatmul.mubr.bf16.gmra.mrb[0].mxu0 %v3629
      %v3763 = vpop.f32.mrb[0].mxu0
      %v3764 = vadd.f32 0.0, %v3763
      %v3765 = vpop.f32.mrb[0].mxu0
      %v3766 = vpop.f32.mrb[0].mxu0
      %v3767 = vadd.f32 0.0, %v3766
      %v3768 = vpop.f32.mrb[0].mxu0
      %3769 = vmatprep.mubr.bf16.mxu0 0
      %3770 = vmatmul.mubr.bf16.gmra.mrb[0].mxu0 %v3632
      %v3771 = vpop.f32.mrb[0].mxu0
      %v3772 = vadd.f32 0.0, %v3771
      %v3773 = vpop.f32.mrb[0].mxu0
      %v3774 = vpop.f32.mrb[0].mxu0
      %v3775 = vadd.f32 0.0, %v3774
      %v3776 = vpop.f32.mrb[0].mxu0
      %3777 = vmatprep.mubr.bf16.mxu0 0
      %3778 = vmatmul.mubr.bf16.gmra.mrb[0].mxu0 %v3635
      %v3779 = vpop.f32.mrb[0].mxu0
      %v3780 = vadd.f32 0.0, %v3779
      %v3781 = vpop.f32.mrb[0].mxu0
      %v3782 = vpop.f32.mrb[0].mxu0
      %v3783 = vadd.f32 0.0, %v3782
      %v3784 = vpop.f32.mrb[0].mxu0
      %3785 = vmatprep.mubr.bf16.mxu0 0
      %3786 = vmatmul.mubr.bf16.gmra.mrb[0].mxu0 %v3638
      %v3787 = vpop.f32.mrb[0].mxu0
      %v3788 = vadd.f32 0.0, %v3787
      %v3789 = vpop.f32.mrb[0].mxu0
      %v3790 = vpop.f32.mrb[0].mxu0
      %v3791 = vadd.f32 0.0, %v3790
      %v3792 = vpop.f32.mrb[0].mxu0
      %3793 = vmatprep.mubr.bf16.mxu0 0
      %3794 = vmatmul.mubr.bf16.gmra.mrb[0].mxu0 %v3641
      %v3795 = vpop.f32.mrb[0].mxu0
      %v3796 = vadd.f32 0.0, %v3795
      %v3797 = vpop.f32.mrb[0].mxu0
      %v3798 = vpop.f32.mrb[0].mxu0
      %v3799 = vadd.f32 0.0, %v3798
      %v3800 = vpop.f32.mrb[0].mxu0
      %3801 = vmatprep.mubr.bf16.mxu0 0
      %3802 = vmatmul.mubr.bf16.gmra.mrb[0].mxu0 %v3644
      %v3803 = vpop.f32.mrb[0].mxu0
      %v3804 = vadd.f32 0.0, %v3803
      %v3805 = vpop.f32.mrb[0].mxu0
      %v3806 = vpop.f32.mrb[0].mxu0
      %v3807 = vadd.f32 0.0, %v3806
      %v3808 = vpop.f32.mrb[0].mxu0
      %3809 = vmatprep.mubr.bf16.mxu0 0
      %3810 = vmatmul.mubr.bf16.gmra.mrb[0].mxu0 %v3647
      %v3811 = vpop.f32.mrb[0].mxu0
      %v3812 = vadd.f32 0.0, %v3811
      %v3813 = vpop.f32.mrb[0].mxu0
      %v3814 = vpop.f32.mrb[0].mxu0
      %v3815 = vadd.f32 0.0, %v3814
      %v3816 = vpop.f32.mrb[0].mxu0
      %3817 = vmatprep.mubr.bf16.mxu0 0
      %3818 = vmatmul.mubr.bf16.gmra.mrb[0].mxu0 %v3650
      %v3819 = vpop.f32.mrb[0].mxu0
      %v3820 = vadd.f32 0.0, %v3819
      %v3821 = vpop.f32.mrb[0].mxu0
      %v3822 = vpop.f32.mrb[0].mxu0
      %v3823 = vadd.f32 0.0, %v3822
      %v3824 = vpop.f32.mrb[0].mxu0
      %3825 = vmatprep.mubr.bf16.mxu0 0
      %3826 = vmatmul.mubr.bf16.gmra.mrb[0].mxu0 %v3653
      %v3827 = vpop.f32.mrb[0].mxu0
      %v3828 = vadd.f32 0.0, %v3827
      %v3829 = vpop.f32.mrb[0].mxu0
      %v3830 = vpop.f32.mrb[0].mxu0
      %v3831 = vadd.f32 0.0, %v3830
      %v3832 = vpop.f32.mrb[0].mxu0
      %3833 = vmatprep.mubr.bf16.mxu0 0
      %3834 = vmatmul.mubr.bf16.gmra.mrb[0].mxu0 %v3656
      %v3835 = vpop.f32.mrb[0].mxu0
      %v3836 = vadd.f32 0.0, %v3835
      %v3837 = vpop.f32.mrb[0].mxu0
      %v3838 = vpop.f32.mrb[0].mxu0
      %v3839 = vadd.f32 0.0, %v3838
      %v3840 = vpop.f32.mrb[0].mxu0
      %3841 = vmatprep.mubr.bf16.mxu0 0
      %3842 = vmatmul.mubr.bf16.gmra.mrb[0].mxu0 %v3659
      %v3843 = vpop.f32.mrb[0].mxu0
      %v3844 = vadd.f32 0.0, %v3843
      %v3845 = vpop.f32.mrb[0].mxu0
      %v3846 = vpop.f32.mrb[0].mxu0
      %v3847 = vadd.f32 0.0, %v3846
      %v3848 = vpop.f32.mrb[0].mxu0
      %3849 = vmatprep.mubr.bf16.mxu0 0
      %3850 = vmatmul.mubr.bf16.gmra.mrb[0].mxu0 %v3662
      %v3851 = vpop.f32.mrb[0].mxu0
      %v3852 = vadd.f32 0.0, %v3851
      %v3853 = vpop.f32.mrb[0].mxu0
      %v3854 = vpop.f32.mrb[0].mxu0
      %v3855 = vadd.f32 0.0, %v3854
      %v3856 = vpop.f32.mrb[0].mxu0
      %3857 = vmatprep.mubr.bf16.mxu0 0
      %3858 = vmatmul.mubr.bf16.gmra.mrb[0].mxu0 %v3665
      %v3859 = vpop.f32.mrb[0].mxu0
      %v3860 = vadd.f32 0.0, %v3859
      %v3861 = vpop.f32.mrb[0].mxu0
      %v3862 = vpop.f32.mrb[0].mxu0
      %v3863 = vadd.f32 0.0, %v3862
      %v3864 = vpop.f32.mrb[0].mxu0
      %3865 = vmatprep.mubr.bf16.mxu0 0
      %3866 = vmatmul.mubr.bf16.gmra.mrb[0].mxu0 %v3668
      %v3867 = vpop.f32.mrb[0].mxu0
      %v3868 = vadd.f32 0.0, %v3867
      %v3869 = vpop.f32.mrb[0].mxu0
      %v3870 = vpop.f32.mrb[0].mxu0
      %v3871 = vpop.f32.mrb[0].mxu0
      %3872 = vdwg.mxu0
      %v3873 = vadd.f32 %v3228, %v3708
      %v3874 = vadd.f32 %v3229, %v3711
      %v3875 = vadd.f32 %v3230, %v3716
      %v3876 = vadd.f32 %v3231, %v3719
      %v3877 = vadd.f32 %v3232, %v3724
      %v3878 = vadd.f32 %v3233, %v3727
      %v3879 = vadd.f32 %v3234, %v3732
      %v3880 = vadd.f32 %v3235, %v3735
      %v3881 = vadd.f32 %v3236, %v3740
      %v3882 = vadd.f32 %v3237, %v3743
      %v3883 = vadd.f32 %v3238, %v3748
      %v3884 = vadd.f32 %v3239, %v3751
      %v3885 = vadd.f32 %v3240, %v3756
      %v3886 = vadd.f32 %v3241, %v3759
      %v3887 = vadd.f32 %v3242, %v3764
      %v3888 = vadd.f32 %v3243, %v3767
      %v3889 = vadd.f32 %v3244, %v3772
      %v3890 = vadd.f32 %v3245, %v3775
      %v3891 = vadd.f32 %v3246, %v3780
      %v3892 = vadd.f32 %v3247, %v3783
      %v3893 = vadd.f32 %v3248, %v3788
      %v3894 = vadd.f32 %v3249, %v3791
      %v3895 = vadd.f32 %v3250, %v3796
      %v3896 = vadd.f32 %v3251, %v3799
      %v3897 = vadd.f32 %v3252, %v3804
      %v3898 = vadd.f32 %v3253, %v3807
      %v3899 = vadd.f32 %v3254, %v3812
      %v3900 = vadd.f32 %v3255, %v3815
      %v3901 = vadd.f32 %v3256, %v3820
      %v3902 = vadd.f32 %v3257, %v3823
      %v3903 = vadd.f32 %v3258, %v3828
      %v3904 = vadd.f32 %v3259, %v3831
      %v3905 = vadd.f32 %v3260, %v3836
      %v3906 = vadd.f32 %v3261, %v3839
      %v3907 = vadd.f32 %v3262, %v3844
      %v3908 = vadd.f32 %v3263, %v3847
      %v3909 = vadd.f32 %v3264, %v3852
      %v3910 = vadd.f32 %v3265, %v3855
      %v3911 = vadd.f32 %v3266, %v3860
      %v3912 = vadd.f32 %v3267, %v3863
      %v3913 = vadd.f32 %v3268, %v3868
      %v3914 = vld [vmem:[%s224 + $0x10] sm:$0x8]
      %s3915 = scalar_lea.vmem %s1, 16
      %v3916 = vld [vmem:[%s3915] sm:$0x3]
      %v3918 = vunpack.c.l.b16 %v3914
      %v3919 = vpack.c.b16 %v3356, %v3918
      %vm3920 = vcmask 1044480
      %v3921 = vrot.slane %v3919, 3
      %v3922 = vrot.slane %v3398, 3
      %v3923 = vsel %vm3920, %v3921, %v3922
      %v3924 = vrot.slane %v3399, 3
      %v3925 = vsel %vm3920, %v3922, %v3924
      %v3926 = vrot.slane %v3400, 3
      %v3927 = vsel %vm3920, %v3924, %v3926
      %v3928 = vrot.slane %v3401, 3
      %v3929 = vsel %vm3920, %v3926, %v3928
      %v3930 = vrot.slane %v3402, 3
      %v3931 = vsel %vm3920, %v3928, %v3930
      %v3932 = vrot.slane %v3403, 3
      %v3933 = vsel %vm3920, %v3930, %v3932
      %v3934 = vrot.slane %v3404, 3
      %v3935 = vsel %vm3920, %v3932, %v3934
      %v3936 = vrot.slane %v3405, 3
      %v3937 = vsel %vm3920, %v3934, %v3936
      %v3938 = vrot.slane %v3406, 3
      %v3939 = vsel %vm3920, %v3936, %v3938
      %v3940 = vrot.slane %v3407, 3
      %v3941 = vsel %vm3920, %v3938, %v3940
      %v3942 = vrot.slane %v3408, 3
      %v3943 = vsel %vm3920, %v3940, %v3942
      %v3944 = vrot.slane %v3409, 3
      %v3945 = vsel %vm3920, %v3942, %v3944
      %v3946 = vrot.slane %v3410, 3
      %v3947 = vsel %vm3920, %v3944, %v3946
      %v3948 = vrot.slane %v3411, 3
      %v3949 = vsel %vm3920, %v3946, %v3948
      %v3950 = vrot.slane %v3412, 3
      %v3951 = vsel %vm3920, %v3948, %v3950
      %v3952 = vrot.slane %v3413, 3
      %v3953 = vsel %vm3920, %v3950, %v3952
      %v3954 = vrot.slane %v3414, 3
      %v3955 = vsel %vm3920, %v3952, %v3954
      %v3956 = vrot.slane %v3415, 3
      %v3957 = vsel %vm3920, %v3954, %v3956
      %v3958 = vrot.slane %v3416, 3
      %v3959 = vsel %vm3920, %v3956, %v3958
      %v3960 = vrot.slane %v3417, 3
      %v3961 = vsel %vm3920, %v3958, %v3960
      %v3963 = vsel %vm552, %v3923, 0
      %v3966 = vsel %vm552, %v3925, 0
      %v3969 = vsel %vm552, %v3927, 0
      %v3972 = vsel %vm552, %v3929, 0
      %v3975 = vsel %vm552, %v3931, 0
      %v3978 = vsel %vm552, %v3933, 0
      %v3981 = vsel %vm552, %v3935, 0
      %v3984 = vsel %vm552, %v3937, 0
      %v3987 = vsel %vm552, %v3939, 0
      %v3990 = vsel %vm552, %v3941, 0
      %v3993 = vsel %vm552, %v3943, 0
      %v3996 = vsel %vm552, %v3945, 0
      %v3999 = vsel %vm552, %v3947, 0
      %v4002 = vsel %vm552, %v3949, 0
      %v4005 = vsel %vm552, %v3951, 0
      %v4008 = vsel %vm552, %v3953, 0
      %v4011 = vsel %vm552, %v3955, 0
      %v4014 = vsel %vm552, %v3957, 0
      %v4017 = vsel %vm552, %v3959, 0
      %v4020 = vsel %vm552, %v3961, 0
      %v4023 = vsel %vm552, %v3960, 0
      %v4026 = vsel %vm616, %v3916, 0
      %4028 = vmatprep.subr.bf16.mxu0 0
      %4029 = vmatpush1.bf16.msra.mxu0 %v4026
      %4030 = vmatprep.subr.bf16.mxu0 0
      %4031 = vmatpush1.bf16.msra.mxu0 0
      %4032 = vmatprep.subr.bf16.mxu0 0
      %4033 = vmatpush1.bf16.msra.mxu0 0
      %4034 = vmatprep.subr.bf16.mxu0 0
      %4035 = vmatpush1.bf16.msra.mxu0 0
      %4036 = vmatprep.subr.bf16.mxu0 0
      %4037 = vmatpush1.bf16.msra.mxu0 0
      %4038 = vmatprep.subr.bf16.mxu0 0
      %4039 = vmatpush1.bf16.msra.mxu0 0
      %4040 = vmatprep.subr.bf16.mxu0 0
      %4041 = vmatpush1.bf16.msra.mxu0 0
      %4042 = vmatprep.subr.bf16.mxu0 0
      %4043 = vmatpush1.bf16.msra.mxu0 0
      %4044 = vmatprep.subr.bf16.mxu0 0
      %4045 = vmatpush1.bf16.msra.mxu0 0
      %4046 = vmatprep.subr.bf16.mxu0 0
      %4047 = vmatpush1.bf16.msra.mxu0 0
      %4048 = vmatprep.subr.bf16.mxu0 0
      %4049 = vmatpush1.bf16.msra.mxu0 0
      %4050 = vmatprep.subr.bf16.mxu0 0
      %4051 = vmatpush1.bf16.msra.mxu0 0
      %4052 = vmatprep.subr.bf16.mxu0 0
      %4053 = vmatpush1.bf16.msra.mxu0 0
      %4054 = vmatprep.subr.bf16.mxu0 0
      %4055 = vmatpush1.bf16.msra.mxu0 0
      %4056 = vmatprep.subr.bf16.mxu0 0
      %4057 = vmatpush1.bf16.msra.mxu0 0
      %4058 = vmatprep.subr.bf16.mxu0 0
      %4059 = vmatpush1.bf16.msra.mxu0 0
      %4060 = vmatprep.mubr.bf16.mxu0 0
      %4061 = vmatmul.mubr.bf16.gmra.mrb[0].mxu0 %v3963
      %v4062 = vpop.f32.mrb[0].mxu0
      %v4063 = vadd.f32 0.0, %v4062
      %v4064 = vpop.f32.mrb[0].mxu0
      %v4065 = vpop.f32.mrb[0].mxu0
      %v4066 = vadd.f32 0.0, %v4065
      %v4067 = vpop.f32.mrb[0].mxu0
      %4068 = vmatprep.mubr.bf16.mxu0 0
      %4069 = vmatmul.mubr.bf16.gmra.mrb[0].mxu0 %v3966
      %v4070 = vpop.f32.mrb[0].mxu0
      %v4071 = vadd.f32 0.0, %v4070
      %v4072 = vpop.f32.mrb[0].mxu0
      %v4073 = vpop.f32.mrb[0].mxu0
      %v4074 = vadd.f32 0.0, %v4073
      %v4075 = vpop.f32.mrb[0].mxu0
      %4076 = vmatprep.mubr.bf16.mxu0 0
      %4077 = vmatmul.mubr.bf16.gmra.mrb[0].mxu0 %v3969
      %v4078 = vpop.f32.mrb[0].mxu0
      %v4079 = vadd.f32 0.0, %v4078
      %v4080 = vpop.f32.mrb[0].mxu0
      %v4081 = vpop.f32.mrb[0].mxu0
      %v4082 = vadd.f32 0.0, %v4081
      %v4083 = vpop.f32.mrb[0].mxu0
      %4084 = vmatprep.mubr.bf16.mxu0 0
      %4085 = vmatmul.mubr.bf16.gmra.mrb[0].mxu0 %v3972
      %v4086 = vpop.f32.mrb[0].mxu0
      %v4087 = vadd.f32 0.0, %v4086
      %v4088 = vpop.f32.mrb[0].mxu0
      %v4089 = vpop.f32.mrb[0].mxu0
      %v4090 = vadd.f32 0.0, %v4089
      %v4091 = vpop.f32.mrb[0].mxu0
      %4092 = vmatprep.mubr.bf16.mxu0 0
      %4093 = vmatmul.mubr.bf16.gmra.mrb[0].mxu0 %v3975
      %v4094 = vpop.f32.mrb[0].mxu0
      %v4095 = vadd.f32 0.0, %v4094
      %v4096 = vpop.f32.mrb[0].mxu0
      %v4097 = vpop.f32.mrb[0].mxu0
      %v4098 = vadd.f32 0.0, %v4097
      %v4099 = vpop.f32.mrb[0].mxu0
      %4100 = vmatprep.mubr.bf16.mxu0 0
      %4101 = vmatmul.mubr.bf16.gmra.mrb[0].mxu0 %v3978
      %v4102 = vpop.f32.mrb[0].mxu0
      %v4103 = vadd.f32 0.0, %v4102
      %v4104 = vpop.f32.mrb[0].mxu0
      %v4105 = vpop.f32.mrb[0].mxu0
      %v4106 = vadd.f32 0.0, %v4105
      %v4107 = vpop.f32.mrb[0].mxu0
      %4108 = vmatprep.mubr.bf16.mxu0 0
      %4109 = vmatmul.mubr.bf16.gmra.mrb[0].mxu0 %v3981
      %v4110 = vpop.f32.mrb[0].mxu0
      %v4111 = vadd.f32 0.0, %v4110
      %v4112 = vpop.f32.mrb[0].mxu0
      %v4113 = vpop.f32.mrb[0].mxu0
      %v4114 = vadd.f32 0.0, %v4113
      %v4115 = vpop.f32.mrb[0].mxu0
      %4116 = vmatprep.mubr.bf16.mxu0 0
      %4117 = vmatmul.mubr.bf16.gmra.mrb[0].mxu0 %v3984
      %v4118 = vpop.f32.mrb[0].mxu0
      %v4119 = vadd.f32 0.0, %v4118
      %v4120 = vpop.f32.mrb[0].mxu0
      %v4121 = vpop.f32.mrb[0].mxu0
      %v4122 = vadd.f32 0.0, %v4121
      %v4123 = vpop.f32.mrb[0].mxu0
      %4124 = vmatprep.mubr.bf16.mxu0 0
      %4125 = vmatmul.mubr.bf16.gmra.mrb[0].mxu0 %v3987
      %v4126 = vpop.f32.mrb[0].mxu0
      %v4127 = vadd.f32 0.0, %v4126
      %v4128 = vpop.f32.mrb[0].mxu0
      %v4129 = vpop.f32.mrb[0].mxu0
      %v4130 = vadd.f32 0.0, %v4129
      %v4131 = vpop.f32.mrb[0].mxu0
      %4132 = vmatprep.mubr.bf16.mxu0 0
      %4133 = vmatmul.mubr.bf16.gmra.mrb[0].mxu0 %v3990
      %v4134 = vpop.f32.mrb[0].mxu0
      %v4135 = vadd.f32 0.0, %v4134
      %v4136 = vpop.f32.mrb[0].mxu0
      %v4137 = vpop.f32.mrb[0].mxu0
      %v4138 = vadd.f32 0.0, %v4137
      %v4139 = vpop.f32.mrb[0].mxu0
      %4140 = vmatprep.mubr.bf16.mxu0 0
      %4141 = vmatmul.mubr.bf16.gmra.mrb[0].mxu0 %v3993
      %v4142 = vpop.f32.mrb[0].mxu0
      %v4143 = vadd.f32 0.0, %v4142
      %v4144 = vpop.f32.mrb[0].mxu0
      %v4145 = vpop.f32.mrb[0].mxu0
      %v4146 = vadd.f32 0.0, %v4145
      %v4147 = vpop.f32.mrb[0].mxu0
      %4148 = vmatprep.mubr.bf16.mxu0 0
      %4149 = vmatmul.mubr.bf16.gmra.mrb[0].mxu0 %v3996
      %v4150 = vpop.f32.mrb[0].mxu0
      %v4151 = vadd.f32 0.0, %v4150
      %v4152 = vpop.f32.mrb[0].mxu0
      %v4153 = vpop.f32.mrb[0].mxu0
      %v4154 = vadd.f32 0.0, %v4153
      %v4155 = vpop.f32.mrb[0].mxu0
      %4156 = vmatprep.mubr.bf16.mxu0 0
      %4157 = vmatmul.mubr.bf16.gmra.mrb[0].mxu0 %v3999
      %v4158 = vpop.f32.mrb[0].mxu0
      %v4159 = vadd.f32 0.0, %v4158
      %v4160 = vpop.f32.mrb[0].mxu0
      %v4161 = vpop.f32.mrb[0].mxu0
      %v4162 = vadd.f32 0.0, %v4161
      %v4163 = vpop.f32.mrb[0].mxu0
      %4164 = vmatprep.mubr.bf16.mxu0 0
      %4165 = vmatmul.mubr.bf16.gmra.mrb[0].mxu0 %v4002
      %v4166 = vpop.f32.mrb[0].mxu0
      %v4167 = vadd.f32 0.0, %v4166
      %v4168 = vpop.f32.mrb[0].mxu0
      %v4169 = vpop.f32.mrb[0].mxu0
      %v4170 = vadd.f32 0.0, %v4169
      %v4171 = vpop.f32.mrb[0].mxu0
      %4172 = vmatprep.mubr.bf16.mxu0 0
      %4173 = vmatmul.mubr.bf16.gmra.mrb[0].mxu0 %v4005
      %v4174 = vpop.f32.mrb[0].mxu0
      %v4175 = vadd.f32 0.0, %v4174
      %v4176 = vpop.f32.mrb[0].mxu0
      %v4177 = vpop.f32.mrb[0].mxu0
      %v4178 = vadd.f32 0.0, %v4177
      %v4179 = vpop.f32.mrb[0].mxu0
      %4180 = vmatprep.mubr.bf16.mxu0 0
      %4181 = vmatmul.mubr.bf16.gmra.mrb[0].mxu0 %v4008
      %v4182 = vpop.f32.mrb[0].mxu0
      %v4183 = vadd.f32 0.0, %v4182
      %v4184 = vpop.f32.mrb[0].mxu0
      %v4185 = vpop.f32.mrb[0].mxu0
      %v4186 = vadd.f32 0.0, %v4185
      %v4187 = vpop.f32.mrb[0].mxu0
      %4188 = vmatprep.mubr.bf16.mxu0 0
      %4189 = vmatmul.mubr.bf16.gmra.mrb[0].mxu0 %v4011
      %v4190 = vpop.f32.mrb[0].mxu0
      %v4191 = vadd.f32 0.0, %v4190
      %v4192 = vpop.f32.mrb[0].mxu0
      %v4193 = vpop.f32.mrb[0].mxu0
      %v4194 = vadd.f32 0.0, %v4193
      %v4195 = vpop.f32.mrb[0].mxu0
      %4196 = vmatprep.mubr.bf16.mxu0 0
      %4197 = vmatmul.mubr.bf16.gmra.mrb[0].mxu0 %v4014
      %v4198 = vpop.f32.mrb[0].mxu0
      %v4199 = vadd.f32 0.0, %v4198
      %v4200 = vpop.f32.mrb[0].mxu0
      %v4201 = vpop.f32.mrb[0].mxu0
      %v4202 = vadd.f32 0.0, %v4201
      %v4203 = vpop.f32.mrb[0].mxu0
      %4204 = vmatprep.mubr.bf16.mxu0 0
      %4205 = vmatmul.mubr.bf16.gmra.mrb[0].mxu0 %v4017
      %v4206 = vpop.f32.mrb[0].mxu0
      %v4207 = vadd.f32 0.0, %v4206
      %v4208 = vpop.f32.mrb[0].mxu0
      %v4209 = vpop.f32.mrb[0].mxu0
      %v4210 = vadd.f32 0.0, %v4209
      %v4211 = vpop.f32.mrb[0].mxu0
      %4212 = vmatprep.mubr.bf16.mxu0 0
      %4213 = vmatmul.mubr.bf16.gmra.mrb[0].mxu0 %v4020
      %v4214 = vpop.f32.mrb[0].mxu0
      %v4215 = vadd.f32 0.0, %v4214
      %v4216 = vpop.f32.mrb[0].mxu0
      %v4217 = vpop.f32.mrb[0].mxu0
      %v4218 = vadd.f32 0.0, %v4217
      %v4219 = vpop.f32.mrb[0].mxu0
      %4220 = vmatprep.mubr.bf16.mxu0 0
      %4221 = vmatmul.mubr.bf16.gmra.mrb[0].mxu0 %v4023
      %v4222 = vpop.f32.mrb[0].mxu0
      %v4223 = vadd.f32 0.0, %v4222
      %v4224 = vpop.f32.mrb[0].mxu0
      %v4225 = vpop.f32.mrb[0].mxu0
      %v4226 = vpop.f32.mrb[0].mxu0
      %4227 = vdwg.mxu0
      %v4228 = vadd.f32 %v3873, %v4063
      %v4229 = vadd.f32 %v3874, %v4066
      %v4230 = vadd.f32 %v3875, %v4071
      %v4231 = vadd.f32 %v3876, %v4074
      %v4232 = vadd.f32 %v3877, %v4079
      %v4233 = vadd.f32 %v3878, %v4082
      %v4234 = vadd.f32 %v3879, %v4087
      %v4235 = vadd.f32 %v3880, %v4090
      %v4236 = vadd.f32 %v3881, %v4095
      %v4237 = vadd.f32 %v3882, %v4098
      %v4238 = vadd.f32 %v3883, %v4103
      %v4239 = vadd.f32 %v3884, %v4106
      %v4240 = vadd.f32 %v3885, %v4111
      %v4241 = vadd.f32 %v3886, %v4114
      %v4242 = vadd.f32 %v3887, %v4119
      %v4243 = vadd.f32 %v3888, %v4122
      %v4244 = vadd.f32 %v3889, %v4127
      %v4245 = vadd.f32 %v3890, %v4130
      %v4246 = vadd.f32 %v3891, %v4135
      %v4247 = vadd.f32 %v3892, %v4138
      %v4248 = vadd.f32 %v3893, %v4143
      %v4249 = vadd.f32 %v3894, %v4146
      %v4250 = vadd.f32 %v3895, %v4151
      %v4251 = vadd.f32 %v3896, %v4154
      %v4252 = vadd.f32 %v3897, %v4159
      %v4253 = vadd.f32 %v3898, %v4162
      %v4254 = vadd.f32 %v3899, %v4167
      %v4255 = vadd.f32 %v3900, %v4170
      %v4256 = vadd.f32 %v3901, %v4175
      %v4257 = vadd.f32 %v3902, %v4178
      %v4258 = vadd.f32 %v3903, %v4183
      %v4259 = vadd.f32 %v3904, %v4186
      %v4260 = vadd.f32 %v3905, %v4191
      %v4261 = vadd.f32 %v3906, %v4194
      %v4262 = vadd.f32 %v3907, %v4199
      %v4263 = vadd.f32 %v3908, %v4202
      %v4264 = vadd.f32 %v3909, %v4207
      %v4265 = vadd.f32 %v3910, %v4210
      %v4266 = vadd.f32 %v3911, %v4215
      %v4267 = vadd.f32 %v3912, %v4218
      %v4268 = vadd.f32 %v3913, %v4223
      %v4269 = vld [vmem:[%s3] sm:$0x1]
      %v4270 = vlaneseq
      %v4271 = vshrl.u32 %v4270, 7
      %v4272 = vsub.s32 0, %v4271
      %v4273 = vrot.slane %v4269, %v4272
      %v4274 = vmul.f32 %v4228, %v4273
      %v4275 = vmul.f32 %v4229, %v4273
      %v4276 = vmul.f32 %v4230, %v4273
      %v4277 = vmul.f32 %v4231, %v4273
      %v4278 = vmul.f32 %v4232, %v4273
      %v4279 = vmul.f32 %v4233, %v4273
      %v4280 = vmul.f32 %v4234, %v4273
      %v4281 = vmul.f32 %v4235, %v4273
      %v4282 = vmul.f32 %v4236, %v4273
      %v4283 = vmul.f32 %v4237, %v4273
      %v4284 = vmul.f32 %v4238, %v4273
      %v4285 = vmul.f32 %v4239, %v4273
      %v4286 = vmul.f32 %v4240, %v4273
      %v4287 = vmul.f32 %v4241, %v4273
      %v4288 = vmul.f32 %v4242, %v4273
      %v4289 = vmul.f32 %v4243, %v4273
      %v4290 = vmul.f32 %v4244, %v4273
      %v4291 = vmul.f32 %v4245, %v4273
      %v4292 = vmul.f32 %v4246, %v4273
      %v4293 = vmul.f32 %v4247, %v4273
      %v4294 = vmul.f32 %v4248, %v4273
      %v4295 = vmul.f32 %v4249, %v4273
      %v4296 = vmul.f32 %v4250, %v4273
      %v4297 = vmul.f32 %v4251, %v4273
      %v4298 = vmul.f32 %v4252, %v4273
      %v4299 = vmul.f32 %v4253, %v4273
      %v4300 = vmul.f32 %v4254, %v4273
      %v4301 = vmul.f32 %v4255, %v4273
      %v4302 = vmul.f32 %v4256, %v4273
      %v4303 = vmul.f32 %v4257, %v4273
      %v4304 = vmul.f32 %v4258, %v4273
      %v4305 = vmul.f32 %v4259, %v4273
      %v4306 = vmul.f32 %v4260, %v4273
      %v4307 = vmul.f32 %v4261, %v4273
      %v4308 = vmul.f32 %v4262, %v4273
      %v4309 = vmul.f32 %v4263, %v4273
      %v4310 = vmul.f32 %v4264, %v4273
      %v4311 = vmul.f32 %v4265, %v4273
      %v4312 = vmul.f32 %v4266, %v4273
      %v4313 = vmul.f32 %v4267, %v4273
      %v4314 = vmul.f32 %v4268, %v4273
      %v4315 = vld [vmem:[%s3 + $0x1] sm:$0x1]
      %v4316 = vlaneseq
      %v4317 = vshrl.u32 %v4316, 7
      %v4318 = vsub.s32 0, %v4317
      %v4319 = vrot.slane %v4315, %v4318
      %v4320 = vadd.f32 %v4274, %v4319
      %v4321 = vadd.f32 %v4275, %v4319
      %v4322 = vadd.f32 %v4276, %v4319
      %v4323 = vadd.f32 %v4277, %v4319
      %v4324 = vadd.f32 %v4278, %v4319
      %v4325 = vadd.f32 %v4279, %v4319
      %v4326 = vadd.f32 %v4280, %v4319
      %v4327 = vadd.f32 %v4281, %v4319
      %v4328 = vadd.f32 %v4282, %v4319
      %v4329 = vadd.f32 %v4283, %v4319
      %v4330 = vadd.f32 %v4284, %v4319
      %v4331 = vadd.f32 %v4285, %v4319
      %v4332 = vadd.f32 %v4286, %v4319
      %v4333 = vadd.f32 %v4287, %v4319
      %v4334 = vadd.f32 %v4288, %v4319
      %v4335 = vadd.f32 %v4289, %v4319
      %v4336 = vadd.f32 %v4290, %v4319
      %v4337 = vadd.f32 %v4291, %v4319
      %v4338 = vadd.f32 %v4292, %v4319
      %v4339 = vadd.f32 %v4293, %v4319
      %v4340 = vadd.f32 %v4294, %v4319
      %v4341 = vadd.f32 %v4295, %v4319
      %v4342 = vadd.f32 %v4296, %v4319
      %v4343 = vadd.f32 %v4297, %v4319
      %v4344 = vadd.f32 %v4298, %v4319
      %v4345 = vadd.f32 %v4299, %v4319
      %v4346 = vadd.f32 %v4300, %v4319
      %v4347 = vadd.f32 %v4301, %v4319
      %v4348 = vadd.f32 %v4302, %v4319
      %v4349 = vadd.f32 %v4303, %v4319
      %v4350 = vadd.f32 %v4304, %v4319
      %v4351 = vadd.f32 %v4305, %v4319
      %v4352 = vadd.f32 %v4306, %v4319
      %v4353 = vadd.f32 %v4307, %v4319
      %v4354 = vadd.f32 %v4308, %v4319
      %v4355 = vadd.f32 %v4309, %v4319
      %v4356 = vadd.f32 %v4310, %v4319
      %v4357 = vadd.f32 %v4311, %v4319
      %v4358 = vadd.f32 %v4312, %v4319
      %v4359 = vadd.f32 %v4313, %v4319
      %v4360 = vadd.f32 %v4314, %v4319
      %vm4361 = vcmp.gt.f32.partialorder %v4320, 0.0
      %vm4362 = vcmp.gt.f32.partialorder %v4321, 0.0
      %vm4363 = vcmp.gt.f32.partialorder %v4322, 0.0
      %vm4364 = vcmp.gt.f32.partialorder %v4323, 0.0
      %vm4365 = vcmp.gt.f32.partialorder %v4324, 0.0
      %vm4366 = vcmp.gt.f32.partialorder %v4325, 0.0
      %vm4367 = vcmp.gt.f32.partialorder %v4326, 0.0
      %vm4368 = vcmp.gt.f32.partialorder %v4327, 0.0
      %vm4369 = vcmp.gt.f32.partialorder %v4328, 0.0
      %vm4370 = vcmp.gt.f32.partialorder %v4329, 0.0
      %vm4371 = vcmp.gt.f32.partialorder %v4330, 0.0
      %vm4372 = vcmp.gt.f32.partialorder %v4331, 0.0
      %vm4373 = vcmp.gt.f32.partialorder %v4332, 0.0
      %vm4374 = vcmp.gt.f32.partialorder %v4333, 0.0
      %vm4375 = vcmp.gt.f32.partialorder %v4334, 0.0
      %vm4376 = vcmp.gt.f32.partialorder %v4335, 0.0
      %vm4377 = vcmp.gt.f32.partialorder %v4336, 0.0
      %vm4378 = vcmp.gt.f32.partialorder %v4337, 0.0
      %vm4379 = vcmp.gt.f32.partialorder %v4338, 0.0
      %vm4380 = vcmp.gt.f32.partialorder %v4339, 0.0
      %vm4381 = vcmp.gt.f32.partialorder %v4340, 0.0
      %vm4382 = vcmp.gt.f32.partialorder %v4341, 0.0
      %vm4383 = vcmp.gt.f32.partialorder %v4342, 0.0
      %vm4384 = vcmp.gt.f32.partialorder %v4343, 0.0
      %vm4385 = vcmp.gt.f32.partialorder %v4344, 0.0
      %vm4386 = vcmp.gt.f32.partialorder %v4345, 0.0
      %vm4387 = vcmp.gt.f32.partialorder %v4346, 0.0
      %vm4388 = vcmp.gt.f32.partialorder %v4347, 0.0
      %vm4389 = vcmp.gt.f32.partialorder %v4348, 0.0
      %vm4390 = vcmp.gt.f32.partialorder %v4349, 0.0
      %vm4391 = vcmp.gt.f32.partialorder %v4350, 0.0
      %vm4392 = vcmp.gt.f32.partialorder %v4351, 0.0
      %vm4393 = vcmp.gt.f32.partialorder %v4352, 0.0
      %vm4394 = vcmp.gt.f32.partialorder %v4353, 0.0
      %vm4395 = vcmp.gt.f32.partialorder %v4354, 0.0
      %vm4396 = vcmp.gt.f32.partialorder %v4355, 0.0
      %vm4397 = vcmp.gt.f32.partialorder %v4356, 0.0
      %vm4398 = vcmp.gt.f32.partialorder %v4357, 0.0
      %vm4399 = vcmp.gt.f32.partialorder %v4358, 0.0
      %vm4400 = vcmp.gt.f32.partialorder %v4359, 0.0
      %vm4401 = vcmp.gt.f32.partialorder %v4360, 0.0
      %v4402 = vmul.f32 %v4320, 0.01
      %v4403 = vmul.f32 %v4321, 0.01
      %v4404 = vmul.f32 %v4322, 0.01
      %v4405 = vmul.f32 %v4323, 0.01
      %v4406 = vmul.f32 %v4324, 0.01
      %v4407 = vmul.f32 %v4325, 0.01
      %v4408 = vmul.f32 %v4326, 0.01
      %v4409 = vmul.f32 %v4327, 0.01
      %v4410 = vmul.f32 %v4328, 0.01
      %v4411 = vmul.f32 %v4329, 0.01
      %v4412 = vmul.f32 %v4330, 0.01
      %v4413 = vmul.f32 %v4331, 0.01
      %v4414 = vmul.f32 %v4332, 0.01
      %v4415 = vmul.f32 %v4333, 0.01
      %v4416 = vmul.f32 %v4334, 0.01
      %v4417 = vmul.f32 %v4335, 0.01
      %v4418 = vmul.f32 %v4336, 0.01
      %v4419 = vmul.f32 %v4337, 0.01
      %v4420 = vmul.f32 %v4338, 0.01
      %v4421 = vmul.f32 %v4339, 0.01
      %v4422 = vmul.f32 %v4340, 0.01
      %v4423 = vmul.f32 %v4341, 0.01
      %v4424 = vmul.f32 %v4342, 0.01
      %v4425 = vmul.f32 %v4343, 0.01
      %v4426 = vmul.f32 %v4344, 0.01
      %v4427 = vmul.f32 %v4345, 0.01
      %v4428 = vmul.f32 %v4346, 0.01
      %v4429 = vmul.f32 %v4347, 0.01
      %v4430 = vmul.f32 %v4348, 0.01
      %v4431 = vmul.f32 %v4349, 0.01
      %v4432 = vmul.f32 %v4350, 0.01
      %v4433 = vmul.f32 %v4351, 0.01
      %v4434 = vmul.f32 %v4352, 0.01
      %v4435 = vmul.f32 %v4353, 0.01
      %v4436 = vmul.f32 %v4354, 0.01
      %v4437 = vmul.f32 %v4355, 0.01
      %v4438 = vmul.f32 %v4356, 0.01
      %v4439 = vmul.f32 %v4357, 0.01
      %v4440 = vmul.f32 %v4358, 0.01
      %v4441 = vmul.f32 %v4359, 0.01
      %v4442 = vmul.f32 %v4360, 0.01
      %v4443 = vsel %vm4361, %v4320, %v4402
      %v4444 = vsel %vm4362, %v4321, %v4403
      %v4445 = vsel %vm4363, %v4322, %v4404
      %v4446 = vsel %vm4364, %v4323, %v4405
      %v4447 = vsel %vm4365, %v4324, %v4406
      %v4448 = vsel %vm4366, %v4325, %v4407
      %v4449 = vsel %vm4367, %v4326, %v4408
      %v4450 = vsel %vm4368, %v4327, %v4409
      %v4451 = vsel %vm4369, %v4328, %v4410
      %v4452 = vsel %vm4370, %v4329, %v4411
      %v4453 = vsel %vm4371, %v4330, %v4412
      %v4454 = vsel %vm4372, %v4331, %v4413
      %v4455 = vsel %vm4373, %v4332, %v4414
      %v4456 = vsel %vm4374, %v4333, %v4415
      %v4457 = vsel %vm4375, %v4334, %v4416
      %v4458 = vsel %vm4376, %v4335, %v4417
      %v4459 = vsel %vm4377, %v4336, %v4418
      %v4460 = vsel %vm4378, %v4337, %v4419
      %v4461 = vsel %vm4379, %v4338, %v4420
      %v4462 = vsel %vm4380, %v4339, %v4421
      %v4463 = vsel %vm4381, %v4340, %v4422
      %v4464 = vsel %vm4382, %v4341, %v4423
      %v4465 = vsel %vm4383, %v4342, %v4424
      %v4466 = vsel %vm4384, %v4343, %v4425
      %v4467 = vsel %vm4385, %v4344, %v4426
      %v4468 = vsel %vm4386, %v4345, %v4427
      %v4469 = vsel %vm4387, %v4346, %v4428
      %v4470 = vsel %vm4388, %v4347, %v4429
      %v4471 = vsel %vm4389, %v4348, %v4430
      %v4472 = vsel %vm4390, %v4349, %v4431
      %v4473 = vsel %vm4391, %v4350, %v4432
      %v4474 = vsel %vm4392, %v4351, %v4433
      %v4475 = vsel %vm4393, %v4352, %v4434
      %v4476 = vsel %vm4394, %v4353, %v4435
      %v4477 = vsel %vm4395, %v4354, %v4436
      %v4478 = vsel %vm4396, %v4355, %v4437
      %v4479 = vsel %vm4397, %v4356, %v4438
      %v4480 = vsel %vm4398, %v4357, %v4439
      %v4481 = vsel %vm4399, %v4358, %v4440
      %v4482 = vsel %vm4400, %v4359, %v4441
      %v4483 = vsel %vm4401, %v4360, %v4442
      %v4484 = vlaneseq
      %v4485 = vshrl.u32 %v4484, 7
      %v4486 = vadd.s32 %v4485, 8
      %v4487 = vadd.s32 %v4485, 16
      %v4488 = vadd.s32 %v4485, 24
      %v4489 = vadd.s32 %v4485, 32
      %v4490 = vadd.s32 %v4485, 40
      %v4491 = vadd.s32 %v4485, 48
      %v4492 = vadd.s32 %v4485, 56
      %v4493 = vadd.s32 %v4485, 64
      %v4494 = vadd.s32 %v4485, 72
      %v4495 = vadd.s32 %v4485, 80
      %v4496 = vadd.s32 %v4485, 88
      %v4497 = vadd.s32 %v4485, 96
      %v4498 = vadd.s32 %v4485, 104
      %v4499 = vadd.s32 %v4485, 112
      %v4500 = vadd.s32 %v4485, 120
      %v4501 = vadd.s32 %v4485, 128
      %v4502 = vadd.s32 %v4485, 136
      %v4503 = vadd.s32 %v4485, 144
      %v4504 = vadd.s32 %v4485, 152
      %v4505 = vadd.s32 %v4485, 160
      %v4506 = vadd.s32 %v4485, 168
      %v4507 = vadd.s32 %v4485, 176
      %v4508 = vadd.s32 %v4485, 184
      %v4509 = vadd.s32 %v4485, 192
      %v4510 = vadd.s32 %v4485, 200
      %v4511 = vadd.s32 %v4485, 208
      %v4512 = vadd.s32 %v4485, 216
      %v4513 = vadd.s32 %v4485, 224
      %v4514 = vadd.s32 %v4485, 232
      %v4515 = vadd.s32 %v4485, 240
      %v4516 = vadd.s32 %v4485, 248
      %v4517 = vadd.s32 %v4485, 256
      %v4518 = vadd.s32 %v4485, 264
      %v4519 = vadd.s32 %v4485, 272
      %v4520 = vadd.s32 %v4485, 280
      %v4521 = vadd.s32 %v4485, 288
      %v4522 = vadd.s32 %v4485, 296
      %v4523 = vadd.s32 %v4485, 304
      %v4524 = vadd.s32 %v4485, 312
      %v4525 = vadd.s32 %v4485, 320
      %vm4526 = vcmp.lt.s32.totalorder %v4485, 0
      %v4527 = vsub.s32 0, %v4485
      %v4528 = vsel %vm4526, %v4527, %v4485
      %v4529 = vmul.u32.u64.compose %v4528, 3817748708
      %v4530 = vextract.low.u32 %v4529
      %v4531 = vextract.high.u32 %v4529
      %v4532 = vshrl.u32 %v4531, 4
      %v4533 = vmul.u32 %v4532, 18
      %v4534 = vsub.s32 %v4528, %v4533
      %v4535 = vsub.s32 0, %v4534
      %v4536 = vsel %vm4526, %v4535, %v4534
      %vm4537 = vcmp.lt.s32.totalorder %v4486, 0
      %v4538 = vsub.s32 0, %v4486
      %v4539 = vsel %vm4537, %v4538, %v4486
      %v4540 = vmul.u32.u64.compose %v4539, 3817748708
      %v4541 = vextract.low.u32 %v4540
      %v4542 = vextract.high.u32 %v4540
      %v4543 = vshrl.u32 %v4542, 4
      %v4544 = vmul.u32 %v4543, 18
      %v4545 = vsub.s32 %v4539, %v4544
      %v4546 = vsub.s32 0, %v4545
      %v4547 = vsel %vm4537, %v4546, %v4545
      %vm4548 = vcmp.lt.s32.totalorder %v4487, 0
      %v4549 = vsub.s32 0, %v4487
      %v4550 = vsel %vm4548, %v4549, %v4487
      %v4551 = vmul.u32.u64.compose %v4550, 3817748708
      %v4552 = vextract.low.u32 %v4551
      %v4553 = vextract.high.u32 %v4551
      %v4554 = vshrl.u32 %v4553, 4
      %v4555 = vmul.u32 %v4554, 18
      %v4556 = vsub.s32 %v4550, %v4555
      %v4557 = vsub.s32 0, %v4556
      %v4558 = vsel %vm4548, %v4557, %v4556
      %vm4559 = vcmp.lt.s32.totalorder %v4488, 0
      %v4560 = vsub.s32 0, %v4488
      %v4561 = vsel %vm4559, %v4560, %v4488
      %v4562 = vmul.u32.u64.compose %v4561, 3817748708
      %v4563 = vextract.low.u32 %v4562
      %v4564 = vextract.high.u32 %v4562
      %v4565 = vshrl.u32 %v4564, 4
      %v4566 = vmul.u32 %v4565, 18
      %v4567 = vsub.s32 %v4561, %v4566
      %v4568 = vsub.s32 0, %v4567
      %v4569 = vsel %vm4559, %v4568, %v4567
      %vm4570 = vcmp.lt.s32.totalorder %v4489, 0
      %v4571 = vsub.s32 0, %v4489
      %v4572 = vsel %vm4570, %v4571, %v4489
      %v4573 = vmul.u32.u64.compose %v4572, 3817748708
      %v4574 = vextract.low.u32 %v4573
      %v4575 = vextract.high.u32 %v4573
      %v4576 = vshrl.u32 %v4575, 4
      %v4577 = vmul.u32 %v4576, 18
      %v4578 = vsub.s32 %v4572, %v4577
      %v4579 = vsub.s32 0, %v4578
      %v4580 = vsel %vm4570, %v4579, %v4578
      %vm4581 = vcmp.lt.s32.totalorder %v4490, 0
      %v4582 = vsub.s32 0, %v4490
      %v4583 = vsel %vm4581, %v4582, %v4490
      %v4584 = vmul.u32.u64.compose %v4583, 3817748708
      %v4585 = vextract.low.u32 %v4584
      %v4586 = vextract.high.u32 %v4584
      %v4587 = vshrl.u32 %v4586, 4
      %v4588 = vmul.u32 %v4587, 18
      %v4589 = vsub.s32 %v4583, %v4588
      %v4590 = vsub.s32 0, %v4589
      %v4591 = vsel %vm4581, %v4590, %v4589
      %vm4592 = vcmp.lt.s32.totalorder %v4491, 0
      %v4593 = vsub.s32 0, %v4491
      %v4594 = vsel %vm4592, %v4593, %v4491
      %v4595 = vmul.u32.u64.compose %v4594, 3817748708
      %v4596 = vextract.low.u32 %v4595
      %v4597 = vextract.high.u32 %v4595
      %v4598 = vshrl.u32 %v4597, 4
      %v4599 = vmul.u32 %v4598, 18
      %v4600 = vsub.s32 %v4594, %v4599
      %v4601 = vsub.s32 0, %v4600
      %v4602 = vsel %vm4592, %v4601, %v4600
      %vm4603 = vcmp.lt.s32.totalorder %v4492, 0
      %v4604 = vsub.s32 0, %v4492
      %v4605 = vsel %vm4603, %v4604, %v4492
      %v4606 = vmul.u32.u64.compose %v4605, 3817748708
      %v4607 = vextract.low.u32 %v4606
      %v4608 = vextract.high.u32 %v4606
      %v4609 = vshrl.u32 %v4608, 4
      %v4610 = vmul.u32 %v4609, 18
      %v4611 = vsub.s32 %v4605, %v4610
      %v4612 = vsub.s32 0, %v4611
      %v4613 = vsel %vm4603, %v4612, %v4611
      %vm4614 = vcmp.lt.s32.totalorder %v4493, 0
      %v4615 = vsub.s32 0, %v4493
      %v4616 = vsel %vm4614, %v4615, %v4493
      %v4617 = vmul.u32.u64.compose %v4616, 3817748708
      %v4618 = vextract.low.u32 %v4617
      %v4619 = vextract.high.u32 %v4617
      %v4620 = vshrl.u32 %v4619, 4
      %v4621 = vmul.u32 %v4620, 18
      %v4622 = vsub.s32 %v4616, %v4621
      %v4623 = vsub.s32 0, %v4622
      %v4624 = vsel %vm4614, %v4623, %v4622
      %vm4625 = vcmp.lt.s32.totalorder %v4494, 0
      %v4626 = vsub.s32 0, %v4494
      %v4627 = vsel %vm4625, %v4626, %v4494
      %v4628 = vmul.u32.u64.compose %v4627, 3817748708
      %v4629 = vextract.low.u32 %v4628
      %v4630 = vextract.high.u32 %v4628
      %v4631 = vshrl.u32 %v4630, 4
      %v4632 = vmul.u32 %v4631, 18
      %v4633 = vsub.s32 %v4627, %v4632
      %v4634 = vsub.s32 0, %v4633
      %v4635 = vsel %vm4625, %v4634, %v4633
      %vm4636 = vcmp.lt.s32.totalorder %v4495, 0
      %v4637 = vsub.s32 0, %v4495
      %v4638 = vsel %vm4636, %v4637, %v4495
      %v4639 = vmul.u32.u64.compose %v4638, 3817748708
      %v4640 = vextract.low.u32 %v4639
      %v4641 = vextract.high.u32 %v4639
      %v4642 = vshrl.u32 %v4641, 4
      %v4643 = vmul.u32 %v4642, 18
      %v4644 = vsub.s32 %v4638, %v4643
      %v4645 = vsub.s32 0, %v4644
      %v4646 = vsel %vm4636, %v4645, %v4644
      %vm4647 = vcmp.lt.s32.totalorder %v4496, 0
      %v4648 = vsub.s32 0, %v4496
      %v4649 = vsel %vm4647, %v4648, %v4496
      %v4650 = vmul.u32.u64.compose %v4649, 3817748708
      %v4651 = vextract.low.u32 %v4650
      %v4652 = vextract.high.u32 %v4650
      %v4653 = vshrl.u32 %v4652, 4
      %v4654 = vmul.u32 %v4653, 18
      %v4655 = vsub.s32 %v4649, %v4654
      %v4656 = vsub.s32 0, %v4655
      %v4657 = vsel %vm4647, %v4656, %v4655
      %vm4658 = vcmp.lt.s32.totalorder %v4497, 0
      %v4659 = vsub.s32 0, %v4497
      %v4660 = vsel %vm4658, %v4659, %v4497
      %v4661 = vmul.u32.u64.compose %v4660, 3817748708
      %v4662 = vextract.low.u32 %v4661
      %v4663 = vextract.high.u32 %v4661
      %v4664 = vshrl.u32 %v4663, 4
      %v4665 = vmul.u32 %v4664, 18
      %v4666 = vsub.s32 %v4660, %v4665
      %v4667 = vsub.s32 0, %v4666
      %v4668 = vsel %vm4658, %v4667, %v4666
      %vm4669 = vcmp.lt.s32.totalorder %v4498, 0
      %v4670 = vsub.s32 0, %v4498
      %v4671 = vsel %vm4669, %v4670, %v4498
      %v4672 = vmul.u32.u64.compose %v4671, 3817748708
      %v4673 = vextract.low.u32 %v4672
      %v4674 = vextract.high.u32 %v4672
      %v4675 = vshrl.u32 %v4674, 4
      %v4676 = vmul.u32 %v4675, 18
      %v4677 = vsub.s32 %v4671, %v4676
      %v4678 = vsub.s32 0, %v4677
      %v4679 = vsel %vm4669, %v4678, %v4677
      %vm4680 = vcmp.lt.s32.totalorder %v4499, 0
      %v4681 = vsub.s32 0, %v4499
      %v4682 = vsel %vm4680, %v4681, %v4499
      %v4683 = vmul.u32.u64.compose %v4682, 3817748708
      %v4684 = vextract.low.u32 %v4683
      %v4685 = vextract.high.u32 %v4683
      %v4686 = vshrl.u32 %v4685, 4
      %v4687 = vmul.u32 %v4686, 18
      %v4688 = vsub.s32 %v4682, %v4687
      %v4689 = vsub.s32 0, %v4688
      %v4690 = vsel %vm4680, %v4689, %v4688
      %vm4691 = vcmp.lt.s32.totalorder %v4500, 0
      %v4692 = vsub.s32 0, %v4500
      %v4693 = vsel %vm4691, %v4692, %v4500
      %v4694 = vmul.u32.u64.compose %v4693, 3817748708
      %v4695 = vextract.low.u32 %v4694
      %v4696 = vextract.high.u32 %v4694
      %v4697 = vshrl.u32 %v4696, 4
      %v4698 = vmul.u32 %v4697, 18
      %v4699 = vsub.s32 %v4693, %v4698
      %v4700 = vsub.s32 0, %v4699
      %v4701 = vsel %vm4691, %v4700, %v4699
      %vm4702 = vcmp.lt.s32.totalorder %v4501, 0
      %v4703 = vsub.s32 0, %v4501
      %v4704 = vsel %vm4702, %v4703, %v4501
      %v4705 = vmul.u32.u64.compose %v4704, 3817748708
      %v4706 = vextract.low.u32 %v4705
      %v4707 = vextract.high.u32 %v4705
      %v4708 = vshrl.u32 %v4707, 4
      %v4709 = vmul.u32 %v4708, 18
      %v4710 = vsub.s32 %v4704, %v4709
      %v4711 = vsub.s32 0, %v4710
      %v4712 = vsel %vm4702, %v4711, %v4710
      %vm4713 = vcmp.lt.s32.totalorder %v4502, 0
      %v4714 = vsub.s32 0, %v4502
      %v4715 = vsel %vm4713, %v4714, %v4502
      %v4716 = vmul.u32.u64.compose %v4715, 3817748708
      %v4717 = vextract.low.u32 %v4716
      %v4718 = vextract.high.u32 %v4716
      %v4719 = vshrl.u32 %v4718, 4
      %v4720 = vmul.u32 %v4719, 18
      %v4721 = vsub.s32 %v4715, %v4720
      %v4722 = vsub.s32 0, %v4721
      %v4723 = vsel %vm4713, %v4722, %v4721
      %vm4724 = vcmp.lt.s32.totalorder %v4503, 0
      %v4725 = vsub.s32 0, %v4503
      %v4726 = vsel %vm4724, %v4725, %v4503
      %v4727 = vmul.u32.u64.compose %v4726, 3817748708
      %v4728 = vextract.low.u32 %v4727
      %v4729 = vextract.high.u32 %v4727
      %v4730 = vshrl.u32 %v4729, 4
      %v4731 = vmul.u32 %v4730, 18
      %v4732 = vsub.s32 %v4726, %v4731
      %v4733 = vsub.s32 0, %v4732
      %v4734 = vsel %vm4724, %v4733, %v4732
      %vm4735 = vcmp.lt.s32.totalorder %v4504, 0
      %v4736 = vsub.s32 0, %v4504
      %v4737 = vsel %vm4735, %v4736, %v4504
      %v4738 = vmul.u32.u64.compose %v4737, 3817748708
      %v4739 = vextract.low.u32 %v4738
      %v4740 = vextract.high.u32 %v4738
      %v4741 = vshrl.u32 %v4740, 4
      %v4742 = vmul.u32 %v4741, 18
      %v4743 = vsub.s32 %v4737, %v4742
      %v4744 = vsub.s32 0, %v4743
      %v4745 = vsel %vm4735, %v4744, %v4743
      %vm4746 = vcmp.lt.s32.totalorder %v4505, 0
      %v4747 = vsub.s32 0, %v4505
      %v4748 = vsel %vm4746, %v4747, %v4505
      %v4749 = vmul.u32.u64.compose %v4748, 3817748708
      %v4750 = vextract.low.u32 %v4749
      %v4751 = vextract.high.u32 %v4749
      %v4752 = vshrl.u32 %v4751, 4
      %v4753 = vmul.u32 %v4752, 18
      %v4754 = vsub.s32 %v4748, %v4753
      %v4755 = vsub.s32 0, %v4754
      %v4756 = vsel %vm4746, %v4755, %v4754
      %vm4757 = vcmp.lt.s32.totalorder %v4506, 0
      %v4758 = vsub.s32 0, %v4506
      %v4759 = vsel %vm4757, %v4758, %v4506
      %v4760 = vmul.u32.u64.compose %v4759, 3817748708
      %v4761 = vextract.low.u32 %v4760
      %v4762 = vextract.high.u32 %v4760
      %v4763 = vshrl.u32 %v4762, 4
      %v4764 = vmul.u32 %v4763, 18
      %v4765 = vsub.s32 %v4759, %v4764
      %v4766 = vsub.s32 0, %v4765
      %v4767 = vsel %vm4757, %v4766, %v4765
      %vm4768 = vcmp.lt.s32.totalorder %v4507, 0
      %v4769 = vsub.s32 0, %v4507
      %v4770 = vsel %vm4768, %v4769, %v4507
      %v4771 = vmul.u32.u64.compose %v4770, 3817748708
      %v4772 = vextract.low.u32 %v4771
      %v4773 = vextract.high.u32 %v4771
      %v4774 = vshrl.u32 %v4773, 4
      %v4775 = vmul.u32 %v4774, 18
      %v4776 = vsub.s32 %v4770, %v4775
      %v4777 = vsub.s32 0, %v4776
      %v4778 = vsel %vm4768, %v4777, %v4776
      %vm4779 = vcmp.lt.s32.totalorder %v4508, 0
      %v4780 = vsub.s32 0, %v4508
      %v4781 = vsel %vm4779, %v4780, %v4508
      %v4782 = vmul.u32.u64.compose %v4781, 3817748708
      %v4783 = vextract.low.u32 %v4782
      %v4784 = vextract.high.u32 %v4782
      %v4785 = vshrl.u32 %v4784, 4
      %v4786 = vmul.u32 %v4785, 18
      %v4787 = vsub.s32 %v4781, %v4786
      %v4788 = vsub.s32 0, %v4787
      %v4789 = vsel %vm4779, %v4788, %v4787
      %vm4790 = vcmp.lt.s32.totalorder %v4509, 0
      %v4791 = vsub.s32 0, %v4509
      %v4792 = vsel %vm4790, %v4791, %v4509
      %v4793 = vmul.u32.u64.compose %v4792, 3817748708
      %v4794 = vextract.low.u32 %v4793
      %v4795 = vextract.high.u32 %v4793
      %v4796 = vshrl.u32 %v4795, 4
      %v4797 = vmul.u32 %v4796, 18
      %v4798 = vsub.s32 %v4792, %v4797
      %v4799 = vsub.s32 0, %v4798
      %v4800 = vsel %vm4790, %v4799, %v4798
      %vm4801 = vcmp.lt.s32.totalorder %v4510, 0
      %v4802 = vsub.s32 0, %v4510
      %v4803 = vsel %vm4801, %v4802, %v4510
      %v4804 = vmul.u32.u64.compose %v4803, 3817748708
      %v4805 = vextract.low.u32 %v4804
      %v4806 = vextract.high.u32 %v4804
      %v4807 = vshrl.u32 %v4806, 4
      %v4808 = vmul.u32 %v4807, 18
      %v4809 = vsub.s32 %v4803, %v4808
      %v4810 = vsub.s32 0, %v4809
      %v4811 = vsel %vm4801, %v4810, %v4809
      %vm4812 = vcmp.lt.s32.totalorder %v4511, 0
      %v4813 = vsub.s32 0, %v4511
      %v4814 = vsel %vm4812, %v4813, %v4511
      %v4815 = vmul.u32.u64.compose %v4814, 3817748708
      %v4816 = vextract.low.u32 %v4815
      %v4817 = vextract.high.u32 %v4815
      %v4818 = vshrl.u32 %v4817, 4
      %v4819 = vmul.u32 %v4818, 18
      %v4820 = vsub.s32 %v4814, %v4819
      %v4821 = vsub.s32 0, %v4820
      %v4822 = vsel %vm4812, %v4821, %v4820
      %vm4823 = vcmp.lt.s32.totalorder %v4512, 0
      %v4824 = vsub.s32 0, %v4512
      %v4825 = vsel %vm4823, %v4824, %v4512
      %v4826 = vmul.u32.u64.compose %v4825, 3817748708
      %v4827 = vextract.low.u32 %v4826
      %v4828 = vextract.high.u32 %v4826
      %v4829 = vshrl.u32 %v4828, 4
      %v4830 = vmul.u32 %v4829, 18
      %v4831 = vsub.s32 %v4825, %v4830
      %v4832 = vsub.s32 0, %v4831
      %v4833 = vsel %vm4823, %v4832, %v4831
      %vm4834 = vcmp.lt.s32.totalorder %v4513, 0
      %v4835 = vsub.s32 0, %v4513
      %v4836 = vsel %vm4834, %v4835, %v4513
      %v4837 = vmul.u32.u64.compose %v4836, 3817748708
      %v4838 = vextract.low.u32 %v4837
      %v4839 = vextract.high.u32 %v4837
      %v4840 = vshrl.u32 %v4839, 4
      %v4841 = vmul.u32 %v4840, 18
      %v4842 = vsub.s32 %v4836, %v4841
      %v4843 = vsub.s32 0, %v4842
      %v4844 = vsel %vm4834, %v4843, %v4842
      %vm4845 = vcmp.lt.s32.totalorder %v4514, 0
      %v4846 = vsub.s32 0, %v4514
      %v4847 = vsel %vm4845, %v4846, %v4514
      %v4848 = vmul.u32.u64.compose %v4847, 3817748708
      %v4849 = vextract.low.u32 %v4848
      %v4850 = vextract.high.u32 %v4848
      %v4851 = vshrl.u32 %v4850, 4
      %v4852 = vmul.u32 %v4851, 18
      %v4853 = vsub.s32 %v4847, %v4852
      %v4854 = vsub.s32 0, %v4853
      %v4855 = vsel %vm4845, %v4854, %v4853
      %vm4856 = vcmp.lt.s32.totalorder %v4515, 0
      %v4857 = vsub.s32 0, %v4515
      %v4858 = vsel %vm4856, %v4857, %v4515
      %v4859 = vmul.u32.u64.compose %v4858, 3817748708
      %v4860 = vextract.low.u32 %v4859
      %v4861 = vextract.high.u32 %v4859
      %v4862 = vshrl.u32 %v4861, 4
      %v4863 = vmul.u32 %v4862, 18
      %v4864 = vsub.s32 %v4858, %v4863
      %v4865 = vsub.s32 0, %v4864
      %v4866 = vsel %vm4856, %v4865, %v4864
      %vm4867 = vcmp.lt.s32.totalorder %v4516, 0
      %v4868 = vsub.s32 0, %v4516
      %v4869 = vsel %vm4867, %v4868, %v4516
      %v4870 = vmul.u32.u64.compose %v4869, 3817748708
      %v4871 = vextract.low.u32 %v4870
      %v4872 = vextract.high.u32 %v4870
      %v4873 = vshrl.u32 %v4872, 4
      %v4874 = vmul.u32 %v4873, 18
      %v4875 = vsub.s32 %v4869, %v4874
      %v4876 = vsub.s32 0, %v4875
      %v4877 = vsel %vm4867, %v4876, %v4875
      %vm4878 = vcmp.lt.s32.totalorder %v4517, 0
      %v4879 = vsub.s32 0, %v4517
      %v4880 = vsel %vm4878, %v4879, %v4517
      %v4881 = vmul.u32.u64.compose %v4880, 3817748708
      %v4882 = vextract.low.u32 %v4881
      %v4883 = vextract.high.u32 %v4881
      %v4884 = vshrl.u32 %v4883, 4
      %v4885 = vmul.u32 %v4884, 18
      %v4886 = vsub.s32 %v4880, %v4885
      %v4887 = vsub.s32 0, %v4886
      %v4888 = vsel %vm4878, %v4887, %v4886
      %vm4889 = vcmp.lt.s32.totalorder %v4518, 0
      %v4890 = vsub.s32 0, %v4518
      %v4891 = vsel %vm4889, %v4890, %v4518
      %v4892 = vmul.u32.u64.compose %v4891, 3817748708
      %v4893 = vextract.low.u32 %v4892
      %v4894 = vextract.high.u32 %v4892
      %v4895 = vshrl.u32 %v4894, 4
      %v4896 = vmul.u32 %v4895, 18
      %v4897 = vsub.s32 %v4891, %v4896
      %v4898 = vsub.s32 0, %v4897
      %v4899 = vsel %vm4889, %v4898, %v4897
      %vm4900 = vcmp.lt.s32.totalorder %v4519, 0
      %v4901 = vsub.s32 0, %v4519
      %v4902 = vsel %vm4900, %v4901, %v4519
      %v4903 = vmul.u32.u64.compose %v4902, 3817748708
      %v4904 = vextract.low.u32 %v4903
      %v4905 = vextract.high.u32 %v4903
      %v4906 = vshrl.u32 %v4905, 4
      %v4907 = vmul.u32 %v4906, 18
      %v4908 = vsub.s32 %v4902, %v4907
      %v4909 = vsub.s32 0, %v4908
      %v4910 = vsel %vm4900, %v4909, %v4908
      %vm4911 = vcmp.lt.s32.totalorder %v4520, 0
      %v4912 = vsub.s32 0, %v4520
      %v4913 = vsel %vm4911, %v4912, %v4520
      %v4914 = vmul.u32.u64.compose %v4913, 3817748708
      %v4915 = vextract.low.u32 %v4914
      %v4916 = vextract.high.u32 %v4914
      %v4917 = vshrl.u32 %v4916, 4
      %v4918 = vmul.u32 %v4917, 18
      %v4919 = vsub.s32 %v4913, %v4918
      %v4920 = vsub.s32 0, %v4919
      %v4921 = vsel %vm4911, %v4920, %v4919
      %vm4922 = vcmp.lt.s32.totalorder %v4521, 0
      %v4923 = vsub.s32 0, %v4521
      %v4924 = vsel %vm4922, %v4923, %v4521
      %v4925 = vmul.u32.u64.compose %v4924, 3817748708
      %v4926 = vextract.low.u32 %v4925
      %v4927 = vextract.high.u32 %v4925
      %v4928 = vshrl.u32 %v4927, 4
      %v4929 = vmul.u32 %v4928, 18
      %v4930 = vsub.s32 %v4924, %v4929
      %v4931 = vsub.s32 0, %v4930
      %v4932 = vsel %vm4922, %v4931, %v4930
      %vm4933 = vcmp.lt.s32.totalorder %v4522, 0
      %v4934 = vsub.s32 0, %v4522
      %v4935 = vsel %vm4933, %v4934, %v4522
      %v4936 = vmul.u32.u64.compose %v4935, 3817748708
      %v4937 = vextract.low.u32 %v4936
      %v4938 = vextract.high.u32 %v4936
      %v4939 = vshrl.u32 %v4938, 4
      %v4940 = vmul.u32 %v4939, 18
      %v4941 = vsub.s32 %v4935, %v4940
      %v4942 = vsub.s32 0, %v4941
      %v4943 = vsel %vm4933, %v4942, %v4941
      %vm4944 = vcmp.lt.s32.totalorder %v4523, 0
      %v4945 = vsub.s32 0, %v4523
      %v4946 = vsel %vm4944, %v4945, %v4523
      %v4947 = vmul.u32.u64.compose %v4946, 3817748708
      %v4948 = vextract.low.u32 %v4947
      %v4949 = vextract.high.u32 %v4947
      %v4950 = vshrl.u32 %v4949, 4
      %v4951 = vmul.u32 %v4950, 18
      %v4952 = vsub.s32 %v4946, %v4951
      %v4953 = vsub.s32 0, %v4952
      %v4954 = vsel %vm4944, %v4953, %v4952
      %vm4955 = vcmp.lt.s32.totalorder %v4524, 0
      %v4956 = vsub.s32 0, %v4524
      %v4957 = vsel %vm4955, %v4956, %v4524
      %v4958 = vmul.u32.u64.compose %v4957, 3817748708
      %v4959 = vextract.low.u32 %v4958
      %v4960 = vextract.high.u32 %v4958
      %v4961 = vshrl.u32 %v4960, 4
      %v4962 = vmul.u32 %v4961, 18
      %v4963 = vsub.s32 %v4957, %v4962
      %v4964 = vsub.s32 0, %v4963
      %v4965 = vsel %vm4955, %v4964, %v4963
      %vm4966 = vcmp.lt.s32.totalorder %v4525, 0
      %v4967 = vsub.s32 0, %v4525
      %v4968 = vsel %vm4966, %v4967, %v4525
      %v4969 = vmul.u32.u64.compose %v4968, 3817748708
      %v4970 = vextract.low.u32 %v4969
      %v4971 = vextract.high.u32 %v4969
      %v4972 = vshrl.u32 %v4971, 4
      %v4973 = vmul.u32 %v4972, 18
      %v4974 = vsub.s32 %v4968, %v4973
      %v4975 = vsub.s32 0, %v4974
      %v4976 = vsel %vm4966, %v4975, %v4974
      %vm4977 = vcmp.ne.s32.totalorder %v4536, 0
      %vm4978 = vcmp.ne.s32.totalorder %v4547, 0
      %vm4979 = vcmp.ne.s32.totalorder %v4558, 0
      %vm4980 = vcmp.ne.s32.totalorder %v4569, 0
      %vm4981 = vcmp.ne.s32.totalorder %v4580, 0
      %vm4982 = vcmp.ne.s32.totalorder %v4591, 0
      %vm4983 = vcmp.ne.s32.totalorder %v4602, 0
      %vm4984 = vcmp.ne.s32.totalorder %v4613, 0
      %vm4985 = vcmp.ne.s32.totalorder %v4624, 0
      %vm4986 = vcmp.ne.s32.totalorder %v4635, 0
      %vm4987 = vcmp.ne.s32.totalorder %v4646, 0
      %vm4988 = vcmp.ne.s32.totalorder %v4657, 0
      %vm4989 = vcmp.ne.s32.totalorder %v4668, 0
      %vm4990 = vcmp.ne.s32.totalorder %v4679, 0
      %vm4991 = vcmp.ne.s32.totalorder %v4690, 0
      %vm4992 = vcmp.ne.s32.totalorder %v4701, 0
      %vm4993 = vcmp.ne.s32.totalorder %v4712, 0
      %vm4994 = vcmp.ne.s32.totalorder %v4723, 0
      %vm4995 = vcmp.ne.s32.totalorder %v4734, 0
      %vm4996 = vcmp.ne.s32.totalorder %v4745, 0
      %vm4997 = vcmp.ne.s32.totalorder %v4756, 0
      %vm4998 = vcmp.ne.s32.totalorder %v4767, 0
      %vm4999 = vcmp.ne.s32.totalorder %v4778, 0
      %vm5000 = vcmp.ne.s32.totalorder %v4789, 0
      %vm5001 = vcmp.ne.s32.totalorder %v4800, 0
      %vm5002 = vcmp.ne.s32.totalorder %v4811, 0
      %vm5003 = vcmp.ne.s32.totalorder %v4822, 0
      %vm5004 = vcmp.ne.s32.totalorder %v4833, 0
      %vm5005 = vcmp.ne.s32.totalorder %v4844, 0
      %vm5006 = vcmp.ne.s32.totalorder %v4855, 0
      %vm5007 = vcmp.ne.s32.totalorder %v4866, 0
      %vm5008 = vcmp.ne.s32.totalorder %v4877, 0
      %vm5009 = vcmp.ne.s32.totalorder %v4888, 0
      %vm5010 = vcmp.ne.s32.totalorder %v4899, 0
      %vm5011 = vcmp.ne.s32.totalorder %v4910, 0
      %vm5012 = vcmp.ne.s32.totalorder %v4921, 0
      %vm5013 = vcmp.ne.s32.totalorder %v4932, 0
      %vm5014 = vcmp.ne.s32.totalorder %v4943, 0
      %vm5015 = vcmp.ne.s32.totalorder %v4954, 0
      %vm5016 = vcmp.ne.s32.totalorder %v4965, 0
      %vm5017 = vcmp.ne.s32.totalorder %v4976, 0
      %vm5018 = vcmp.lt.s32.totalorder %v4536, 0
      %vm5019 = vcmp.lt.s32.totalorder %v4547, 0
      %vm5020 = vcmp.lt.s32.totalorder %v4558, 0
      %vm5021 = vcmp.lt.s32.totalorder %v4569, 0
      %vm5022 = vcmp.lt.s32.totalorder %v4580, 0
      %vm5023 = vcmp.lt.s32.totalorder %v4591, 0
      %vm5024 = vcmp.lt.s32.totalorder %v4602, 0
      %vm5025 = vcmp.lt.s32.totalorder %v4613, 0
      %vm5026 = vcmp.lt.s32.totalorder %v4624, 0
      %vm5027 = vcmp.lt.s32.totalorder %v4635, 0
      %vm5028 = vcmp.lt.s32.totalorder %v4646, 0
      %vm5029 = vcmp.lt.s32.totalorder %v4657, 0
      %vm5030 = vcmp.lt.s32.totalorder %v4668, 0
      %vm5031 = vcmp.lt.s32.totalorder %v4679, 0
      %vm5032 = vcmp.lt.s32.totalorder %v4690, 0
      %vm5033 = vcmp.lt.s32.totalorder %v4701, 0
      %vm5034 = vcmp.lt.s32.totalorder %v4712, 0
      %vm5035 = vcmp.lt.s32.totalorder %v4723, 0
      %vm5036 = vcmp.lt.s32.totalorder %v4734, 0
      %vm5037 = vcmp.lt.s32.totalorder %v4745, 0
      %vm5038 = vcmp.lt.s32.totalorder %v4756, 0
      %vm5039 = vcmp.lt.s32.totalorder %v4767, 0
      %vm5040 = vcmp.lt.s32.totalorder %v4778, 0
      %vm5041 = vcmp.lt.s32.totalorder %v4789, 0
      %vm5042 = vcmp.lt.s32.totalorder %v4800, 0
      %vm5043 = vcmp.lt.s32.totalorder %v4811, 0
      %vm5044 = vcmp.lt.s32.totalorder %v4822, 0
      %vm5045 = vcmp.lt.s32.totalorder %v4833, 0
      %vm5046 = vcmp.lt.s32.totalorder %v4844, 0
      %vm5047 = vcmp.lt.s32.totalorder %v4855, 0
      %vm5048 = vcmp.lt.s32.totalorder %v4866, 0
      %vm5049 = vcmp.lt.s32.totalorder %v4877, 0
      %vm5050 = vcmp.lt.s32.totalorder %v4888, 0
      %vm5051 = vcmp.lt.s32.totalorder %v4899, 0
      %vm5052 = vcmp.lt.s32.totalorder %v4910, 0
      %vm5053 = vcmp.lt.s32.totalorder %v4921, 0
      %vm5054 = vcmp.lt.s32.totalorder %v4932, 0
      %vm5055 = vcmp.lt.s32.totalorder %v4943, 0
      %vm5056 = vcmp.lt.s32.totalorder %v4954, 0
      %vm5057 = vcmp.lt.s32.totalorder %v4965, 0
      %vm5058 = vcmp.lt.s32.totalorder %v4976, 0
      %vm5059 = vmand %vm5018, %vm4977
      %vm5060 = vmand %vm5019, %vm4978
      %vm5061 = vmand %vm5020, %vm4979
      %vm5062 = vmand %vm5021, %vm4980
      %vm5063 = vmand %vm5022, %vm4981
      %vm5064 = vmand %vm5023, %vm4982
      %vm5065 = vmand %vm5024, %vm4983
      %vm5066 = vmand %vm5025, %vm4984
      %vm5067 = vmand %vm5026, %vm4985
      %vm5068 = vmand %vm5027, %vm4986
      %vm5069 = vmand %vm5028, %vm4987
      %vm5070 = vmand %vm5029, %vm4988
      %vm5071 = vmand %vm5030, %vm4989
      %vm5072 = vmand %vm5031, %vm4990
      %vm5073 = vmand %vm5032, %vm4991
      %vm5074 = vmand %vm5033, %vm4992
      %vm5075 = vmand %vm5034, %vm4993
      %vm5076 = vmand %vm5035, %vm4994
      %vm5077 = vmand %vm5036, %vm4995
      %vm5078 = vmand %vm5037, %vm4996
      %vm5079 = vmand %vm5038, %vm4997
      %vm5080 = vmand %vm5039, %vm4998
      %vm5081 = vmand %vm5040, %vm4999
      %vm5082 = vmand %vm5041, %vm5000
      %vm5083 = vmand %vm5042, %vm5001
      %vm5084 = vmand %vm5043, %vm5002
      %vm5085 = vmand %vm5044, %vm5003
      %vm5086 = vmand %vm5045, %vm5004
      %vm5087 = vmand %vm5046, %vm5005
      %vm5088 = vmand %vm5047, %vm5006
      %vm5089 = vmand %vm5048, %vm5007
      %vm5090 = vmand %vm5049, %vm5008
      %vm5091 = vmand %vm5050, %vm5009
      %vm5092 = vmand %vm5051, %vm5010
      %vm5093 = vmand %vm5052, %vm5011
      %vm5094 = vmand %vm5053, %vm5012
      %vm5095 = vmand %vm5054, %vm5013
      %vm5096 = vmand %vm5055, %vm5014
      %vm5097 = vmand %vm5056, %vm5015
      %vm5098 = vmand %vm5057, %vm5016
      %vm5099 = vmand %vm5058, %vm5017
      %v5100 = vadd.s32 %v4536, 18
      %v5101 = vadd.s32 %v4547, 18
      %v5102 = vadd.s32 %v4558, 18
      %v5103 = vadd.s32 %v4569, 18
      %v5104 = vadd.s32 %v4580, 18
      %v5105 = vadd.s32 %v4591, 18
      %v5106 = vadd.s32 %v4602, 18
      %v5107 = vadd.s32 %v4613, 18
      %v5108 = vadd.s32 %v4624, 18
      %v5109 = vadd.s32 %v4635, 18
      %v5110 = vadd.s32 %v4646, 18
      %v5111 = vadd.s32 %v4657, 18
      %v5112 = vadd.s32 %v4668, 18
      %v5113 = vadd.s32 %v4679, 18
      %v5114 = vadd.s32 %v4690, 18
      %v5115 = vadd.s32 %v4701, 18
      %v5116 = vadd.s32 %v4712, 18
      %v5117 = vadd.s32 %v4723, 18
      %v5118 = vadd.s32 %v4734, 18
      %v5119 = vadd.s32 %v4745, 18
      %v5120 = vadd.s32 %v4756, 18
      %v5121 = vadd.s32 %v4767, 18
      %v5122 = vadd.s32 %v4778, 18
      %v5123 = vadd.s32 %v4789, 18
      %v5124 = vadd.s32 %v4800, 18
      %v5125 = vadd.s32 %v4811, 18
      %v5126 = vadd.s32 %v4822, 18
      %v5127 = vadd.s32 %v4833, 18
      %v5128 = vadd.s32 %v4844, 18
      %v5129 = vadd.s32 %v4855, 18
      %v5130 = vadd.s32 %v4866, 18
      %v5131 = vadd.s32 %v4877, 18
      %v5132 = vadd.s32 %v4888, 18
      %v5133 = vadd.s32 %v4899, 18
      %v5134 = vadd.s32 %v4910, 18
      %v5135 = vadd.s32 %v4921, 18
      %v5136 = vadd.s32 %v4932, 18
      %v5137 = vadd.s32 %v4943, 18
      %v5138 = vadd.s32 %v4954, 18
      %v5139 = vadd.s32 %v4965, 18
      %v5140 = vadd.s32 %v4976, 18
      %v5141 = vsel %vm5059, %v5100, %v4536
      %v5142 = vsel %vm5060, %v5101, %v4547
      %v5143 = vsel %vm5061, %v5102, %v4558
      %v5144 = vsel %vm5062, %v5103, %v4569
      %v5145 = vsel %vm5063, %v5104, %v4580
      %v5146 = vsel %vm5064, %v5105, %v4591
      %v5147 = vsel %vm5065, %v5106, %v4602
      %v5148 = vsel %vm5066, %v5107, %v4613
      %v5149 = vsel %vm5067, %v5108, %v4624
      %v5150 = vsel %vm5068, %v5109, %v4635
      %v5151 = vsel %vm5069, %v5110, %v4646
      %v5152 = vsel %vm5070, %v5111, %v4657
      %v5153 = vsel %vm5071, %v5112, %v4668
      %v5154 = vsel %vm5072, %v5113, %v4679
      %v5155 = vsel %vm5073, %v5114, %v4690
      %v5156 = vsel %vm5074, %v5115, %v4701
      %v5157 = vsel %vm5075, %v5116, %v4712
      %v5158 = vsel %vm5076, %v5117, %v4723
      %v5159 = vsel %vm5077, %v5118, %v4734
      %v5160 = vsel %vm5078, %v5119, %v4745
      %v5161 = vsel %vm5079, %v5120, %v4756
      %v5162 = vsel %vm5080, %v5121, %v4767
      %v5163 = vsel %vm5081, %v5122, %v4778
      %v5164 = vsel %vm5082, %v5123, %v4789
      %v5165 = vsel %vm5083, %v5124, %v4800
      %v5166 = vsel %vm5084, %v5125, %v4811
      %v5167 = vsel %vm5085, %v5126, %v4822
      %v5168 = vsel %vm5086, %v5127, %v4833
      %v5169 = vsel %vm5087, %v5128, %v4844
      %v5170 = vsel %vm5088, %v5129, %v4855
      %v5171 = vsel %vm5089, %v5130, %v4866
      %v5172 = vsel %vm5090, %v5131, %v4877
      %v5173 = vsel %vm5091, %v5132, %v4888
      %v5174 = vsel %vm5092, %v5133, %v4899
      %v5175 = vsel %vm5093, %v5134, %v4910
      %v5176 = vsel %vm5094, %v5135, %v4921
      %v5177 = vsel %vm5095, %v5136, %v4932
      %v5178 = vsel %vm5096, %v5137, %v4943
      %v5179 = vsel %vm5097, %v5138, %v4954
      %v5180 = vsel %vm5098, %v5139, %v4965
      %v5181 = vsel %vm5099, %v5140, %v4976
      %vm5223 = vcmask 1045504
      %v5224 = vrot.slane %v4443, 2
      %v5225 = vrot.slane %v4444, 2
      %v5226 = vsel %vm5223, %v5224, %v5225
      %v5227 = vrot.slane %v4445, 2
      %v5228 = vsel %vm5223, %v5225, %v5227
      %v5229 = vrot.slane %v4446, 2
      %v5230 = vsel %vm5223, %v5227, %v5229
      %v5231 = vrot.slane %v4447, 2
      %v5232 = vsel %vm5223, %v5229, %v5231
      %v5233 = vrot.slane %v4448, 2
      %v5234 = vsel %vm5223, %v5231, %v5233
      %v5235 = vrot.slane %v4449, 2
      %v5236 = vsel %vm5223, %v5233, %v5235
      %v5237 = vrot.slane %v4450, 2
      %v5238 = vsel %vm5223, %v5235, %v5237
      %v5239 = vrot.slane %v4451, 2
      %v5240 = vsel %vm5223, %v5237, %v5239
      %v5241 = vrot.slane %v4452, 2
      %v5242 = vsel %vm5223, %v5239, %v5241
      %v5243 = vrot.slane %v4453, 2
      %v5244 = vsel %vm5223, %v5241, %v5243
      %v5245 = vrot.slane %v4454, 2
      %v5246 = vsel %vm5223, %v5243, %v5245
      %v5247 = vrot.slane %v4455, 2
      %v5248 = vsel %vm5223, %v5245, %v5247
      %v5249 = vrot.slane %v4456, 2
      %v5250 = vsel %vm5223, %v5247, %v5249
      %v5251 = vrot.slane %v4457, 2
      %v5252 = vsel %vm5223, %v5249, %v5251
      %v5253 = vrot.slane %v4458, 2
      %v5254 = vsel %vm5223, %v5251, %v5253
      %v5255 = vrot.slane %v4459, 2
      %v5256 = vsel %vm5223, %v5253, %v5255
      %v5257 = vrot.slane %v4460, 2
      %v5258 = vsel %vm5223, %v5255, %v5257
      %v5259 = vrot.slane %v4461, 2
      %v5260 = vsel %vm5223, %v5257, %v5259
      %v5261 = vrot.slane %v4462, 2
      %v5262 = vsel %vm5223, %v5259, %v5261
      %v5263 = vrot.slane %v4463, 2
      %v5264 = vsel %vm5223, %v5261, %v5263
      %v5265 = vrot.slane %v4464, 2
      %v5266 = vsel %vm5223, %v5263, %v5265
      %v5267 = vrot.slane %v4465, 2
      %v5268 = vsel %vm5223, %v5265, %v5267
      %v5269 = vrot.slane %v4466, 2
      %v5270 = vsel %vm5223, %v5267, %v5269
      %v5271 = vrot.slane %v4467, 2
      %v5272 = vsel %vm5223, %v5269, %v5271
      %v5273 = vrot.slane %v4468, 2
      %v5274 = vsel %vm5223, %v5271, %v5273
      %v5275 = vrot.slane %v4469, 2
      %v5276 = vsel %vm5223, %v5273, %v5275
      %v5277 = vrot.slane %v4470, 2
      %v5278 = vsel %vm5223, %v5275, %v5277
      %v5279 = vrot.slane %v4471, 2
      %v5280 = vsel %vm5223, %v5277, %v5279
      %v5281 = vrot.slane %v4472, 2
      %v5282 = vsel %vm5223, %v5279, %v5281
      %v5283 = vrot.slane %v4473, 2
      %v5284 = vsel %vm5223, %v5281, %v5283
      %v5285 = vrot.slane %v4474, 2
      %v5286 = vsel %vm5223, %v5283, %v5285
      %v5287 = vrot.slane %v4475, 2
      %v5288 = vsel %vm5223, %v5285, %v5287
      %v5289 = vrot.slane %v4476, 2
      %v5290 = vsel %vm5223, %v5287, %v5289
      %v5291 = vrot.slane %v4477, 2
      %v5292 = vsel %vm5223, %v5289, %v5291
      %v5293 = vrot.slane %v4478, 2
      %v5294 = vsel %vm5223, %v5291, %v5293
      %v5295 = vrot.slane %v4479, 2
      %v5296 = vsel %vm5223, %v5293, %v5295
      %v5297 = vrot.slane %v4480, 2
      %v5298 = vsel %vm5223, %v5295, %v5297
      %v5299 = vrot.slane %v4481, 2
      %v5300 = vsel %vm5223, %v5297, %v5299
      %v5301 = vrot.slane %v4482, 2
      %v5302 = vsel %vm5223, %v5299, %v5301
      %v5303 = vrot.slane %v4483, 2
      %v5304 = vsel %vm5223, %v5301, %v5303
      %v5346 = vrot.slane %v4443, 6
      %v5348 = vsel %vm616, %v5303, %v5346
      %v5349 = vrot.slane %v4444, 6
      %v5350 = vsel %vm616, %v5346, %v5349
      %v5351 = vrot.slane %v4445, 6
      %v5352 = vsel %vm616, %v5349, %v5351
      %v5353 = vrot.slane %v4446, 6
      %v5354 = vsel %vm616, %v5351, %v5353
      %v5355 = vrot.slane %v4447, 6
      %v5356 = vsel %vm616, %v5353, %v5355
      %v5357 = vrot.slane %v4448, 6
      %v5358 = vsel %vm616, %v5355, %v5357
      %v5359 = vrot.slane %v4449, 6
      %v5360 = vsel %vm616, %v5357, %v5359
      %v5361 = vrot.slane %v4450, 6
      %v5362 = vsel %vm616, %v5359, %v5361
      %v5363 = vrot.slane %v4451, 6
      %v5364 = vsel %vm616, %v5361, %v5363
      %v5365 = vrot.slane %v4452, 6
      %v5366 = vsel %vm616, %v5363, %v5365
      %v5367 = vrot.slane %v4453, 6
      %v5368 = vsel %vm616, %v5365, %v5367
      %v5369 = vrot.slane %v4454, 6
      %v5370 = vsel %vm616, %v5367, %v5369
      %v5371 = vrot.slane %v4455, 6
      %v5372 = vsel %vm616, %v5369, %v5371
      %v5373 = vrot.slane %v4456, 6
      %v5374 = vsel %vm616, %v5371, %v5373
      %v5375 = vrot.slane %v4457, 6
      %v5376 = vsel %vm616, %v5373, %v5375
      %v5377 = vrot.slane %v4458, 6
      %v5378 = vsel %vm616, %v5375, %v5377
      %v5379 = vrot.slane %v4459, 6
      %v5380 = vsel %vm616, %v5377, %v5379
      %v5381 = vrot.slane %v4460, 6
      %v5382 = vsel %vm616, %v5379, %v5381
      %v5383 = vrot.slane %v4461, 6
      %v5384 = vsel %vm616, %v5381, %v5383
      %v5385 = vrot.slane %v4462, 6
      %v5386 = vsel %vm616, %v5383, %v5385
      %v5387 = vrot.slane %v4463, 6
      %v5388 = vsel %vm616, %v5385, %v5387
      %v5389 = vrot.slane %v4464, 6
      %v5390 = vsel %vm616, %v5387, %v5389
      %v5391 = vrot.slane %v4465, 6
      %v5392 = vsel %vm616, %v5389, %v5391
      %v5393 = vrot.slane %v4466, 6
      %v5394 = vsel %vm616, %v5391, %v5393
      %v5395 = vrot.slane %v4467, 6
      %v5396 = vsel %vm616, %v5393, %v5395
      %v5397 = vrot.slane %v4468, 6
      %v5398 = vsel %vm616, %v5395, %v5397
      %v5399 = vrot.slane %v4469, 6
      %v5400 = vsel %vm616, %v5397, %v5399
      %v5401 = vrot.slane %v4470, 6
      %v5402 = vsel %vm616, %v5399, %v5401
      %v5403 = vrot.slane %v4471, 6
      %v5404 = vsel %vm616, %v5401, %v5403
      %v5405 = vrot.slane %v4472, 6
      %v5406 = vsel %vm616, %v5403, %v5405
      %v5407 = vrot.slane %v4473, 6
      %v5408 = vsel %vm616, %v5405, %v5407
      %v5409 = vrot.slane %v4474, 6
      %v5410 = vsel %vm616, %v5407, %v5409
      %v5411 = vrot.slane %v4475, 6
      %v5412 = vsel %vm616, %v5409, %v5411
      %v5413 = vrot.slane %v4476, 6
      %v5414 = vsel %vm616, %v5411, %v5413
      %v5415 = vrot.slane %v4477, 6
      %v5416 = vsel %vm616, %v5413, %v5415
      %v5417 = vrot.slane %v4478, 6
      %v5418 = vsel %vm616, %v5415, %v5417
      %v5419 = vrot.slane %v4479, 6
      %v5420 = vsel %vm616, %v5417, %v5419
      %v5421 = vrot.slane %v4480, 6
      %v5422 = vsel %vm616, %v5419, %v5421
      %v5423 = vrot.slane %v4481, 6
      %v5424 = vsel %vm616, %v5421, %v5423
      %v5425 = vrot.slane %v4482, 6
      %v5426 = vsel %vm616, %v5423, %v5425
      %v5427 = vrot.slane %v4483, 6
      %v5428 = vsel %vm616, %v5425, %v5427
      %vm5469 = vcmp.eq.s32.totalorder %v5141, 0
      %vm5470 = vcmp.eq.s32.totalorder %v5142, 0
      %vm5471 = vcmp.eq.s32.totalorder %v5143, 0
      %vm5472 = vcmp.eq.s32.totalorder %v5144, 0
      %vm5473 = vcmp.eq.s32.totalorder %v5145, 0
      %vm5474 = vcmp.eq.s32.totalorder %v5146, 0
      %vm5475 = vcmp.eq.s32.totalorder %v5147, 0
      %vm5476 = vcmp.eq.s32.totalorder %v5148, 0
      %vm5477 = vcmp.eq.s32.totalorder %v5149, 0
      %vm5478 = vcmp.eq.s32.totalorder %v5150, 0
      %vm5479 = vcmp.eq.s32.totalorder %v5151, 0
      %vm5480 = vcmp.eq.s32.totalorder %v5152, 0
      %vm5481 = vcmp.eq.s32.totalorder %v5153, 0
      %vm5482 = vcmp.eq.s32.totalorder %v5154, 0
      %vm5483 = vcmp.eq.s32.totalorder %v5155, 0
      %vm5484 = vcmp.eq.s32.totalorder %v5156, 0
      %vm5485 = vcmp.eq.s32.totalorder %v5157, 0
      %vm5486 = vcmp.eq.s32.totalorder %v5158, 0
      %vm5487 = vcmp.eq.s32.totalorder %v5159, 0
      %vm5488 = vcmp.eq.s32.totalorder %v5160, 0
      %vm5489 = vcmp.eq.s32.totalorder %v5161, 0
      %vm5490 = vcmp.eq.s32.totalorder %v5162, 0
      %vm5491 = vcmp.eq.s32.totalorder %v5163, 0
      %vm5492 = vcmp.eq.s32.totalorder %v5164, 0
      %vm5493 = vcmp.eq.s32.totalorder %v5165, 0
      %vm5494 = vcmp.eq.s32.totalorder %v5166, 0
      %vm5495 = vcmp.eq.s32.totalorder %v5167, 0
      %vm5496 = vcmp.eq.s32.totalorder %v5168, 0
      %vm5497 = vcmp.eq.s32.totalorder %v5169, 0
      %vm5498 = vcmp.eq.s32.totalorder %v5170, 0
      %vm5499 = vcmp.eq.s32.totalorder %v5171, 0
      %vm5500 = vcmp.eq.s32.totalorder %v5172, 0
      %vm5501 = vcmp.eq.s32.totalorder %v5173, 0
      %vm5502 = vcmp.eq.s32.totalorder %v5174, 0
      %vm5503 = vcmp.eq.s32.totalorder %v5175, 0
      %vm5504 = vcmp.eq.s32.totalorder %v5176, 0
      %vm5505 = vcmp.eq.s32.totalorder %v5177, 0
      %vm5506 = vcmp.eq.s32.totalorder %v5178, 0
      %vm5507 = vcmp.eq.s32.totalorder %v5179, 0
      %vm5508 = vcmp.eq.s32.totalorder %v5180, 0
      %vm5509 = vcmp.eq.s32.totalorder %v5181, 0
      %v5510 = vsel %vm5469, 1, 0
      %v5511 = vsel %vm5470, 1, 0
      %v5512 = vsel %vm5471, 1, 0
      %v5513 = vsel %vm5472, 1, 0
      %v5514 = vsel %vm5473, 1, 0
      %v5515 = vsel %vm5474, 1, 0
      %v5516 = vsel %vm5475, 1, 0
      %v5517 = vsel %vm5476, 1, 0
      %v5518 = vsel %vm5477, 1, 0
      %v5519 = vsel %vm5478, 1, 0
      %v5520 = vsel %vm5479, 1, 0
      %v5521 = vsel %vm5480, 1, 0
      %v5522 = vsel %vm5481, 1, 0
      %v5523 = vsel %vm5482, 1, 0
      %v5524 = vsel %vm5483, 1, 0
      %v5525 = vsel %vm5484, 1, 0
      %v5526 = vsel %vm5485, 1, 0
      %v5527 = vsel %vm5486, 1, 0
      %v5528 = vsel %vm5487, 1, 0
      %v5529 = vsel %vm5488, 1, 0
      %v5530 = vsel %vm5489, 1, 0
      %v5531 = vsel %vm5490, 1, 0
      %v5532 = vsel %vm5491, 1, 0
      %v5533 = vsel %vm5492, 1, 0
      %v5534 = vsel %vm5493, 1, 0
      %v5535 = vsel %vm5494, 1, 0
      %v5536 = vsel %vm5495, 1, 0
      %v5537 = vsel %vm5496, 1, 0
      %v5538 = vsel %vm5497, 1, 0
      %v5539 = vsel %vm5498, 1, 0
      %v5540 = vsel %vm5499, 1, 0
      %v5541 = vsel %vm5500, 1, 0
      %v5542 = vsel %vm5501, 1, 0
      %v5543 = vsel %vm5502, 1, 0
      %v5544 = vsel %vm5503, 1, 0
      %v5545 = vsel %vm5504, 1, 0
      %v5546 = vsel %vm5505, 1, 0
      %v5547 = vsel %vm5506, 1, 0
      %v5548 = vsel %vm5507, 1, 0
      %v5549 = vsel %vm5508, 1, 0
      %v5550 = vsel %vm5509, 1, 0
      %vm5551 = vcmp.eq.s32.totalorder %v5510, 1
      %vm5552 = vcmp.eq.s32.totalorder %v5511, 1
      %vm5553 = vcmp.eq.s32.totalorder %v5512, 1
      %vm5554 = vcmp.eq.s32.totalorder %v5513, 1
      %vm5555 = vcmp.eq.s32.totalorder %v5514, 1
      %vm5556 = vcmp.eq.s32.totalorder %v5515, 1
      %vm5557 = vcmp.eq.s32.totalorder %v5516, 1
      %vm5558 = vcmp.eq.s32.totalorder %v5517, 1
      %vm5559 = vcmp.eq.s32.totalorder %v5518, 1
      %vm5560 = vcmp.eq.s32.totalorder %v5519, 1
      %vm5561 = vcmp.eq.s32.totalorder %v5520, 1
      %vm5562 = vcmp.eq.s32.totalorder %v5521, 1
      %vm5563 = vcmp.eq.s32.totalorder %v5522, 1
      %vm5564 = vcmp.eq.s32.totalorder %v5523, 1
      %vm5565 = vcmp.eq.s32.totalorder %v5524, 1
      %vm5566 = vcmp.eq.s32.totalorder %v5525, 1
      %vm5567 = vcmp.eq.s32.totalorder %v5526, 1
      %vm5568 = vcmp.eq.s32.totalorder %v5527, 1
      %vm5569 = vcmp.eq.s32.totalorder %v5528, 1
      %vm5570 = vcmp.eq.s32.totalorder %v5529, 1
      %vm5571 = vcmp.eq.s32.totalorder %v5530, 1
      %vm5572 = vcmp.eq.s32.totalorder %v5531, 1
      %vm5573 = vcmp.eq.s32.totalorder %v5532, 1
      %vm5574 = vcmp.eq.s32.totalorder %v5533, 1
      %vm5575 = vcmp.eq.s32.totalorder %v5534, 1
      %vm5576 = vcmp.eq.s32.totalorder %v5535, 1
      %vm5577 = vcmp.eq.s32.totalorder %v5536, 1
      %vm5578 = vcmp.eq.s32.totalorder %v5537, 1
      %vm5579 = vcmp.eq.s32.totalorder %v5538, 1
      %vm5580 = vcmp.eq.s32.totalorder %v5539, 1
      %vm5581 = vcmp.eq.s32.totalorder %v5540, 1
      %vm5582 = vcmp.eq.s32.totalorder %v5541, 1
      %vm5583 = vcmp.eq.s32.totalorder %v5542, 1
      %vm5584 = vcmp.eq.s32.totalorder %v5543, 1
      %vm5585 = vcmp.eq.s32.totalorder %v5544, 1
      %vm5586 = vcmp.eq.s32.totalorder %v5545, 1
      %vm5587 = vcmp.eq.s32.totalorder %v5546, 1
      %vm5588 = vcmp.eq.s32.totalorder %v5547, 1
      %vm5589 = vcmp.eq.s32.totalorder %v5548, 1
      %vm5590 = vcmp.eq.s32.totalorder %v5549, 1
      %vm5591 = vcmp.eq.s32.totalorder %v5550, 1
      %v5592 = vsel %vm5551, %v5226, %v4443
      %v5593 = vsel %vm5552, %v5228, %v4444
      %v5594 = vsel %vm5553, %v5230, %v4445
      %v5595 = vsel %vm5554, %v5232, %v4446
      %v5596 = vsel %vm5555, %v5234, %v4447
      %v5597 = vsel %vm5556, %v5236, %v4448
      %v5598 = vsel %vm5557, %v5238, %v4449
      %v5599 = vsel %vm5558, %v5240, %v4450
      %v5600 = vsel %vm5559, %v5242, %v4451
      %v5601 = vsel %vm5560, %v5244, %v4452
      %v5602 = vsel %vm5561, %v5246, %v4453
      %v5603 = vsel %vm5562, %v5248, %v4454
      %v5604 = vsel %vm5563, %v5250, %v4455
      %v5605 = vsel %vm5564, %v5252, %v4456
      %v5606 = vsel %vm5565, %v5254, %v4457
      %v5607 = vsel %vm5566, %v5256, %v4458
      %v5608 = vsel %vm5567, %v5258, %v4459
      %v5609 = vsel %vm5568, %v5260, %v4460
      %v5610 = vsel %vm5569, %v5262, %v4461
      %v5611 = vsel %vm5570, %v5264, %v4462
      %v5612 = vsel %vm5571, %v5266, %v4463
      %v5613 = vsel %vm5572, %v5268, %v4464
      %v5614 = vsel %vm5573, %v5270, %v4465
      %v5615 = vsel %vm5574, %v5272, %v4466
      %v5616 = vsel %vm5575, %v5274, %v4467
      %v5617 = vsel %vm5576, %v5276, %v4468
      %v5618 = vsel %vm5577, %v5278, %v4469
      %v5619 = vsel %vm5578, %v5280, %v4470
      %v5620 = vsel %vm5579, %v5282, %v4471
      %v5621 = vsel %vm5580, %v5284, %v4472
      %v5622 = vsel %vm5581, %v5286, %v4473
      %v5623 = vsel %vm5582, %v5288, %v4474
      %v5624 = vsel %vm5583, %v5290, %v4475
      %v5625 = vsel %vm5584, %v5292, %v4476
      %v5626 = vsel %vm5585, %v5294, %v4477
      %v5627 = vsel %vm5586, %v5296, %v4478
      %v5628 = vsel %vm5587, %v5298, %v4479
      %v5629 = vsel %vm5588, %v5300, %v4480
      %v5630 = vsel %vm5589, %v5302, %v4481
      %v5631 = vsel %vm5590, %v5304, %v4482
      %v5632 = vsel %vm5591, %v5348, %v4483
      %vm5633 = vcmp.eq.s32.totalorder %v5141, 17
      %vm5634 = vcmp.eq.s32.totalorder %v5142, 17
      %vm5635 = vcmp.eq.s32.totalorder %v5143, 17
      %vm5636 = vcmp.eq.s32.totalorder %v5144, 17
      %vm5637 = vcmp.eq.s32.totalorder %v5145, 17
      %vm5638 = vcmp.eq.s32.totalorder %v5146, 17
      %vm5639 = vcmp.eq.s32.totalorder %v5147, 17
      %vm5640 = vcmp.eq.s32.totalorder %v5148, 17
      %vm5641 = vcmp.eq.s32.totalorder %v5149, 17
      %vm5642 = vcmp.eq.s32.totalorder %v5150, 17
      %vm5643 = vcmp.eq.s32.totalorder %v5151, 17
      %vm5644 = vcmp.eq.s32.totalorder %v5152, 17
      %vm5645 = vcmp.eq.s32.totalorder %v5153, 17
      %vm5646 = vcmp.eq.s32.totalorder %v5154, 17
      %vm5647 = vcmp.eq.s32.totalorder %v5155, 17
      %vm5648 = vcmp.eq.s32.totalorder %v5156, 17
      %vm5649 = vcmp.eq.s32.totalorder %v5157, 17
      %vm5650 = vcmp.eq.s32.totalorder %v5158, 17
      %vm5651 = vcmp.eq.s32.totalorder %v5159, 17
      %vm5652 = vcmp.eq.s32.totalorder %v5160, 17
      %vm5653 = vcmp.eq.s32.totalorder %v5161, 17
      %vm5654 = vcmp.eq.s32.totalorder %v5162, 17
      %vm5655 = vcmp.eq.s32.totalorder %v5163, 17
      %vm5656 = vcmp.eq.s32.totalorder %v5164, 17
      %vm5657 = vcmp.eq.s32.totalorder %v5165, 17
      %vm5658 = vcmp.eq.s32.totalorder %v5166, 17
      %vm5659 = vcmp.eq.s32.totalorder %v5167, 17
      %vm5660 = vcmp.eq.s32.totalorder %v5168, 17
      %vm5661 = vcmp.eq.s32.totalorder %v5169, 17
      %vm5662 = vcmp.eq.s32.totalorder %v5170, 17
      %vm5663 = vcmp.eq.s32.totalorder %v5171, 17
      %vm5664 = vcmp.eq.s32.totalorder %v5172, 17
      %vm5665 = vcmp.eq.s32.totalorder %v5173, 17
      %vm5666 = vcmp.eq.s32.totalorder %v5174, 17
      %vm5667 = vcmp.eq.s32.totalorder %v5175, 17
      %vm5668 = vcmp.eq.s32.totalorder %v5176, 17
      %vm5669 = vcmp.eq.s32.totalorder %v5177, 17
      %vm5670 = vcmp.eq.s32.totalorder %v5178, 17
      %vm5671 = vcmp.eq.s32.totalorder %v5179, 17
      %vm5672 = vcmp.eq.s32.totalorder %v5180, 17
      %vm5673 = vcmp.eq.s32.totalorder %v5181, 17
      %v5674 = vsel %vm5633, 1, 0
      %v5675 = vsel %vm5634, 1, 0
      %v5676 = vsel %vm5635, 1, 0
      %v5677 = vsel %vm5636, 1, 0
      %v5678 = vsel %vm5637, 1, 0
      %v5679 = vsel %vm5638, 1, 0
      %v5680 = vsel %vm5639, 1, 0
      %v5681 = vsel %vm5640, 1, 0
      %v5682 = vsel %vm5641, 1, 0
      %v5683 = vsel %vm5642, 1, 0
      %v5684 = vsel %vm5643, 1, 0
      %v5685 = vsel %vm5644, 1, 0
      %v5686 = vsel %vm5645, 1, 0
      %v5687 = vsel %vm5646, 1, 0
      %v5688 = vsel %vm5647, 1, 0
      %v5689 = vsel %vm5648, 1, 0
      %v5690 = vsel %vm5649, 1, 0
      %v5691 = vsel %vm5650, 1, 0
      %v5692 = vsel %vm5651, 1, 0
      %v5693 = vsel %vm5652, 1, 0
      %v5694 = vsel %vm5653, 1, 0
      %v5695 = vsel %vm5654, 1, 0
      %v5696 = vsel %vm5655, 1, 0
      %v5697 = vsel %vm5656, 1, 0
      %v5698 = vsel %vm5657, 1, 0
      %v5699 = vsel %vm5658, 1, 0
      %v5700 = vsel %vm5659, 1, 0
      %v5701 = vsel %vm5660, 1, 0
      %v5702 = vsel %vm5661, 1, 0
      %v5703 = vsel %vm5662, 1, 0
      %v5704 = vsel %vm5663, 1, 0
      %v5705 = vsel %vm5664, 1, 0
      %v5706 = vsel %vm5665, 1, 0
      %v5707 = vsel %vm5666, 1, 0
      %v5708 = vsel %vm5667, 1, 0
      %v5709 = vsel %vm5668, 1, 0
      %v5710 = vsel %vm5669, 1, 0
      %v5711 = vsel %vm5670, 1, 0
      %v5712 = vsel %vm5671, 1, 0
      %v5713 = vsel %vm5672, 1, 0
      %v5714 = vsel %vm5673, 1, 0
      %vm5715 = vcmp.eq.s32.totalorder %v5674, 1
      %vm5716 = vcmp.eq.s32.totalorder %v5675, 1
      %vm5717 = vcmp.eq.s32.totalorder %v5676, 1
      %vm5718 = vcmp.eq.s32.totalorder %v5677, 1
      %vm5719 = vcmp.eq.s32.totalorder %v5678, 1
      %vm5720 = vcmp.eq.s32.totalorder %v5679, 1
      %vm5721 = vcmp.eq.s32.totalorder %v5680, 1
      %vm5722 = vcmp.eq.s32.totalorder %v5681, 1
      %vm5723 = vcmp.eq.s32.totalorder %v5682, 1
      %vm5724 = vcmp.eq.s32.totalorder %v5683, 1
      %vm5725 = vcmp.eq.s32.totalorder %v5684, 1
      %vm5726 = vcmp.eq.s32.totalorder %v5685, 1
      %vm5727 = vcmp.eq.s32.totalorder %v5686, 1
      %vm5728 = vcmp.eq.s32.totalorder %v5687, 1
      %vm5729 = vcmp.eq.s32.totalorder %v5688, 1
      %vm5730 = vcmp.eq.s32.totalorder %v5689, 1
      %vm5731 = vcmp.eq.s32.totalorder %v5690, 1
      %vm5732 = vcmp.eq.s32.totalorder %v5691, 1
      %vm5733 = vcmp.eq.s32.totalorder %v5692, 1
      %vm5734 = vcmp.eq.s32.totalorder %v5693, 1
      %vm5735 = vcmp.eq.s32.totalorder %v5694, 1
      %vm5736 = vcmp.eq.s32.totalorder %v5695, 1
      %vm5737 = vcmp.eq.s32.totalorder %v5696, 1
      %vm5738 = vcmp.eq.s32.totalorder %v5697, 1
      %vm5739 = vcmp.eq.s32.totalorder %v5698, 1
      %vm5740 = vcmp.eq.s32.totalorder %v5699, 1
      %vm5741 = vcmp.eq.s32.totalorder %v5700, 1
      %vm5742 = vcmp.eq.s32.totalorder %v5701, 1
      %vm5743 = vcmp.eq.s32.totalorder %v5702, 1
      %vm5744 = vcmp.eq.s32.totalorder %v5703, 1
      %vm5745 = vcmp.eq.s32.totalorder %v5704, 1
      %vm5746 = vcmp.eq.s32.totalorder %v5705, 1
      %vm5747 = vcmp.eq.s32.totalorder %v5706, 1
      %vm5748 = vcmp.eq.s32.totalorder %v5707, 1
      %vm5749 = vcmp.eq.s32.totalorder %v5708, 1
      %vm5750 = vcmp.eq.s32.totalorder %v5709, 1
      %vm5751 = vcmp.eq.s32.totalorder %v5710, 1
      %vm5752 = vcmp.eq.s32.totalorder %v5711, 1
      %vm5753 = vcmp.eq.s32.totalorder %v5712, 1
      %vm5754 = vcmp.eq.s32.totalorder %v5713, 1
      %vm5755 = vcmp.eq.s32.totalorder %v5714, 1
      %v5756 = vsel %vm5715, %v5348, %v5592
      %v5757 = vsel %vm5716, %v5350, %v5593
      %v5758 = vsel %vm5717, %v5352, %v5594
      %v5759 = vsel %vm5718, %v5354, %v5595
      %v5760 = vsel %vm5719, %v5356, %v5596
      %v5761 = vsel %vm5720, %v5358, %v5597
      %v5762 = vsel %vm5721, %v5360, %v5598
      %v5763 = vsel %vm5722, %v5362, %v5599
      %v5764 = vsel %vm5723, %v5364, %v5600
      %v5765 = vsel %vm5724, %v5366, %v5601
      %v5766 = vsel %vm5725, %v5368, %v5602
      %v5767 = vsel %vm5726, %v5370, %v5603
      %v5768 = vsel %vm5727, %v5372, %v5604
      %v5769 = vsel %vm5728, %v5374, %v5605
      %v5770 = vsel %vm5729, %v5376, %v5606
      %v5771 = vsel %vm5730, %v5378, %v5607
      %v5772 = vsel %vm5731, %v5380, %v5608
      %v5773 = vsel %vm5732, %v5382, %v5609
      %v5774 = vsel %vm5733, %v5384, %v5610
      %v5775 = vsel %vm5734, %v5386, %v5611
      %v5776 = vsel %vm5735, %v5388, %v5612
      %v5777 = vsel %vm5736, %v5390, %v5613
      %v5778 = vsel %vm5737, %v5392, %v5614
      %v5779 = vsel %vm5738, %v5394, %v5615
      %v5780 = vsel %vm5739, %v5396, %v5616
      %v5781 = vsel %vm5740, %v5398, %v5617
      %v5782 = vsel %vm5741, %v5400, %v5618
      %v5783 = vsel %vm5742, %v5402, %v5619
      %v5784 = vsel %vm5743, %v5404, %v5620
      %v5785 = vsel %vm5744, %v5406, %v5621
      %v5786 = vsel %vm5745, %v5408, %v5622
      %v5787 = vsel %vm5746, %v5410, %v5623
      %v5788 = vsel %vm5747, %v5412, %v5624
      %v5789 = vsel %vm5748, %v5414, %v5625
      %v5790 = vsel %vm5749, %v5416, %v5626
      %v5791 = vsel %vm5750, %v5418, %v5627
      %v5792 = vsel %vm5751, %v5420, %v5628
      %v5793 = vsel %vm5752, %v5422, %v5629
      %v5794 = vsel %vm5753, %v5424, %v5630
      %v5795 = vsel %vm5754, %v5426, %v5631
      %v5796 = vsel %vm5755, %v5428, %v5632
      %vm5797 = vcmask 60416
      %5798 = vst.msk [vmem:[#allocation2] sm:$0xf] %vm5797, 0
      %vm5799 = vcmask 60418
      %5800 = vst.msk [vmem:[#allocation2 + $0xa4] sm:$0xc] %vm5799, 0
      %vm5801 = vcmask 58368
      %5802 = vst.msk [vmem:[#allocation2 + $0xa8] sm:$0x3] %vm5801, 0
      %v5803 = vpack.c.bf16 %v5757, %v5756
      %v5804 = vpack.c.bf16 %v5759, %v5758
      %v5805 = vpack.c.bf16 %v5761, %v5760
      %v5806 = vpack.c.bf16 %v5763, %v5762
      %v5807 = vpack.c.bf16 %v5765, %v5764
      %v5808 = vpack.c.bf16 %v5767, %v5766
      %v5809 = vpack.c.bf16 %v5769, %v5768
      %v5810 = vpack.c.bf16 %v5771, %v5770
      %v5811 = vpack.c.bf16 %v5773, %v5772
      %v5812 = vpack.c.bf16 %v5775, %v5774
      %v5813 = vpack.c.bf16 %v5777, %v5776
      %v5814 = vpack.c.bf16 %v5779, %v5778
      %v5815 = vpack.c.bf16 %v5781, %v5780
      %v5816 = vpack.c.bf16 %v5783, %v5782
      %v5817 = vpack.c.bf16 %v5785, %v5784
      %v5818 = vpack.c.bf16 %v5787, %v5786
      %v5819 = vpack.c.bf16 %v5789, %v5788
      %v5820 = vpack.c.bf16 %v5791, %v5790
      %v5821 = vpack.c.bf16 %v5793, %v5792
      %v5822 = vpack.c.bf16 %v5795, %v5794
      %v5823 = vpack.c.bf16 %v5796, %v5796
      %v5845 = vunpack.c.l.b16 %v5803
      %v5846 = vunpack.c.h.b16 %v5803
      %v5847 = vunpack.c.l.b16 %v5804
      %v5848 = vunpack.c.h.b16 %v5804
      %v5849 = vunpack.c.l.b16 %v5805
      %v5850 = vunpack.c.h.b16 %v5805
      %v5851 = vunpack.c.l.b16 %v5806
      %v5852 = vunpack.c.h.b16 %v5806
      %v5853 = vunpack.c.l.b16 %v5807
      %v5854 = vunpack.c.h.b16 %v5807
      %v5855 = vunpack.c.l.b16 %v5808
      %v5856 = vunpack.c.h.b16 %v5808
      %v5857 = vunpack.c.l.b16 %v5809
      %v5858 = vunpack.c.h.b16 %v5809
      %v5859 = vunpack.c.l.b16 %v5810
      %v5860 = vunpack.c.h.b16 %v5810
      %v5861 = vunpack.c.l.b16 %v5811
      %v5862 = vunpack.c.h.b16 %v5811
      %v5863 = vunpack.c.l.b16 %v5812
      %v5864 = vunpack.c.h.b16 %v5812
      %v5865 = vunpack.c.l.b16 %v5813
      %v5866 = vunpack.c.h.b16 %v5813
      %v5867 = vunpack.c.l.b16 %v5814
      %v5868 = vunpack.c.h.b16 %v5814
      %v5869 = vunpack.c.l.b16 %v5815
      %v5870 = vunpack.c.h.b16 %v5815
      %v5871 = vunpack.c.l.b16 %v5816
      %v5872 = vunpack.c.h.b16 %v5816
      %v5873 = vunpack.c.l.b16 %v5817
      %v5874 = vunpack.c.h.b16 %v5817
      %v5875 = vunpack.c.l.b16 %v5818
      %v5876 = vunpack.c.h.b16 %v5818
      %v5877 = vunpack.c.l.b16 %v5819
      %v5878 = vunpack.c.h.b16 %v5819
      %v5879 = vunpack.c.l.b16 %v5820
      %v5880 = vunpack.c.h.b16 %v5820
      %v5881 = vunpack.c.l.b16 %v5821
      %v5882 = vunpack.c.h.b16 %v5821
      %v5883 = vunpack.c.l.b16 %v5822
      %v5884 = vunpack.c.h.b16 %v5822
      %v5885 = vunpack.c.l.b16 %v5823
      %v5886 = vpack.c.b16 %v5845, %v5845
      %v5887 = vpack.c.b16 %v5846, %v5846
      %v5888 = vpack.c.b16 %v5847, %v5847
      %v5889 = vpack.c.b16 %v5848, %v5848
      %v5890 = vpack.c.b16 %v5849, %v5849
      %v5891 = vpack.c.b16 %v5850, %v5850
      %v5892 = vpack.c.b16 %v5851, %v5851
      %v5893 = vpack.c.b16 %v5852, %v5852
      %v5894 = vpack.c.b16 %v5853, %v5853
      %v5895 = vpack.c.b16 %v5854, %v5854
      %v5896 = vpack.c.b16 %v5855, %v5855
      %v5897 = vpack.c.b16 %v5856, %v5856
      %v5898 = vpack.c.b16 %v5857, %v5857
      %v5899 = vpack.c.b16 %v5858, %v5858
      %v5900 = vpack.c.b16 %v5859, %v5859
      %v5901 = vpack.c.b16 %v5860, %v5860
      %v5902 = vpack.c.b16 %v5861, %v5861
      %v5903 = vpack.c.b16 %v5862, %v5862
      %v5904 = vpack.c.b16 %v5863, %v5863
      %v5905 = vpack.c.b16 %v5864, %v5864
      %v5906 = vpack.c.b16 %v5865, %v5865
      %v5907 = vpack.c.b16 %v5866, %v5866
      %v5908 = vpack.c.b16 %v5867, %v5867
      %v5909 = vpack.c.b16 %v5868, %v5868
      %v5910 = vpack.c.b16 %v5869, %v5869
      %v5911 = vpack.c.b16 %v5870, %v5870
      %v5912 = vpack.c.b16 %v5871, %v5871
      %v5913 = vpack.c.b16 %v5872, %v5872
      %v5914 = vpack.c.b16 %v5873, %v5873
      %v5915 = vpack.c.b16 %v5874, %v5874
      %v5916 = vpack.c.b16 %v5875, %v5875
      %v5917 = vpack.c.b16 %v5876, %v5876
      %v5918 = vpack.c.b16 %v5877, %v5877
      %v5919 = vpack.c.b16 %v5878, %v5878
      %v5920 = vpack.c.b16 %v5879, %v5879
      %v5921 = vpack.c.b16 %v5880, %v5880
      %v5922 = vpack.c.b16 %v5881, %v5881
      %v5923 = vpack.c.b16 %v5882, %v5882
      %v5924 = vpack.c.b16 %v5883, %v5883
      %v5925 = vpack.c.b16 %v5884, %v5884
      %v5926 = vpack.c.b16 %v5885, %v5885
      %5968 = vst.msk [vmem:[#allocation2 + $0x4] sm:$0xf] %vm5797, %v5886
      %5969 = vst.msk [vmem:[#allocation2 + $0x8] sm:$0xf] %vm5797, %v5887
      %5970 = vst.msk [vmem:[#allocation2 + $0xc] sm:$0xf] %vm5797, %v5888
      %5971 = vst.msk [vmem:[#allocation2 + $0x10] sm:$0xf] %vm5797, %v5889
      %5972 = vst.msk [vmem:[#allocation2 + $0x14] sm:$0xf] %vm5797, %v5890
      %5973 = vst.msk [vmem:[#allocation2 + $0x18] sm:$0xf] %vm5797, %v5891
      %5974 = vst.msk [vmem:[#allocation2 + $0x1c] sm:$0xf] %vm5797, %v5892
      %5975 = vst.msk [vmem:[#allocation2 + $0x20] sm:$0xf] %vm5797, %v5893
      %5976 = vst.msk [vmem:[#allocation2 + $0x24] sm:$0xf] %vm5797, %v5894
      %5977 = vst.msk [vmem:[#allocation2 + $0x28] sm:$0xf] %vm5797, %v5895
      %5978 = vst.msk [vmem:[#allocation2 + $0x2c] sm:$0xf] %vm5797, %v5896
      %5979 = vst.msk [vmem:[#allocation2 + $0x30] sm:$0xf] %vm5797, %v5897
      %5980 = vst.msk [vmem:[#allocation2 + $0x34] sm:$0xf] %vm5797, %v5898
      %5981 = vst.msk [vmem:[#allocation2 + $0x38] sm:$0xf] %vm5797, %v5899
      %5982 = vst.msk [vmem:[#allocation2 + $0x3c] sm:$0xf] %vm5797, %v5900
      %5983 = vst.msk [vmem:[#allocation2 + $0x40] sm:$0xf] %vm5797, %v5901
      %5984 = vst.msk [vmem:[#allocation2 + $0x44] sm:$0xf] %vm5797, %v5902
      %5985 = vst.msk [vmem:[#allocation2 + $0x48] sm:$0xf] %vm5797, %v5903
      %5986 = vst.msk [vmem:[#allocation2 + $0x4c] sm:$0xf] %vm5797, %v5904
      %5987 = vst.msk [vmem:[#allocation2 + $0x50] sm:$0xf] %vm5797, %v5905
      %5988 = vst.msk [vmem:[#allocation2 + $0x54] sm:$0xf] %vm5797, %v5906
      %5989 = vst.msk [vmem:[#allocation2 + $0x58] sm:$0xf] %vm5797, %v5907
      %5990 = vst.msk [vmem:[#allocation2 + $0x5c] sm:$0xf] %vm5797, %v5908
      %5991 = vst.msk [vmem:[#allocation2 + $0x60] sm:$0xf] %vm5797, %v5909
      %5992 = vst.msk [vmem:[#allocation2 + $0x64] sm:$0xf] %vm5797, %v5910
      %5993 = vst.msk [vmem:[#allocation2 + $0x68] sm:$0xf] %vm5797, %v5911
      %5994 = vst.msk [vmem:[#allocation2 + $0x6c] sm:$0xf] %vm5797, %v5912
      %5995 = vst.msk [vmem:[#allocation2 + $0x70] sm:$0xf] %vm5797, %v5913
      %5996 = vst.msk [vmem:[#allocation2 + $0x74] sm:$0xf] %vm5797, %v5914
      %5997 = vst.msk [vmem:[#allocation2 + $0x78] sm:$0xf] %vm5797, %v5915
      %5998 = vst.msk [vmem:[#allocation2 + $0x7c] sm:$0xf] %vm5797, %v5916
      %5999 = vst.msk [vmem:[#allocation2 + $0x80] sm:$0xf] %vm5797, %v5917
      %6000 = vst.msk [vmem:[#allocation2 + $0x84] sm:$0xf] %vm5797, %v5918
      %6001 = vst.msk [vmem:[#allocation2 + $0x88] sm:$0xf] %vm5797, %v5919
      %6002 = vst.msk [vmem:[#allocation2 + $0x8c] sm:$0xf] %vm5797, %v5920
      %6003 = vst.msk [vmem:[#allocation2 + $0x90] sm:$0xf] %vm5797, %v5921
      %6004 = vst.msk [vmem:[#allocation2 + $0x94] sm:$0xf] %vm5797, %v5922
      %6005 = vst.msk [vmem:[#allocation2 + $0x98] sm:$0xf] %vm5797, %v5923
      %6006 = vst.msk [vmem:[#allocation2 + $0x9c] sm:$0xf] %vm5797, %v5924
      %6007 = vst.msk [vmem:[#allocation2 + $0xa0] sm:$0xf] %vm5797, %v5925
      %6008 = vst.msk [vmem:[#allocation2 + $0xa4] sm:$0x3] %vm5801, %v5926
      %p6009 = scmp.eq.s32.totalorder %s20, 0
      // Predicated region
      $region37: #{conv_block_forward.1} parent=35 // pred_check
        %p6010 = pneg %p6009
      $region38: #{conv_block_forward.1} parent=35 // pred_check_branch
        %6012 = sbr.rel (%p6010) target = $region40
      $region39: #{conv_block_forward.1} parent=35 // pred_region
        %v6013 = vld [vmem:[#allocation2 + $0x14] sm:$0xc]
        %v6014 = vld [vmem:[#allocation2 + $0x18] sm:$0xf]
        %v6015 = vld [vmem:[#allocation2 + $0x1c] sm:$0x7]
        %vm6019 = vcmask 1041408
        %vm6020 = vcmask 1045508
        %vm6021 = vmor %vm6019, %vm6020
        %v6022 = vrot.slane %v6013, 6
        %v6023 = vrot.slane %v6022, 4
        %v6024 = vrot.slane %v6014, 6
        %v6025 = vsel %vm6021, %v6023, %v6024
        %v6026 = vrot.slane %v6024, 4
        %v6027 = vrot.slane %v6015, 6
        %v6028 = vsel %vm6021, %v6026, %v6027
        %v6029 = vrot.slane %v6027, 4
        %6033 = vst.msk [vmem:[#allocation2 + $0x4] sm:$0xf] %vm5797, %v6025
        %6034 = vst.msk [vmem:[#allocation2 + $0x8] sm:$0xf] %vm5797, %v6028
        %vm6035 = vcmask 57344
        %6036 = vst.msk [vmem:[#allocation2 + $0xc] sm:$0x1] %vm6035, %v6029
        %v6037 = vld [vmem:[#allocation2 + $0x88] sm:$0x8]
        %v6038 = vld [vmem:[#allocation2 + $0x8c] sm:$0xf]
        %v6039 = vld [vmem:[#allocation2 + $0x90] sm:$0xf]
        %v6043 = vrot.slane %v6037, 6
        %v6044 = vrot.slane %v6043, 4
        %v6045 = vrot.slane %v6038, 6
        %v6046 = vsel %vm6021, %v6044, %v6045
        %v6047 = vrot.slane %v6045, 4
        %v6048 = vrot.slane %v6039, 6
        %v6049 = vsel %vm6021, %v6047, %v6048
        %v6050 = vrot.slane %v6048, 4
        %vm6054 = vcmask 60417
        %6055 = vst.msk [vmem:[#allocation2 + $0x9c] sm:$0xe] %vm6054, %v6046
        %6056 = vst.msk [vmem:[#allocation2 + $0xa0] sm:$0xf] %vm5797, %v6049
        %6057 = vst.msk [vmem:[#allocation2 + $0xa4] sm:$0x3] %vm5801, %v6050
      $region40: #{conv_block_forward.1} parent=35 // pred_fallthru
        _
      %v6058 = vld [vmem:[#allocation2] sm:$0x8]
      %v6059 = vld [vmem:[#allocation2 + $0x4] sm:$0xf]
      %v6060 = vld [vmem:[#allocation2 + $0x8] sm:$0xf]
      %v6061 = vld [vmem:[#allocation2 + $0xc] sm:$0xf]
      %v6062 = vld [vmem:[#allocation2 + $0x10] sm:$0xf]
      %v6063 = vld [vmem:[#allocation2 + $0x14] sm:$0xf]
      %v6064 = vld [vmem:[#allocation2 + $0x18] sm:$0xf]
      %v6065 = vld [vmem:[#allocation2 + $0x1c] sm:$0xf]
      %v6066 = vld [vmem:[#allocation2 + $0x20] sm:$0xf]
      %v6067 = vld [vmem:[#allocation2 + $0x24] sm:$0xf]
      %v6068 = vld [vmem:[#allocation2 + $0x28] sm:$0xf]
      %v6069 = vld [vmem:[#allocation2 + $0x2c] sm:$0xf]
      %v6070 = vld [vmem:[#allocation2 + $0x30] sm:$0xf]
      %v6071 = vld [vmem:[#allocation2 + $0x34] sm:$0xf]
      %v6072 = vld [vmem:[#allocation2 + $0x38] sm:$0xf]
      %v6073 = vld [vmem:[#allocation2 + $0x3c] sm:$0xf]
      %v6074 = vld [vmem:[#allocation2 + $0x40] sm:$0xf]
      %v6075 = vld [vmem:[#allocation2 + $0x44] sm:$0xf]
      %v6076 = vld [vmem:[#allocation2 + $0x48] sm:$0xf]
      %v6077 = vld [vmem:[#allocation2 + $0x4c] sm:$0xf]
      %v6078 = vld [vmem:[#allocation2 + $0x50] sm:$0xf]
      %v6079 = vld [vmem:[#allocation2 + $0x54] sm:$0xf]
      %v6080 = vld [vmem:[#allocation2 + $0x58] sm:$0xf]
      %v6081 = vld [vmem:[#allocation2 + $0x5c] sm:$0xf]
      %v6082 = vld [vmem:[#allocation2 + $0x60] sm:$0xf]
      %v6083 = vld [vmem:[#allocation2 + $0x64] sm:$0xf]
      %v6084 = vld [vmem:[#allocation2 + $0x68] sm:$0xf]
      %v6085 = vld [vmem:[#allocation2 + $0x6c] sm:$0xf]
      %v6086 = vld [vmem:[#allocation2 + $0x70] sm:$0xf]
      %v6087 = vld [vmem:[#allocation2 + $0x74] sm:$0xf]
      %v6088 = vld [vmem:[#allocation2 + $0x78] sm:$0xf]
      %v6089 = vld [vmem:[#allocation2 + $0x7c] sm:$0xf]
      %v6090 = vld [vmem:[#allocation2 + $0x80] sm:$0xf]
      %v6091 = vld [vmem:[#allocation2 + $0x84] sm:$0xf]
      %v6092 = vld [vmem:[#allocation2 + $0x88] sm:$0xf]
      %v6093 = vld [vmem:[#allocation2 + $0x8c] sm:$0xf]
      %v6094 = vld [vmem:[#allocation2 + $0x90] sm:$0xf]
      %v6095 = vld [vmem:[%s2] sm:$0xf]
      %s6096 = scalar_lea.vmem %s2, 4
      %v6097 = vld [vmem:[%s6096] sm:$0xf]
      %v6134 = vunpack.c.l.b16 %v6059
      %v6135 = vunpack.c.l.b16 %v6060
      %v6136 = vunpack.c.l.b16 %v6061
      %v6137 = vunpack.c.l.b16 %v6062
      %v6138 = vunpack.c.l.b16 %v6063
      %v6139 = vunpack.c.l.b16 %v6064
      %v6140 = vunpack.c.l.b16 %v6065
      %v6141 = vunpack.c.l.b16 %v6066
      %v6142 = vunpack.c.l.b16 %v6067
      %v6143 = vunpack.c.l.b16 %v6068
      %v6144 = vunpack.c.l.b16 %v6069
      %v6145 = vunpack.c.l.b16 %v6070
      %v6146 = vunpack.c.l.b16 %v6071
      %v6147 = vunpack.c.l.b16 %v6072
      %v6148 = vunpack.c.l.b16 %v6073
      %v6149 = vunpack.c.l.b16 %v6074
      %v6150 = vunpack.c.l.b16 %v6075
      %v6151 = vunpack.c.l.b16 %v6076
      %v6152 = vunpack.c.l.b16 %v6077
      %v6153 = vunpack.c.l.b16 %v6078
      %v6154 = vunpack.c.l.b16 %v6079
      %v6155 = vunpack.c.l.b16 %v6080
      %v6156 = vunpack.c.l.b16 %v6081
      %v6157 = vunpack.c.l.b16 %v6082
      %v6158 = vunpack.c.l.b16 %v6083
      %v6159 = vunpack.c.l.b16 %v6084
      %v6160 = vunpack.c.l.b16 %v6085
      %v6161 = vunpack.c.l.b16 %v6086
      %v6162 = vunpack.c.l.b16 %v6087
      %v6163 = vunpack.c.l.b16 %v6088
      %v6164 = vunpack.c.l.b16 %v6089
      %v6165 = vunpack.c.l.b16 %v6090
      %v6166 = vunpack.c.l.b16 %v6091
      %v6167 = vunpack.c.l.b16 %v6092
      %v6168 = vunpack.c.l.b16 %v6093
      %v6169 = vunpack.c.l.b16 %v6094
      %v6170 = vpack.c.b16 %v6135, %v6134
      %v6171 = vpack.c.b16 %v6137, %v6136
      %v6172 = vpack.c.b16 %v6139, %v6138
      %v6173 = vpack.c.b16 %v6141, %v6140
      %v6174 = vpack.c.b16 %v6143, %v6142
      %v6175 = vpack.c.b16 %v6145, %v6144
      %v6176 = vpack.c.b16 %v6147, %v6146
      %v6177 = vpack.c.b16 %v6149, %v6148
      %v6178 = vpack.c.b16 %v6151, %v6150
      %v6179 = vpack.c.b16 %v6153, %v6152
      %v6180 = vpack.c.b16 %v6155, %v6154
      %v6181 = vpack.c.b16 %v6157, %v6156
      %v6182 = vpack.c.b16 %v6159, %v6158
      %v6183 = vpack.c.b16 %v6161, %v6160
      %v6184 = vpack.c.b16 %v6163, %v6162
      %v6185 = vpack.c.b16 %v6165, %v6164
      %v6186 = vpack.c.b16 %v6167, %v6166
      %v6187 = vpack.c.b16 %v6169, %v6168
      %vm6188 = vcmask 64512
      %v6190 = vsel %vm6188, %v6170, 0
      %v6193 = vsel %vm6188, %v6171, 0
      %v6196 = vsel %vm6188, %v6172, 0
      %v6199 = vsel %vm6188, %v6173, 0
      %v6202 = vsel %vm6188, %v6174, 0
      %v6205 = vsel %vm6188, %v6175, 0
      %v6208 = vsel %vm6188, %v6176, 0
      %v6211 = vsel %vm6188, %v6177, 0
      %v6214 = vsel %vm6188, %v6178, 0
      %v6217 = vsel %vm6188, %v6179, 0
      %v6220 = vsel %vm6188, %v6180, 0
      %v6223 = vsel %vm6188, %v6181, 0
      %v6226 = vsel %vm6188, %v6182, 0
      %v6229 = vsel %vm6188, %v6183, 0
      %v6232 = vsel %vm6188, %v6184, 0
      %v6235 = vsel %vm6188, %v6185, 0
      %v6238 = vsel %vm6188, %v6186, 0
      %v6241 = vsel %vm6188, %v6187, 0
      %vm6243 = vcmask 1043456
      %v6245 = vsel %vm6243, %v6097, 0
      %6247 = vmatprep.subr.bf16.mxu0 0
      %6248 = vmatpush1.bf16.msra.mxu0 %v6245
      %6249 = vmatprep.subr.bf16.mxu0 0
      %6250 = vmatpush1.bf16.msra.mxu0 0
      %6251 = vmatprep.subr.bf16.mxu0 0
      %6252 = vmatpush1.bf16.msra.mxu0 0
      %6253 = vmatprep.subr.bf16.mxu0 0
      %6254 = vmatpush1.bf16.msra.mxu0 0
      %6255 = vmatprep.subr.bf16.mxu0 0
      %6256 = vmatpush1.bf16.msra.mxu0 0
      %6257 = vmatprep.subr.bf16.mxu0 0
      %6258 = vmatpush1.bf16.msra.mxu0 0
      %6259 = vmatprep.subr.bf16.mxu0 0
      %6260 = vmatpush1.bf16.msra.mxu0 0
      %6261 = vmatprep.subr.bf16.mxu0 0
      %6262 = vmatpush1.bf16.msra.mxu0 0
      %6263 = vmatprep.subr.bf16.mxu0 0
      %6264 = vmatpush1.bf16.msra.mxu0 0
      %6265 = vmatprep.subr.bf16.mxu0 0
      %6266 = vmatpush1.bf16.msra.mxu0 0
      %6267 = vmatprep.subr.bf16.mxu0 0
      %6268 = vmatpush1.bf16.msra.mxu0 0
      %6269 = vmatprep.subr.bf16.mxu0 0
      %6270 = vmatpush1.bf16.msra.mxu0 0
      %6271 = vmatprep.subr.bf16.mxu0 0
      %6272 = vmatpush1.bf16.msra.mxu0 0
      %6273 = vmatprep.subr.bf16.mxu0 0
      %6274 = vmatpush1.bf16.msra.mxu0 0
      %6275 = vmatprep.subr.bf16.mxu0 0
      %6276 = vmatpush1.bf16.msra.mxu0 0
      %6277 = vmatprep.subr.bf16.mxu0 0
      %6278 = vmatpush1.bf16.msra.mxu0 0
      %6279 = vmatprep.mubr.bf16.mxu0 0
      %6280 = vmatmul.mubr.bf16.gmra.mrb[0].mxu0 %v6190
      %v6281 = vpop.f32.mrb[0].mxu0
      %v6282 = vadd.f32 0.0, %v6281
      %v6283 = vpop.f32.mrb[0].mxu0
      %v6284 = vpop.f32.mrb[0].mxu0
      %v6285 = vadd.f32 0.0, %v6284
      %v6286 = vpop.f32.mrb[0].mxu0
      %6287 = vmatprep.mubr.bf16.mxu0 0
      %6288 = vmatmul.mubr.bf16.gmra.mrb[0].mxu0 %v6193
      %v6289 = vpop.f32.mrb[0].mxu0
      %v6290 = vadd.f32 0.0, %v6289
      %v6291 = vpop.f32.mrb[0].mxu0
      %v6292 = vpop.f32.mrb[0].mxu0
      %v6293 = vadd.f32 0.0, %v6292
      %v6294 = vpop.f32.mrb[0].mxu0
      %6295 = vmatprep.mubr.bf16.mxu0 0
      %6296 = vmatmul.mubr.bf16.gmra.mrb[0].mxu0 %v6196
      %v6297 = vpop.f32.mrb[0].mxu0
      %v6298 = vadd.f32 0.0, %v6297
      %v6299 = vpop.f32.mrb[0].mxu0
      %v6300 = vpop.f32.mrb[0].mxu0
      %v6301 = vadd.f32 0.0, %v6300
      %v6302 = vpop.f32.mrb[0].mxu0
      %6303 = vmatprep.mubr.bf16.mxu0 0
      %6304 = vmatmul.mubr.bf16.gmra.mrb[0].mxu0 %v6199
      %v6305 = vpop.f32.mrb[0].mxu0
      %v6306 = vadd.f32 0.0, %v6305
      %v6307 = vpop.f32.mrb[0].mxu0
      %v6308 = vpop.f32.mrb[0].mxu0
      %v6309 = vadd.f32 0.0, %v6308
      %v6310 = vpop.f32.mrb[0].mxu0
      %6311 = vmatprep.mubr.bf16.mxu0 0
      %6312 = vmatmul.mubr.bf16.gmra.mrb[0].mxu0 %v6202
      %v6313 = vpop.f32.mrb[0].mxu0
      %v6314 = vadd.f32 0.0, %v6313
      %v6315 = vpop.f32.mrb[0].mxu0
      %v6316 = vpop.f32.mrb[0].mxu0
      %v6317 = vadd.f32 0.0, %v6316
      %v6318 = vpop.f32.mrb[0].mxu0
      %6319 = vmatprep.mubr.bf16.mxu0 0
      %6320 = vmatmul.mubr.bf16.gmra.mrb[0].mxu0 %v6205
      %v6321 = vpop.f32.mrb[0].mxu0
      %v6322 = vadd.f32 0.0, %v6321
      %v6323 = vpop.f32.mrb[0].mxu0
      %v6324 = vpop.f32.mrb[0].mxu0
      %v6325 = vadd.f32 0.0, %v6324
      %v6326 = vpop.f32.mrb[0].mxu0
      %6327 = vmatprep.mubr.bf16.mxu0 0
      %6328 = vmatmul.mubr.bf16.gmra.mrb[0].mxu0 %v6208
      %v6329 = vpop.f32.mrb[0].mxu0
      %v6330 = vadd.f32 0.0, %v6329
      %v6331 = vpop.f32.mrb[0].mxu0
      %v6332 = vpop.f32.mrb[0].mxu0
      %v6333 = vadd.f32 0.0, %v6332
      %v6334 = vpop.f32.mrb[0].mxu0
      %6335 = vmatprep.mubr.bf16.mxu0 0
      %6336 = vmatmul.mubr.bf16.gmra.mrb[0].mxu0 %v6211
      %v6337 = vpop.f32.mrb[0].mxu0
      %v6338 = vadd.f32 0.0, %v6337
      %v6339 = vpop.f32.mrb[0].mxu0
      %v6340 = vpop.f32.mrb[0].mxu0
      %v6341 = vadd.f32 0.0, %v6340
      %v6342 = vpop.f32.mrb[0].mxu0
      %6343 = vmatprep.mubr.bf16.mxu0 0
      %6344 = vmatmul.mubr.bf16.gmra.mrb[0].mxu0 %v6214
      %v6345 = vpop.f32.mrb[0].mxu0
      %v6346 = vadd.f32 0.0, %v6345
      %v6347 = vpop.f32.mrb[0].mxu0
      %v6348 = vpop.f32.mrb[0].mxu0
      %v6349 = vadd.f32 0.0, %v6348
      %v6350 = vpop.f32.mrb[0].mxu0
      %6351 = vmatprep.mubr.bf16.mxu0 0
      %6352 = vmatmul.mubr.bf16.gmra.mrb[0].mxu0 %v6217
      %v6353 = vpop.f32.mrb[0].mxu0
      %v6354 = vadd.f32 0.0, %v6353
      %v6355 = vpop.f32.mrb[0].mxu0
      %v6356 = vpop.f32.mrb[0].mxu0
      %v6357 = vadd.f32 0.0, %v6356
      %v6358 = vpop.f32.mrb[0].mxu0
      %6359 = vmatprep.mubr.bf16.mxu0 0
      %6360 = vmatmul.mubr.bf16.gmra.mrb[0].mxu0 %v6220
      %v6361 = vpop.f32.mrb[0].mxu0
      %v6362 = vadd.f32 0.0, %v6361
      %v6363 = vpop.f32.mrb[0].mxu0
      %v6364 = vpop.f32.mrb[0].mxu0
      %v6365 = vadd.f32 0.0, %v6364
      %v6366 = vpop.f32.mrb[0].mxu0
      %6367 = vmatprep.mubr.bf16.mxu0 0
      %6368 = vmatmul.mubr.bf16.gmra.mrb[0].mxu0 %v6223
      %v6369 = vpop.f32.mrb[0].mxu0
      %v6370 = vadd.f32 0.0, %v6369
      %v6371 = vpop.f32.mrb[0].mxu0
      %v6372 = vpop.f32.mrb[0].mxu0
      %v6373 = vadd.f32 0.0, %v6372
      %v6374 = vpop.f32.mrb[0].mxu0
      %6375 = vmatprep.mubr.bf16.mxu0 0
      %6376 = vmatmul.mubr.bf16.gmra.mrb[0].mxu0 %v6226
      %v6377 = vpop.f32.mrb[0].mxu0
      %v6378 = vadd.f32 0.0, %v6377
      %v6379 = vpop.f32.mrb[0].mxu0
      %v6380 = vpop.f32.mrb[0].mxu0
      %v6381 = vadd.f32 0.0, %v6380
      %v6382 = vpop.f32.mrb[0].mxu0
      %6383 = vmatprep.mubr.bf16.mxu0 0
      %6384 = vmatmul.mubr.bf16.gmra.mrb[0].mxu0 %v6229
      %v6385 = vpop.f32.mrb[0].mxu0
      %v6386 = vadd.f32 0.0, %v6385
      %v6387 = vpop.f32.mrb[0].mxu0
      %v6388 = vpop.f32.mrb[0].mxu0
      %v6389 = vadd.f32 0.0, %v6388
      %v6390 = vpop.f32.mrb[0].mxu0
      %6391 = vmatprep.mubr.bf16.mxu0 0
      %6392 = vmatmul.mubr.bf16.gmra.mrb[0].mxu0 %v6232
      %v6393 = vpop.f32.mrb[0].mxu0
      %v6394 = vadd.f32 0.0, %v6393
      %v6395 = vpop.f32.mrb[0].mxu0
      %v6396 = vpop.f32.mrb[0].mxu0
      %v6397 = vadd.f32 0.0, %v6396
      %v6398 = vpop.f32.mrb[0].mxu0
      %6399 = vmatprep.mubr.bf16.mxu0 0
      %6400 = vmatmul.mubr.bf16.gmra.mrb[0].mxu0 %v6235
      %v6401 = vpop.f32.mrb[0].mxu0
      %v6402 = vadd.f32 0.0, %v6401
      %v6403 = vpop.f32.mrb[0].mxu0
      %v6404 = vpop.f32.mrb[0].mxu0
      %v6405 = vadd.f32 0.0, %v6404
      %v6406 = vpop.f32.mrb[0].mxu0
      %6407 = vmatprep.mubr.bf16.mxu0 0
      %6408 = vmatmul.mubr.bf16.gmra.mrb[0].mxu0 %v6238
      %v6409 = vpop.f32.mrb[0].mxu0
      %v6410 = vadd.f32 0.0, %v6409
      %v6411 = vpop.f32.mrb[0].mxu0
      %v6412 = vpop.f32.mrb[0].mxu0
      %v6413 = vadd.f32 0.0, %v6412
      %v6414 = vpop.f32.mrb[0].mxu0
      %6415 = vmatprep.mubr.bf16.mxu0 0
      %6416 = vmatmul.mubr.bf16.gmra.mrb[0].mxu0 %v6241
      %v6417 = vpop.f32.mrb[0].mxu0
      %v6418 = vadd.f32 0.0, %v6417
      %v6419 = vpop.f32.mrb[0].mxu0
      %v6420 = vpop.f32.mrb[0].mxu0
      %v6421 = vadd.f32 0.0, %v6420
      %v6422 = vpop.f32.mrb[0].mxu0
      %6423 = vdwg.mxu0
      %v6425 = vunpack.c.l.b16 %v6058
      %v6426 = vpack.c.b16 %v6134, %v6425
      %v6427 = vpack.c.b16 %v6136, %v6135
      %v6428 = vpack.c.b16 %v6138, %v6137
      %v6429 = vpack.c.b16 %v6140, %v6139
      %v6430 = vpack.c.b16 %v6142, %v6141
      %v6431 = vpack.c.b16 %v6144, %v6143
      %v6432 = vpack.c.b16 %v6146, %v6145
      %v6433 = vpack.c.b16 %v6148, %v6147
      %v6434 = vpack.c.b16 %v6150, %v6149
      %v6435 = vpack.c.b16 %v6152, %v6151
      %v6436 = vpack.c.b16 %v6154, %v6153
      %v6437 = vpack.c.b16 %v6156, %v6155
      %v6438 = vpack.c.b16 %v6158, %v6157
      %v6439 = vpack.c.b16 %v6160, %v6159
      %v6440 = vpack.c.b16 %v6162, %v6161
      %v6441 = vpack.c.b16 %v6164, %v6163
      %v6442 = vpack.c.b16 %v6166, %v6165
      %v6443 = vpack.c.b16 %v6168, %v6167
      %v6444 = vpack.c.b16 %v6169, %v6169
      %vm6445 = vsmask.f32 4352
      %v6447 = vshrl.u32 %v6426, 16
      %v6449 = vrot.slane %v6447, 3
      %v6450 = vshll.u32 %v6426, 16
      %v6452 = vrot.slane %v6450, 4
      %v6453 = vor.u32 %v6449, %v6452
      %v6455 = vshrl.u32 %v6427, 16
      %v6457 = vrot.slane %v6455, 3
      %v6458 = vshll.u32 %v6427, 16
      %v6460 = vrot.slane %v6458, 4
      %v6461 = vor.u32 %v6457, %v6460
      %v6462 = vsel %vm6445, %v6453, %v6461
      %v6464 = vshrl.u32 %v6428, 16
      %v6466 = vrot.slane %v6464, 3
      %v6467 = vshll.u32 %v6428, 16
      %v6469 = vrot.slane %v6467, 4
      %v6470 = vor.u32 %v6466, %v6469
      %v6471 = vsel %vm6445, %v6461, %v6470
      %v6473 = vshrl.u32 %v6429, 16
      %v6475 = vrot.slane %v6473, 3
      %v6476 = vshll.u32 %v6429, 16
      %v6478 = vrot.slane %v6476, 4
      %v6479 = vor.u32 %v6475, %v6478
      %v6480 = vsel %vm6445, %v6470, %v6479
      %v6482 = vshrl.u32 %v6430, 16
      %v6484 = vrot.slane %v6482, 3
      %v6485 = vshll.u32 %v6430, 16
      %v6487 = vrot.slane %v6485, 4
      %v6488 = vor.u32 %v6484, %v6487
      %v6489 = vsel %vm6445, %v6479, %v6488
      %v6491 = vshrl.u32 %v6431, 16
      %v6493 = vrot.slane %v6491, 3
      %v6494 = vshll.u32 %v6431, 16
      %v6496 = vrot.slane %v6494, 4
      %v6497 = vor.u32 %v6493, %v6496
      %v6498 = vsel %vm6445, %v6488, %v6497
      %v6500 = vshrl.u32 %v6432, 16
      %v6502 = vrot.slane %v6500, 3
      %v6503 = vshll.u32 %v6432, 16
      %v6505 = vrot.slane %v6503, 4
      %v6506 = vor.u32 %v6502, %v6505
      %v6507 = vsel %vm6445, %v6497, %v6506
      %v6509 = vshrl.u32 %v6433, 16
      %v6511 = vrot.slane %v6509, 3
      %v6512 = vshll.u32 %v6433, 16
      %v6514 = vrot.slane %v6512, 4
      %v6515 = vor.u32 %v6511, %v6514
      %v6516 = vsel %vm6445, %v6506, %v6515
      %v6518 = vshrl.u32 %v6434, 16
      %v6520 = vrot.slane %v6518, 3
      %v6521 = vshll.u32 %v6434, 16
      %v6523 = vrot.slane %v6521, 4
      %v6524 = vor.u32 %v6520, %v6523
      %v6525 = vsel %vm6445, %v6515, %v6524
      %v6527 = vshrl.u32 %v6435, 16
      %v6529 = vrot.slane %v6527, 3
      %v6530 = vshll.u32 %v6435, 16
      %v6532 = vrot.slane %v6530, 4
      %v6533 = vor.u32 %v6529, %v6532
      %v6534 = vsel %vm6445, %v6524, %v6533
      %v6536 = vshrl.u32 %v6436, 16
      %v6538 = vrot.slane %v6536, 3
      %v6539 = vshll.u32 %v6436, 16
      %v6541 = vrot.slane %v6539, 4
      %v6542 = vor.u32 %v6538, %v6541
      %v6543 = vsel %vm6445, %v6533, %v6542
      %v6545 = vshrl.u32 %v6437, 16
      %v6547 = vrot.slane %v6545, 3
      %v6548 = vshll.u32 %v6437, 16
      %v6550 = vrot.slane %v6548, 4
      %v6551 = vor.u32 %v6547, %v6550
      %v6552 = vsel %vm6445, %v6542, %v6551
      %v6554 = vshrl.u32 %v6438, 16
      %v6556 = vrot.slane %v6554, 3
      %v6557 = vshll.u32 %v6438, 16
      %v6559 = vrot.slane %v6557, 4
      %v6560 = vor.u32 %v6556, %v6559
      %v6561 = vsel %vm6445, %v6551, %v6560
      %v6563 = vshrl.u32 %v6439, 16
      %v6565 = vrot.slane %v6563, 3
      %v6566 = vshll.u32 %v6439, 16
      %v6568 = vrot.slane %v6566, 4
      %v6569 = vor.u32 %v6565, %v6568
      %v6570 = vsel %vm6445, %v6560, %v6569
      %v6572 = vshrl.u32 %v6440, 16
      %v6574 = vrot.slane %v6572, 3
      %v6575 = vshll.u32 %v6440, 16
      %v6577 = vrot.slane %v6575, 4
      %v6578 = vor.u32 %v6574, %v6577
      %v6579 = vsel %vm6445, %v6569, %v6578
      %v6581 = vshrl.u32 %v6441, 16
      %v6583 = vrot.slane %v6581, 3
      %v6584 = vshll.u32 %v6441, 16
      %v6586 = vrot.slane %v6584, 4
      %v6587 = vor.u32 %v6583, %v6586
      %v6588 = vsel %vm6445, %v6578, %v6587
      %v6590 = vshrl.u32 %v6442, 16
      %v6592 = vrot.slane %v6590, 3
      %v6593 = vshll.u32 %v6442, 16
      %v6595 = vrot.slane %v6593, 4
      %v6596 = vor.u32 %v6592, %v6595
      %v6597 = vsel %vm6445, %v6587, %v6596
      %v6599 = vshrl.u32 %v6443, 16
      %v6601 = vrot.slane %v6599, 3
      %v6602 = vshll.u32 %v6443, 16
      %v6604 = vrot.slane %v6602, 4
      %v6605 = vor.u32 %v6601, %v6604
      %v6606 = vsel %vm6445, %v6596, %v6605
      %v6608 = vshrl.u32 %v6444, 16
      %v6610 = vrot.slane %v6608, 3
      %v6611 = vshll.u32 %v6444, 16
      %v6613 = vrot.slane %v6611, 4
      %v6614 = vor.u32 %v6610, %v6613
      %v6615 = vsel %vm6445, %v6605, %v6614
      %v6617 = vsel %vm6188, %v6462, 0
      %v6620 = vsel %vm6188, %v6471, 0
      %v6623 = vsel %vm6188, %v6480, 0
      %v6626 = vsel %vm6188, %v6489, 0
      %v6629 = vsel %vm6188, %v6498, 0
      %v6632 = vsel %vm6188, %v6507, 0
      %v6635 = vsel %vm6188, %v6516, 0
      %v6638 = vsel %vm6188, %v6525, 0
      %v6641 = vsel %vm6188, %v6534, 0
      %v6644 = vsel %vm6188, %v6543, 0
      %v6647 = vsel %vm6188, %v6552, 0
      %v6650 = vsel %vm6188, %v6561, 0
      %v6653 = vsel %vm6188, %v6570, 0
      %v6656 = vsel %vm6188, %v6579, 0
      %v6659 = vsel %vm6188, %v6588, 0
      %v6662 = vsel %vm6188, %v6597, 0
      %v6665 = vsel %vm6188, %v6606, 0
      %v6668 = vsel %vm6188, %v6615, 0
      %v6671 = vsel %vm6243, %v6095, 0
      %6673 = vmatprep.subr.bf16.mxu0 0
      %6674 = vmatpush1.bf16.msra.mxu0 %v6671
      %6675 = vmatprep.subr.bf16.mxu0 0
      %6676 = vmatpush1.bf16.msra.mxu0 0
      %6677 = vmatprep.subr.bf16.mxu0 0
      %6678 = vmatpush1.bf16.msra.mxu0 0
      %6679 = vmatprep.subr.bf16.mxu0 0
      %6680 = vmatpush1.bf16.msra.mxu0 0
      %6681 = vmatprep.subr.bf16.mxu0 0
      %6682 = vmatpush1.bf16.msra.mxu0 0
      %6683 = vmatprep.subr.bf16.mxu0 0
      %6684 = vmatpush1.bf16.msra.mxu0 0
      %6685 = vmatprep.subr.bf16.mxu0 0
      %6686 = vmatpush1.bf16.msra.mxu0 0
      %6687 = vmatprep.subr.bf16.mxu0 0
      %6688 = vmatpush1.bf16.msra.mxu0 0
      %6689 = vmatprep.subr.bf16.mxu0 0
      %6690 = vmatpush1.bf16.msra.mxu0 0
      %6691 = vmatprep.subr.bf16.mxu0 0
      %6692 = vmatpush1.bf16.msra.mxu0 0
      %6693 = vmatprep.subr.bf16.mxu0 0
      %6694 = vmatpush1.bf16.msra.mxu0 0
      %6695 = vmatprep.subr.bf16.mxu0 0
      %6696 = vmatpush1.bf16.msra.mxu0 0
      %6697 = vmatprep.subr.bf16.mxu0 0
      %6698 = vmatpush1.bf16.msra.mxu0 0
      %6699 = vmatprep.subr.bf16.mxu0 0
      %6700 = vmatpush1.bf16.msra.mxu0 0
      %6701 = vmatprep.subr.bf16.mxu0 0
      %6702 = vmatpush1.bf16.msra.mxu0 0
      %6703 = vmatprep.subr.bf16.mxu0 0
      %6704 = vmatpush1.bf16.msra.mxu0 0
      %6705 = vmatprep.mubr.bf16.mxu0 0
      %6706 = vmatmul.mubr.bf16.gmra.mrb[0].mxu0 %v6617
      %v6707 = vpop.f32.mrb[0].mxu0
      %v6708 = vadd.f32 %v6282, %v6707
      %v6709 = vpop.f32.mrb[0].mxu0
      %v6710 = vpop.f32.mrb[0].mxu0
      %v6711 = vadd.f32 %v6285, %v6710
      %v6712 = vpop.f32.mrb[0].mxu0
      %6713 = vmatprep.mubr.bf16.mxu0 0
      %6714 = vmatmul.mubr.bf16.gmra.mrb[0].mxu0 %v6620
      %v6715 = vpop.f32.mrb[0].mxu0
      %v6716 = vadd.f32 %v6290, %v6715
      %v6717 = vpop.f32.mrb[0].mxu0
      %v6718 = vpop.f32.mrb[0].mxu0
      %v6719 = vadd.f32 %v6293, %v6718
      %v6720 = vpop.f32.mrb[0].mxu0
      %6721 = vmatprep.mubr.bf16.mxu0 0
      %6722 = vmatmul.mubr.bf16.gmra.mrb[0].mxu0 %v6623
      %v6723 = vpop.f32.mrb[0].mxu0
      %v6724 = vadd.f32 %v6298, %v6723
      %v6725 = vpop.f32.mrb[0].mxu0
      %v6726 = vpop.f32.mrb[0].mxu0
      %v6727 = vadd.f32 %v6301, %v6726
      %v6728 = vpop.f32.mrb[0].mxu0
      %6729 = vmatprep.mubr.bf16.mxu0 0
      %6730 = vmatmul.mubr.bf16.gmra.mrb[0].mxu0 %v6626
      %v6731 = vpop.f32.mrb[0].mxu0
      %v6732 = vadd.f32 %v6306, %v6731
      %v6733 = vpop.f32.mrb[0].mxu0
      %v6734 = vpop.f32.mrb[0].mxu0
      %v6735 = vadd.f32 %v6309, %v6734
      %v6736 = vpop.f32.mrb[0].mxu0
      %6737 = vmatprep.mubr.bf16.mxu0 0
      %6738 = vmatmul.mubr.bf16.gmra.mrb[0].mxu0 %v6629
      %v6739 = vpop.f32.mrb[0].mxu0
      %v6740 = vadd.f32 %v6314, %v6739
      %v6741 = vpop.f32.mrb[0].mxu0
      %v6742 = vpop.f32.mrb[0].mxu0
      %v6743 = vadd.f32 %v6317, %v6742
      %v6744 = vpop.f32.mrb[0].mxu0
      %6745 = vmatprep.mubr.bf16.mxu0 0
      %6746 = vmatmul.mubr.bf16.gmra.mrb[0].mxu0 %v6632
      %v6747 = vpop.f32.mrb[0].mxu0
      %v6748 = vadd.f32 %v6322, %v6747
      %v6749 = vpop.f32.mrb[0].mxu0
      %v6750 = vpop.f32.mrb[0].mxu0
      %v6751 = vadd.f32 %v6325, %v6750
      %v6752 = vpop.f32.mrb[0].mxu0
      %6753 = vmatprep.mubr.bf16.mxu0 0
      %6754 = vmatmul.mubr.bf16.gmra.mrb[0].mxu0 %v6635
      %v6755 = vpop.f32.mrb[0].mxu0
      %v6756 = vadd.f32 %v6330, %v6755
      %v6757 = vpop.f32.mrb[0].mxu0
      %v6758 = vpop.f32.mrb[0].mxu0
      %v6759 = vadd.f32 %v6333, %v6758
      %v6760 = vpop.f32.mrb[0].mxu0
      %6761 = vmatprep.mubr.bf16.mxu0 0
      %6762 = vmatmul.mubr.bf16.gmra.mrb[0].mxu0 %v6638
      %v6763 = vpop.f32.mrb[0].mxu0
      %v6764 = vadd.f32 %v6338, %v6763
      %v6765 = vpop.f32.mrb[0].mxu0
      %v6766 = vpop.f32.mrb[0].mxu0
      %v6767 = vadd.f32 %v6341, %v6766
      %v6768 = vpop.f32.mrb[0].mxu0
      %6769 = vmatprep.mubr.bf16.mxu0 0
      %6770 = vmatmul.mubr.bf16.gmra.mrb[0].mxu0 %v6641
      %v6771 = vpop.f32.mrb[0].mxu0
      %v6772 = vadd.f32 %v6346, %v6771
      %v6773 = vpop.f32.mrb[0].mxu0
      %v6774 = vpop.f32.mrb[0].mxu0
      %v6775 = vadd.f32 %v6349, %v6774
      %v6776 = vpop.f32.mrb[0].mxu0
      %6777 = vmatprep.mubr.bf16.mxu0 0
      %6778 = vmatmul.mubr.bf16.gmra.mrb[0].mxu0 %v6644
      %v6779 = vpop.f32.mrb[0].mxu0
      %v6780 = vadd.f32 %v6354, %v6779
      %v6781 = vpop.f32.mrb[0].mxu0
      %v6782 = vpop.f32.mrb[0].mxu0
      %v6783 = vadd.f32 %v6357, %v6782
      %v6784 = vpop.f32.mrb[0].mxu0
      %6785 = vmatprep.mubr.bf16.mxu0 0
      %6786 = vmatmul.mubr.bf16.gmra.mrb[0].mxu0 %v6647
      %v6787 = vpop.f32.mrb[0].mxu0
      %v6788 = vadd.f32 %v6362, %v6787
      %v6789 = vpop.f32.mrb[0].mxu0
      %v6790 = vpop.f32.mrb[0].mxu0
      %v6791 = vadd.f32 %v6365, %v6790
      %v6792 = vpop.f32.mrb[0].mxu0
      %6793 = vmatprep.mubr.bf16.mxu0 0
      %6794 = vmatmul.mubr.bf16.gmra.mrb[0].mxu0 %v6650
      %v6795 = vpop.f32.mrb[0].mxu0
      %v6796 = vadd.f32 %v6370, %v6795
      %v6797 = vpop.f32.mrb[0].mxu0
      %v6798 = vpop.f32.mrb[0].mxu0
      %v6799 = vadd.f32 %v6373, %v6798
      %v6800 = vpop.f32.mrb[0].mxu0
      %6801 = vmatprep.mubr.bf16.mxu0 0
      %6802 = vmatmul.mubr.bf16.gmra.mrb[0].mxu0 %v6653
      %v6803 = vpop.f32.mrb[0].mxu0
      %v6804 = vadd.f32 %v6378, %v6803
      %v6805 = vpop.f32.mrb[0].mxu0
      %v6806 = vpop.f32.mrb[0].mxu0
      %v6807 = vadd.f32 %v6381, %v6806
      %v6808 = vpop.f32.mrb[0].mxu0
      %6809 = vmatprep.mubr.bf16.mxu0 0
      %6810 = vmatmul.mubr.bf16.gmra.mrb[0].mxu0 %v6656
      %v6811 = vpop.f32.mrb[0].mxu0
      %v6812 = vadd.f32 %v6386, %v6811
      %v6813 = vpop.f32.mrb[0].mxu0
      %v6814 = vpop.f32.mrb[0].mxu0
      %v6815 = vadd.f32 %v6389, %v6814
      %v6816 = vpop.f32.mrb[0].mxu0
      %6817 = vmatprep.mubr.bf16.mxu0 0
      %6818 = vmatmul.mubr.bf16.gmra.mrb[0].mxu0 %v6659
      %v6819 = vpop.f32.mrb[0].mxu0
      %v6820 = vadd.f32 %v6394, %v6819
      %v6821 = vpop.f32.mrb[0].mxu0
      %v6822 = vpop.f32.mrb[0].mxu0
      %v6823 = vadd.f32 %v6397, %v6822
      %v6824 = vpop.f32.mrb[0].mxu0
      %6825 = vmatprep.mubr.bf16.mxu0 0
      %6826 = vmatmul.mubr.bf16.gmra.mrb[0].mxu0 %v6662
      %v6827 = vpop.f32.mrb[0].mxu0
      %v6828 = vadd.f32 %v6402, %v6827
      %v6829 = vpop.f32.mrb[0].mxu0
      %v6830 = vpop.f32.mrb[0].mxu0
      %v6831 = vadd.f32 %v6405, %v6830
      %v6832 = vpop.f32.mrb[0].mxu0
      %6833 = vmatprep.mubr.bf16.mxu0 0
      %6834 = vmatmul.mubr.bf16.gmra.mrb[0].mxu0 %v6665
      %v6835 = vpop.f32.mrb[0].mxu0
      %v6836 = vadd.f32 %v6410, %v6835
      %v6837 = vpop.f32.mrb[0].mxu0
      %v6838 = vpop.f32.mrb[0].mxu0
      %v6839 = vadd.f32 %v6413, %v6838
      %v6840 = vpop.f32.mrb[0].mxu0
      %6841 = vmatprep.mubr.bf16.mxu0 0
      %6842 = vmatmul.mubr.bf16.gmra.mrb[0].mxu0 %v6668
      %v6843 = vpop.f32.mrb[0].mxu0
      %v6844 = vadd.f32 %v6418, %v6843
      %v6845 = vpop.f32.mrb[0].mxu0
      %v6846 = vpop.f32.mrb[0].mxu0
      %v6847 = vadd.f32 %v6421, %v6846
      %v6848 = vpop.f32.mrb[0].mxu0
      %6849 = vdwg.mxu0
      %v6850 = vld [vmem:[#allocation2 + $0x4] sm:$0xf]
      %v6851 = vld [vmem:[#allocation2 + $0x8] sm:$0xf]
      %v6852 = vld [vmem:[#allocation2 + $0xc] sm:$0xf]
      %v6853 = vld [vmem:[#allocation2 + $0x10] sm:$0xf]
      %v6854 = vld [vmem:[#allocation2 + $0x14] sm:$0xf]
      %v6855 = vld [vmem:[#allocation2 + $0x18] sm:$0xf]
      %v6856 = vld [vmem:[#allocation2 + $0x1c] sm:$0xf]
      %v6857 = vld [vmem:[#allocation2 + $0x20] sm:$0xf]
      %v6858 = vld [vmem:[#allocation2 + $0x24] sm:$0xf]
      %v6859 = vld [vmem:[#allocation2 + $0x28] sm:$0xf]
      %v6860 = vld [vmem:[#allocation2 + $0x2c] sm:$0xf]
      %v6861 = vld [vmem:[#allocation2 + $0x30] sm:$0xf]
      %v6862 = vld [vmem:[#allocation2 + $0x34] sm:$0xf]
      %v6863 = vld [vmem:[#allocation2 + $0x38] sm:$0xf]
      %v6864 = vld [vmem:[#allocation2 + $0x3c] sm:$0xf]
      %v6865 = vld [vmem:[#allocation2 + $0x40] sm:$0xf]
      %v6866 = vld [vmem:[#allocation2 + $0x44] sm:$0xf]
      %v6867 = vld [vmem:[#allocation2 + $0x48] sm:$0xf]
      %v6868 = vld [vmem:[#allocation2 + $0x4c] sm:$0xf]
      %v6869 = vld [vmem:[#allocation2 + $0x50] sm:$0xf]
      %v6870 = vld [vmem:[#allocation2 + $0x54] sm:$0xf]
      %v6871 = vld [vmem:[#allocation2 + $0x58] sm:$0xf]
      %v6872 = vld [vmem:[#allocation2 + $0x5c] sm:$0xf]
      %v6873 = vld [vmem:[#allocation2 + $0x60] sm:$0xf]
      %v6874 = vld [vmem:[#allocation2 + $0x64] sm:$0xf]
      %v6875 = vld [vmem:[#allocation2 + $0x68] sm:$0xf]
      %v6876 = vld [vmem:[#allocation2 + $0x6c] sm:$0xf]
      %v6877 = vld [vmem:[#allocation2 + $0x70] sm:$0xf]
      %v6878 = vld [vmem:[#allocation2 + $0x74] sm:$0xf]
      %v6879 = vld [vmem:[#allocation2 + $0x78] sm:$0xf]
      %v6880 = vld [vmem:[#allocation2 + $0x7c] sm:$0xf]
      %v6881 = vld [vmem:[#allocation2 + $0x80] sm:$0xf]
      %v6882 = vld [vmem:[#allocation2 + $0x84] sm:$0xf]
      %v6883 = vld [vmem:[#allocation2 + $0x88] sm:$0xf]
      %v6884 = vld [vmem:[#allocation2 + $0x8c] sm:$0xf]
      %v6885 = vld [vmem:[#allocation2 + $0x90] sm:$0xf]
      %v6886 = vld [vmem:[#allocation2 + $0x94] sm:$0x1]
      %s6887 = scalar_lea.vmem %s2, 8
      %v6888 = vld [vmem:[%s6887] sm:$0xf]
      %v6926 = vunpack.c.l.b16 %v6850
      %v6927 = vunpack.c.l.b16 %v6851
      %v6928 = vunpack.c.l.b16 %v6852
      %v6929 = vunpack.c.l.b16 %v6853
      %v6930 = vunpack.c.l.b16 %v6854
      %v6931 = vunpack.c.l.b16 %v6855
      %v6932 = vunpack.c.l.b16 %v6856
      %v6933 = vunpack.c.l.b16 %v6857
      %v6934 = vunpack.c.l.b16 %v6858
      %v6935 = vunpack.c.l.b16 %v6859
      %v6936 = vunpack.c.l.b16 %v6860
      %v6937 = vunpack.c.l.b16 %v6861
      %v6938 = vunpack.c.l.b16 %v6862
      %v6939 = vunpack.c.l.b16 %v6863
      %v6940 = vunpack.c.l.b16 %v6864
      %v6941 = vunpack.c.l.b16 %v6865
      %v6942 = vunpack.c.l.b16 %v6866
      %v6943 = vunpack.c.l.b16 %v6867
      %v6944 = vunpack.c.l.b16 %v6868
      %v6945 = vunpack.c.l.b16 %v6869
      %v6946 = vunpack.c.l.b16 %v6870
      %v6947 = vunpack.c.l.b16 %v6871
      %v6948 = vunpack.c.l.b16 %v6872
      %v6949 = vunpack.c.l.b16 %v6873
      %v6950 = vunpack.c.l.b16 %v6874
      %v6951 = vunpack.c.l.b16 %v6875
      %v6952 = vunpack.c.l.b16 %v6876
      %v6953 = vunpack.c.l.b16 %v6877
      %v6954 = vunpack.c.l.b16 %v6878
      %v6955 = vunpack.c.l.b16 %v6879
      %v6956 = vunpack.c.l.b16 %v6880
      %v6957 = vunpack.c.l.b16 %v6881
      %v6958 = vunpack.c.l.b16 %v6882
      %v6959 = vunpack.c.l.b16 %v6883
      %v6960 = vunpack.c.l.b16 %v6884
      %v6961 = vunpack.c.l.b16 %v6885
      %v6962 = vunpack.c.l.b16 %v6886
      %v6963 = vpack.c.b16 %v6927, %v6926
      %v6964 = vpack.c.b16 %v6929, %v6928
      %v6965 = vpack.c.b16 %v6931, %v6930
      %v6966 = vpack.c.b16 %v6933, %v6932
      %v6967 = vpack.c.b16 %v6935, %v6934
      %v6968 = vpack.c.b16 %v6937, %v6936
      %v6969 = vpack.c.b16 %v6939, %v6938
      %v6970 = vpack.c.b16 %v6941, %v6940
      %v6971 = vpack.c.b16 %v6943, %v6942
      %v6972 = vpack.c.b16 %v6945, %v6944
      %v6973 = vpack.c.b16 %v6947, %v6946
      %v6974 = vpack.c.b16 %v6949, %v6948
      %v6975 = vpack.c.b16 %v6951, %v6950
      %v6976 = vpack.c.b16 %v6953, %v6952
      %v6977 = vpack.c.b16 %v6955, %v6954
      %v6978 = vpack.c.b16 %v6957, %v6956
      %v6979 = vpack.c.b16 %v6959, %v6958
      %v6980 = vpack.c.b16 %v6961, %v6960
      %v6981 = vpack.c.b16 %v6962, %v6962
      %v6983 = vshrl.u32 %v6963, 16
      %v6985 = vshll.u32 %v6963, 16
      %v6987 = vrot.slane %v6985, 1
      %v6988 = vor.u32 %v6983, %v6987
      %v6990 = vshll.u32 %v6964, 16
      %v6992 = vrot.slane %v6990, 1
      %v6993 = vsel %vm384, %v6988, %v6992
      %v6994 = vshrl.u32 %v6964, 16
      %v6996 = vor.u32 %v6994, %v6992
      %v6998 = vshll.u32 %v6965, 16
      %v7000 = vrot.slane %v6998, 1
      %v7001 = vsel %vm384, %v6996, %v7000
      %v7002 = vshrl.u32 %v6965, 16
      %v7004 = vor.u32 %v7002, %v7000
      %v7006 = vshll.u32 %v6966, 16
      %v7008 = vrot.slane %v7006, 1
      %v7009 = vsel %vm384, %v7004, %v7008
      %v7010 = vshrl.u32 %v6966, 16
      %v7012 = vor.u32 %v7010, %v7008
      %v7014 = vshll.u32 %v6967, 16
      %v7016 = vrot.slane %v7014, 1
      %v7017 = vsel %vm384, %v7012, %v7016
      %v7018 = vshrl.u32 %v6967, 16
      %v7020 = vor.u32 %v7018, %v7016
      %v7022 = vshll.u32 %v6968, 16
      %v7024 = vrot.slane %v7022, 1
      %v7025 = vsel %vm384, %v7020, %v7024
      %v7026 = vshrl.u32 %v6968, 16
      %v7028 = vor.u32 %v7026, %v7024
      %v7030 = vshll.u32 %v6969, 16
      %v7032 = vrot.slane %v7030, 1
      %v7033 = vsel %vm384, %v7028, %v7032
      %v7034 = vshrl.u32 %v6969, 16
      %v7036 = vor.u32 %v7034, %v7032
      %v7038 = vshll.u32 %v6970, 16
      %v7040 = vrot.slane %v7038, 1
      %v7041 = vsel %vm384, %v7036, %v7040
      %v7042 = vshrl.u32 %v6970, 16
      %v7044 = vor.u32 %v7042, %v7040
      %v7046 = vshll.u32 %v6971, 16
      %v7048 = vrot.slane %v7046, 1
      %v7049 = vsel %vm384, %v7044, %v7048
      %v7050 = vshrl.u32 %v6971, 16
      %v7052 = vor.u32 %v7050, %v7048
      %v7054 = vshll.u32 %v6972, 16
      %v7056 = vrot.slane %v7054, 1
      %v7057 = vsel %vm384, %v7052, %v7056
      %v7058 = vshrl.u32 %v6972, 16
      %v7060 = vor.u32 %v7058, %v7056
      %v7062 = vshll.u32 %v6973, 16
      %v7064 = vrot.slane %v7062, 1
      %v7065 = vsel %vm384, %v7060, %v7064
      %v7066 = vshrl.u32 %v6973, 16
      %v7068 = vor.u32 %v7066, %v7064
      %v7070 = vshll.u32 %v6974, 16
      %v7072 = vrot.slane %v7070, 1
      %v7073 = vsel %vm384, %v7068, %v7072
      %v7074 = vshrl.u32 %v6974, 16
      %v7076 = vor.u32 %v7074, %v7072
      %v7078 = vshll.u32 %v6975, 16
      %v7080 = vrot.slane %v7078, 1
      %v7081 = vsel %vm384, %v7076, %v7080
      %v7082 = vshrl.u32 %v6975, 16
      %v7084 = vor.u32 %v7082, %v7080
      %v7086 = vshll.u32 %v6976, 16
      %v7088 = vrot.slane %v7086, 1
      %v7089 = vsel %vm384, %v7084, %v7088
      %v7090 = vshrl.u32 %v6976, 16
      %v7092 = vor.u32 %v7090, %v7088
      %v7094 = vshll.u32 %v6977, 16
      %v7096 = vrot.slane %v7094, 1
      %v7097 = vsel %vm384, %v7092, %v7096
      %v7098 = vshrl.u32 %v6977, 16
      %v7100 = vor.u32 %v7098, %v7096
      %v7102 = vshll.u32 %v6978, 16
      %v7104 = vrot.slane %v7102, 1
      %v7105 = vsel %vm384, %v7100, %v7104
      %v7106 = vshrl.u32 %v6978, 16
      %v7108 = vor.u32 %v7106, %v7104
      %v7110 = vshll.u32 %v6979, 16
      %v7112 = vrot.slane %v7110, 1
      %v7113 = vsel %vm384, %v7108, %v7112
      %v7114 = vshrl.u32 %v6979, 16
      %v7116 = vor.u32 %v7114, %v7112
      %v7118 = vshll.u32 %v6980, 16
      %v7120 = vrot.slane %v7118, 1
      %v7121 = vsel %vm384, %v7116, %v7120
      %v7122 = vshrl.u32 %v6980, 16
      %v7124 = vor.u32 %v7122, %v7120
      %v7126 = vshll.u32 %v6981, 16
      %v7128 = vrot.slane %v7126, 1
      %v7129 = vsel %vm384, %v7124, %v7128
      %v7131 = vsel %vm6188, %v6993, 0
      %v7134 = vsel %vm6188, %v7001, 0
      %v7137 = vsel %vm6188, %v7009, 0
      %v7140 = vsel %vm6188, %v7017, 0
      %v7143 = vsel %vm6188, %v7025, 0
      %v7146 = vsel %vm6188, %v7033, 0
      %v7149 = vsel %vm6188, %v7041, 0
      %v7152 = vsel %vm6188, %v7049, 0
      %v7155 = vsel %vm6188, %v7057, 0
      %v7158 = vsel %vm6188, %v7065, 0
      %v7161 = vsel %vm6188, %v7073, 0
      %v7164 = vsel %vm6188, %v7081, 0
      %v7167 = vsel %vm6188, %v7089, 0
      %v7170 = vsel %vm6188, %v7097, 0
      %v7173 = vsel %vm6188, %v7105, 0
      %v7176 = vsel %vm6188, %v7113, 0
      %v7179 = vsel %vm6188, %v7121, 0
      %v7182 = vsel %vm6188, %v7129, 0
      %v7185 = vsel %vm6243, %v6888, 0
      %7187 = vmatprep.subr.bf16.mxu0 0
      %7188 = vmatpush1.bf16.msra.mxu0 %v7185
      %7189 = vmatprep.subr.bf16.mxu0 0
      %7190 = vmatpush1.bf16.msra.mxu0 0
      %7191 = vmatprep.subr.bf16.mxu0 0
      %7192 = vmatpush1.bf16.msra.mxu0 0
      %7193 = vmatprep.subr.bf16.mxu0 0
      %7194 = vmatpush1.bf16.msra.mxu0 0
      %7195 = vmatprep.subr.bf16.mxu0 0
      %7196 = vmatpush1.bf16.msra.mxu0 0
      %7197 = vmatprep.subr.bf16.mxu0 0
      %7198 = vmatpush1.bf16.msra.mxu0 0
      %7199 = vmatprep.subr.bf16.mxu0 0
      %7200 = vmatpush1.bf16.msra.mxu0 0
      %7201 = vmatprep.subr.bf16.mxu0 0
      %7202 = vmatpush1.bf16.msra.mxu0 0
      %7203 = vmatprep.subr.bf16.mxu0 0
      %7204 = vmatpush1.bf16.msra.mxu0 0
      %7205 = vmatprep.subr.bf16.mxu0 0
      %7206 = vmatpush1.bf16.msra.mxu0 0
      %7207 = vmatprep.subr.bf16.mxu0 0
      %7208 = vmatpush1.bf16.msra.mxu0 0
      %7209 = vmatprep.subr.bf16.mxu0 0
      %7210 = vmatpush1.bf16.msra.mxu0 0
      %7211 = vmatprep.subr.bf16.mxu0 0
      %7212 = vmatpush1.bf16.msra.mxu0 0
      %7213 = vmatprep.subr.bf16.mxu0 0
      %7214 = vmatpush1.bf16.msra.mxu0 0
      %7215 = vmatprep.subr.bf16.mxu0 0
      %7216 = vmatpush1.bf16.msra.mxu0 0
      %7217 = vmatprep.subr.bf16.mxu0 0
      %7218 = vmatpush1.bf16.msra.mxu0 0
      %7219 = vmatprep.mubr.bf16.mxu0 0
      %7220 = vmatmul.mubr.bf16.gmra.mrb[0].mxu0 %v7131
      %v7221 = vpop.f32.mrb[0].mxu0
      %v7222 = vadd.f32 0.0, %v7221
      %v7223 = vpop.f32.mrb[0].mxu0
      %v7224 = vpop.f32.mrb[0].mxu0
      %v7225 = vadd.f32 0.0, %v7224
      %v7226 = vpop.f32.mrb[0].mxu0
      %7227 = vmatprep.mubr.bf16.mxu0 0
      %7228 = vmatmul.mubr.bf16.gmra.mrb[0].mxu0 %v7134
      %v7229 = vpop.f32.mrb[0].mxu0
      %v7230 = vadd.f32 0.0, %v7229
      %v7231 = vpop.f32.mrb[0].mxu0
      %v7232 = vpop.f32.mrb[0].mxu0
      %v7233 = vadd.f32 0.0, %v7232
      %v7234 = vpop.f32.mrb[0].mxu0
      %7235 = vmatprep.mubr.bf16.mxu0 0
      %7236 = vmatmul.mubr.bf16.gmra.mrb[0].mxu0 %v7137
      %v7237 = vpop.f32.mrb[0].mxu0
      %v7238 = vadd.f32 0.0, %v7237
      %v7239 = vpop.f32.mrb[0].mxu0
      %v7240 = vpop.f32.mrb[0].mxu0
      %v7241 = vadd.f32 0.0, %v7240
      %v7242 = vpop.f32.mrb[0].mxu0
      %7243 = vmatprep.mubr.bf16.mxu0 0
      %7244 = vmatmul.mubr.bf16.gmra.mrb[0].mxu0 %v7140
      %v7245 = vpop.f32.mrb[0].mxu0
      %v7246 = vadd.f32 0.0, %v7245
      %v7247 = vpop.f32.mrb[0].mxu0
      %v7248 = vpop.f32.mrb[0].mxu0
      %v7249 = vadd.f32 0.0, %v7248
      %v7250 = vpop.f32.mrb[0].mxu0
      %7251 = vmatprep.mubr.bf16.mxu0 0
      %7252 = vmatmul.mubr.bf16.gmra.mrb[0].mxu0 %v7143
      %v7253 = vpop.f32.mrb[0].mxu0
      %v7254 = vadd.f32 0.0, %v7253
      %v7255 = vpop.f32.mrb[0].mxu0
      %v7256 = vpop.f32.mrb[0].mxu0
      %v7257 = vadd.f32 0.0, %v7256
      %v7258 = vpop.f32.mrb[0].mxu0
      %7259 = vmatprep.mubr.bf16.mxu0 0
      %7260 = vmatmul.mubr.bf16.gmra.mrb[0].mxu0 %v7146
      %v7261 = vpop.f32.mrb[0].mxu0
      %v7262 = vadd.f32 0.0, %v7261
      %v7263 = vpop.f32.mrb[0].mxu0
      %v7264 = vpop.f32.mrb[0].mxu0
      %v7265 = vadd.f32 0.0, %v7264
      %v7266 = vpop.f32.mrb[0].mxu0
      %7267 = vmatprep.mubr.bf16.mxu0 0
      %7268 = vmatmul.mubr.bf16.gmra.mrb[0].mxu0 %v7149
      %v7269 = vpop.f32.mrb[0].mxu0
      %v7270 = vadd.f32 0.0, %v7269
      %v7271 = vpop.f32.mrb[0].mxu0
      %v7272 = vpop.f32.mrb[0].mxu0
      %v7273 = vadd.f32 0.0, %v7272
      %v7274 = vpop.f32.mrb[0].mxu0
      %7275 = vmatprep.mubr.bf16.mxu0 0
      %7276 = vmatmul.mubr.bf16.gmra.mrb[0].mxu0 %v7152
      %v7277 = vpop.f32.mrb[0].mxu0
      %v7278 = vadd.f32 0.0, %v7277
      %v7279 = vpop.f32.mrb[0].mxu0
      %v7280 = vpop.f32.mrb[0].mxu0
      %v7281 = vadd.f32 0.0, %v7280
      %v7282 = vpop.f32.mrb[0].mxu0
      %7283 = vmatprep.mubr.bf16.mxu0 0
      %7284 = vmatmul.mubr.bf16.gmra.mrb[0].mxu0 %v7155
      %v7285 = vpop.f32.mrb[0].mxu0
      %v7286 = vadd.f32 0.0, %v7285
      %v7287 = vpop.f32.mrb[0].mxu0
      %v7288 = vpop.f32.mrb[0].mxu0
      %v7289 = vadd.f32 0.0, %v7288
      %v7290 = vpop.f32.mrb[0].mxu0
      %7291 = vmatprep.mubr.bf16.mxu0 0
      %7292 = vmatmul.mubr.bf16.gmra.mrb[0].mxu0 %v7158
      %v7293 = vpop.f32.mrb[0].mxu0
      %v7294 = vadd.f32 0.0, %v7293
      %v7295 = vpop.f32.mrb[0].mxu0
      %v7296 = vpop.f32.mrb[0].mxu0
      %v7297 = vadd.f32 0.0, %v7296
      %v7298 = vpop.f32.mrb[0].mxu0
      %7299 = vmatprep.mubr.bf16.mxu0 0
      %7300 = vmatmul.mubr.bf16.gmra.mrb[0].mxu0 %v7161
      %v7301 = vpop.f32.mrb[0].mxu0
      %v7302 = vadd.f32 0.0, %v7301
      %v7303 = vpop.f32.mrb[0].mxu0
      %v7304 = vpop.f32.mrb[0].mxu0
      %v7305 = vadd.f32 0.0, %v7304
      %v7306 = vpop.f32.mrb[0].mxu0
      %7307 = vmatprep.mubr.bf16.mxu0 0
      %7308 = vmatmul.mubr.bf16.gmra.mrb[0].mxu0 %v7164
      %v7309 = vpop.f32.mrb[0].mxu0
      %v7310 = vadd.f32 0.0, %v7309
      %v7311 = vpop.f32.mrb[0].mxu0
      %v7312 = vpop.f32.mrb[0].mxu0
      %v7313 = vadd.f32 0.0, %v7312
      %v7314 = vpop.f32.mrb[0].mxu0
      %7315 = vmatprep.mubr.bf16.mxu0 0
      %7316 = vmatmul.mubr.bf16.gmra.mrb[0].mxu0 %v7167
      %v7317 = vpop.f32.mrb[0].mxu0
      %v7318 = vadd.f32 0.0, %v7317
      %v7319 = vpop.f32.mrb[0].mxu0
      %v7320 = vpop.f32.mrb[0].mxu0
      %v7321 = vadd.f32 0.0, %v7320
      %v7322 = vpop.f32.mrb[0].mxu0
      %7323 = vmatprep.mubr.bf16.mxu0 0
      %7324 = vmatmul.mubr.bf16.gmra.mrb[0].mxu0 %v7170
      %v7325 = vpop.f32.mrb[0].mxu0
      %v7326 = vadd.f32 0.0, %v7325
      %v7327 = vpop.f32.mrb[0].mxu0
      %v7328 = vpop.f32.mrb[0].mxu0
      %v7329 = vadd.f32 0.0, %v7328
      %v7330 = vpop.f32.mrb[0].mxu0
      %7331 = vmatprep.mubr.bf16.mxu0 0
      %7332 = vmatmul.mubr.bf16.gmra.mrb[0].mxu0 %v7173
      %v7333 = vpop.f32.mrb[0].mxu0
      %v7334 = vadd.f32 0.0, %v7333
      %v7335 = vpop.f32.mrb[0].mxu0
      %v7336 = vpop.f32.mrb[0].mxu0
      %v7337 = vadd.f32 0.0, %v7336
      %v7338 = vpop.f32.mrb[0].mxu0
      %7339 = vmatprep.mubr.bf16.mxu0 0
      %7340 = vmatmul.mubr.bf16.gmra.mrb[0].mxu0 %v7176
      %v7341 = vpop.f32.mrb[0].mxu0
      %v7342 = vadd.f32 0.0, %v7341
      %v7343 = vpop.f32.mrb[0].mxu0
      %v7344 = vpop.f32.mrb[0].mxu0
      %v7345 = vadd.f32 0.0, %v7344
      %v7346 = vpop.f32.mrb[0].mxu0
      %7347 = vmatprep.mubr.bf16.mxu0 0
      %7348 = vmatmul.mubr.bf16.gmra.mrb[0].mxu0 %v7179
      %v7349 = vpop.f32.mrb[0].mxu0
      %v7350 = vadd.f32 0.0, %v7349
      %v7351 = vpop.f32.mrb[0].mxu0
      %v7352 = vpop.f32.mrb[0].mxu0
      %v7353 = vadd.f32 0.0, %v7352
      %v7354 = vpop.f32.mrb[0].mxu0
      %7355 = vmatprep.mubr.bf16.mxu0 0
      %7356 = vmatmul.mubr.bf16.gmra.mrb[0].mxu0 %v7182
      %v7357 = vpop.f32.mrb[0].mxu0
      %v7358 = vadd.f32 0.0, %v7357
      %v7359 = vpop.f32.mrb[0].mxu0
      %v7360 = vpop.f32.mrb[0].mxu0
      %v7361 = vadd.f32 0.0, %v7360
      %v7362 = vpop.f32.mrb[0].mxu0
      %7363 = vdwg.mxu0
      %v7364 = vadd.f32 %v6708, %v7222
      %v7365 = vadd.f32 %v6711, %v7225
      %v7366 = vadd.f32 %v6716, %v7230
      %v7367 = vadd.f32 %v6719, %v7233
      %v7368 = vadd.f32 %v6724, %v7238
      %v7369 = vadd.f32 %v6727, %v7241
      %v7370 = vadd.f32 %v6732, %v7246
      %v7371 = vadd.f32 %v6735, %v7249
      %v7372 = vadd.f32 %v6740, %v7254
      %v7373 = vadd.f32 %v6743, %v7257
      %v7374 = vadd.f32 %v6748, %v7262
      %v7375 = vadd.f32 %v6751, %v7265
      %v7376 = vadd.f32 %v6756, %v7270
      %v7377 = vadd.f32 %v6759, %v7273
      %v7378 = vadd.f32 %v6764, %v7278
      %v7379 = vadd.f32 %v6767, %v7281
      %v7380 = vadd.f32 %v6772, %v7286
      %v7381 = vadd.f32 %v6775, %v7289
      %v7382 = vadd.f32 %v6780, %v7294
      %v7383 = vadd.f32 %v6783, %v7297
      %v7384 = vadd.f32 %v6788, %v7302
      %v7385 = vadd.f32 %v6791, %v7305
      %v7386 = vadd.f32 %v6796, %v7310
      %v7387 = vadd.f32 %v6799, %v7313
      %v7388 = vadd.f32 %v6804, %v7318
      %v7389 = vadd.f32 %v6807, %v7321
      %v7390 = vadd.f32 %v6812, %v7326
      %v7391 = vadd.f32 %v6815, %v7329
      %v7392 = vadd.f32 %v6820, %v7334
      %v7393 = vadd.f32 %v6823, %v7337
      %v7394 = vadd.f32 %v6828, %v7342
      %v7395 = vadd.f32 %v6831, %v7345
      %v7396 = vadd.f32 %v6836, %v7350
      %v7397 = vadd.f32 %v6839, %v7353
      %v7398 = vadd.f32 %v6844, %v7358
      %v7399 = vadd.f32 %v6847, %v7361
      %v7400 = vld [vmem:[#allocation2 + $0xc] sm:$0xf]
      %v7401 = vld [vmem:[#allocation2 + $0x10] sm:$0xf]
      %v7402 = vld [vmem:[#allocation2 + $0x14] sm:$0xf]
      %v7403 = vld [vmem:[#allocation2 + $0x18] sm:$0xf]
      %v7404 = vld [vmem:[#allocation2 + $0x1c] sm:$0xf]
      %v7405 = vld [vmem:[#allocation2 + $0x20] sm:$0xf]
      %v7406 = vld [vmem:[#allocation2 + $0x24] sm:$0xf]
      %v7407 = vld [vmem:[#allocation2 + $0x28] sm:$0xf]
      %v7408 = vld [vmem:[#allocation2 + $0x2c] sm:$0xf]
      %v7409 = vld [vmem:[#allocation2 + $0x30] sm:$0xf]
      %v7410 = vld [vmem:[#allocation2 + $0x34] sm:$0xf]
      %v7411 = vld [vmem:[#allocation2 + $0x38] sm:$0xf]
      %v7412 = vld [vmem:[#allocation2 + $0x3c] sm:$0xf]
      %v7413 = vld [vmem:[#allocation2 + $0x40] sm:$0xf]
      %v7414 = vld [vmem:[#allocation2 + $0x44] sm:$0xf]
      %v7415 = vld [vmem:[#allocation2 + $0x48] sm:$0xf]
      %v7416 = vld [vmem:[#allocation2 + $0x4c] sm:$0xf]
      %v7417 = vld [vmem:[#allocation2 + $0x50] sm:$0xf]
      %v7418 = vld [vmem:[#allocation2 + $0x54] sm:$0xf]
      %v7419 = vld [vmem:[#allocation2 + $0x58] sm:$0xf]
      %v7420 = vld [vmem:[#allocation2 + $0x5c] sm:$0xf]
      %v7421 = vld [vmem:[#allocation2 + $0x60] sm:$0xf]
      %v7422 = vld [vmem:[#allocation2 + $0x64] sm:$0xf]
      %v7423 = vld [vmem:[#allocation2 + $0x68] sm:$0xf]
      %v7424 = vld [vmem:[#allocation2 + $0x6c] sm:$0xf]
      %v7425 = vld [vmem:[#allocation2 + $0x70] sm:$0xf]
      %v7426 = vld [vmem:[#allocation2 + $0x74] sm:$0xf]
      %v7427 = vld [vmem:[#allocation2 + $0x78] sm:$0xf]
      %v7428 = vld [vmem:[#allocation2 + $0x7c] sm:$0xf]
      %v7429 = vld [vmem:[#allocation2 + $0x80] sm:$0xf]
      %v7430 = vld [vmem:[#allocation2 + $0x84] sm:$0xf]
      %v7431 = vld [vmem:[#allocation2 + $0x88] sm:$0xf]
      %v7432 = vld [vmem:[#allocation2 + $0x8c] sm:$0xf]
      %v7433 = vld [vmem:[#allocation2 + $0x90] sm:$0xf]
      %v7434 = vld [vmem:[#allocation2 + $0x94] sm:$0xf]
      %v7435 = vld [vmem:[#allocation2 + $0x98] sm:$0xf]
      %v7436 = vld [vmem:[#allocation2 + $0x9c] sm:$0x1]
      %s7437 = scalar_lea.vmem %s2, 12
      %v7438 = vld [vmem:[%s7437] sm:$0xf]
      %v7476 = vunpack.c.l.b16 %v7400
      %v7477 = vunpack.c.l.b16 %v7401
      %v7478 = vunpack.c.l.b16 %v7402
      %v7479 = vunpack.c.l.b16 %v7403
      %v7480 = vunpack.c.l.b16 %v7404
      %v7481 = vunpack.c.l.b16 %v7405
      %v7482 = vunpack.c.l.b16 %v7406
      %v7483 = vunpack.c.l.b16 %v7407
      %v7484 = vunpack.c.l.b16 %v7408
      %v7485 = vunpack.c.l.b16 %v7409
      %v7486 = vunpack.c.l.b16 %v7410
      %v7487 = vunpack.c.l.b16 %v7411
      %v7488 = vunpack.c.l.b16 %v7412
      %v7489 = vunpack.c.l.b16 %v7413
      %v7490 = vunpack.c.l.b16 %v7414
      %v7491 = vunpack.c.l.b16 %v7415
      %v7492 = vunpack.c.l.b16 %v7416
      %v7493 = vunpack.c.l.b16 %v7417
      %v7494 = vunpack.c.l.b16 %v7418
      %v7495 = vunpack.c.l.b16 %v7419
      %v7496 = vunpack.c.l.b16 %v7420
      %v7497 = vunpack.c.l.b16 %v7421
      %v7498 = vunpack.c.l.b16 %v7422
      %v7499 = vunpack.c.l.b16 %v7423
      %v7500 = vunpack.c.l.b16 %v7424
      %v7501 = vunpack.c.l.b16 %v7425
      %v7502 = vunpack.c.l.b16 %v7426
      %v7503 = vunpack.c.l.b16 %v7427
      %v7504 = vunpack.c.l.b16 %v7428
      %v7505 = vunpack.c.l.b16 %v7429
      %v7506 = vunpack.c.l.b16 %v7430
      %v7507 = vunpack.c.l.b16 %v7431
      %v7508 = vunpack.c.l.b16 %v7432
      %v7509 = vunpack.c.l.b16 %v7433
      %v7510 = vunpack.c.l.b16 %v7434
      %v7511 = vunpack.c.l.b16 %v7435
      %v7512 = vunpack.c.l.b16 %v7436
      %v7513 = vpack.c.b16 %v7477, %v7476
      %v7514 = vpack.c.b16 %v7479, %v7478
      %v7515 = vpack.c.b16 %v7481, %v7480
      %v7516 = vpack.c.b16 %v7483, %v7482
      %v7517 = vpack.c.b16 %v7485, %v7484
      %v7518 = vpack.c.b16 %v7487, %v7486
      %v7519 = vpack.c.b16 %v7489, %v7488
      %v7520 = vpack.c.b16 %v7491, %v7490
      %v7521 = vpack.c.b16 %v7493, %v7492
      %v7522 = vpack.c.b16 %v7495, %v7494
      %v7523 = vpack.c.b16 %v7497, %v7496
      %v7524 = vpack.c.b16 %v7499, %v7498
      %v7525 = vpack.c.b16 %v7501, %v7500
      %v7526 = vpack.c.b16 %v7503, %v7502
      %v7527 = vpack.c.b16 %v7505, %v7504
      %v7528 = vpack.c.b16 %v7507, %v7506
      %v7529 = vpack.c.b16 %v7509, %v7508
      %v7530 = vpack.c.b16 %v7511, %v7510
      %v7531 = vpack.c.b16 %v7512, %v7512
      %v7533 = vshrl.u32 %v7513, 16
      %v7535 = vshll.u32 %v7513, 16
      %v7537 = vrot.slane %v7535, 1
      %v7538 = vor.u32 %v7533, %v7537
      %v7540 = vshll.u32 %v7514, 16
      %v7542 = vrot.slane %v7540, 1
      %v7543 = vsel %vm384, %v7538, %v7542
      %v7544 = vshrl.u32 %v7514, 16
      %v7546 = vor.u32 %v7544, %v7542
      %v7548 = vshll.u32 %v7515, 16
      %v7550 = vrot.slane %v7548, 1
      %v7551 = vsel %vm384, %v7546, %v7550
      %v7552 = vshrl.u32 %v7515, 16
      %v7554 = vor.u32 %v7552, %v7550
      %v7556 = vshll.u32 %v7516, 16
      %v7558 = vrot.slane %v7556, 1
      %v7559 = vsel %vm384, %v7554, %v7558
      %v7560 = vshrl.u32 %v7516, 16
      %v7562 = vor.u32 %v7560, %v7558
      %v7564 = vshll.u32 %v7517, 16
      %v7566 = vrot.slane %v7564, 1
      %v7567 = vsel %vm384, %v7562, %v7566
      %v7568 = vshrl.u32 %v7517, 16
      %v7570 = vor.u32 %v7568, %v7566
      %v7572 = vshll.u32 %v7518, 16
      %v7574 = vrot.slane %v7572, 1
      %v7575 = vsel %vm384, %v7570, %v7574
      %v7576 = vshrl.u32 %v7518, 16
      %v7578 = vor.u32 %v7576, %v7574
      %v7580 = vshll.u32 %v7519, 16
      %v7582 = vrot.slane %v7580, 1
      %v7583 = vsel %vm384, %v7578, %v7582
      %v7584 = vshrl.u32 %v7519, 16
      %v7586 = vor.u32 %v7584, %v7582
      %v7588 = vshll.u32 %v7520, 16
      %v7590 = vrot.slane %v7588, 1
      %v7591 = vsel %vm384, %v7586, %v7590
      %v7592 = vshrl.u32 %v7520, 16
      %v7594 = vor.u32 %v7592, %v7590
      %v7596 = vshll.u32 %v7521, 16
      %v7598 = vrot.slane %v7596, 1
      %v7599 = vsel %vm384, %v7594, %v7598
      %v7600 = vshrl.u32 %v7521, 16
      %v7602 = vor.u32 %v7600, %v7598
      %v7604 = vshll.u32 %v7522, 16
      %v7606 = vrot.slane %v7604, 1
      %v7607 = vsel %vm384, %v7602, %v7606
      %v7608 = vshrl.u32 %v7522, 16
      %v7610 = vor.u32 %v7608, %v7606
      %v7612 = vshll.u32 %v7523, 16
      %v7614 = vrot.slane %v7612, 1
      %v7615 = vsel %vm384, %v7610, %v7614
      %v7616 = vshrl.u32 %v7523, 16
      %v7618 = vor.u32 %v7616, %v7614
      %v7620 = vshll.u32 %v7524, 16
      %v7622 = vrot.slane %v7620, 1
      %v7623 = vsel %vm384, %v7618, %v7622
      %v7624 = vshrl.u32 %v7524, 16
      %v7626 = vor.u32 %v7624, %v7622
      %v7628 = vshll.u32 %v7525, 16
      %v7630 = vrot.slane %v7628, 1
      %v7631 = vsel %vm384, %v7626, %v7630
      %v7632 = vshrl.u32 %v7525, 16
      %v7634 = vor.u32 %v7632, %v7630
      %v7636 = vshll.u32 %v7526, 16
      %v7638 = vrot.slane %v7636, 1
      %v7639 = vsel %vm384, %v7634, %v7638
      %v7640 = vshrl.u32 %v7526, 16
      %v7642 = vor.u32 %v7640, %v7638
      %v7644 = vshll.u32 %v7527, 16
      %v7646 = vrot.slane %v7644, 1
      %v7647 = vsel %vm384, %v7642, %v7646
      %v7648 = vshrl.u32 %v7527, 16
      %v7650 = vor.u32 %v7648, %v7646
      %v7652 = vshll.u32 %v7528, 16
      %v7654 = vrot.slane %v7652, 1
      %v7655 = vsel %vm384, %v7650, %v7654
      %v7656 = vshrl.u32 %v7528, 16
      %v7658 = vor.u32 %v7656, %v7654
      %v7660 = vshll.u32 %v7529, 16
      %v7662 = vrot.slane %v7660, 1
      %v7663 = vsel %vm384, %v7658, %v7662
      %v7664 = vshrl.u32 %v7529, 16
      %v7666 = vor.u32 %v7664, %v7662
      %v7668 = vshll.u32 %v7530, 16
      %v7670 = vrot.slane %v7668, 1
      %v7671 = vsel %vm384, %v7666, %v7670
      %v7672 = vshrl.u32 %v7530, 16
      %v7674 = vor.u32 %v7672, %v7670
      %v7676 = vshll.u32 %v7531, 16
      %v7678 = vrot.slane %v7676, 1
      %v7679 = vsel %vm384, %v7674, %v7678
      %v7681 = vsel %vm6188, %v7543, 0
      %v7684 = vsel %vm6188, %v7551, 0
      %v7687 = vsel %vm6188, %v7559, 0
      %v7690 = vsel %vm6188, %v7567, 0
      %v7693 = vsel %vm6188, %v7575, 0
      %v7696 = vsel %vm6188, %v7583, 0
      %v7699 = vsel %vm6188, %v7591, 0
      %v7702 = vsel %vm6188, %v7599, 0
      %v7705 = vsel %vm6188, %v7607, 0
      %v7708 = vsel %vm6188, %v7615, 0
      %v7711 = vsel %vm6188, %v7623, 0
      %v7714 = vsel %vm6188, %v7631, 0
      %v7717 = vsel %vm6188, %v7639, 0
      %v7720 = vsel %vm6188, %v7647, 0
      %v7723 = vsel %vm6188, %v7655, 0
      %v7726 = vsel %vm6188, %v7663, 0
      %v7729 = vsel %vm6188, %v7671, 0
      %v7732 = vsel %vm6188, %v7679, 0
      %v7735 = vsel %vm6243, %v7438, 0
      %7737 = vmatprep.subr.bf16.mxu0 0
      %7738 = vmatpush1.bf16.msra.mxu0 %v7735
      %7739 = vmatprep.subr.bf16.mxu0 0
      %7740 = vmatpush1.bf16.msra.mxu0 0
      %7741 = vmatprep.subr.bf16.mxu0 0
      %7742 = vmatpush1.bf16.msra.mxu0 0
      %7743 = vmatprep.subr.bf16.mxu0 0
      %7744 = vmatpush1.bf16.msra.mxu0 0
      %7745 = vmatprep.subr.bf16.mxu0 0
      %7746 = vmatpush1.bf16.msra.mxu0 0
      %7747 = vmatprep.subr.bf16.mxu0 0
      %7748 = vmatpush1.bf16.msra.mxu0 0
      %7749 = vmatprep.subr.bf16.mxu0 0
      %7750 = vmatpush1.bf16.msra.mxu0 0
      %7751 = vmatprep.subr.bf16.mxu0 0
      %7752 = vmatpush1.bf16.msra.mxu0 0
      %7753 = vmatprep.subr.bf16.mxu0 0
      %7754 = vmatpush1.bf16.msra.mxu0 0
      %7755 = vmatprep.subr.bf16.mxu0 0
      %7756 = vmatpush1.bf16.msra.mxu0 0
      %7757 = vmatprep.subr.bf16.mxu0 0
      %7758 = vmatpush1.bf16.msra.mxu0 0
      %7759 = vmatprep.subr.bf16.mxu0 0
      %7760 = vmatpush1.bf16.msra.mxu0 0
      %7761 = vmatprep.subr.bf16.mxu0 0
      %7762 = vmatpush1.bf16.msra.mxu0 0
      %7763 = vmatprep.subr.bf16.mxu0 0
      %7764 = vmatpush1.bf16.msra.mxu0 0
      %7765 = vmatprep.subr.bf16.mxu0 0
      %7766 = vmatpush1.bf16.msra.mxu0 0
      %7767 = vmatprep.subr.bf16.mxu0 0
      %7768 = vmatpush1.bf16.msra.mxu0 0
      %7769 = vmatprep.mubr.bf16.mxu0 0
      %7770 = vmatmul.mubr.bf16.gmra.mrb[0].mxu0 %v7681
      %v7771 = vpop.f32.mrb[0].mxu0
      %v7772 = vadd.f32 0.0, %v7771
      %v7773 = vpop.f32.mrb[0].mxu0
      %v7774 = vpop.f32.mrb[0].mxu0
      %v7775 = vadd.f32 0.0, %v7774
      %v7776 = vpop.f32.mrb[0].mxu0
      %7777 = vmatprep.mubr.bf16.mxu0 0
      %7778 = vmatmul.mubr.bf16.gmra.mrb[0].mxu0 %v7684
      %v7779 = vpop.f32.mrb[0].mxu0
      %v7780 = vadd.f32 0.0, %v7779
      %v7781 = vpop.f32.mrb[0].mxu0
      %v7782 = vpop.f32.mrb[0].mxu0
      %v7783 = vadd.f32 0.0, %v7782
      %v7784 = vpop.f32.mrb[0].mxu0
      %7785 = vmatprep.mubr.bf16.mxu0 0
      %7786 = vmatmul.mubr.bf16.gmra.mrb[0].mxu0 %v7687
      %v7787 = vpop.f32.mrb[0].mxu0
      %v7788 = vadd.f32 0.0, %v7787
      %v7789 = vpop.f32.mrb[0].mxu0
      %v7790 = vpop.f32.mrb[0].mxu0
      %v7791 = vadd.f32 0.0, %v7790
      %v7792 = vpop.f32.mrb[0].mxu0
      %7793 = vmatprep.mubr.bf16.mxu0 0
      %7794 = vmatmul.mubr.bf16.gmra.mrb[0].mxu0 %v7690
      %v7795 = vpop.f32.mrb[0].mxu0
      %v7796 = vadd.f32 0.0, %v7795
      %v7797 = vpop.f32.mrb[0].mxu0
      %v7798 = vpop.f32.mrb[0].mxu0
      %v7799 = vadd.f32 0.0, %v7798
      %v7800 = vpop.f32.mrb[0].mxu0
      %7801 = vmatprep.mubr.bf16.mxu0 0
      %7802 = vmatmul.mubr.bf16.gmra.mrb[0].mxu0 %v7693
      %v7803 = vpop.f32.mrb[0].mxu0
      %v7804 = vadd.f32 0.0, %v7803
      %v7805 = vpop.f32.mrb[0].mxu0
      %v7806 = vpop.f32.mrb[0].mxu0
      %v7807 = vadd.f32 0.0, %v7806
      %v7808 = vpop.f32.mrb[0].mxu0
      %7809 = vmatprep.mubr.bf16.mxu0 0
      %7810 = vmatmul.mubr.bf16.gmra.mrb[0].mxu0 %v7696
      %v7811 = vpop.f32.mrb[0].mxu0
      %v7812 = vadd.f32 0.0, %v7811
      %v7813 = vpop.f32.mrb[0].mxu0
      %v7814 = vpop.f32.mrb[0].mxu0
      %v7815 = vadd.f32 0.0, %v7814
      %v7816 = vpop.f32.mrb[0].mxu0
      %7817 = vmatprep.mubr.bf16.mxu0 0
      %7818 = vmatmul.mubr.bf16.gmra.mrb[0].mxu0 %v7699
      %v7819 = vpop.f32.mrb[0].mxu0
      %v7820 = vadd.f32 0.0, %v7819
      %v7821 = vpop.f32.mrb[0].mxu0
      %v7822 = vpop.f32.mrb[0].mxu0
      %v7823 = vadd.f32 0.0, %v7822
      %v7824 = vpop.f32.mrb[0].mxu0
      %7825 = vmatprep.mubr.bf16.mxu0 0
      %7826 = vmatmul.mubr.bf16.gmra.mrb[0].mxu0 %v7702
      %v7827 = vpop.f32.mrb[0].mxu0
      %v7828 = vadd.f32 0.0, %v7827
      %v7829 = vpop.f32.mrb[0].mxu0
      %v7830 = vpop.f32.mrb[0].mxu0
      %v7831 = vadd.f32 0.0, %v7830
      %v7832 = vpop.f32.mrb[0].mxu0
      %7833 = vmatprep.mubr.bf16.mxu0 0
      %7834 = vmatmul.mubr.bf16.gmra.mrb[0].mxu0 %v7705
      %v7835 = vpop.f32.mrb[0].mxu0
      %v7836 = vadd.f32 0.0, %v7835
      %v7837 = vpop.f32.mrb[0].mxu0
      %v7838 = vpop.f32.mrb[0].mxu0
      %v7839 = vadd.f32 0.0, %v7838
      %v7840 = vpop.f32.mrb[0].mxu0
      %7841 = vmatprep.mubr.bf16.mxu0 0
      %7842 = vmatmul.mubr.bf16.gmra.mrb[0].mxu0 %v7708
      %v7843 = vpop.f32.mrb[0].mxu0
      %v7844 = vadd.f32 0.0, %v7843
      %v7845 = vpop.f32.mrb[0].mxu0
      %v7846 = vpop.f32.mrb[0].mxu0
      %v7847 = vadd.f32 0.0, %v7846
      %v7848 = vpop.f32.mrb[0].mxu0
      %7849 = vmatprep.mubr.bf16.mxu0 0
      %7850 = vmatmul.mubr.bf16.gmra.mrb[0].mxu0 %v7711
      %v7851 = vpop.f32.mrb[0].mxu0
      %v7852 = vadd.f32 0.0, %v7851
      %v7853 = vpop.f32.mrb[0].mxu0
      %v7854 = vpop.f32.mrb[0].mxu0
      %v7855 = vadd.f32 0.0, %v7854
      %v7856 = vpop.f32.mrb[0].mxu0
      %7857 = vmatprep.mubr.bf16.mxu0 0
      %7858 = vmatmul.mubr.bf16.gmra.mrb[0].mxu0 %v7714
      %v7859 = vpop.f32.mrb[0].mxu0
      %v7860 = vadd.f32 0.0, %v7859
      %v7861 = vpop.f32.mrb[0].mxu0
      %v7862 = vpop.f32.mrb[0].mxu0
      %v7863 = vadd.f32 0.0, %v7862
      %v7864 = vpop.f32.mrb[0].mxu0
      %7865 = vmatprep.mubr.bf16.mxu0 0
      %7866 = vmatmul.mubr.bf16.gmra.mrb[0].mxu0 %v7717
      %v7867 = vpop.f32.mrb[0].mxu0
      %v7868 = vadd.f32 0.0, %v7867
      %v7869 = vpop.f32.mrb[0].mxu0
      %v7870 = vpop.f32.mrb[0].mxu0
      %v7871 = vadd.f32 0.0, %v7870
      %v7872 = vpop.f32.mrb[0].mxu0
      %7873 = vmatprep.mubr.bf16.mxu0 0
      %7874 = vmatmul.mubr.bf16.gmra.mrb[0].mxu0 %v7720
      %v7875 = vpop.f32.mrb[0].mxu0
      %v7876 = vadd.f32 0.0, %v7875
      %v7877 = vpop.f32.mrb[0].mxu0
      %v7878 = vpop.f32.mrb[0].mxu0
      %v7879 = vadd.f32 0.0, %v7878
      %v7880 = vpop.f32.mrb[0].mxu0
      %7881 = vmatprep.mubr.bf16.mxu0 0
      %7882 = vmatmul.mubr.bf16.gmra.mrb[0].mxu0 %v7723
      %v7883 = vpop.f32.mrb[0].mxu0
      %v7884 = vadd.f32 0.0, %v7883
      %v7885 = vpop.f32.mrb[0].mxu0
      %v7886 = vpop.f32.mrb[0].mxu0
      %v7887 = vadd.f32 0.0, %v7886
      %v7888 = vpop.f32.mrb[0].mxu0
      %7889 = vmatprep.mubr.bf16.mxu0 0
      %7890 = vmatmul.mubr.bf16.gmra.mrb[0].mxu0 %v7726
      %v7891 = vpop.f32.mrb[0].mxu0
      %v7892 = vadd.f32 0.0, %v7891
      %v7893 = vpop.f32.mrb[0].mxu0
      %v7894 = vpop.f32.mrb[0].mxu0
      %v7895 = vadd.f32 0.0, %v7894
      %v7896 = vpop.f32.mrb[0].mxu0
      %7897 = vmatprep.mubr.bf16.mxu0 0
      %7898 = vmatmul.mubr.bf16.gmra.mrb[0].mxu0 %v7729
      %v7899 = vpop.f32.mrb[0].mxu0
      %v7900 = vadd.f32 0.0, %v7899
      %v7901 = vpop.f32.mrb[0].mxu0
      %v7902 = vpop.f32.mrb[0].mxu0
      %v7903 = vadd.f32 0.0, %v7902
      %v7904 = vpop.f32.mrb[0].mxu0
      %7905 = vmatprep.mubr.bf16.mxu0 0
      %7906 = vmatmul.mubr.bf16.gmra.mrb[0].mxu0 %v7732
      %v7907 = vpop.f32.mrb[0].mxu0
      %v7908 = vadd.f32 0.0, %v7907
      %v7909 = vpop.f32.mrb[0].mxu0
      %v7910 = vpop.f32.mrb[0].mxu0
      %v7911 = vadd.f32 0.0, %v7910
      %v7912 = vpop.f32.mrb[0].mxu0
      %7913 = vdwg.mxu0
      %v7914 = vadd.f32 %v7364, %v7772
      %v7915 = vadd.f32 %v7365, %v7775
      %v7916 = vadd.f32 %v7366, %v7780
      %v7917 = vadd.f32 %v7367, %v7783
      %v7918 = vadd.f32 %v7368, %v7788
      %v7919 = vadd.f32 %v7369, %v7791
      %v7920 = vadd.f32 %v7370, %v7796
      %v7921 = vadd.f32 %v7371, %v7799
      %v7922 = vadd.f32 %v7372, %v7804
      %v7923 = vadd.f32 %v7373, %v7807
      %v7924 = vadd.f32 %v7374, %v7812
      %v7925 = vadd.f32 %v7375, %v7815
      %v7926 = vadd.f32 %v7376, %v7820
      %v7927 = vadd.f32 %v7377, %v7823
      %v7928 = vadd.f32 %v7378, %v7828
      %v7929 = vadd.f32 %v7379, %v7831
      %v7930 = vadd.f32 %v7380, %v7836
      %v7931 = vadd.f32 %v7381, %v7839
      %v7932 = vadd.f32 %v7382, %v7844
      %v7933 = vadd.f32 %v7383, %v7847
      %v7934 = vadd.f32 %v7384, %v7852
      %v7935 = vadd.f32 %v7385, %v7855
      %v7936 = vadd.f32 %v7386, %v7860
      %v7937 = vadd.f32 %v7387, %v7863
      %v7938 = vadd.f32 %v7388, %v7868
      %v7939 = vadd.f32 %v7389, %v7871
      %v7940 = vadd.f32 %v7390, %v7876
      %v7941 = vadd.f32 %v7391, %v7879
      %v7942 = vadd.f32 %v7392, %v7884
      %v7943 = vadd.f32 %v7393, %v7887
      %v7944 = vadd.f32 %v7394, %v7892
      %v7945 = vadd.f32 %v7395, %v7895
      %v7946 = vadd.f32 %v7396, %v7900
      %v7947 = vadd.f32 %v7397, %v7903
      %v7948 = vadd.f32 %v7398, %v7908
      %v7949 = vadd.f32 %v7399, %v7911
      %v7950 = vld [vmem:[#allocation2 + $0xc] sm:$0xe]
      %s7951 = scalar_lea.vmem %s2, 16
      %v7952 = vld [vmem:[%s7951] sm:$0xf]
      %v7954 = vunpack.c.l.b16 %v7950
      %v7955 = vpack.c.b16 %v7477, %v7954
      %v7956 = vrot.slane %v7955, 1
      %v7957 = vrot.slane %v7514, 1
      %v7958 = vsel %vm1075, %v7956, %v7957
      %v7959 = vrot.slane %v7515, 1
      %v7960 = vsel %vm1075, %v7957, %v7959
      %v7961 = vrot.slane %v7516, 1
      %v7962 = vsel %vm1075, %v7959, %v7961
      %v7963 = vrot.slane %v7517, 1
      %v7964 = vsel %vm1075, %v7961, %v7963
      %v7965 = vrot.slane %v7518, 1
      %v7966 = vsel %vm1075, %v7963, %v7965
      %v7967 = vrot.slane %v7519, 1
      %v7968 = vsel %vm1075, %v7965, %v7967
      %v7969 = vrot.slane %v7520, 1
      %v7970 = vsel %vm1075, %v7967, %v7969
      %v7971 = vrot.slane %v7521, 1
      %v7972 = vsel %vm1075, %v7969, %v7971
      %v7973 = vrot.slane %v7522, 1
      %v7974 = vsel %vm1075, %v7971, %v7973
      %v7975 = vrot.slane %v7523, 1
      %v7976 = vsel %vm1075, %v7973, %v7975
      %v7977 = vrot.slane %v7524, 1
      %v7978 = vsel %vm1075, %v7975, %v7977
      %v7979 = vrot.slane %v7525, 1
      %v7980 = vsel %vm1075, %v7977, %v7979
      %v7981 = vrot.slane %v7526, 1
      %v7982 = vsel %vm1075, %v7979, %v7981
      %v7983 = vrot.slane %v7527, 1
      %v7984 = vsel %vm1075, %v7981, %v7983
      %v7985 = vrot.slane %v7528, 1
      %v7986 = vsel %vm1075, %v7983, %v7985
      %v7987 = vrot.slane %v7529, 1
      %v7988 = vsel %vm1075, %v7985, %v7987
      %v7989 = vrot.slane %v7530, 1
      %v7990 = vsel %vm1075, %v7987, %v7989
      %v7991 = vrot.slane %v7531, 1
      %v7992 = vsel %vm1075, %v7989, %v7991
      %v7994 = vsel %vm6188, %v7958, 0
      %v7997 = vsel %vm6188, %v7960, 0
      %v8000 = vsel %vm6188, %v7962, 0
      %v8003 = vsel %vm6188, %v7964, 0
      %v8006 = vsel %vm6188, %v7966, 0
      %v8009 = vsel %vm6188, %v7968, 0
      %v8012 = vsel %vm6188, %v7970, 0
      %v8015 = vsel %vm6188, %v7972, 0
      %v8018 = vsel %vm6188, %v7974, 0
      %v8021 = vsel %vm6188, %v7976, 0
      %v8024 = vsel %vm6188, %v7978, 0
      %v8027 = vsel %vm6188, %v7980, 0
      %v8030 = vsel %vm6188, %v7982, 0
      %v8033 = vsel %vm6188, %v7984, 0
      %v8036 = vsel %vm6188, %v7986, 0
      %v8039 = vsel %vm6188, %v7988, 0
      %v8042 = vsel %vm6188, %v7990, 0
      %v8045 = vsel %vm6188, %v7992, 0
      %v8048 = vsel %vm6243, %v7952, 0
      %8050 = vmatprep.subr.bf16.mxu0 0
      %8051 = vmatpush1.bf16.msra.mxu0 %v8048
      %8052 = vmatprep.subr.bf16.mxu0 0
      %8053 = vmatpush1.bf16.msra.mxu0 0
      %8054 = vmatprep.subr.bf16.mxu0 0
      %8055 = vmatpush1.bf16.msra.mxu0 0
      %8056 = vmatprep.subr.bf16.mxu0 0
      %8057 = vmatpush1.bf16.msra.mxu0 0
      %8058 = vmatprep.subr.bf16.mxu0 0
      %8059 = vmatpush1.bf16.msra.mxu0 0
      %8060 = vmatprep.subr.bf16.mxu0 0
      %8061 = vmatpush1.bf16.msra.mxu0 0
      %8062 = vmatprep.subr.bf16.mxu0 0
      %8063 = vmatpush1.bf16.msra.mxu0 0
      %8064 = vmatprep.subr.bf16.mxu0 0
      %8065 = vmatpush1.bf16.msra.mxu0 0
      %8066 = vmatprep.subr.bf16.mxu0 0
      %8067 = vmatpush1.bf16.msra.mxu0 0
      %8068 = vmatprep.subr.bf16.mxu0 0
      %8069 = vmatpush1.bf16.msra.mxu0 0
      %8070 = vmatprep.subr.bf16.mxu0 0
      %8071 = vmatpush1.bf16.msra.mxu0 0
      %8072 = vmatprep.subr.bf16.mxu0 0
      %8073 = vmatpush1.bf16.msra.mxu0 0
      %8074 = vmatprep.subr.bf16.mxu0 0
      %8075 = vmatpush1.bf16.msra.mxu0 0
      %8076 = vmatprep.subr.bf16.mxu0 0
      %8077 = vmatpush1.bf16.msra.mxu0 0
      %8078 = vmatprep.subr.bf16.mxu0 0
      %8079 = vmatpush1.bf16.msra.mxu0 0
      %8080 = vmatprep.subr.bf16.mxu0 0
      %8081 = vmatpush1.bf16.msra.mxu0 0
      %8082 = vmatprep.mubr.bf16.mxu0 0
      %8083 = vmatmul.mubr.bf16.gmra.mrb[0].mxu0 %v7994
      %v8084 = vpop.f32.mrb[0].mxu0
      %v8085 = vadd.f32 0.0, %v8084
      %v8086 = vpop.f32.mrb[0].mxu0
      %v8087 = vpop.f32.mrb[0].mxu0
      %v8088 = vadd.f32 0.0, %v8087
      %v8089 = vpop.f32.mrb[0].mxu0
      %8090 = vmatprep.mubr.bf16.mxu0 0
      %8091 = vmatmul.mubr.bf16.gmra.mrb[0].mxu0 %v7997
      %v8092 = vpop.f32.mrb[0].mxu0
      %v8093 = vadd.f32 0.0, %v8092
      %v8094 = vpop.f32.mrb[0].mxu0
      %v8095 = vpop.f32.mrb[0].mxu0
      %v8096 = vadd.f32 0.0, %v8095
      %v8097 = vpop.f32.mrb[0].mxu0
      %8098 = vmatprep.mubr.bf16.mxu0 0
      %8099 = vmatmul.mubr.bf16.gmra.mrb[0].mxu0 %v8000
      %v8100 = vpop.f32.mrb[0].mxu0
      %v8101 = vadd.f32 0.0, %v8100
      %v8102 = vpop.f32.mrb[0].mxu0
      %v8103 = vpop.f32.mrb[0].mxu0
      %v8104 = vadd.f32 0.0, %v8103
      %v8105 = vpop.f32.mrb[0].mxu0
      %8106 = vmatprep.mubr.bf16.mxu0 0
      %8107 = vmatmul.mubr.bf16.gmra.mrb[0].mxu0 %v8003
      %v8108 = vpop.f32.mrb[0].mxu0
      %v8109 = vadd.f32 0.0, %v8108
      %v8110 = vpop.f32.mrb[0].mxu0
      %v8111 = vpop.f32.mrb[0].mxu0
      %v8112 = vadd.f32 0.0, %v8111
      %v8113 = vpop.f32.mrb[0].mxu0
      %8114 = vmatprep.mubr.bf16.mxu0 0
      %8115 = vmatmul.mubr.bf16.gmra.mrb[0].mxu0 %v8006
      %v8116 = vpop.f32.mrb[0].mxu0
      %v8117 = vadd.f32 0.0, %v8116
      %v8118 = vpop.f32.mrb[0].mxu0
      %v8119 = vpop.f32.mrb[0].mxu0
      %v8120 = vadd.f32 0.0, %v8119
      %v8121 = vpop.f32.mrb[0].mxu0
      %8122 = vmatprep.mubr.bf16.mxu0 0
      %8123 = vmatmul.mubr.bf16.gmra.mrb[0].mxu0 %v8009
      %v8124 = vpop.f32.mrb[0].mxu0
      %v8125 = vadd.f32 0.0, %v8124
      %v8126 = vpop.f32.mrb[0].mxu0
      %v8127 = vpop.f32.mrb[0].mxu0
      %v8128 = vadd.f32 0.0, %v8127
      %v8129 = vpop.f32.mrb[0].mxu0
      %8130 = vmatprep.mubr.bf16.mxu0 0
      %8131 = vmatmul.mubr.bf16.gmra.mrb[0].mxu0 %v8012
      %v8132 = vpop.f32.mrb[0].mxu0
      %v8133 = vadd.f32 0.0, %v8132
      %v8134 = vpop.f32.mrb[0].mxu0
      %v8135 = vpop.f32.mrb[0].mxu0
      %v8136 = vadd.f32 0.0, %v8135
      %v8137 = vpop.f32.mrb[0].mxu0
      %8138 = vmatprep.mubr.bf16.mxu0 0
      %8139 = vmatmul.mubr.bf16.gmra.mrb[0].mxu0 %v8015
      %v8140 = vpop.f32.mrb[0].mxu0
      %v8141 = vadd.f32 0.0, %v8140
      %v8142 = vpop.f32.mrb[0].mxu0
      %v8143 = vpop.f32.mrb[0].mxu0
      %v8144 = vadd.f32 0.0, %v8143
      %v8145 = vpop.f32.mrb[0].mxu0
      %8146 = vmatprep.mubr.bf16.mxu0 0
      %8147 = vmatmul.mubr.bf16.gmra.mrb[0].mxu0 %v8018
      %v8148 = vpop.f32.mrb[0].mxu0
      %v8149 = vadd.f32 0.0, %v8148
      %v8150 = vpop.f32.mrb[0].mxu0
      %v8151 = vpop.f32.mrb[0].mxu0
      %v8152 = vadd.f32 0.0, %v8151
      %v8153 = vpop.f32.mrb[0].mxu0
      %8154 = vmatprep.mubr.bf16.mxu0 0
      %8155 = vmatmul.mubr.bf16.gmra.mrb[0].mxu0 %v8021
      %v8156 = vpop.f32.mrb[0].mxu0
      %v8157 = vadd.f32 0.0, %v8156
      %v8158 = vpop.f32.mrb[0].mxu0
      %v8159 = vpop.f32.mrb[0].mxu0
      %v8160 = vadd.f32 0.0, %v8159
      %v8161 = vpop.f32.mrb[0].mxu0
      %8162 = vmatprep.mubr.bf16.mxu0 0
      %8163 = vmatmul.mubr.bf16.gmra.mrb[0].mxu0 %v8024
      %v8164 = vpop.f32.mrb[0].mxu0
      %v8165 = vadd.f32 0.0, %v8164
      %v8166 = vpop.f32.mrb[0].mxu0
      %v8167 = vpop.f32.mrb[0].mxu0
      %v8168 = vadd.f32 0.0, %v8167
      %v8169 = vpop.f32.mrb[0].mxu0
      %8170 = vmatprep.mubr.bf16.mxu0 0
      %8171 = vmatmul.mubr.bf16.gmra.mrb[0].mxu0 %v8027
      %v8172 = vpop.f32.mrb[0].mxu0
      %v8173 = vadd.f32 0.0, %v8172
      %v8174 = vpop.f32.mrb[0].mxu0
      %v8175 = vpop.f32.mrb[0].mxu0
      %v8176 = vadd.f32 0.0, %v8175
      %v8177 = vpop.f32.mrb[0].mxu0
      %8178 = vmatprep.mubr.bf16.mxu0 0
      %8179 = vmatmul.mubr.bf16.gmra.mrb[0].mxu0 %v8030
      %v8180 = vpop.f32.mrb[0].mxu0
      %v8181 = vadd.f32 0.0, %v8180
      %v8182 = vpop.f32.mrb[0].mxu0
      %v8183 = vpop.f32.mrb[0].mxu0
      %v8184 = vadd.f32 0.0, %v8183
      %v8185 = vpop.f32.mrb[0].mxu0
      %8186 = vmatprep.mubr.bf16.mxu0 0
      %8187 = vmatmul.mubr.bf16.gmra.mrb[0].mxu0 %v8033
      %v8188 = vpop.f32.mrb[0].mxu0
      %v8189 = vadd.f32 0.0, %v8188
      %v8190 = vpop.f32.mrb[0].mxu0
      %v8191 = vpop.f32.mrb[0].mxu0
      %v8192 = vadd.f32 0.0, %v8191
      %v8193 = vpop.f32.mrb[0].mxu0
      %8194 = vmatprep.mubr.bf16.mxu0 0
      %8195 = vmatmul.mubr.bf16.gmra.mrb[0].mxu0 %v8036
      %v8196 = vpop.f32.mrb[0].mxu0
      %v8197 = vadd.f32 0.0, %v8196
      %v8198 = vpop.f32.mrb[0].mxu0
      %v8199 = vpop.f32.mrb[0].mxu0
      %v8200 = vadd.f32 0.0, %v8199
      %v8201 = vpop.f32.mrb[0].mxu0
      %8202 = vmatprep.mubr.bf16.mxu0 0
      %8203 = vmatmul.mubr.bf16.gmra.mrb[0].mxu0 %v8039
      %v8204 = vpop.f32.mrb[0].mxu0
      %v8205 = vadd.f32 0.0, %v8204
      %v8206 = vpop.f32.mrb[0].mxu0
      %v8207 = vpop.f32.mrb[0].mxu0
      %v8208 = vadd.f32 0.0, %v8207
      %v8209 = vpop.f32.mrb[0].mxu0
      %8210 = vmatprep.mubr.bf16.mxu0 0
      %8211 = vmatmul.mubr.bf16.gmra.mrb[0].mxu0 %v8042
      %v8212 = vpop.f32.mrb[0].mxu0
      %v8213 = vadd.f32 0.0, %v8212
      %v8214 = vpop.f32.mrb[0].mxu0
      %v8215 = vpop.f32.mrb[0].mxu0
      %v8216 = vadd.f32 0.0, %v8215
      %v8217 = vpop.f32.mrb[0].mxu0
      %8218 = vmatprep.mubr.bf16.mxu0 0
      %8219 = vmatmul.mubr.bf16.gmra.mrb[0].mxu0 %v8045
      %v8220 = vpop.f32.mrb[0].mxu0
      %v8221 = vadd.f32 0.0, %v8220
      %v8222 = vpop.f32.mrb[0].mxu0
      %v8223 = vpop.f32.mrb[0].mxu0
      %v8224 = vadd.f32 0.0, %v8223
      %v8225 = vpop.f32.mrb[0].mxu0
      %8226 = vdwg.mxu0
      %v8227 = vadd.f32 %v7914, %v8085
      %v8228 = vadd.f32 %v7915, %v8088
      %v8229 = vadd.f32 %v7916, %v8093
      %v8230 = vadd.f32 %v7917, %v8096
      %v8231 = vadd.f32 %v7918, %v8101
      %v8232 = vadd.f32 %v7919, %v8104
      %v8233 = vadd.f32 %v7920, %v8109
      %v8234 = vadd.f32 %v7921, %v8112
      %v8235 = vadd.f32 %v7922, %v8117
      %v8236 = vadd.f32 %v7923, %v8120
      %v8237 = vadd.f32 %v7924, %v8125
      %v8238 = vadd.f32 %v7925, %v8128
      %v8239 = vadd.f32 %v7926, %v8133
      %v8240 = vadd.f32 %v7927, %v8136
      %v8241 = vadd.f32 %v7928, %v8141
      %v8242 = vadd.f32 %v7929, %v8144
      %v8243 = vadd.f32 %v7930, %v8149
      %v8244 = vadd.f32 %v7931, %v8152
      %v8245 = vadd.f32 %v7932, %v8157
      %v8246 = vadd.f32 %v7933, %v8160
      %v8247 = vadd.f32 %v7934, %v8165
      %v8248 = vadd.f32 %v7935, %v8168
      %v8249 = vadd.f32 %v7936, %v8173
      %v8250 = vadd.f32 %v7937, %v8176
      %v8251 = vadd.f32 %v7938, %v8181
      %v8252 = vadd.f32 %v7939, %v8184
      %v8253 = vadd.f32 %v7940, %v8189
      %v8254 = vadd.f32 %v7941, %v8192
      %v8255 = vadd.f32 %v7942, %v8197
      %v8256 = vadd.f32 %v7943, %v8200
      %v8257 = vadd.f32 %v7944, %v8205
      %v8258 = vadd.f32 %v7945, %v8208
      %v8259 = vadd.f32 %v7946, %v8213
      %v8260 = vadd.f32 %v7947, %v8216
      %v8261 = vadd.f32 %v7948, %v8221
      %v8262 = vadd.f32 %v7949, %v8224
      %v8263 = vld [vmem:[#allocation2 + $0x9c] sm:$0x3]
      %s8264 = scalar_lea.vmem %s2, 20
      %v8265 = vld [vmem:[%s8264] sm:$0xf]
      %v8267 = vunpack.c.l.b16 %v8263
      %v8268 = vpack.c.b16 %v8267, %v8267
      %v8270 = vshrl.u32 %v7955, 16
      %v8272 = vrot.slane %v8270, 1
      %v8273 = vshll.u32 %v7955, 16
      %v8275 = vrot.slane %v8273, 2
      %v8276 = vor.u32 %v8272, %v8275
      %v8277 = vrot.slane %v7544, 1
      %v8278 = vrot.slane %v7540, 2
      %v8279 = vor.u32 %v8277, %v8278
      %v8280 = vsel %vm1924, %v8276, %v8279
      %v8281 = vrot.slane %v7552, 1
      %v8282 = vrot.slane %v7548, 2
      %v8283 = vor.u32 %v8281, %v8282
      %v8284 = vsel %vm1924, %v8279, %v8283
      %v8285 = vrot.slane %v7560, 1
      %v8286 = vrot.slane %v7556, 2
      %v8287 = vor.u32 %v8285, %v8286
      %v8288 = vsel %vm1924, %v8283, %v8287
      %v8289 = vrot.slane %v7568, 1
      %v8290 = vrot.slane %v7564, 2
      %v8291 = vor.u32 %v8289, %v8290
      %v8292 = vsel %vm1924, %v8287, %v8291
      %v8293 = vrot.slane %v7576, 1
      %v8294 = vrot.slane %v7572, 2
      %v8295 = vor.u32 %v8293, %v8294
      %v8296 = vsel %vm1924, %v8291, %v8295
      %v8297 = vrot.slane %v7584, 1
      %v8298 = vrot.slane %v7580, 2
      %v8299 = vor.u32 %v8297, %v8298
      %v8300 = vsel %vm1924, %v8295, %v8299
      %v8301 = vrot.slane %v7592, 1
      %v8302 = vrot.slane %v7588, 2
      %v8303 = vor.u32 %v8301, %v8302
      %v8304 = vsel %vm1924, %v8299, %v8303
      %v8305 = vrot.slane %v7600, 1
      %v8306 = vrot.slane %v7596, 2
      %v8307 = vor.u32 %v8305, %v8306
      %v8308 = vsel %vm1924, %v8303, %v8307
      %v8309 = vrot.slane %v7608, 1
      %v8310 = vrot.slane %v7604, 2
      %v8311 = vor.u32 %v8309, %v8310
      %v8312 = vsel %vm1924, %v8307, %v8311
      %v8313 = vrot.slane %v7616, 1
      %v8314 = vrot.slane %v7612, 2
      %v8315 = vor.u32 %v8313, %v8314
      %v8316 = vsel %vm1924, %v8311, %v8315
      %v8317 = vrot.slane %v7624, 1
      %v8318 = vrot.slane %v7620, 2
      %v8319 = vor.u32 %v8317, %v8318
      %v8320 = vsel %vm1924, %v8315, %v8319
      %v8321 = vrot.slane %v7632, 1
      %v8322 = vrot.slane %v7628, 2
      %v8323 = vor.u32 %v8321, %v8322
      %v8324 = vsel %vm1924, %v8319, %v8323
      %v8325 = vrot.slane %v7640, 1
      %v8326 = vrot.slane %v7636, 2
      %v8327 = vor.u32 %v8325, %v8326
      %v8328 = vsel %vm1924, %v8323, %v8327
      %v8329 = vrot.slane %v7648, 1
      %v8330 = vrot.slane %v7644, 2
      %v8331 = vor.u32 %v8329, %v8330
      %v8332 = vsel %vm1924, %v8327, %v8331
      %v8333 = vrot.slane %v7656, 1
      %v8334 = vrot.slane %v7652, 2
      %v8335 = vor.u32 %v8333, %v8334
      %v8336 = vsel %vm1924, %v8331, %v8335
      %v8337 = vrot.slane %v7664, 1
      %v8338 = vrot.slane %v7660, 2
      %v8339 = vor.u32 %v8337, %v8338
      %v8340 = vsel %vm1924, %v8335, %v8339
      %v8341 = vrot.slane %v7672, 1
      %v8342 = vrot.slane %v7668, 2
      %v8343 = vor.u32 %v8341, %v8342
      %v8344 = vsel %vm1924, %v8339, %v8343
      %v8346 = vshrl.u32 %v8268, 16
      %v8348 = vrot.slane %v8346, 1
      %v8349 = vshll.u32 %v8268, 16
      %v8351 = vrot.slane %v8349, 2
      %v8352 = vor.u32 %v8348, %v8351
      %v8353 = vsel %vm1924, %v8343, %v8352
      %v8355 = vsel %vm6188, %v8280, 0
      %v8358 = vsel %vm6188, %v8284, 0
      %v8361 = vsel %vm6188, %v8288, 0
      %v8364 = vsel %vm6188, %v8292, 0
      %v8367 = vsel %vm6188, %v8296, 0
      %v8370 = vsel %vm6188, %v8300, 0
      %v8373 = vsel %vm6188, %v8304, 0
      %v8376 = vsel %vm6188, %v8308, 0
      %v8379 = vsel %vm6188, %v8312, 0
      %v8382 = vsel %vm6188, %v8316, 0
      %v8385 = vsel %vm6188, %v8320, 0
      %v8388 = vsel %vm6188, %v8324, 0
      %v8391 = vsel %vm6188, %v8328, 0
      %v8394 = vsel %vm6188, %v8332, 0
      %v8397 = vsel %vm6188, %v8336, 0
      %v8400 = vsel %vm6188, %v8340, 0
      %v8403 = vsel %vm6188, %v8344, 0
      %v8406 = vsel %vm6188, %v8353, 0
      %v8409 = vsel %vm6243, %v8265, 0
      %8411 = vmatprep.subr.bf16.mxu0 0
      %8412 = vmatpush1.bf16.msra.mxu0 %v8409
      %8413 = vmatprep.subr.bf16.mxu0 0
      %8414 = vmatpush1.bf16.msra.mxu0 0
      %8415 = vmatprep.subr.bf16.mxu0 0
      %8416 = vmatpush1.bf16.msra.mxu0 0
      %8417 = vmatprep.subr.bf16.mxu0 0
      %8418 = vmatpush1.bf16.msra.mxu0 0
      %8419 = vmatprep.subr.bf16.mxu0 0
      %8420 = vmatpush1.bf16.msra.mxu0 0
      %8421 = vmatprep.subr.bf16.mxu0 0
      %8422 = vmatpush1.bf16.msra.mxu0 0
      %8423 = vmatprep.subr.bf16.mxu0 0
      %8424 = vmatpush1.bf16.msra.mxu0 0
      %8425 = vmatprep.subr.bf16.mxu0 0
      %8426 = vmatpush1.bf16.msra.mxu0 0
      %8427 = vmatprep.subr.bf16.mxu0 0
      %8428 = vmatpush1.bf16.msra.mxu0 0
      %8429 = vmatprep.subr.bf16.mxu0 0
      %8430 = vmatpush1.bf16.msra.mxu0 0
      %8431 = vmatprep.subr.bf16.mxu0 0
      %8432 = vmatpush1.bf16.msra.mxu0 0
      %8433 = vmatprep.subr.bf16.mxu0 0
      %8434 = vmatpush1.bf16.msra.mxu0 0
      %8435 = vmatprep.subr.bf16.mxu0 0
      %8436 = vmatpush1.bf16.msra.mxu0 0
      %8437 = vmatprep.subr.bf16.mxu0 0
      %8438 = vmatpush1.bf16.msra.mxu0 0
      %8439 = vmatprep.subr.bf16.mxu0 0
      %8440 = vmatpush1.bf16.msra.mxu0 0
      %8441 = vmatprep.subr.bf16.mxu0 0
      %8442 = vmatpush1.bf16.msra.mxu0 0
      %8443 = vmatprep.mubr.bf16.mxu0 0
      %8444 = vmatmul.mubr.bf16.gmra.mrb[0].mxu0 %v8355
      %v8445 = vpop.f32.mrb[0].mxu0
      %v8446 = vadd.f32 0.0, %v8445
      %v8447 = vpop.f32.mrb[0].mxu0
      %v8448 = vpop.f32.mrb[0].mxu0
      %v8449 = vadd.f32 0.0, %v8448
      %v8450 = vpop.f32.mrb[0].mxu0
      %8451 = vmatprep.mubr.bf16.mxu0 0
      %8452 = vmatmul.mubr.bf16.gmra.mrb[0].mxu0 %v8358
      %v8453 = vpop.f32.mrb[0].mxu0
      %v8454 = vadd.f32 0.0, %v8453
      %v8455 = vpop.f32.mrb[0].mxu0
      %v8456 = vpop.f32.mrb[0].mxu0
      %v8457 = vadd.f32 0.0, %v8456
      %v8458 = vpop.f32.mrb[0].mxu0
      %8459 = vmatprep.mubr.bf16.mxu0 0
      %8460 = vmatmul.mubr.bf16.gmra.mrb[0].mxu0 %v8361
      %v8461 = vpop.f32.mrb[0].mxu0
      %v8462 = vadd.f32 0.0, %v8461
      %v8463 = vpop.f32.mrb[0].mxu0
      %v8464 = vpop.f32.mrb[0].mxu0
      %v8465 = vadd.f32 0.0, %v8464
      %v8466 = vpop.f32.mrb[0].mxu0
      %8467 = vmatprep.mubr.bf16.mxu0 0
      %8468 = vmatmul.mubr.bf16.gmra.mrb[0].mxu0 %v8364
      %v8469 = vpop.f32.mrb[0].mxu0
      %v8470 = vadd.f32 0.0, %v8469
      %v8471 = vpop.f32.mrb[0].mxu0
      %v8472 = vpop.f32.mrb[0].mxu0
      %v8473 = vadd.f32 0.0, %v8472
      %v8474 = vpop.f32.mrb[0].mxu0
      %8475 = vmatprep.mubr.bf16.mxu0 0
      %8476 = vmatmul.mubr.bf16.gmra.mrb[0].mxu0 %v8367
      %v8477 = vpop.f32.mrb[0].mxu0
      %v8478 = vadd.f32 0.0, %v8477
      %v8479 = vpop.f32.mrb[0].mxu0
      %v8480 = vpop.f32.mrb[0].mxu0
      %v8481 = vadd.f32 0.0, %v8480
      %v8482 = vpop.f32.mrb[0].mxu0
      %8483 = vmatprep.mubr.bf16.mxu0 0
      %8484 = vmatmul.mubr.bf16.gmra.mrb[0].mxu0 %v8370
      %v8485 = vpop.f32.mrb[0].mxu0
      %v8486 = vadd.f32 0.0, %v8485
      %v8487 = vpop.f32.mrb[0].mxu0
      %v8488 = vpop.f32.mrb[0].mxu0
      %v8489 = vadd.f32 0.0, %v8488
      %v8490 = vpop.f32.mrb[0].mxu0
      %8491 = vmatprep.mubr.bf16.mxu0 0
      %8492 = vmatmul.mubr.bf16.gmra.mrb[0].mxu0 %v8373
      %v8493 = vpop.f32.mrb[0].mxu0
      %v8494 = vadd.f32 0.0, %v8493
      %v8495 = vpop.f32.mrb[0].mxu0
      %v8496 = vpop.f32.mrb[0].mxu0
      %v8497 = vadd.f32 0.0, %v8496
      %v8498 = vpop.f32.mrb[0].mxu0
      %8499 = vmatprep.mubr.bf16.mxu0 0
      %8500 = vmatmul.mubr.bf16.gmra.mrb[0].mxu0 %v8376
      %v8501 = vpop.f32.mrb[0].mxu0
      %v8502 = vadd.f32 0.0, %v8501
      %v8503 = vpop.f32.mrb[0].mxu0
      %v8504 = vpop.f32.mrb[0].mxu0
      %v8505 = vadd.f32 0.0, %v8504
      %v8506 = vpop.f32.mrb[0].mxu0
      %8507 = vmatprep.mubr.bf16.mxu0 0
      %8508 = vmatmul.mubr.bf16.gmra.mrb[0].mxu0 %v8379
      %v8509 = vpop.f32.mrb[0].mxu0
      %v8510 = vadd.f32 0.0, %v8509
      %v8511 = vpop.f32.mrb[0].mxu0
      %v8512 = vpop.f32.mrb[0].mxu0
      %v8513 = vadd.f32 0.0, %v8512
      %v8514 = vpop.f32.mrb[0].mxu0
      %8515 = vmatprep.mubr.bf16.mxu0 0
      %8516 = vmatmul.mubr.bf16.gmra.mrb[0].mxu0 %v8382
      %v8517 = vpop.f32.mrb[0].mxu0
      %v8518 = vadd.f32 0.0, %v8517
      %v8519 = vpop.f32.mrb[0].mxu0
      %v8520 = vpop.f32.mrb[0].mxu0
      %v8521 = vadd.f32 0.0, %v8520
      %v8522 = vpop.f32.mrb[0].mxu0
      %8523 = vmatprep.mubr.bf16.mxu0 0
      %8524 = vmatmul.mubr.bf16.gmra.mrb[0].mxu0 %v8385
      %v8525 = vpop.f32.mrb[0].mxu0
      %v8526 = vadd.f32 0.0, %v8525
      %v8527 = vpop.f32.mrb[0].mxu0
      %v8528 = vpop.f32.mrb[0].mxu0
      %v8529 = vadd.f32 0.0, %v8528
      %v8530 = vpop.f32.mrb[0].mxu0
      %8531 = vmatprep.mubr.bf16.mxu0 0
      %8532 = vmatmul.mubr.bf16.gmra.mrb[0].mxu0 %v8388
      %v8533 = vpop.f32.mrb[0].mxu0
      %v8534 = vadd.f32 0.0, %v8533
      %v8535 = vpop.f32.mrb[0].mxu0
      %v8536 = vpop.f32.mrb[0].mxu0
      %v8537 = vadd.f32 0.0, %v8536
      %v8538 = vpop.f32.mrb[0].mxu0
      %8539 = vmatprep.mubr.bf16.mxu0 0
      %8540 = vmatmul.mubr.bf16.gmra.mrb[0].mxu0 %v8391
      %v8541 = vpop.f32.mrb[0].mxu0
      %v8542 = vadd.f32 0.0, %v8541
      %v8543 = vpop.f32.mrb[0].mxu0
      %v8544 = vpop.f32.mrb[0].mxu0
      %v8545 = vadd.f32 0.0, %v8544
      %v8546 = vpop.f32.mrb[0].mxu0
      %8547 = vmatprep.mubr.bf16.mxu0 0
      %8548 = vmatmul.mubr.bf16.gmra.mrb[0].mxu0 %v8394
      %v8549 = vpop.f32.mrb[0].mxu0
      %v8550 = vadd.f32 0.0, %v8549
      %v8551 = vpop.f32.mrb[0].mxu0
      %v8552 = vpop.f32.mrb[0].mxu0
      %v8553 = vadd.f32 0.0, %v8552
      %v8554 = vpop.f32.mrb[0].mxu0
      %8555 = vmatprep.mubr.bf16.mxu0 0
      %8556 = vmatmul.mubr.bf16.gmra.mrb[0].mxu0 %v8397
      %v8557 = vpop.f32.mrb[0].mxu0
      %v8558 = vadd.f32 0.0, %v8557
      %v8559 = vpop.f32.mrb[0].mxu0
      %v8560 = vpop.f32.mrb[0].mxu0
      %v8561 = vadd.f32 0.0, %v8560
      %v8562 = vpop.f32.mrb[0].mxu0
      %8563 = vmatprep.mubr.bf16.mxu0 0
      %8564 = vmatmul.mubr.bf16.gmra.mrb[0].mxu0 %v8400
      %v8565 = vpop.f32.mrb[0].mxu0
      %v8566 = vadd.f32 0.0, %v8565
      %v8567 = vpop.f32.mrb[0].mxu0
      %v8568 = vpop.f32.mrb[0].mxu0
      %v8569 = vadd.f32 0.0, %v8568
      %v8570 = vpop.f32.mrb[0].mxu0
      %8571 = vmatprep.mubr.bf16.mxu0 0
      %8572 = vmatmul.mubr.bf16.gmra.mrb[0].mxu0 %v8403
      %v8573 = vpop.f32.mrb[0].mxu0
      %v8574 = vadd.f32 0.0, %v8573
      %v8575 = vpop.f32.mrb[0].mxu0
      %v8576 = vpop.f32.mrb[0].mxu0
      %v8577 = vadd.f32 0.0, %v8576
      %v8578 = vpop.f32.mrb[0].mxu0
      %8579 = vmatprep.mubr.bf16.mxu0 0
      %8580 = vmatmul.mubr.bf16.gmra.mrb[0].mxu0 %v8406
      %v8581 = vpop.f32.mrb[0].mxu0
      %v8582 = vadd.f32 0.0, %v8581
      %v8583 = vpop.f32.mrb[0].mxu0
      %v8584 = vpop.f32.mrb[0].mxu0
      %v8585 = vadd.f32 0.0, %v8584
      %v8586 = vpop.f32.mrb[0].mxu0
      %8587 = vdwg.mxu0
      %v8588 = vadd.f32 %v8227, %v8446
      %v8589 = vadd.f32 %v8228, %v8449
      %v8590 = vadd.f32 %v8229, %v8454
      %v8591 = vadd.f32 %v8230, %v8457
      %v8592 = vadd.f32 %v8231, %v8462
      %v8593 = vadd.f32 %v8232, %v8465
      %v8594 = vadd.f32 %v8233, %v8470
      %v8595 = vadd.f32 %v8234, %v8473
      %v8596 = vadd.f32 %v8235, %v8478
      %v8597 = vadd.f32 %v8236, %v8481
      %v8598 = vadd.f32 %v8237, %v8486
      %v8599 = vadd.f32 %v8238, %v8489
      %v8600 = vadd.f32 %v8239, %v8494
      %v8601 = vadd.f32 %v8240, %v8497
      %v8602 = vadd.f32 %v8241, %v8502
      %v8603 = vadd.f32 %v8242, %v8505
      %v8604 = vadd.f32 %v8243, %v8510
      %v8605 = vadd.f32 %v8244, %v8513
      %v8606 = vadd.f32 %v8245, %v8518
      %v8607 = vadd.f32 %v8246, %v8521
      %v8608 = vadd.f32 %v8247, %v8526
      %v8609 = vadd.f32 %v8248, %v8529
      %v8610 = vadd.f32 %v8249, %v8534
      %v8611 = vadd.f32 %v8250, %v8537
      %v8612 = vadd.f32 %v8251, %v8542
      %v8613 = vadd.f32 %v8252, %v8545
      %v8614 = vadd.f32 %v8253, %v8550
      %v8615 = vadd.f32 %v8254, %v8553
      %v8616 = vadd.f32 %v8255, %v8558
      %v8617 = vadd.f32 %v8256, %v8561
      %v8618 = vadd.f32 %v8257, %v8566
      %v8619 = vadd.f32 %v8258, %v8569
      %v8620 = vadd.f32 %v8259, %v8574
      %v8621 = vadd.f32 %v8260, %v8577
      %v8622 = vadd.f32 %v8261, %v8582
      %v8623 = vadd.f32 %v8262, %v8585
      %v8624 = vld [vmem:[#allocation2 + $0x14] sm:$0xe]
      %v8625 = vld [vmem:[#allocation2 + $0x18] sm:$0xf]
      %v8626 = vld [vmem:[#allocation2 + $0x1c] sm:$0xf]
      %v8627 = vld [vmem:[#allocation2 + $0x20] sm:$0xf]
      %v8628 = vld [vmem:[#allocation2 + $0x24] sm:$0xf]
      %v8629 = vld [vmem:[#allocation2 + $0x28] sm:$0xf]
      %v8630 = vld [vmem:[#allocation2 + $0x2c] sm:$0xf]
      %v8631 = vld [vmem:[#allocation2 + $0x30] sm:$0xf]
      %v8632 = vld [vmem:[#allocation2 + $0x34] sm:$0xf]
      %v8633 = vld [vmem:[#allocation2 + $0x38] sm:$0xf]
      %v8634 = vld [vmem:[#allocation2 + $0x3c] sm:$0xf]
      %v8635 = vld [vmem:[#allocation2 + $0x40] sm:$0xf]
      %v8636 = vld [vmem:[#allocation2 + $0x44] sm:$0xf]
      %v8637 = vld [vmem:[#allocation2 + $0x48] sm:$0xf]
      %v8638 = vld [vmem:[#allocation2 + $0x4c] sm:$0xf]
      %v8639 = vld [vmem:[#allocation2 + $0x50] sm:$0xf]
      %v8640 = vld [vmem:[#allocation2 + $0x54] sm:$0xf]
      %v8641 = vld [vmem:[#allocation2 + $0x58] sm:$0xf]
      %v8642 = vld [vmem:[#allocation2 + $0x5c] sm:$0xf]
      %v8643 = vld [vmem:[#allocation2 + $0x60] sm:$0xf]
      %v8644 = vld [vmem:[#allocation2 + $0x64] sm:$0xf]
      %v8645 = vld [vmem:[#allocation2 + $0x68] sm:$0xf]
      %v8646 = vld [vmem:[#allocation2 + $0x6c] sm:$0xf]
      %v8647 = vld [vmem:[#allocation2 + $0x70] sm:$0xf]
      %v8648 = vld [vmem:[#allocation2 + $0x74] sm:$0xf]
      %v8649 = vld [vmem:[#allocation2 + $0x78] sm:$0xf]
      %v8650 = vld [vmem:[#allocation2 + $0x7c] sm:$0xf]
      %v8651 = vld [vmem:[#allocation2 + $0x80] sm:$0xf]
      %v8652 = vld [vmem:[#allocation2 + $0x84] sm:$0xf]
      %v8653 = vld [vmem:[#allocation2 + $0x88] sm:$0xf]
      %v8654 = vld [vmem:[#allocation2 + $0x8c] sm:$0xf]
      %v8655 = vld [vmem:[#allocation2 + $0x90] sm:$0xf]
      %v8656 = vld [vmem:[#allocation2 + $0x94] sm:$0xf]
      %v8657 = vld [vmem:[#allocation2 + $0x98] sm:$0xf]
      %v8658 = vld [vmem:[#allocation2 + $0x9c] sm:$0xf]
      %v8659 = vld [vmem:[#allocation2 + $0xa0] sm:$0xf]
      %v8660 = vld [vmem:[#allocation2 + $0xa4] sm:$0x3]
      %s8661 = scalar_lea.vmem %s2, 24
      %v8662 = vld [vmem:[%s8661] sm:$0xf]
      %v8700 = vunpack.c.l.b16 %v8624
      %v8701 = vunpack.c.l.b16 %v8625
      %v8702 = vunpack.c.l.b16 %v8626
      %v8703 = vunpack.c.l.b16 %v8627
      %v8704 = vunpack.c.l.b16 %v8628
      %v8705 = vunpack.c.l.b16 %v8629
      %v8706 = vunpack.c.l.b16 %v8630
      %v8707 = vunpack.c.l.b16 %v8631
      %v8708 = vunpack.c.l.b16 %v8632
      %v8709 = vunpack.c.l.b16 %v8633
      %v8710 = vunpack.c.l.b16 %v8634
      %v8711 = vunpack.c.l.b16 %v8635
      %v8712 = vunpack.c.l.b16 %v8636
      %v8713 = vunpack.c.l.b16 %v8637
      %v8714 = vunpack.c.l.b16 %v8638
      %v8715 = vunpack.c.l.b16 %v8639
      %v8716 = vunpack.c.l.b16 %v8640
      %v8717 = vunpack.c.l.b16 %v8641
      %v8718 = vunpack.c.l.b16 %v8642
      %v8719 = vunpack.c.l.b16 %v8643
      %v8720 = vunpack.c.l.b16 %v8644
      %v8721 = vunpack.c.l.b16 %v8645
      %v8722 = vunpack.c.l.b16 %v8646
      %v8723 = vunpack.c.l.b16 %v8647
      %v8724 = vunpack.c.l.b16 %v8648
      %v8725 = vunpack.c.l.b16 %v8649
      %v8726 = vunpack.c.l.b16 %v8650
      %v8727 = vunpack.c.l.b16 %v8651
      %v8728 = vunpack.c.l.b16 %v8652
      %v8729 = vunpack.c.l.b16 %v8653
      %v8730 = vunpack.c.l.b16 %v8654
      %v8731 = vunpack.c.l.b16 %v8655
      %v8732 = vunpack.c.l.b16 %v8656
      %v8733 = vunpack.c.l.b16 %v8657
      %v8734 = vunpack.c.l.b16 %v8658
      %v8735 = vunpack.c.l.b16 %v8659
      %v8736 = vunpack.c.l.b16 %v8660
      %v8737 = vpack.c.b16 %v8701, %v8700
      %v8738 = vpack.c.b16 %v8703, %v8702
      %v8739 = vpack.c.b16 %v8705, %v8704
      %v8740 = vpack.c.b16 %v8707, %v8706
      %v8741 = vpack.c.b16 %v8709, %v8708
      %v8742 = vpack.c.b16 %v8711, %v8710
      %v8743 = vpack.c.b16 %v8713, %v8712
      %v8744 = vpack.c.b16 %v8715, %v8714
      %v8745 = vpack.c.b16 %v8717, %v8716
      %v8746 = vpack.c.b16 %v8719, %v8718
      %v8747 = vpack.c.b16 %v8721, %v8720
      %v8748 = vpack.c.b16 %v8723, %v8722
      %v8749 = vpack.c.b16 %v8725, %v8724
      %v8750 = vpack.c.b16 %v8727, %v8726
      %v8751 = vpack.c.b16 %v8729, %v8728
      %v8752 = vpack.c.b16 %v8731, %v8730
      %v8753 = vpack.c.b16 %v8733, %v8732
      %v8754 = vpack.c.b16 %v8735, %v8734
      %v8755 = vpack.c.b16 %v8736, %v8736
      %v8757 = vshrl.u32 %v8737, 16
      %v8759 = vrot.slane %v8757, 1
      %v8760 = vshll.u32 %v8737, 16
      %v8762 = vrot.slane %v8760, 2
      %v8763 = vor.u32 %v8759, %v8762
      %v8765 = vshrl.u32 %v8738, 16
      %v8767 = vrot.slane %v8765, 1
      %v8768 = vshll.u32 %v8738, 16
      %v8770 = vrot.slane %v8768, 2
      %v8771 = vor.u32 %v8767, %v8770
      %v8772 = vsel %vm1924, %v8763, %v8771
      %v8774 = vshrl.u32 %v8739, 16
      %v8776 = vrot.slane %v8774, 1
      %v8777 = vshll.u32 %v8739, 16
      %v8779 = vrot.slane %v8777, 2
      %v8780 = vor.u32 %v8776, %v8779
      %v8781 = vsel %vm1924, %v8771, %v8780
      %v8783 = vshrl.u32 %v8740, 16
      %v8785 = vrot.slane %v8783, 1
      %v8786 = vshll.u32 %v8740, 16
      %v8788 = vrot.slane %v8786, 2
      %v8789 = vor.u32 %v8785, %v8788
      %v8790 = vsel %vm1924, %v8780, %v8789
      %v8792 = vshrl.u32 %v8741, 16
      %v8794 = vrot.slane %v8792, 1
      %v8795 = vshll.u32 %v8741, 16
      %v8797 = vrot.slane %v8795, 2
      %v8798 = vor.u32 %v8794, %v8797
      %v8799 = vsel %vm1924, %v8789, %v8798
      %v8801 = vshrl.u32 %v8742, 16
      %v8803 = vrot.slane %v8801, 1
      %v8804 = vshll.u32 %v8742, 16
      %v8806 = vrot.slane %v8804, 2
      %v8807 = vor.u32 %v8803, %v8806
      %v8808 = vsel %vm1924, %v8798, %v8807
      %v8810 = vshrl.u32 %v8743, 16
      %v8812 = vrot.slane %v8810, 1
      %v8813 = vshll.u32 %v8743, 16
      %v8815 = vrot.slane %v8813, 2
      %v8816 = vor.u32 %v8812, %v8815
      %v8817 = vsel %vm1924, %v8807, %v8816
      %v8819 = vshrl.u32 %v8744, 16
      %v8821 = vrot.slane %v8819, 1
      %v8822 = vshll.u32 %v8744, 16
      %v8824 = vrot.slane %v8822, 2
      %v8825 = vor.u32 %v8821, %v8824
      %v8826 = vsel %vm1924, %v8816, %v8825
      %v8828 = vshrl.u32 %v8745, 16
      %v8830 = vrot.slane %v8828, 1
      %v8831 = vshll.u32 %v8745, 16
      %v8833 = vrot.slane %v8831, 2
      %v8834 = vor.u32 %v8830, %v8833
      %v8835 = vsel %vm1924, %v8825, %v8834
      %v8837 = vshrl.u32 %v8746, 16
      %v8839 = vrot.slane %v8837, 1
      %v8840 = vshll.u32 %v8746, 16
      %v8842 = vrot.slane %v8840, 2
      %v8843 = vor.u32 %v8839, %v8842
      %v8844 = vsel %vm1924, %v8834, %v8843
      %v8846 = vshrl.u32 %v8747, 16
      %v8848 = vrot.slane %v8846, 1
      %v8849 = vshll.u32 %v8747, 16
      %v8851 = vrot.slane %v8849, 2
      %v8852 = vor.u32 %v8848, %v8851
      %v8853 = vsel %vm1924, %v8843, %v8852
      %v8855 = vshrl.u32 %v8748, 16
      %v8857 = vrot.slane %v8855, 1
      %v8858 = vshll.u32 %v8748, 16
      %v8860 = vrot.slane %v8858, 2
      %v8861 = vor.u32 %v8857, %v8860
      %v8862 = vsel %vm1924, %v8852, %v8861
      %v8864 = vshrl.u32 %v8749, 16
      %v8866 = vrot.slane %v8864, 1
      %v8867 = vshll.u32 %v8749, 16
      %v8869 = vrot.slane %v8867, 2
      %v8870 = vor.u32 %v8866, %v8869
      %v8871 = vsel %vm1924, %v8861, %v8870
      %v8873 = vshrl.u32 %v8750, 16
      %v8875 = vrot.slane %v8873, 1
      %v8876 = vshll.u32 %v8750, 16
      %v8878 = vrot.slane %v8876, 2
      %v8879 = vor.u32 %v8875, %v8878
      %v8880 = vsel %vm1924, %v8870, %v8879
      %v8882 = vshrl.u32 %v8751, 16
      %v8884 = vrot.slane %v8882, 1
      %v8885 = vshll.u32 %v8751, 16
      %v8887 = vrot.slane %v8885, 2
      %v8888 = vor.u32 %v8884, %v8887
      %v8889 = vsel %vm1924, %v8879, %v8888
      %v8891 = vshrl.u32 %v8752, 16
      %v8893 = vrot.slane %v8891, 1
      %v8894 = vshll.u32 %v8752, 16
      %v8896 = vrot.slane %v8894, 2
      %v8897 = vor.u32 %v8893, %v8896
      %v8898 = vsel %vm1924, %v8888, %v8897
      %v8900 = vshrl.u32 %v8753, 16
      %v8902 = vrot.slane %v8900, 1
      %v8903 = vshll.u32 %v8753, 16
      %v8905 = vrot.slane %v8903, 2
      %v8906 = vor.u32 %v8902, %v8905
      %v8907 = vsel %vm1924, %v8897, %v8906
      %v8909 = vshrl.u32 %v8754, 16
      %v8911 = vrot.slane %v8909, 1
      %v8912 = vshll.u32 %v8754, 16
      %v8914 = vrot.slane %v8912, 2
      %v8915 = vor.u32 %v8911, %v8914
      %v8916 = vsel %vm1924, %v8906, %v8915
      %v8918 = vshrl.u32 %v8755, 16
      %v8920 = vrot.slane %v8918, 1
      %v8921 = vshll.u32 %v8755, 16
      %v8923 = vrot.slane %v8921, 2
      %v8924 = vor.u32 %v8920, %v8923
      %v8925 = vsel %vm1924, %v8915, %v8924
      %v8927 = vsel %vm6188, %v8772, 0
      %v8930 = vsel %vm6188, %v8781, 0
      %v8933 = vsel %vm6188, %v8790, 0
      %v8936 = vsel %vm6188, %v8799, 0
      %v8939 = vsel %vm6188, %v8808, 0
      %v8942 = vsel %vm6188, %v8817, 0
      %v8945 = vsel %vm6188, %v8826, 0
      %v8948 = vsel %vm6188, %v8835, 0
      %v8951 = vsel %vm6188, %v8844, 0
      %v8954 = vsel %vm6188, %v8853, 0
      %v8957 = vsel %vm6188, %v8862, 0
      %v8960 = vsel %vm6188, %v8871, 0
      %v8963 = vsel %vm6188, %v8880, 0
      %v8966 = vsel %vm6188, %v8889, 0
      %v8969 = vsel %vm6188, %v8898, 0
      %v8972 = vsel %vm6188, %v8907, 0
      %v8975 = vsel %vm6188, %v8916, 0
      %v8978 = vsel %vm6188, %v8925, 0
      %v8981 = vsel %vm6243, %v8662, 0
      %8983 = vmatprep.subr.bf16.mxu0 0
      %8984 = vmatpush1.bf16.msra.mxu0 %v8981
      %8985 = vmatprep.subr.bf16.mxu0 0
      %8986 = vmatpush1.bf16.msra.mxu0 0
      %8987 = vmatprep.subr.bf16.mxu0 0
      %8988 = vmatpush1.bf16.msra.mxu0 0
      %8989 = vmatprep.subr.bf16.mxu0 0
      %8990 = vmatpush1.bf16.msra.mxu0 0
      %8991 = vmatprep.subr.bf16.mxu0 0
      %8992 = vmatpush1.bf16.msra.mxu0 0
      %8993 = vmatprep.subr.bf16.mxu0 0
      %8994 = vmatpush1.bf16.msra.mxu0 0
      %8995 = vmatprep.subr.bf16.mxu0 0
      %8996 = vmatpush1.bf16.msra.mxu0 0
      %8997 = vmatprep.subr.bf16.mxu0 0
      %8998 = vmatpush1.bf16.msra.mxu0 0
      %8999 = vmatprep.subr.bf16.mxu0 0
      %9000 = vmatpush1.bf16.msra.mxu0 0
      %9001 = vmatprep.subr.bf16.mxu0 0
      %9002 = vmatpush1.bf16.msra.mxu0 0
      %9003 = vmatprep.subr.bf16.mxu0 0
      %9004 = vmatpush1.bf16.msra.mxu0 0
      %9005 = vmatprep.subr.bf16.mxu0 0
      %9006 = vmatpush1.bf16.msra.mxu0 0
      %9007 = vmatprep.subr.bf16.mxu0 0
      %9008 = vmatpush1.bf16.msra.mxu0 0
      %9009 = vmatprep.subr.bf16.mxu0 0
      %9010 = vmatpush1.bf16.msra.mxu0 0
      %9011 = vmatprep.subr.bf16.mxu0 0
      %9012 = vmatpush1.bf16.msra.mxu0 0
      %9013 = vmatprep.subr.bf16.mxu0 0
      %9014 = vmatpush1.bf16.msra.mxu0 0
      %9015 = vmatprep.mubr.bf16.mxu0 0
      %9016 = vmatmul.mubr.bf16.gmra.mrb[0].mxu0 %v8927
      %v9017 = vpop.f32.mrb[0].mxu0
      %v9018 = vadd.f32 0.0, %v9017
      %v9019 = vpop.f32.mrb[0].mxu0
      %v9020 = vpop.f32.mrb[0].mxu0
      %v9021 = vadd.f32 0.0, %v9020
      %v9022 = vpop.f32.mrb[0].mxu0
      %9023 = vmatprep.mubr.bf16.mxu0 0
      %9024 = vmatmul.mubr.bf16.gmra.mrb[0].mxu0 %v8930
      %v9025 = vpop.f32.mrb[0].mxu0
      %v9026 = vadd.f32 0.0, %v9025
      %v9027 = vpop.f32.mrb[0].mxu0
      %v9028 = vpop.f32.mrb[0].mxu0
      %v9029 = vadd.f32 0.0, %v9028
      %v9030 = vpop.f32.mrb[0].mxu0
      %9031 = vmatprep.mubr.bf16.mxu0 0
      %9032 = vmatmul.mubr.bf16.gmra.mrb[0].mxu0 %v8933
      %v9033 = vpop.f32.mrb[0].mxu0
      %v9034 = vadd.f32 0.0, %v9033
      %v9035 = vpop.f32.mrb[0].mxu0
      %v9036 = vpop.f32.mrb[0].mxu0
      %v9037 = vadd.f32 0.0, %v9036
      %v9038 = vpop.f32.mrb[0].mxu0
      %9039 = vmatprep.mubr.bf16.mxu0 0
      %9040 = vmatmul.mubr.bf16.gmra.mrb[0].mxu0 %v8936
      %v9041 = vpop.f32.mrb[0].mxu0
      %v9042 = vadd.f32 0.0, %v9041
      %v9043 = vpop.f32.mrb[0].mxu0
      %v9044 = vpop.f32.mrb[0].mxu0
      %v9045 = vadd.f32 0.0, %v9044
      %v9046 = vpop.f32.mrb[0].mxu0
      %9047 = vmatprep.mubr.bf16.mxu0 0
      %9048 = vmatmul.mubr.bf16.gmra.mrb[0].mxu0 %v8939
      %v9049 = vpop.f32.mrb[0].mxu0
      %v9050 = vadd.f32 0.0, %v9049
      %v9051 = vpop.f32.mrb[0].mxu0
      %v9052 = vpop.f32.mrb[0].mxu0
      %v9053 = vadd.f32 0.0, %v9052
      %v9054 = vpop.f32.mrb[0].mxu0
      %9055 = vmatprep.mubr.bf16.mxu0 0
      %9056 = vmatmul.mubr.bf16.gmra.mrb[0].mxu0 %v8942
      %v9057 = vpop.f32.mrb[0].mxu0
      %v9058 = vadd.f32 0.0, %v9057
      %v9059 = vpop.f32.mrb[0].mxu0
      %v9060 = vpop.f32.mrb[0].mxu0
      %v9061 = vadd.f32 0.0, %v9060
      %v9062 = vpop.f32.mrb[0].mxu0
      %9063 = vmatprep.mubr.bf16.mxu0 0
      %9064 = vmatmul.mubr.bf16.gmra.mrb[0].mxu0 %v8945
      %v9065 = vpop.f32.mrb[0].mxu0
      %v9066 = vadd.f32 0.0, %v9065
      %v9067 = vpop.f32.mrb[0].mxu0
      %v9068 = vpop.f32.mrb[0].mxu0
      %v9069 = vadd.f32 0.0, %v9068
      %v9070 = vpop.f32.mrb[0].mxu0
      %9071 = vmatprep.mubr.bf16.mxu0 0
      %9072 = vmatmul.mubr.bf16.gmra.mrb[0].mxu0 %v8948
      %v9073 = vpop.f32.mrb[0].mxu0
      %v9074 = vadd.f32 0.0, %v9073
      %v9075 = vpop.f32.mrb[0].mxu0
      %v9076 = vpop.f32.mrb[0].mxu0
      %v9077 = vadd.f32 0.0, %v9076
      %v9078 = vpop.f32.mrb[0].mxu0
      %9079 = vmatprep.mubr.bf16.mxu0 0
      %9080 = vmatmul.mubr.bf16.gmra.mrb[0].mxu0 %v8951
      %v9081 = vpop.f32.mrb[0].mxu0
      %v9082 = vadd.f32 0.0, %v9081
      %v9083 = vpop.f32.mrb[0].mxu0
      %v9084 = vpop.f32.mrb[0].mxu0
      %v9085 = vadd.f32 0.0, %v9084
      %v9086 = vpop.f32.mrb[0].mxu0
      %9087 = vmatprep.mubr.bf16.mxu0 0
      %9088 = vmatmul.mubr.bf16.gmra.mrb[0].mxu0 %v8954
      %v9089 = vpop.f32.mrb[0].mxu0
      %v9090 = vadd.f32 0.0, %v9089
      %v9091 = vpop.f32.mrb[0].mxu0
      %v9092 = vpop.f32.mrb[0].mxu0
      %v9093 = vadd.f32 0.0, %v9092
      %v9094 = vpop.f32.mrb[0].mxu0
      %9095 = vmatprep.mubr.bf16.mxu0 0
      %9096 = vmatmul.mubr.bf16.gmra.mrb[0].mxu0 %v8957
      %v9097 = vpop.f32.mrb[0].mxu0
      %v9098 = vadd.f32 0.0, %v9097
      %v9099 = vpop.f32.mrb[0].mxu0
      %v9100 = vpop.f32.mrb[0].mxu0
      %v9101 = vadd.f32 0.0, %v9100
      %v9102 = vpop.f32.mrb[0].mxu0
      %9103 = vmatprep.mubr.bf16.mxu0 0
      %9104 = vmatmul.mubr.bf16.gmra.mrb[0].mxu0 %v8960
      %v9105 = vpop.f32.mrb[0].mxu0
      %v9106 = vadd.f32 0.0, %v9105
      %v9107 = vpop.f32.mrb[0].mxu0
      %v9108 = vpop.f32.mrb[0].mxu0
      %v9109 = vadd.f32 0.0, %v9108
      %v9110 = vpop.f32.mrb[0].mxu0
      %9111 = vmatprep.mubr.bf16.mxu0 0
      %9112 = vmatmul.mubr.bf16.gmra.mrb[0].mxu0 %v8963
      %v9113 = vpop.f32.mrb[0].mxu0
      %v9114 = vadd.f32 0.0, %v9113
      %v9115 = vpop.f32.mrb[0].mxu0
      %v9116 = vpop.f32.mrb[0].mxu0
      %v9117 = vadd.f32 0.0, %v9116
      %v9118 = vpop.f32.mrb[0].mxu0
      %9119 = vmatprep.mubr.bf16.mxu0 0
      %9120 = vmatmul.mubr.bf16.gmra.mrb[0].mxu0 %v8966
      %v9121 = vpop.f32.mrb[0].mxu0
      %v9122 = vadd.f32 0.0, %v9121
      %v9123 = vpop.f32.mrb[0].mxu0
      %v9124 = vpop.f32.mrb[0].mxu0
      %v9125 = vadd.f32 0.0, %v9124
      %v9126 = vpop.f32.mrb[0].mxu0
      %9127 = vmatprep.mubr.bf16.mxu0 0
      %9128 = vmatmul.mubr.bf16.gmra.mrb[0].mxu0 %v8969
      %v9129 = vpop.f32.mrb[0].mxu0
      %v9130 = vadd.f32 0.0, %v9129
      %v9131 = vpop.f32.mrb[0].mxu0
      %v9132 = vpop.f32.mrb[0].mxu0
      %v9133 = vadd.f32 0.0, %v9132
      %v9134 = vpop.f32.mrb[0].mxu0
      %9135 = vmatprep.mubr.bf16.mxu0 0
      %9136 = vmatmul.mubr.bf16.gmra.mrb[0].mxu0 %v8972
      %v9137 = vpop.f32.mrb[0].mxu0
      %v9138 = vadd.f32 0.0, %v9137
      %v9139 = vpop.f32.mrb[0].mxu0
      %v9140 = vpop.f32.mrb[0].mxu0
      %v9141 = vadd.f32 0.0, %v9140
      %v9142 = vpop.f32.mrb[0].mxu0
      %9143 = vmatprep.mubr.bf16.mxu0 0
      %9144 = vmatmul.mubr.bf16.gmra.mrb[0].mxu0 %v8975
      %v9145 = vpop.f32.mrb[0].mxu0
      %v9146 = vadd.f32 0.0, %v9145
      %v9147 = vpop.f32.mrb[0].mxu0
      %v9148 = vpop.f32.mrb[0].mxu0
      %v9149 = vadd.f32 0.0, %v9148
      %v9150 = vpop.f32.mrb[0].mxu0
      %9151 = vmatprep.mubr.bf16.mxu0 0
      %9152 = vmatmul.mubr.bf16.gmra.mrb[0].mxu0 %v8978
      %v9153 = vpop.f32.mrb[0].mxu0
      %v9154 = vadd.f32 0.0, %v9153
      %v9155 = vpop.f32.mrb[0].mxu0
      %v9156 = vpop.f32.mrb[0].mxu0
      %v9157 = vadd.f32 0.0, %v9156
      %v9158 = vpop.f32.mrb[0].mxu0
      %9159 = vdwg.mxu0
      %v9160 = vadd.f32 %v8588, %v9018
      %v9161 = vadd.f32 %v8589, %v9021
      %v9162 = vadd.f32 %v8590, %v9026
      %v9163 = vadd.f32 %v8591, %v9029
      %v9164 = vadd.f32 %v8592, %v9034
      %v9165 = vadd.f32 %v8593, %v9037
      %v9166 = vadd.f32 %v8594, %v9042
      %v9167 = vadd.f32 %v8595, %v9045
      %v9168 = vadd.f32 %v8596, %v9050
      %v9169 = vadd.f32 %v8597, %v9053
      %v9170 = vadd.f32 %v8598, %v9058
      %v9171 = vadd.f32 %v8599, %v9061
      %v9172 = vadd.f32 %v8600, %v9066
      %v9173 = vadd.f32 %v8601, %v9069
      %v9174 = vadd.f32 %v8602, %v9074
      %v9175 = vadd.f32 %v8603, %v9077
      %v9176 = vadd.f32 %v8604, %v9082
      %v9177 = vadd.f32 %v8605, %v9085
      %v9178 = vadd.f32 %v8606, %v9090
      %v9179 = vadd.f32 %v8607, %v9093
      %v9180 = vadd.f32 %v8608, %v9098
      %v9181 = vadd.f32 %v8609, %v9101
      %v9182 = vadd.f32 %v8610, %v9106
      %v9183 = vadd.f32 %v8611, %v9109
      %v9184 = vadd.f32 %v8612, %v9114
      %v9185 = vadd.f32 %v8613, %v9117
      %v9186 = vadd.f32 %v8614, %v9122
      %v9187 = vadd.f32 %v8615, %v9125
      %v9188 = vadd.f32 %v8616, %v9130
      %v9189 = vadd.f32 %v8617, %v9133
      %v9190 = vadd.f32 %v8618, %v9138
      %v9191 = vadd.f32 %v8619, %v9141
      %v9192 = vadd.f32 %v8620, %v9146
      %v9193 = vadd.f32 %v8621, %v9149
      %v9194 = vadd.f32 %v8622, %v9154
      %v9195 = vadd.f32 %v8623, %v9157
      %v9196 = vld [vmem:[#allocation2 + $0x14] sm:$0xc]
      %s9197 = scalar_lea.vmem %s2, 28
      %v9198 = vld [vmem:[%s9197] sm:$0xf]
      %v9200 = vunpack.c.l.b16 %v9196
      %v9201 = vpack.c.b16 %v8701, %v9200
      %v9202 = vrot.slane %v9201, 2
      %v9203 = vrot.slane %v8738, 2
      %v9204 = vsel %vm2426, %v9202, %v9203
      %v9205 = vrot.slane %v8739, 2
      %v9206 = vsel %vm2426, %v9203, %v9205
      %v9207 = vrot.slane %v8740, 2
      %v9208 = vsel %vm2426, %v9205, %v9207
      %v9209 = vrot.slane %v8741, 2
      %v9210 = vsel %vm2426, %v9207, %v9209
      %v9211 = vrot.slane %v8742, 2
      %v9212 = vsel %vm2426, %v9209, %v9211
      %v9213 = vrot.slane %v8743, 2
      %v9214 = vsel %vm2426, %v9211, %v9213
      %v9215 = vrot.slane %v8744, 2
      %v9216 = vsel %vm2426, %v9213, %v9215
      %v9217 = vrot.slane %v8745, 2
      %v9218 = vsel %vm2426, %v9215, %v9217
      %v9219 = vrot.slane %v8746, 2
      %v9220 = vsel %vm2426, %v9217, %v9219
      %v9221 = vrot.slane %v8747, 2
      %v9222 = vsel %vm2426, %v9219, %v9221
      %v9223 = vrot.slane %v8748, 2
      %v9224 = vsel %vm2426, %v9221, %v9223
      %v9225 = vrot.slane %v8749, 2
      %v9226 = vsel %vm2426, %v9223, %v9225
      %v9227 = vrot.slane %v8750, 2
      %v9228 = vsel %vm2426, %v9225, %v9227
      %v9229 = vrot.slane %v8751, 2
      %v9230 = vsel %vm2426, %v9227, %v9229
      %v9231 = vrot.slane %v8752, 2
      %v9232 = vsel %vm2426, %v9229, %v9231
      %v9233 = vrot.slane %v8753, 2
      %v9234 = vsel %vm2426, %v9231, %v9233
      %v9235 = vrot.slane %v8754, 2
      %v9236 = vsel %vm2426, %v9233, %v9235
      %v9237 = vrot.slane %v8755, 2
      %v9238 = vsel %vm2426, %v9235, %v9237
      %v9240 = vsel %vm6188, %v9204, 0
      %v9243 = vsel %vm6188, %v9206, 0
      %v9246 = vsel %vm6188, %v9208, 0
      %v9249 = vsel %vm6188, %v9210, 0
      %v9252 = vsel %vm6188, %v9212, 0
      %v9255 = vsel %vm6188, %v9214, 0
      %v9258 = vsel %vm6188, %v9216, 0
      %v9261 = vsel %vm6188, %v9218, 0
      %v9264 = vsel %vm6188, %v9220, 0
      %v9267 = vsel %vm6188, %v9222, 0
      %v9270 = vsel %vm6188, %v9224, 0
      %v9273 = vsel %vm6188, %v9226, 0
      %v9276 = vsel %vm6188, %v9228, 0
      %v9279 = vsel %vm6188, %v9230, 0
      %v9282 = vsel %vm6188, %v9232, 0
      %v9285 = vsel %vm6188, %v9234, 0
      %v9288 = vsel %vm6188, %v9236, 0
      %v9291 = vsel %vm6188, %v9238, 0
      %v9294 = vsel %vm6243, %v9198, 0
      %9296 = vmatprep.subr.bf16.mxu0 0
      %9297 = vmatpush1.bf16.msra.mxu0 %v9294
      %9298 = vmatprep.subr.bf16.mxu0 0
      %9299 = vmatpush1.bf16.msra.mxu0 0
      %9300 = vmatprep.subr.bf16.mxu0 0
      %9301 = vmatpush1.bf16.msra.mxu0 0
      %9302 = vmatprep.subr.bf16.mxu0 0
      %9303 = vmatpush1.bf16.msra.mxu0 0
      %9304 = vmatprep.subr.bf16.mxu0 0
      %9305 = vmatpush1.bf16.msra.mxu0 0
      %9306 = vmatprep.subr.bf16.mxu0 0
      %9307 = vmatpush1.bf16.msra.mxu0 0
      %9308 = vmatprep.subr.bf16.mxu0 0
      %9309 = vmatpush1.bf16.msra.mxu0 0
      %9310 = vmatprep.subr.bf16.mxu0 0
      %9311 = vmatpush1.bf16.msra.mxu0 0
      %9312 = vmatprep.subr.bf16.mxu0 0
      %9313 = vmatpush1.bf16.msra.mxu0 0
      %9314 = vmatprep.subr.bf16.mxu0 0
      %9315 = vmatpush1.bf16.msra.mxu0 0
      %9316 = vmatprep.subr.bf16.mxu0 0
      %9317 = vmatpush1.bf16.msra.mxu0 0
      %9318 = vmatprep.subr.bf16.mxu0 0
      %9319 = vmatpush1.bf16.msra.mxu0 0
      %9320 = vmatprep.subr.bf16.mxu0 0
      %9321 = vmatpush1.bf16.msra.mxu0 0
      %9322 = vmatprep.subr.bf16.mxu0 0
      %9323 = vmatpush1.bf16.msra.mxu0 0
      %9324 = vmatprep.subr.bf16.mxu0 0
      %9325 = vmatpush1.bf16.msra.mxu0 0
      %9326 = vmatprep.subr.bf16.mxu0 0
      %9327 = vmatpush1.bf16.msra.mxu0 0
      %9328 = vmatprep.mubr.bf16.mxu0 0
      %9329 = vmatmul.mubr.bf16.gmra.mrb[0].mxu0 %v9240
      %v9330 = vpop.f32.mrb[0].mxu0
      %v9331 = vadd.f32 0.0, %v9330
      %v9332 = vpop.f32.mrb[0].mxu0
      %v9333 = vpop.f32.mrb[0].mxu0
      %v9334 = vadd.f32 0.0, %v9333
      %v9335 = vpop.f32.mrb[0].mxu0
      %9336 = vmatprep.mubr.bf16.mxu0 0
      %9337 = vmatmul.mubr.bf16.gmra.mrb[0].mxu0 %v9243
      %v9338 = vpop.f32.mrb[0].mxu0
      %v9339 = vadd.f32 0.0, %v9338
      %v9340 = vpop.f32.mrb[0].mxu0
      %v9341 = vpop.f32.mrb[0].mxu0
      %v9342 = vadd.f32 0.0, %v9341
      %v9343 = vpop.f32.mrb[0].mxu0
      %9344 = vmatprep.mubr.bf16.mxu0 0
      %9345 = vmatmul.mubr.bf16.gmra.mrb[0].mxu0 %v9246
      %v9346 = vpop.f32.mrb[0].mxu0
      %v9347 = vadd.f32 0.0, %v9346
      %v9348 = vpop.f32.mrb[0].mxu0
      %v9349 = vpop.f32.mrb[0].mxu0
      %v9350 = vadd.f32 0.0, %v9349
      %v9351 = vpop.f32.mrb[0].mxu0
      %9352 = vmatprep.mubr.bf16.mxu0 0
      %9353 = vmatmul.mubr.bf16.gmra.mrb[0].mxu0 %v9249
      %v9354 = vpop.f32.mrb[0].mxu0
      %v9355 = vadd.f32 0.0, %v9354
      %v9356 = vpop.f32.mrb[0].mxu0
      %v9357 = vpop.f32.mrb[0].mxu0
      %v9358 = vadd.f32 0.0, %v9357
      %v9359 = vpop.f32.mrb[0].mxu0
      %9360 = vmatprep.mubr.bf16.mxu0 0
      %9361 = vmatmul.mubr.bf16.gmra.mrb[0].mxu0 %v9252
      %v9362 = vpop.f32.mrb[0].mxu0
      %v9363 = vadd.f32 0.0, %v9362
      %v9364 = vpop.f32.mrb[0].mxu0
      %v9365 = vpop.f32.mrb[0].mxu0
      %v9366 = vadd.f32 0.0, %v9365
      %v9367 = vpop.f32.mrb[0].mxu0
      %9368 = vmatprep.mubr.bf16.mxu0 0
      %9369 = vmatmul.mubr.bf16.gmra.mrb[0].mxu0 %v9255
      %v9370 = vpop.f32.mrb[0].mxu0
      %v9371 = vadd.f32 0.0, %v9370
      %v9372 = vpop.f32.mrb[0].mxu0
      %v9373 = vpop.f32.mrb[0].mxu0
      %v9374 = vadd.f32 0.0, %v9373
      %v9375 = vpop.f32.mrb[0].mxu0
      %9376 = vmatprep.mubr.bf16.mxu0 0
      %9377 = vmatmul.mubr.bf16.gmra.mrb[0].mxu0 %v9258
      %v9378 = vpop.f32.mrb[0].mxu0
      %v9379 = vadd.f32 0.0, %v9378
      %v9380 = vpop.f32.mrb[0].mxu0
      %v9381 = vpop.f32.mrb[0].mxu0
      %v9382 = vadd.f32 0.0, %v9381
      %v9383 = vpop.f32.mrb[0].mxu0
      %9384 = vmatprep.mubr.bf16.mxu0 0
      %9385 = vmatmul.mubr.bf16.gmra.mrb[0].mxu0 %v9261
      %v9386 = vpop.f32.mrb[0].mxu0
      %v9387 = vadd.f32 0.0, %v9386
      %v9388 = vpop.f32.mrb[0].mxu0
      %v9389 = vpop.f32.mrb[0].mxu0
      %v9390 = vadd.f32 0.0, %v9389
      %v9391 = vpop.f32.mrb[0].mxu0
      %9392 = vmatprep.mubr.bf16.mxu0 0
      %9393 = vmatmul.mubr.bf16.gmra.mrb[0].mxu0 %v9264
      %v9394 = vpop.f32.mrb[0].mxu0
      %v9395 = vadd.f32 0.0, %v9394
      %v9396 = vpop.f32.mrb[0].mxu0
      %v9397 = vpop.f32.mrb[0].mxu0
      %v9398 = vadd.f32 0.0, %v9397
      %v9399 = vpop.f32.mrb[0].mxu0
      %9400 = vmatprep.mubr.bf16.mxu0 0
      %9401 = vmatmul.mubr.bf16.gmra.mrb[0].mxu0 %v9267
      %v9402 = vpop.f32.mrb[0].mxu0
      %v9403 = vadd.f32 0.0, %v9402
      %v9404 = vpop.f32.mrb[0].mxu0
      %v9405 = vpop.f32.mrb[0].mxu0
      %v9406 = vadd.f32 0.0, %v9405
      %v9407 = vpop.f32.mrb[0].mxu0
      %9408 = vmatprep.mubr.bf16.mxu0 0
      %9409 = vmatmul.mubr.bf16.gmra.mrb[0].mxu0 %v9270
      %v9410 = vpop.f32.mrb[0].mxu0
      %v9411 = vadd.f32 0.0, %v9410
      %v9412 = vpop.f32.mrb[0].mxu0
      %v9413 = vpop.f32.mrb[0].mxu0
      %v9414 = vadd.f32 0.0, %v9413
      %v9415 = vpop.f32.mrb[0].mxu0
      %9416 = vmatprep.mubr.bf16.mxu0 0
      %9417 = vmatmul.mubr.bf16.gmra.mrb[0].mxu0 %v9273
      %v9418 = vpop.f32.mrb[0].mxu0
      %v9419 = vadd.f32 0.0, %v9418
      %v9420 = vpop.f32.mrb[0].mxu0
      %v9421 = vpop.f32.mrb[0].mxu0
      %v9422 = vadd.f32 0.0, %v9421
      %v9423 = vpop.f32.mrb[0].mxu0
      %9424 = vmatprep.mubr.bf16.mxu0 0
      %9425 = vmatmul.mubr.bf16.gmra.mrb[0].mxu0 %v9276
      %v9426 = vpop.f32.mrb[0].mxu0
      %v9427 = vadd.f32 0.0, %v9426
      %v9428 = vpop.f32.mrb[0].mxu0
      %v9429 = vpop.f32.mrb[0].mxu0
      %v9430 = vadd.f32 0.0, %v9429
      %v9431 = vpop.f32.mrb[0].mxu0
      %9432 = vmatprep.mubr.bf16.mxu0 0
      %9433 = vmatmul.mubr.bf16.gmra.mrb[0].mxu0 %v9279
      %v9434 = vpop.f32.mrb[0].mxu0
      %v9435 = vadd.f32 0.0, %v9434
      %v9436 = vpop.f32.mrb[0].mxu0
      %v9437 = vpop.f32.mrb[0].mxu0
      %v9438 = vadd.f32 0.0, %v9437
      %v9439 = vpop.f32.mrb[0].mxu0
      %9440 = vmatprep.mubr.bf16.mxu0 0
      %9441 = vmatmul.mubr.bf16.gmra.mrb[0].mxu0 %v9282
      %v9442 = vpop.f32.mrb[0].mxu0
      %v9443 = vadd.f32 0.0, %v9442
      %v9444 = vpop.f32.mrb[0].mxu0
      %v9445 = vpop.f32.mrb[0].mxu0
      %v9446 = vadd.f32 0.0, %v9445
      %v9447 = vpop.f32.mrb[0].mxu0
      %9448 = vmatprep.mubr.bf16.mxu0 0
      %9449 = vmatmul.mubr.bf16.gmra.mrb[0].mxu0 %v9285
      %v9450 = vpop.f32.mrb[0].mxu0
      %v9451 = vadd.f32 0.0, %v9450
      %v9452 = vpop.f32.mrb[0].mxu0
      %v9453 = vpop.f32.mrb[0].mxu0
      %v9454 = vadd.f32 0.0, %v9453
      %v9455 = vpop.f32.mrb[0].mxu0
      %9456 = vmatprep.mubr.bf16.mxu0 0
      %9457 = vmatmul.mubr.bf16.gmra.mrb[0].mxu0 %v9288
      %v9458 = vpop.f32.mrb[0].mxu0
      %v9459 = vadd.f32 0.0, %v9458
      %v9460 = vpop.f32.mrb[0].mxu0
      %v9461 = vpop.f32.mrb[0].mxu0
      %v9462 = vadd.f32 0.0, %v9461
      %v9463 = vpop.f32.mrb[0].mxu0
      %9464 = vmatprep.mubr.bf16.mxu0 0
      %9465 = vmatmul.mubr.bf16.gmra.mrb[0].mxu0 %v9291
      %v9466 = vpop.f32.mrb[0].mxu0
      %v9467 = vadd.f32 0.0, %v9466
      %v9468 = vpop.f32.mrb[0].mxu0
      %v9469 = vpop.f32.mrb[0].mxu0
      %v9470 = vadd.f32 0.0, %v9469
      %v9471 = vpop.f32.mrb[0].mxu0
      %9472 = vdwg.mxu0
      %v9473 = vadd.f32 %v9160, %v9331
      %v9474 = vadd.f32 %v9161, %v9334
      %v9475 = vadd.f32 %v9162, %v9339
      %v9476 = vadd.f32 %v9163, %v9342
      %v9477 = vadd.f32 %v9164, %v9347
      %v9478 = vadd.f32 %v9165, %v9350
      %v9479 = vadd.f32 %v9166, %v9355
      %v9480 = vadd.f32 %v9167, %v9358
      %v9481 = vadd.f32 %v9168, %v9363
      %v9482 = vadd.f32 %v9169, %v9366
      %v9483 = vadd.f32 %v9170, %v9371
      %v9484 = vadd.f32 %v9171, %v9374
      %v9485 = vadd.f32 %v9172, %v9379
      %v9486 = vadd.f32 %v9173, %v9382
      %v9487 = vadd.f32 %v9174, %v9387
      %v9488 = vadd.f32 %v9175, %v9390
      %v9489 = vadd.f32 %v9176, %v9395
      %v9490 = vadd.f32 %v9177, %v9398
      %v9491 = vadd.f32 %v9178, %v9403
      %v9492 = vadd.f32 %v9179, %v9406
      %v9493 = vadd.f32 %v9180, %v9411
      %v9494 = vadd.f32 %v9181, %v9414
      %v9495 = vadd.f32 %v9182, %v9419
      %v9496 = vadd.f32 %v9183, %v9422
      %v9497 = vadd.f32 %v9184, %v9427
      %v9498 = vadd.f32 %v9185, %v9430
      %v9499 = vadd.f32 %v9186, %v9435
      %v9500 = vadd.f32 %v9187, %v9438
      %v9501 = vadd.f32 %v9188, %v9443
      %v9502 = vadd.f32 %v9189, %v9446
      %v9503 = vadd.f32 %v9190, %v9451
      %v9504 = vadd.f32 %v9191, %v9454
      %v9505 = vadd.f32 %v9192, %v9459
      %v9506 = vadd.f32 %v9193, %v9462
      %v9507 = vadd.f32 %v9194, %v9467
      %v9508 = vadd.f32 %v9195, %v9470
      %v9509 = vld [vmem:[#allocation2 + $0xa4] sm:$0x7]
      %s9510 = scalar_lea.vmem %s2, 32
      %v9511 = vld [vmem:[%s9510] sm:$0xf]
      %v9513 = vunpack.c.l.b16 %v9509
      %v9514 = vpack.c.b16 %v9513, %v9513
      %v9516 = vshrl.u32 %v9201, 16
      %v9518 = vrot.slane %v9516, 2
      %v9519 = vshll.u32 %v9201, 16
      %v9521 = vrot.slane %v9519, 3
      %v9522 = vor.u32 %v9518, %v9521
      %v9523 = vrot.slane %v8765, 2
      %v9524 = vrot.slane %v8768, 3
      %v9525 = vor.u32 %v9523, %v9524
      %v9526 = vsel %vm3418, %v9522, %v9525
      %v9527 = vrot.slane %v8774, 2
      %v9528 = vrot.slane %v8777, 3
      %v9529 = vor.u32 %v9527, %v9528
      %v9530 = vsel %vm3418, %v9525, %v9529
      %v9531 = vrot.slane %v8783, 2
      %v9532 = vrot.slane %v8786, 3
      %v9533 = vor.u32 %v9531, %v9532
      %v9534 = vsel %vm3418, %v9529, %v9533
      %v9535 = vrot.slane %v8792, 2
      %v9536 = vrot.slane %v8795, 3
      %v9537 = vor.u32 %v9535, %v9536
      %v9538 = vsel %vm3418, %v9533, %v9537
      %v9539 = vrot.slane %v8801, 2
      %v9540 = vrot.slane %v8804, 3
      %v9541 = vor.u32 %v9539, %v9540
      %v9542 = vsel %vm3418, %v9537, %v9541
      %v9543 = vrot.slane %v8810, 2
      %v9544 = vrot.slane %v8813, 3
      %v9545 = vor.u32 %v9543, %v9544
      %v9546 = vsel %vm3418, %v9541, %v9545
      %v9547 = vrot.slane %v8819, 2
      %v9548 = vrot.slane %v8822, 3
      %v9549 = vor.u32 %v9547, %v9548
      %v9550 = vsel %vm3418, %v9545, %v9549
      %v9551 = vrot.slane %v8828, 2
      %v9552 = vrot.slane %v8831, 3
      %v9553 = vor.u32 %v9551, %v9552
      %v9554 = vsel %vm3418, %v9549, %v9553
      %v9555 = vrot.slane %v8837, 2
      %v9556 = vrot.slane %v8840, 3
      %v9557 = vor.u32 %v9555, %v9556
      %v9558 = vsel %vm3418, %v9553, %v9557
      %v9559 = vrot.slane %v8846, 2
      %v9560 = vrot.slane %v8849, 3
      %v9561 = vor.u32 %v9559, %v9560
      %v9562 = vsel %vm3418, %v9557, %v9561
      %v9563 = vrot.slane %v8855, 2
      %v9564 = vrot.slane %v8858, 3
      %v9565 = vor.u32 %v9563, %v9564
      %v9566 = vsel %vm3418, %v9561, %v9565
      %v9567 = vrot.slane %v8864, 2
      %v9568 = vrot.slane %v8867, 3
      %v9569 = vor.u32 %v9567, %v9568
      %v9570 = vsel %vm3418, %v9565, %v9569
      %v9571 = vrot.slane %v8873, 2
      %v9572 = vrot.slane %v8876, 3
      %v9573 = vor.u32 %v9571, %v9572
      %v9574 = vsel %vm3418, %v9569, %v9573
      %v9575 = vrot.slane %v8882, 2
      %v9576 = vrot.slane %v8885, 3
      %v9577 = vor.u32 %v9575, %v9576
      %v9578 = vsel %vm3418, %v9573, %v9577
      %v9579 = vrot.slane %v8891, 2
      %v9580 = vrot.slane %v8894, 3
      %v9581 = vor.u32 %v9579, %v9580
      %v9582 = vsel %vm3418, %v9577, %v9581
      %v9583 = vrot.slane %v8900, 2
      %v9584 = vrot.slane %v8903, 3
      %v9585 = vor.u32 %v9583, %v9584
      %v9586 = vsel %vm3418, %v9581, %v9585
      %v9587 = vrot.slane %v8909, 2
      %v9588 = vrot.slane %v8912, 3
      %v9589 = vor.u32 %v9587, %v9588
      %v9590 = vsel %vm3418, %v9585, %v9589
      %v9592 = vshrl.u32 %v9514, 16
      %v9594 = vrot.slane %v9592, 2
      %v9595 = vshll.u32 %v9514, 16
      %v9597 = vrot.slane %v9595, 3
      %v9598 = vor.u32 %v9594, %v9597
      %v9599 = vsel %vm3418, %v9589, %v9598
      %v9601 = vsel %vm6188, %v9526, 0
      %v9604 = vsel %vm6188, %v9530, 0
      %v9607 = vsel %vm6188, %v9534, 0
      %v9610 = vsel %vm6188, %v9538, 0
      %v9613 = vsel %vm6188, %v9542, 0
      %v9616 = vsel %vm6188, %v9546, 0
      %v9619 = vsel %vm6188, %v9550, 0
      %v9622 = vsel %vm6188, %v9554, 0
      %v9625 = vsel %vm6188, %v9558, 0
      %v9628 = vsel %vm6188, %v9562, 0
      %v9631 = vsel %vm6188, %v9566, 0
      %v9634 = vsel %vm6188, %v9570, 0
      %v9637 = vsel %vm6188, %v9574, 0
      %v9640 = vsel %vm6188, %v9578, 0
      %v9643 = vsel %vm6188, %v9582, 0
      %v9646 = vsel %vm6188, %v9586, 0
      %v9649 = vsel %vm6188, %v9590, 0
      %v9652 = vsel %vm6188, %v9599, 0
      %v9655 = vsel %vm6243, %v9511, 0
      %9657 = vmatprep.subr.bf16.mxu0 0
      %9658 = vmatpush1.bf16.msra.mxu0 %v9655
      %9659 = vmatprep.subr.bf16.mxu0 0
      %9660 = vmatpush1.bf16.msra.mxu0 0
      %9661 = vmatprep.subr.bf16.mxu0 0
      %9662 = vmatpush1.bf16.msra.mxu0 0
      %9663 = vmatprep.subr.bf16.mxu0 0
      %9664 = vmatpush1.bf16.msra.mxu0 0
      %9665 = vmatprep.subr.bf16.mxu0 0
      %9666 = vmatpush1.bf16.msra.mxu0 0
      %9667 = vmatprep.subr.bf16.mxu0 0
      %9668 = vmatpush1.bf16.msra.mxu0 0
      %9669 = vmatprep.subr.bf16.mxu0 0
      %9670 = vmatpush1.bf16.msra.mxu0 0
      %9671 = vmatprep.subr.bf16.mxu0 0
      %9672 = vmatpush1.bf16.msra.mxu0 0
      %9673 = vmatprep.subr.bf16.mxu0 0
      %9674 = vmatpush1.bf16.msra.mxu0 0
      %9675 = vmatprep.subr.bf16.mxu0 0
      %9676 = vmatpush1.bf16.msra.mxu0 0
      %9677 = vmatprep.subr.bf16.mxu0 0
      %9678 = vmatpush1.bf16.msra.mxu0 0
      %9679 = vmatprep.subr.bf16.mxu0 0
      %9680 = vmatpush1.bf16.msra.mxu0 0
      %9681 = vmatprep.subr.bf16.mxu0 0
      %9682 = vmatpush1.bf16.msra.mxu0 0
      %9683 = vmatprep.subr.bf16.mxu0 0
      %9684 = vmatpush1.bf16.msra.mxu0 0
      %9685 = vmatprep.subr.bf16.mxu0 0
      %9686 = vmatpush1.bf16.msra.mxu0 0
      %9687 = vmatprep.subr.bf16.mxu0 0
      %9688 = vmatpush1.bf16.msra.mxu0 0
      %9689 = vmatprep.mubr.bf16.mxu0 0
      %9690 = vmatmul.mubr.bf16.gmra.mrb[0].mxu0 %v9601
      %v9691 = vpop.f32.mrb[0].mxu0
      %v9692 = vadd.f32 0.0, %v9691
      %v9693 = vpop.f32.mrb[0].mxu0
      %v9694 = vpop.f32.mrb[0].mxu0
      %v9695 = vadd.f32 0.0, %v9694
      %v9696 = vpop.f32.mrb[0].mxu0
      %9697 = vmatprep.mubr.bf16.mxu0 0
      %9698 = vmatmul.mubr.bf16.gmra.mrb[0].mxu0 %v9604
      %v9699 = vpop.f32.mrb[0].mxu0
      %v9700 = vadd.f32 0.0, %v9699
      %v9701 = vpop.f32.mrb[0].mxu0
      %v9702 = vpop.f32.mrb[0].mxu0
      %v9703 = vadd.f32 0.0, %v9702
      %v9704 = vpop.f32.mrb[0].mxu0
      %9705 = vmatprep.mubr.bf16.mxu0 0
      %9706 = vmatmul.mubr.bf16.gmra.mrb[0].mxu0 %v9607
      %v9707 = vpop.f32.mrb[0].mxu0
      %v9708 = vadd.f32 0.0, %v9707
      %v9709 = vpop.f32.mrb[0].mxu0
      %v9710 = vpop.f32.mrb[0].mxu0
      %v9711 = vadd.f32 0.0, %v9710
      %v9712 = vpop.f32.mrb[0].mxu0
      %9713 = vmatprep.mubr.bf16.mxu0 0
      %9714 = vmatmul.mubr.bf16.gmra.mrb[0].mxu0 %v9610
      %v9715 = vpop.f32.mrb[0].mxu0
      %v9716 = vadd.f32 0.0, %v9715
      %v9717 = vpop.f32.mrb[0].mxu0
      %v9718 = vpop.f32.mrb[0].mxu0
      %v9719 = vadd.f32 0.0, %v9718
      %v9720 = vpop.f32.mrb[0].mxu0
      %9721 = vmatprep.mubr.bf16.mxu0 0
      %9722 = vmatmul.mubr.bf16.gmra.mrb[0].mxu0 %v9613
      %v9723 = vpop.f32.mrb[0].mxu0
      %v9724 = vadd.f32 0.0, %v9723
      %v9725 = vpop.f32.mrb[0].mxu0
      %v9726 = vpop.f32.mrb[0].mxu0
      %v9727 = vadd.f32 0.0, %v9726
      %v9728 = vpop.f32.mrb[0].mxu0
      %9729 = vmatprep.mubr.bf16.mxu0 0
      %9730 = vmatmul.mubr.bf16.gmra.mrb[0].mxu0 %v9616
      %v9731 = vpop.f32.mrb[0].mxu0
      %v9732 = vadd.f32 0.0, %v9731
      %v9733 = vpop.f32.mrb[0].mxu0
      %v9734 = vpop.f32.mrb[0].mxu0
      %v9735 = vadd.f32 0.0, %v9734
      %v9736 = vpop.f32.mrb[0].mxu0
      %9737 = vmatprep.mubr.bf16.mxu0 0
      %9738 = vmatmul.mubr.bf16.gmra.mrb[0].mxu0 %v9619
      %v9739 = vpop.f32.mrb[0].mxu0
      %v9740 = vadd.f32 0.0, %v9739
      %v9741 = vpop.f32.mrb[0].mxu0
      %v9742 = vpop.f32.mrb[0].mxu0
      %v9743 = vadd.f32 0.0, %v9742
      %v9744 = vpop.f32.mrb[0].mxu0
      %9745 = vmatprep.mubr.bf16.mxu0 0
      %9746 = vmatmul.mubr.bf16.gmra.mrb[0].mxu0 %v9622
      %v9747 = vpop.f32.mrb[0].mxu0
      %v9748 = vadd.f32 0.0, %v9747
      %v9749 = vpop.f32.mrb[0].mxu0
      %v9750 = vpop.f32.mrb[0].mxu0
      %v9751 = vadd.f32 0.0, %v9750
      %v9752 = vpop.f32.mrb[0].mxu0
      %9753 = vmatprep.mubr.bf16.mxu0 0
      %9754 = vmatmul.mubr.bf16.gmra.mrb[0].mxu0 %v9625
      %v9755 = vpop.f32.mrb[0].mxu0
      %v9756 = vadd.f32 0.0, %v9755
      %v9757 = vpop.f32.mrb[0].mxu0
      %v9758 = vpop.f32.mrb[0].mxu0
      %v9759 = vadd.f32 0.0, %v9758
      %v9760 = vpop.f32.mrb[0].mxu0
      %9761 = vmatprep.mubr.bf16.mxu0 0
      %9762 = vmatmul.mubr.bf16.gmra.mrb[0].mxu0 %v9628
      %v9763 = vpop.f32.mrb[0].mxu0
      %v9764 = vadd.f32 0.0, %v9763
      %v9765 = vpop.f32.mrb[0].mxu0
      %v9766 = vpop.f32.mrb[0].mxu0
      %v9767 = vadd.f32 0.0, %v9766
      %v9768 = vpop.f32.mrb[0].mxu0
      %9769 = vmatprep.mubr.bf16.mxu0 0
      %9770 = vmatmul.mubr.bf16.gmra.mrb[0].mxu0 %v9631
      %v9771 = vpop.f32.mrb[0].mxu0
      %v9772 = vadd.f32 0.0, %v9771
      %v9773 = vpop.f32.mrb[0].mxu0
      %v9774 = vpop.f32.mrb[0].mxu0
      %v9775 = vadd.f32 0.0, %v9774
      %v9776 = vpop.f32.mrb[0].mxu0
      %9777 = vmatprep.mubr.bf16.mxu0 0
      %9778 = vmatmul.mubr.bf16.gmra.mrb[0].mxu0 %v9634
      %v9779 = vpop.f32.mrb[0].mxu0
      %v9780 = vadd.f32 0.0, %v9779
      %v9781 = vpop.f32.mrb[0].mxu0
      %v9782 = vpop.f32.mrb[0].mxu0
      %v9783 = vadd.f32 0.0, %v9782
      %v9784 = vpop.f32.mrb[0].mxu0
      %9785 = vmatprep.mubr.bf16.mxu0 0
      %9786 = vmatmul.mubr.bf16.gmra.mrb[0].mxu0 %v9637
      %v9787 = vpop.f32.mrb[0].mxu0
      %v9788 = vadd.f32 0.0, %v9787
      %v9789 = vpop.f32.mrb[0].mxu0
      %v9790 = vpop.f32.mrb[0].mxu0
      %v9791 = vadd.f32 0.0, %v9790
      %v9792 = vpop.f32.mrb[0].mxu0
      %9793 = vmatprep.mubr.bf16.mxu0 0
      %9794 = vmatmul.mubr.bf16.gmra.mrb[0].mxu0 %v9640
      %v9795 = vpop.f32.mrb[0].mxu0
      %v9796 = vadd.f32 0.0, %v9795
      %v9797 = vpop.f32.mrb[0].mxu0
      %v9798 = vpop.f32.mrb[0].mxu0
      %v9799 = vadd.f32 0.0, %v9798
      %v9800 = vpop.f32.mrb[0].mxu0
      %9801 = vmatprep.mubr.bf16.mxu0 0
      %9802 = vmatmul.mubr.bf16.gmra.mrb[0].mxu0 %v9643
      %v9803 = vpop.f32.mrb[0].mxu0
      %v9804 = vadd.f32 0.0, %v9803
      %v9805 = vpop.f32.mrb[0].mxu0
      %v9806 = vpop.f32.mrb[0].mxu0
      %v9807 = vadd.f32 0.0, %v9806
      %v9808 = vpop.f32.mrb[0].mxu0
      %9809 = vmatprep.mubr.bf16.mxu0 0
      %9810 = vmatmul.mubr.bf16.gmra.mrb[0].mxu0 %v9646
      %v9811 = vpop.f32.mrb[0].mxu0
      %v9812 = vadd.f32 0.0, %v9811
      %v9813 = vpop.f32.mrb[0].mxu0
      %v9814 = vpop.f32.mrb[0].mxu0
      %v9815 = vadd.f32 0.0, %v9814
      %v9816 = vpop.f32.mrb[0].mxu0
      %9817 = vmatprep.mubr.bf16.mxu0 0
      %9818 = vmatmul.mubr.bf16.gmra.mrb[0].mxu0 %v9649
      %v9819 = vpop.f32.mrb[0].mxu0
      %v9820 = vadd.f32 0.0, %v9819
      %v9821 = vpop.f32.mrb[0].mxu0
      %v9822 = vpop.f32.mrb[0].mxu0
      %v9823 = vadd.f32 0.0, %v9822
      %v9824 = vpop.f32.mrb[0].mxu0
      %9825 = vmatprep.mubr.bf16.mxu0 0
      %9826 = vmatmul.mubr.bf16.gmra.mrb[0].mxu0 %v9652
      %v9827 = vpop.f32.mrb[0].mxu0
      %v9828 = vadd.f32 0.0, %v9827
      %v9829 = vpop.f32.mrb[0].mxu0
      %v9830 = vpop.f32.mrb[0].mxu0
      %v9831 = vadd.f32 0.0, %v9830
      %v9832 = vpop.f32.mrb[0].mxu0
      %9833 = vdwg.mxu0
      %v9834 = vadd.f32 %v9473, %v9692
      %v9835 = vadd.f32 %v9474, %v9695
      %v9836 = vadd.f32 %v9475, %v9700
      %v9837 = vadd.f32 %v9476, %v9703
      %v9838 = vadd.f32 %v9477, %v9708
      %v9839 = vadd.f32 %v9478, %v9711
      %v9840 = vadd.f32 %v9479, %v9716
      %v9841 = vadd.f32 %v9480, %v9719
      %v9842 = vadd.f32 %v9481, %v9724
      %v9843 = vadd.f32 %v9482, %v9727
      %v9844 = vadd.f32 %v9483, %v9732
      %v9845 = vadd.f32 %v9484, %v9735
      %v9846 = vadd.f32 %v9485, %v9740
      %v9847 = vadd.f32 %v9486, %v9743
      %v9848 = vadd.f32 %v9487, %v9748
      %v9849 = vadd.f32 %v9488, %v9751
      %v9850 = vadd.f32 %v9489, %v9756
      %v9851 = vadd.f32 %v9490, %v9759
      %v9852 = vadd.f32 %v9491, %v9764
      %v9853 = vadd.f32 %v9492, %v9767
      %v9854 = vadd.f32 %v9493, %v9772
      %v9855 = vadd.f32 %v9494, %v9775
      %v9856 = vadd.f32 %v9495, %v9780
      %v9857 = vadd.f32 %v9496, %v9783
      %v9858 = vadd.f32 %v9497, %v9788
      %v9859 = vadd.f32 %v9498, %v9791
      %v9860 = vadd.f32 %v9499, %v9796
      %v9861 = vadd.f32 %v9500, %v9799
      %v9862 = vadd.f32 %v9501, %v9804
      %v9863 = vadd.f32 %v9502, %v9807
      %v9864 = vadd.f32 %v9503, %v9812
      %v9865 = vadd.f32 %v9504, %v9815
      %v9866 = vadd.f32 %v9505, %v9820
      %v9867 = vadd.f32 %v9506, %v9823
      %v9868 = vadd.f32 %v9507, %v9828
      %v9869 = vadd.f32 %v9508, %v9831
      %v9870 = vld [vmem:[%s3 + $0x2] sm:$0x1]
      %v9871 = vlaneseq
      %v9872 = vshrl.u32 %v9871, 7
      %v9873 = vsub.s32 0, %v9872
      %v9874 = vrot.slane %v9870, %v9873
      %v9875 = vmul.f32 %v9834, %v9874
      %v9876 = vmul.f32 %v9835, %v9874
      %v9877 = vmul.f32 %v9836, %v9874
      %v9878 = vmul.f32 %v9837, %v9874
      %v9879 = vmul.f32 %v9838, %v9874
      %v9880 = vmul.f32 %v9839, %v9874
      %v9881 = vmul.f32 %v9840, %v9874
      %v9882 = vmul.f32 %v9841, %v9874
      %v9883 = vmul.f32 %v9842, %v9874
      %v9884 = vmul.f32 %v9843, %v9874
      %v9885 = vmul.f32 %v9844, %v9874
      %v9886 = vmul.f32 %v9845, %v9874
      %v9887 = vmul.f32 %v9846, %v9874
      %v9888 = vmul.f32 %v9847, %v9874
      %v9889 = vmul.f32 %v9848, %v9874
      %v9890 = vmul.f32 %v9849, %v9874
      %v9891 = vmul.f32 %v9850, %v9874
      %v9892 = vmul.f32 %v9851, %v9874
      %v9893 = vmul.f32 %v9852, %v9874
      %v9894 = vmul.f32 %v9853, %v9874
      %v9895 = vmul.f32 %v9854, %v9874
      %v9896 = vmul.f32 %v9855, %v9874
      %v9897 = vmul.f32 %v9856, %v9874
      %v9898 = vmul.f32 %v9857, %v9874
      %v9899 = vmul.f32 %v9858, %v9874
      %v9900 = vmul.f32 %v9859, %v9874
      %v9901 = vmul.f32 %v9860, %v9874
      %v9902 = vmul.f32 %v9861, %v9874
      %v9903 = vmul.f32 %v9862, %v9874
      %v9904 = vmul.f32 %v9863, %v9874
      %v9905 = vmul.f32 %v9864, %v9874
      %v9906 = vmul.f32 %v9865, %v9874
      %v9907 = vmul.f32 %v9866, %v9874
      %v9908 = vmul.f32 %v9867, %v9874
      %v9909 = vmul.f32 %v9868, %v9874
      %v9910 = vmul.f32 %v9869, %v9874
      %v9911 = vld [vmem:[%s3 + $0x3] sm:$0x1]
      %v9912 = vlaneseq
      %v9913 = vshrl.u32 %v9912, 7
      %v9914 = vsub.s32 0, %v9913
      %v9915 = vrot.slane %v9911, %v9914
      %v9916 = vadd.f32 %v9875, %v9915
      %v9917 = vadd.f32 %v9876, %v9915
      %v9918 = vadd.f32 %v9877, %v9915
      %v9919 = vadd.f32 %v9878, %v9915
      %v9920 = vadd.f32 %v9879, %v9915
      %v9921 = vadd.f32 %v9880, %v9915
      %v9922 = vadd.f32 %v9881, %v9915
      %v9923 = vadd.f32 %v9882, %v9915
      %v9924 = vadd.f32 %v9883, %v9915
      %v9925 = vadd.f32 %v9884, %v9915
      %v9926 = vadd.f32 %v9885, %v9915
      %v9927 = vadd.f32 %v9886, %v9915
      %v9928 = vadd.f32 %v9887, %v9915
      %v9929 = vadd.f32 %v9888, %v9915
      %v9930 = vadd.f32 %v9889, %v9915
      %v9931 = vadd.f32 %v9890, %v9915
      %v9932 = vadd.f32 %v9891, %v9915
      %v9933 = vadd.f32 %v9892, %v9915
      %v9934 = vadd.f32 %v9893, %v9915
      %v9935 = vadd.f32 %v9894, %v9915
      %v9936 = vadd.f32 %v9895, %v9915
      %v9937 = vadd.f32 %v9896, %v9915
      %v9938 = vadd.f32 %v9897, %v9915
      %v9939 = vadd.f32 %v9898, %v9915
      %v9940 = vadd.f32 %v9899, %v9915
      %v9941 = vadd.f32 %v9900, %v9915
      %v9942 = vadd.f32 %v9901, %v9915
      %v9943 = vadd.f32 %v9902, %v9915
      %v9944 = vadd.f32 %v9903, %v9915
      %v9945 = vadd.f32 %v9904, %v9915
      %v9946 = vadd.f32 %v9905, %v9915
      %v9947 = vadd.f32 %v9906, %v9915
      %v9948 = vadd.f32 %v9907, %v9915
      %v9949 = vadd.f32 %v9908, %v9915
      %v9950 = vadd.f32 %v9909, %v9915
      %v9951 = vadd.f32 %v9910, %v9915
      %vm9952 = vcmp.gt.f32.partialorder %v9916, 0.0
      %vm9953 = vcmp.gt.f32.partialorder %v9917, 0.0
      %vm9954 = vcmp.gt.f32.partialorder %v9918, 0.0
      %vm9955 = vcmp.gt.f32.partialorder %v9919, 0.0
      %vm9956 = vcmp.gt.f32.partialorder %v9920, 0.0
      %vm9957 = vcmp.gt.f32.partialorder %v9921, 0.0
      %vm9958 = vcmp.gt.f32.partialorder %v9922, 0.0
      %vm9959 = vcmp.gt.f32.partialorder %v9923, 0.0
      %vm9960 = vcmp.gt.f32.partialorder %v9924, 0.0
      %vm9961 = vcmp.gt.f32.partialorder %v9925, 0.0
      %vm9962 = vcmp.gt.f32.partialorder %v9926, 0.0
      %vm9963 = vcmp.gt.f32.partialorder %v9927, 0.0
      %vm9964 = vcmp.gt.f32.partialorder %v9928, 0.0
      %vm9965 = vcmp.gt.f32.partialorder %v9929, 0.0
      %vm9966 = vcmp.gt.f32.partialorder %v9930, 0.0
      %vm9967 = vcmp.gt.f32.partialorder %v9931, 0.0
      %vm9968 = vcmp.gt.f32.partialorder %v9932, 0.0
      %vm9969 = vcmp.gt.f32.partialorder %v9933, 0.0
      %vm9970 = vcmp.gt.f32.partialorder %v9934, 0.0
      %vm9971 = vcmp.gt.f32.partialorder %v9935, 0.0
      %vm9972 = vcmp.gt.f32.partialorder %v9936, 0.0
      %vm9973 = vcmp.gt.f32.partialorder %v9937, 0.0
      %vm9974 = vcmp.gt.f32.partialorder %v9938, 0.0
      %vm9975 = vcmp.gt.f32.partialorder %v9939, 0.0
      %vm9976 = vcmp.gt.f32.partialorder %v9940, 0.0
      %vm9977 = vcmp.gt.f32.partialorder %v9941, 0.0
      %vm9978 = vcmp.gt.f32.partialorder %v9942, 0.0
      %vm9979 = vcmp.gt.f32.partialorder %v9943, 0.0
      %vm9980 = vcmp.gt.f32.partialorder %v9944, 0.0
      %vm9981 = vcmp.gt.f32.partialorder %v9945, 0.0
      %vm9982 = vcmp.gt.f32.partialorder %v9946, 0.0
      %vm9983 = vcmp.gt.f32.partialorder %v9947, 0.0
      %vm9984 = vcmp.gt.f32.partialorder %v9948, 0.0
      %vm9985 = vcmp.gt.f32.partialorder %v9949, 0.0
      %vm9986 = vcmp.gt.f32.partialorder %v9950, 0.0
      %vm9987 = vcmp.gt.f32.partialorder %v9951, 0.0
      %v9988 = vmul.f32 %v9916, 0.01
      %v9989 = vmul.f32 %v9917, 0.01
      %v9990 = vmul.f32 %v9918, 0.01
      %v9991 = vmul.f32 %v9919, 0.01
      %v9992 = vmul.f32 %v9920, 0.01
      %v9993 = vmul.f32 %v9921, 0.01
      %v9994 = vmul.f32 %v9922, 0.01
      %v9995 = vmul.f32 %v9923, 0.01
      %v9996 = vmul.f32 %v9924, 0.01
      %v9997 = vmul.f32 %v9925, 0.01
      %v9998 = vmul.f32 %v9926, 0.01
      %v9999 = vmul.f32 %v9927, 0.01
      %v10000 = vmul.f32 %v9928, 0.01
      %v10001 = vmul.f32 %v9929, 0.01
      %v10002 = vmul.f32 %v9930, 0.01
      %v10003 = vmul.f32 %v9931, 0.01
      %v10004 = vmul.f32 %v9932, 0.01
      %v10005 = vmul.f32 %v9933, 0.01
      %v10006 = vmul.f32 %v9934, 0.01
      %v10007 = vmul.f32 %v9935, 0.01
      %v10008 = vmul.f32 %v9936, 0.01
      %v10009 = vmul.f32 %v9937, 0.01
      %v10010 = vmul.f32 %v9938, 0.01
      %v10011 = vmul.f32 %v9939, 0.01
      %v10012 = vmul.f32 %v9940, 0.01
      %v10013 = vmul.f32 %v9941, 0.01
      %v10014 = vmul.f32 %v9942, 0.01
      %v10015 = vmul.f32 %v9943, 0.01
      %v10016 = vmul.f32 %v9944, 0.01
      %v10017 = vmul.f32 %v9945, 0.01
      %v10018 = vmul.f32 %v9946, 0.01
      %v10019 = vmul.f32 %v9947, 0.01
      %v10020 = vmul.f32 %v9948, 0.01
      %v10021 = vmul.f32 %v9949, 0.01
      %v10022 = vmul.f32 %v9950, 0.01
      %v10023 = vmul.f32 %v9951, 0.01
      %v10024 = vsel %vm9952, %v9916, %v9988
      %v10025 = vsel %vm9953, %v9917, %v9989
      %v10026 = vsel %vm9954, %v9918, %v9990
      %v10027 = vsel %vm9955, %v9919, %v9991
      %v10028 = vsel %vm9956, %v9920, %v9992
      %v10029 = vsel %vm9957, %v9921, %v9993
      %v10030 = vsel %vm9958, %v9922, %v9994
      %v10031 = vsel %vm9959, %v9923, %v9995
      %v10032 = vsel %vm9960, %v9924, %v9996
      %v10033 = vsel %vm9961, %v9925, %v9997
      %v10034 = vsel %vm9962, %v9926, %v9998
      %v10035 = vsel %vm9963, %v9927, %v9999
      %v10036 = vsel %vm9964, %v9928, %v10000
      %v10037 = vsel %vm9965, %v9929, %v10001
      %v10038 = vsel %vm9966, %v9930, %v10002
      %v10039 = vsel %vm9967, %v9931, %v10003
      %v10040 = vsel %vm9968, %v9932, %v10004
      %v10041 = vsel %vm9969, %v9933, %v10005
      %v10042 = vsel %vm9970, %v9934, %v10006
      %v10043 = vsel %vm9971, %v9935, %v10007
      %v10044 = vsel %vm9972, %v9936, %v10008
      %v10045 = vsel %vm9973, %v9937, %v10009
      %v10046 = vsel %vm9974, %v9938, %v10010
      %v10047 = vsel %vm9975, %v9939, %v10011
      %v10048 = vsel %vm9976, %v9940, %v10012
      %v10049 = vsel %vm9977, %v9941, %v10013
      %v10050 = vsel %vm9978, %v9942, %v10014
      %v10051 = vsel %vm9979, %v9943, %v10015
      %v10052 = vsel %vm9980, %v9944, %v10016
      %v10053 = vsel %vm9981, %v9945, %v10017
      %v10054 = vsel %vm9982, %v9946, %v10018
      %v10055 = vsel %vm9983, %v9947, %v10019
      %v10056 = vsel %vm9984, %v9948, %v10020
      %v10057 = vsel %vm9985, %v9949, %v10021
      %v10058 = vsel %vm9986, %v9950, %v10022
      %v10059 = vsel %vm9987, %v9951, %v10023
      %v10060 = vpack.c.bf16 %v10025, %v10024
      %v10061 = vpack.c.bf16 %v10027, %v10026
      %v10062 = vpack.c.bf16 %v10029, %v10028
      %v10063 = vpack.c.bf16 %v10031, %v10030
      %v10064 = vpack.c.bf16 %v10033, %v10032
      %v10065 = vpack.c.bf16 %v10035, %v10034
      %v10066 = vpack.c.bf16 %v10037, %v10036
      %v10067 = vpack.c.bf16 %v10039, %v10038
      %v10068 = vpack.c.bf16 %v10041, %v10040
      %v10069 = vpack.c.bf16 %v10043, %v10042
      %v10070 = vpack.c.bf16 %v10045, %v10044
      %v10071 = vpack.c.bf16 %v10047, %v10046
      %v10072 = vpack.c.bf16 %v10049, %v10048
      %v10073 = vpack.c.bf16 %v10051, %v10050
      %v10074 = vpack.c.bf16 %v10053, %v10052
      %v10075 = vpack.c.bf16 %v10055, %v10054
      %v10076 = vpack.c.bf16 %v10057, %v10056
      %v10077 = vpack.c.bf16 %v10059, %v10058
      %v10096 = vunpack.c.l.b16 %v10060
      %v10097 = vunpack.c.h.b16 %v10060
      %v10098 = vunpack.c.l.b16 %v10061
      %v10099 = vunpack.c.h.b16 %v10061
      %v10100 = vunpack.c.l.b16 %v10062
      %v10101 = vunpack.c.h.b16 %v10062
      %v10102 = vunpack.c.l.b16 %v10063
      %v10103 = vunpack.c.h.b16 %v10063
      %v10104 = vunpack.c.l.b16 %v10064
      %v10105 = vunpack.c.h.b16 %v10064
      %v10106 = vunpack.c.l.b16 %v10065
      %v10107 = vunpack.c.h.b16 %v10065
      %v10108 = vunpack.c.l.b16 %v10066
      %v10109 = vunpack.c.h.b16 %v10066
      %v10110 = vunpack.c.l.b16 %v10067
      %v10111 = vunpack.c.h.b16 %v10067
      %v10112 = vunpack.c.l.b16 %v10068
      %v10113 = vunpack.c.h.b16 %v10068
      %v10114 = vunpack.c.l.b16 %v10069
      %v10115 = vunpack.c.h.b16 %v10069
      %v10116 = vunpack.c.l.b16 %v10070
      %v10117 = vunpack.c.h.b16 %v10070
      %v10118 = vunpack.c.l.b16 %v10071
      %v10119 = vunpack.c.h.b16 %v10071
      %v10120 = vunpack.c.l.b16 %v10072
      %v10121 = vunpack.c.h.b16 %v10072
      %v10122 = vunpack.c.l.b16 %v10073
      %v10123 = vunpack.c.h.b16 %v10073
      %v10124 = vunpack.c.l.b16 %v10074
      %v10125 = vunpack.c.h.b16 %v10074
      %v10126 = vunpack.c.l.b16 %v10075
      %v10127 = vunpack.c.h.b16 %v10075
      %v10128 = vunpack.c.l.b16 %v10076
      %v10129 = vunpack.c.h.b16 %v10076
      %v10130 = vunpack.c.l.b16 %v10077
      %v10131 = vunpack.c.h.b16 %v10077
      %v10132 = vpack.c.b16 %v10096, %v10096
      %v10133 = vpack.c.b16 %v10097, %v10097
      %v10134 = vpack.c.b16 %v10098, %v10098
      %v10135 = vpack.c.b16 %v10099, %v10099
      %v10136 = vpack.c.b16 %v10100, %v10100
      %v10137 = vpack.c.b16 %v10101, %v10101
      %v10138 = vpack.c.b16 %v10102, %v10102
      %v10139 = vpack.c.b16 %v10103, %v10103
      %v10140 = vpack.c.b16 %v10104, %v10104
      %v10141 = vpack.c.b16 %v10105, %v10105
      %v10142 = vpack.c.b16 %v10106, %v10106
      %v10143 = vpack.c.b16 %v10107, %v10107
      %v10144 = vpack.c.b16 %v10108, %v10108
      %v10145 = vpack.c.b16 %v10109, %v10109
      %v10146 = vpack.c.b16 %v10110, %v10110
      %v10147 = vpack.c.b16 %v10111, %v10111
      %v10148 = vpack.c.b16 %v10112, %v10112
      %v10149 = vpack.c.b16 %v10113, %v10113
      %v10150 = vpack.c.b16 %v10114, %v10114
      %v10151 = vpack.c.b16 %v10115, %v10115
      %v10152 = vpack.c.b16 %v10116, %v10116
      %v10153 = vpack.c.b16 %v10117, %v10117
      %v10154 = vpack.c.b16 %v10118, %v10118
      %v10155 = vpack.c.b16 %v10119, %v10119
      %v10156 = vpack.c.b16 %v10120, %v10120
      %v10157 = vpack.c.b16 %v10121, %v10121
      %v10158 = vpack.c.b16 %v10122, %v10122
      %v10159 = vpack.c.b16 %v10123, %v10123
      %v10160 = vpack.c.b16 %v10124, %v10124
      %v10161 = vpack.c.b16 %v10125, %v10125
      %v10162 = vpack.c.b16 %v10126, %v10126
      %v10163 = vpack.c.b16 %v10127, %v10127
      %v10164 = vpack.c.b16 %v10128, %v10128
      %v10165 = vpack.c.b16 %v10129, %v10129
      %v10166 = vpack.c.b16 %v10130, %v10130
      %v10167 = vpack.c.b16 %v10131, %v10131
      %10204 = vst.msk [vmem:[%s233] sm:$0xf] %vm5797, %v10132
      %10205 = vst.msk [vmem:[%s233 + $0x4] sm:$0xf] %vm5797, %v10133
      %10206 = vst.msk [vmem:[%s233 + $0x8] sm:$0xf] %vm5797, %v10134
      %10207 = vst.msk [vmem:[%s233 + $0xc] sm:$0xf] %vm5797, %v10135
      %10208 = vst.msk [vmem:[%s233 + $0x10] sm:$0xf] %vm5797, %v10136
      %10209 = vst.msk [vmem:[%s233 + $0x14] sm:$0xf] %vm5797, %v10137
      %10210 = vst.msk [vmem:[%s233 + $0x18] sm:$0xf] %vm5797, %v10138
      %10211 = vst.msk [vmem:[%s233 + $0x1c] sm:$0xf] %vm5797, %v10139
      %10212 = vst.msk [vmem:[%s233 + $0x20] sm:$0xf] %vm5797, %v10140
      %10213 = vst.msk [vmem:[%s233 + $0x24] sm:$0xf] %vm5797, %v10141
      %10214 = vst.msk [vmem:[%s233 + $0x28] sm:$0xf] %vm5797, %v10142
      %10215 = vst.msk [vmem:[%s233 + $0x2c] sm:$0xf] %vm5797, %v10143
      %10216 = vst.msk [vmem:[%s233 + $0x30] sm:$0xf] %vm5797, %v10144
      %10217 = vst.msk [vmem:[%s233 + $0x34] sm:$0xf] %vm5797, %v10145
      %10218 = vst.msk [vmem:[%s233 + $0x38] sm:$0xf] %vm5797, %v10146
      %10219 = vst.msk [vmem:[%s233 + $0x3c] sm:$0xf] %vm5797, %v10147
      %10220 = vst.msk [vmem:[%s233 + $0x40] sm:$0xf] %vm5797, %v10148
      %10221 = vst.msk [vmem:[%s233 + $0x44] sm:$0xf] %vm5797, %v10149
      %10222 = vst.msk [vmem:[%s233 + $0x48] sm:$0xf] %vm5797, %v10150
      %10223 = vst.msk [vmem:[%s233 + $0x4c] sm:$0xf] %vm5797, %v10151
      %10224 = vst.msk [vmem:[%s233 + $0x50] sm:$0xf] %vm5797, %v10152
      %10225 = vst.msk [vmem:[%s233 + $0x54] sm:$0xf] %vm5797, %v10153
      %10226 = vst.msk [vmem:[%s233 + $0x58] sm:$0xf] %vm5797, %v10154
      %10227 = vst.msk [vmem:[%s233 + $0x5c] sm:$0xf] %vm5797, %v10155
      %10228 = vst.msk [vmem:[%s233 + $0x60] sm:$0xf] %vm5797, %v10156
      %10229 = vst.msk [vmem:[%s233 + $0x64] sm:$0xf] %vm5797, %v10157
      %10230 = vst.msk [vmem:[%s233 + $0x68] sm:$0xf] %vm5797, %v10158
      %10231 = vst.msk [vmem:[%s233 + $0x6c] sm:$0xf] %vm5797, %v10159
      %10232 = vst.msk [vmem:[%s233 + $0x70] sm:$0xf] %vm5797, %v10160
      %10233 = vst.msk [vmem:[%s233 + $0x74] sm:$0xf] %vm5797, %v10161
      %10234 = vst.msk [vmem:[%s233 + $0x78] sm:$0xf] %vm5797, %v10162
      %10235 = vst.msk [vmem:[%s233 + $0x7c] sm:$0xf] %vm5797, %v10163
      %10236 = vst.msk [vmem:[%s233 + $0x80] sm:$0xf] %vm5797, %v10164
      %10237 = vst.msk [vmem:[%s233 + $0x84] sm:$0xf] %vm5797, %v10165
      %10238 = vst.msk [vmem:[%s233 + $0x88] sm:$0xf] %vm5797, %v10166
      %10239 = vst.msk [vmem:[%s233 + $0x8c] sm:$0xf] %vm5797, %v10167
      %s10240 = smul.u32 36, %s20
      %p10241 = scmp.lt.s32.totalorder %s19, 1
      %s10242 = scalar_select %p10241, %s19, 1
      %p10243 = scmp.lt.s32.totalorder %s10240, 35
      %s10244 = scalar_select %p10243, %s10240, 35
      %s10245 = smul.addr %s10242, 36
      %s10246 = sadd.s32 %s10244, %s10245
      %s10247 = smul.addr %s10246, 4
      %s10248 = scalar_lea.vmem %s4, %s10247
      // Predicated region
      $region41: #{conv_block_forward.1} parent=35 // pred_check
        %p10249 = pneg %p138
      $region42: #{conv_block_forward.1} parent=35 // pred_check_branch
        %10251 = sbr.rel (%p10249) target = $region44
      $region43: #{conv_block_forward.1} parent=35 // pred_region
        %s10252 = smul.u32 36, %s20
      $region44: #{conv_block_forward.1} parent=35 // pred_fallthru
        _
    $region36: #{conv_block_forward.1} parent=5 // pred_fallthru
      _
    %p10253 = scmp.le.s32.totalorder 2, %s10
    // Predicated region
    $region45: #{conv_block_forward.1} parent=5 // pred_check
      %p10254 = pneg %p10253
    $region46: #{conv_block_forward.1} parent=5 // pred_check_branch
      %10256 = sbr.rel (%p10254) target = $region48
    $region47: #{conv_block_forward.1} parent=5 // pred_region
      %s10257 = ssub.s32 %s10, 2
      // Predicated region
      $region49: #{conv_block_forward.1} parent=47 // pred_check
        %p10258 = pneg %p144
      $region50: #{conv_block_forward.1} parent=47 // pred_check_branch
        %10260 = sbr.rel (%p10258) target = $region52
      $region51: #{conv_block_forward.1} parent=47 // pred_region
        %s10261 = smul.u32 36, %s22
        %p10262 = scmp.lt.s32.totalorder %s21, 1
        %s10263 = scalar_select %p10262, %s21, 1
        %p10264 = scmp.lt.s32.totalorder %s10261, 35
        %s10265 = scalar_select %p10264, %s10261, 35
        %s10266 = smul.addr %s10263, 36
        %s10267 = sadd.s32 %s10265, %s10266
        %s10268 = smul.addr %s10267, 4
        %s10269 = scalar_lea.vmem %s4, %s10268
      $region52: #{conv_block_forward.1} parent=47 // pred_fallthru
        _
    $region48: #{conv_block_forward.1} parent=5 // pred_fallthru
      _
  $region6: #{conv_block_forward.1} parent=0 // loop_footer
    %s14 = sadd.s32 1, %s10
  $region7: #{conv_block_forward.1} parent=0 // loop_footer_branch
    %9 = sbr.rel target = $region3
  $region8: #{conv_block_forward.1} parent=0 // loop_exit
    _

</llo_original>
